<compile_context>
chip_gen: v6e
topology: v6e:2x2x1
jax: 0.10.0
libtpu: 0.0.40
codegen_flags: <defaults>
</compile_context>

<pallas_src>
import functools

import jax
import jax.numpy as jnp
from jax.experimental import pallas as pl
from jax.experimental.pallas import tpu as pltpu

_EPS_NORM = 1e-8   # gvp _norm_no_nan eps
_EPS_LN = 1e-5     # torch.nn.LayerNorm eps
_F32 = jnp.float32

_ROW_TILE_MAX = 256   # rows per block


# ---------------------------------------------------------------------------
# In-kernel math helpers (traced into the Pallas kernels)
# ---------------------------------------------------------------------------

def _layer_norm_s(s, g, b):
    mu = jnp.mean(s, axis=-1, keepdims=True)
    var = jnp.mean((s - mu) * (s - mu), axis=-1, keepdims=True)
    return (s - mu) * jax.lax.rsqrt(var + _EPS_LN) * g + b


def _layer_norm_v(v):
    sq = jnp.maximum(v[0] * v[0] + v[1] * v[1] + v[2] * v[2], _EPS_NORM)
    inv = jax.lax.rsqrt(jnp.mean(sq, axis=-1, keepdims=True))
    return [vk * inv for vk in v]


def _sigmoid(x):
    return 1.0 / (1.0 + jnp.exp(-x))


def _gvp_tail(s_lin, vh, wsv, wb, wv, *, relu, sig):
    """Finish a GVP given s @ Wss (s_lin) and v @ Wh per xyz (vh)."""
    vn = jnp.sqrt(jnp.maximum(vh[0] * vh[0] + vh[1] * vh[1] + vh[2] * vh[2],
                              _EPS_NORM))
    s_out = s_lin + jnp.dot(vn, wsv, preferred_element_type=_F32) + wb
    v_out = [jnp.dot(vh[k], wv, preferred_element_type=_F32) for k in range(3)]
    if sig:   # vector_act = sigmoid of per-channel vector norm (vector_gate=False)
        gate = _sigmoid(jnp.sqrt(jnp.maximum(
            v_out[0] * v_out[0] + v_out[1] * v_out[1] + v_out[2] * v_out[2],
            _EPS_NORM)))
        v_out = [vk * gate for vk in v_out]
    if relu:  # scalar_act = ReLU
        s_out = jnp.maximum(s_out, 0.0)
    return s_out, v_out


def _gvp(s, v, wh, wss, wsv, wb, wv, *, relu, sig):
    vh = [jnp.dot(v[k], wh, preferred_element_type=_F32) for k in range(3)]
    s_lin = jnp.dot(s, wss, preferred_element_type=_F32)
    return _gvp_tail(s_lin, vh, wsv, wb, wv, relu=relu, sig=sig)


# ---------------------------------------------------------------------------
# Pallas kernels (each one is a fused module group)
# ---------------------------------------------------------------------------

def _ln_gvp_kernel(relu, sig, s_ref, v_ref, g_ref, b_ref,
                   wh_ref, wss_ref, wsv_ref, wb_ref, wv_ref,
                   so_ref, vo_ref):
    """Fused tuple-LayerNorm -> GVP (vector output).  W_v / W_e."""
    s = _layer_norm_s(s_ref[...], g_ref[...], b_ref[...])
    v = _layer_norm_v([v_ref[0], v_ref[1], v_ref[2]])
    s_out, v_out = _gvp(s, v, wh_ref[...], wss_ref[...], wsv_ref[...],
                        wb_ref[...], wv_ref[...], relu=relu, sig=sig)
    so_ref[...] = s_out
    for k in range(3):
        vo_ref[k] = v_out[k]


def _ln_gvp_scalar_kernel(s_ref, v_ref, g_ref, b_ref,
                          wh_ref, wss_ref, wsv_ref, wb_ref, so_ref):
    """Fused tuple-LayerNorm -> GVP with vo == 0 (W_out head, ReLU scalar act)."""
    s = _layer_norm_s(s_ref[...], g_ref[...], b_ref[...])
    v = _layer_norm_v([v_ref[0], v_ref[1], v_ref[2]])
    wh = wh_ref[...]
    vh = [jnp.dot(v[k], wh, preferred_element_type=_F32) for k in range(3)]
    vn = jnp.sqrt(jnp.maximum(vh[0] * vh[0] + vh[1] * vh[1] + vh[2] * vh[2],
                              _EPS_NORM))
    s_out = (jnp.dot(s, wss_ref[...], preferred_element_type=_F32)
             + jnp.dot(vn, wsv_ref[...], preferred_element_type=_F32)
             + wb_ref[...])
    so_ref[...] = jnp.maximum(s_out, 0.0)


def _gvp_conv_layer_kernel(
        es_ref, ev_ref, srcc_ref, dstc_ref, dstr_ref, s_ref, v_ref,
        whj_ref, whe_ref, whi_ref, wsj_ref, wse_ref, wsi_ref,
        wsv0_ref, b0_ref, wv0_ref,
        wh1_ref, wss1_ref, wsv1_ref, b1_ref, wv1_ref,
        wh2_ref, wss2_ref, wsv2_ref, b2_ref, wv2_ref,
        n0g_ref, n0b_ref,
        f0wh_ref, f0wss_ref, f0wsv_ref, f0b_ref, f0wv_ref,
        f1wh_ref, f1wss_ref, f1wsv_ref, f1b_ref, f1wv_ref,
        n1g_ref, n1b_ref,
        so_ref, vo_ref,
        dhs_ref, dhv_ref, deg_ref):
    """One full GVPConvLayer.

    Grid: edge tiles ('arbitrary').  Node slabs (inputs, outputs, scratch
    accumulators) are VMEM-resident across the whole grid.  Per tile:
    in-kernel one-hot gather -> 3 message GVPs -> scatter-sum + degree
    accumulation.  On the last tile: scatter-mean scaling, residual, LN,
    2 FF GVPs, residual, LN, write outputs."""
    step = pl.program_id(0)

    @pl.when(step == 0)
    def _init():
        dhs_ref[...] = jnp.zeros_like(dhs_ref)
        dhv_ref[...] = jnp.zeros_like(dhv_ref)
        deg_ref[...] = jnp.zeros_like(deg_ref)

    n_pad = s_ref.shape[0]
    t_e = es_ref.shape[0]

    s_nodes = s_ref[...]
    v_nodes = [v_ref[0], v_ref[1], v_ref[2]]

    # ---- in-kernel gathers: one-hot [TE, N_pad] matmuls on the MXU ----
    lane_nodes = jax.lax.broadcasted_iota(jnp.int32, (t_e, n_pad), 1)
    g_src = (lane_nodes == srcc_ref[...]).astype(_F32)     # padded edge = -1 -> 0 row
    g_dst = (lane_nodes == dstc_ref[...]).astype(_F32)
    s_j = jnp.dot(g_src, s_nodes, preferred_element_type=_F32)
    s_i = jnp.dot(g_dst, s_nodes, preferred_element_type=_F32)
    v_j = [jnp.dot(g_src, v_nodes[k], preferred_element_type=_F32)
           for k in range(3)]
    v_i = [jnp.dot(g_dst, v_nodes[k], preferred_element_type=_F32)
           for k in range(3)]

    # ---- message GVP #0 on cat([x_j, edge, x_i]), concat-free split weights ----
    whj, whe, whi = whj_ref[...], whe_ref[...], whi_ref[...]
    vh = [jnp.dot(v_j[k], whj, preferred_element_type=_F32)
          + jnp.dot(ev_ref[k], whe, preferred_element_type=_F32)
          + jnp.dot(v_i[k], whi, preferred_element_type=_F32)
          for k in range(3)]
    s_lin = (jnp.dot(s_j, wsj_ref[...], preferred_element_type=_F32)
             + jnp.dot(es_ref[...], wse_ref[...], preferred_element_type=_F32)
             + jnp.dot(s_i, wsi_ref[...], preferred_element_type=_F32))
    ms, mv = _gvp_tail(s_lin, vh, wsv0_ref[...], b0_ref[...], wv0_ref[...],
                       relu=True, sig=True)

    # ---- message GVP #1 (default acts) and #2 (no acts) ----
    ms, mv = _gvp(ms, mv, wh1_ref[...], wss1_ref[...], wsv1_ref[...],
                  b1_ref[...], wv1_ref[...], relu=True, sig=True)
    ms, mv = _gvp(ms, mv, wh2_ref[...], wss2_ref[...], wsv2_ref[...],
                  b2_ref[...], wv2_ref[...], relu=False, sig=False)

    # ---- scatter-sum onto destination nodes + degree accumulation ----
    sub_nodes = jax.lax.broadcasted_iota(jnp.int32, (n_pad, t_e), 0)
    scat = (sub_nodes == dstr_ref[...]).astype(_F32)        # [N_pad, TE]
    dhs_ref[...] = dhs_ref[...] + jnp.dot(scat, ms, preferred_element_type=_F32)
    for k in range(3):
        dhv_ref[k] = dhv_ref[k] + jnp.dot(scat, mv[k],
                                          preferred_element_type=_F32)
    deg_ref[...] = deg_ref[...] + jnp.sum(scat, axis=-1, keepdims=True)

    # ---- node update on the last edge tile (never leaves VMEM until here) ----
    @pl.when(step == pl.num_programs(0) - 1)
    def _finalize():
        inv_deg = 1.0 / jnp.maximum(deg_ref[...], 1.0)      # scatter-mean scale
        xs = s_nodes + dhs_ref[...] * inv_deg
        xv = [v_nodes[k] + dhv_ref[k] * inv_deg for k in range(3)]
        xs = _layer_norm_s(xs, n0g_ref[...], n0b_ref[...])
        xv = _layer_norm_v(xv)

        fs, fv = _gvp(xs, xv, f0wh_ref[...], f0wss_ref[...], f0wsv_ref[...],
                      f0b_ref[...], f0wv_ref[...], relu=True, sig=True)
        fs, fv = _gvp(fs, fv, f1wh_ref[...], f1wss_ref[...], f1wsv_ref[...],
                      f1b_ref[...], f1wv_ref[...], relu=False, sig=False)

        ys = _layer_norm_s(xs + fs, n1g_ref[...], n1b_ref[...])
        yv = _layer_norm_v([xv[k] + fv[k] for k in range(3)])

        so_ref[...] = ys
        for k in range(3):
            vo_ref[k] = yv[k]


# ---------------------------------------------------------------------------
# BlockSpec helpers and pallas_call wrappers
# ---------------------------------------------------------------------------

def _row_spec(n_cols, tile):               # [R, C] tiled over rows
    return pl.BlockSpec((tile, n_cols), lambda r: (r, 0))


def _vec_spec(n_cols, tile):               # [3, R, C] tiled over rows (axis 1)
    return pl.BlockSpec((3, tile, n_cols), lambda r: (0, r, 0))


def _bcast_spec(arr):                      # weights: full block every step
    zeros = (0,) * arr.ndim
    return pl.BlockSpec(tuple(arr.shape), lambda r, _z=zeros: _z)


def ln_gvp_apply(s, v, ln, gp, *, relu, sig, tile):
    rows = s.shape[0]
    so = gp["ws_b"].shape[1]
    vo = gp["wv_t"].shape[1]
    weights = [ln["g"], ln["b"], gp["wh_t"], gp["ws_s_t"], gp["ws_v_t"],
               gp["ws_b"], gp["wv_t"]]
    return pl.pallas_call(
        functools.partial(_ln_gvp_kernel, relu, sig),
        grid=(rows // tile,),
        in_specs=[_row_spec(s.shape[1], tile), _vec_spec(v.shape[2], tile)]
                 + [_bcast_spec(w) for w in weights],
        out_specs=(_row_spec(so, tile), _vec_spec(vo, tile)),
        out_shape=(jax.ShapeDtypeStruct((rows, so), _F32),
                   jax.ShapeDtypeStruct((3, rows, vo), _F32)),
        compiler_params=pltpu.CompilerParams(
            dimension_semantics=("parallel",)),
    )(s, v, *weights)


def ln_gvp_scalar_apply(s, v, ln, gp, *, tile):
    rows, si = s.shape
    so = gp["ws_b"].shape[1]
    weights = [ln["g"], ln["b"], gp["wh_t"], gp["ws_s_t"], gp["ws_v_t"],
               gp["ws_b"]]
    return pl.pallas_call(
        _ln_gvp_scalar_kernel,
        grid=(rows // tile,),
        in_specs=[_row_spec(si, tile), _vec_spec(v.shape[2], tile)]
                 + [_bcast_spec(w) for w in weights],
        out_specs=_row_spec(so, tile),
        out_shape=jax.ShapeDtypeStruct((rows, so), _F32),
        compiler_params=pltpu.CompilerParams(
            dimension_semantics=("parallel",)),
    )(s, v, *weights)


def gvp_conv_layer_apply(s, v, es, ev, src_col, dst_col, dst_row, layer_p,
                         *, n_pad, ns, nv, tile):
    e_pad, es_dim = es.shape
    ev_dim = ev.shape[2]
    m0, m1, m2 = layer_p["msg0"], layer_p["msg1"], layer_p["msg2"]
    f0, f1 = layer_p["ff0"], layer_p["ff1"]
    wh0, ws0 = m0["wh_t"], m0["ws_s_t"]
    # split msg0 weights so the [x_j | edge | x_i] concat never materializes
    weights = [
        wh0[:nv], wh0[nv:nv + ev_dim], wh0[nv + ev_dim:],
        ws0[:ns], ws0[ns:ns + es_dim], ws0[ns + es_dim:],
        m0["ws_v_t"], m0["ws_b"], m0["wv_t"],
        m1["wh_t"], m1["ws_s_t"], m1["ws_v_t"], m1["ws_b"], m1["wv_t"],
        m2["wh_t"], m2["ws_s_t"], m2["ws_v_t"], m2["ws_b"], m2["wv_t"],
        layer_p["norm0"]["g"], layer_p["norm0"]["b"],
        f0["wh_t"], f0["ws_s_t"], f0["ws_v_t"], f0["ws_b"], f0["wv_t"],
        f1["wh_t"], f1["ws_s_t"], f1["ws_v_t"], f1["ws_b"], f1["wv_t"],
        layer_p["norm1"]["g"], layer_p["norm1"]["b"],
    ]
    node_s_spec = pl.BlockSpec((n_pad, ns), lambda e: (0, 0))
    node_v_spec = pl.BlockSpec((3, n_pad, nv), lambda e: (0, 0, 0))
    in_specs = ([_row_spec(es_dim, tile), _vec_spec(ev_dim, tile),
                 pl.BlockSpec((tile, 1), lambda e: (e, 0)),    # src (column)
                 pl.BlockSpec((tile, 1), lambda e: (e, 0)),    # dst (column)
                 pl.BlockSpec((1, tile), lambda e: (0, e)),    # dst (row)
                 node_s_spec, node_v_spec]
                + [_bcast_spec(w) for w in weights])
    return pl.pallas_call(
        _gvp_conv_layer_kernel,
        grid=(e_pad // tile,),
        in_specs=in_specs,
        out_specs=(node_s_spec, node_v_spec),
        out_shape=(jax.ShapeDtypeStruct((n_pad, ns), _F32),
                   jax.ShapeDtypeStruct((3, n_pad, nv), _F32)),
        scratch_shapes=[pltpu.VMEM((n_pad, ns), _F32),
                        pltpu.VMEM((3, n_pad, nv), _F32),
                        pltpu.VMEM((n_pad, 1), _F32)],
        compiler_params=pltpu.CompilerParams(
            dimension_semantics=("arbitrary",)),
    )(es, ev, src_col, dst_col, dst_row, s, v, *weights)


# ---------------------------------------------------------------------------
# Parameter initialization (deterministic, synthetic weights)
# ---------------------------------------------------------------------------

def _linear_init(key, fin, fout, bias=True):
    kw, kb = jax.random.split(key)
    w = jax.random.normal(kw, (fout, fin), _F32) / jnp.sqrt(float(fin))
    b = jax.random.normal(kb, (fout,), _F32) * 0.1 if bias else None
    return w, b


def init_gvp(key, si, vi, so, vo):
    """GVP params. wh: (vi->h, no bias), ws: (h+si -> so), wv: (h->vo, no bias)."""
    h = max(vi, vo)
    ks = jax.random.split(key, 3)
    wh, _ = _linear_init(ks[0], vi, h, bias=False)
    ws, wsb = _linear_init(ks[1], h + si, so)
    p = {
        "wh_t": wh.T,                 # [vi, h]
        "ws_s_t": ws[:, :si].T,       # [si, so]  (cat order is [s, vn])
        "ws_v_t": ws[:, si:].T,       # [h,  so]
        "ws_b": wsb.reshape(1, so),   # [1,  so]
    }
    if vo:
        wv, _ = _linear_init(ks[2], h, vo, bias=False)
        p["wv_t"] = wv.T              # [h, vo]
    return p


def init_ln(si):
    return {"g": jnp.ones((1, si), _F32), "b": jnp.zeros((1, si), _F32)}


def init_params(key, node_in=(6, 3), node_h=(32, 4), edge_in=(32, 1),
                edge_h=(32, 1), num_layers=3):
    ns, nv = node_h
    es, ev = edge_h
    si_in = node_in[0] + 20   # seq_in=True appends a 20-dim embedding
    keys = jax.random.split(key, 4 + num_layers)
    params = {
        "W_s": jax.random.normal(keys[0], (20, 20), _F32),
        "wv_ln": init_ln(si_in),
        "wv_gvp": init_gvp(keys[1], si_in, node_in[1], ns, nv),
        "we_ln": init_ln(edge_in[0]),
        "we_gvp": init_gvp(keys[2], edge_in[0], edge_in[1], es, ev),
        "out_ln": init_ln(ns),
        "out_gvp": init_gvp(keys[3], ns, nv, ns, 0),
    }
    layers = []
    for l in range(num_layers):
        lk = jax.random.split(keys[4 + l], 5)
        layers.append({
            "msg0": init_gvp(lk[0], 2 * ns + es, 2 * nv + ev, ns, nv),
            "msg1": init_gvp(lk[1], ns, nv, ns, nv),
            "msg2": init_gvp(lk[2], ns, nv, ns, nv),
            "norm0": init_ln(ns),
            "ff0": init_gvp(lk[3], ns, nv, 4 * ns, 2 * nv),
            "ff1": init_gvp(lk[4], 4 * ns, 2 * nv, ns, nv),
            "norm1": init_ln(ns),
        })
    params["layers"] = layers
    return params


# ---------------------------------------------------------------------------
# GVP_embedding forward
# ---------------------------------------------------------------------------

def _round_up(x, m):
    return ((x + m - 1) // m) * m


def _pad_axis(x, n, axis):
    pad = n - x.shape[axis]
    if pad == 0:
        return x
    widths = [(0, 0)] * x.ndim
    widths[axis] = (0, pad)
    return jnp.pad(x, widths)


def gvp_embedding_forward(params, h_V, edge_index, h_E, seq):
    s_in, v_in = h_V          # [N, 6],  [3, N, 3]
    es_in, ev_in = h_E        # [E, 32], [3, E, 1]
    n_nodes = s_in.shape[0]
    n_edges = es_in.shape[0]

    node_tile = min(_ROW_TILE_MAX, _round_up(n_nodes, 8))
    edge_tile = min(_ROW_TILE_MAX, _round_up(n_edges, 8))
    n_pad = _round_up(n_nodes, node_tile)
    e_pad = _round_up(n_edges, edge_tile)

    ns = params["out_gvp"]["ws_b"].shape[1]   # node scalar width (32)
    nv = params["wv_gvp"]["wv_t"].shape[1]    # node vector width (4)

    # ---- glue: seq embedding, concat, padding, edge indices (outside kernels) ----
    seq_emb = jnp.take(params["W_s"], seq, axis=0)              # [N, 20]
    s = _pad_axis(jnp.concatenate([s_in, seq_emb], axis=-1), n_pad, 0)
    v = _pad_axis(v_in, n_pad, 1)
    es = _pad_axis(es_in, e_pad, 0)
    ev = _pad_axis(ev_in, e_pad, 1)

    # padded edges get index -1 so they never match any node inside the kernel
    src = jnp.pad(edge_index[0].astype(jnp.int32), (0, e_pad - n_edges),
                  constant_values=-1)
    dst = jnp.pad(edge_index[1].astype(jnp.int32), (0, e_pad - n_edges),
                  constant_values=-1)
    src_col = src.reshape(e_pad, 1)
    dst_col = dst.reshape(e_pad, 1)
    dst_row = dst.reshape(1, e_pad)

    # ---- W_v / W_e: fused LayerNorm + GVP (no activations) ----
    s, v = ln_gvp_apply(s, v, params["wv_ln"], params["wv_gvp"],
                        relu=False, sig=False, tile=node_tile)
    es, ev = ln_gvp_apply(es, ev, params["we_ln"], params["we_gvp"],
                          relu=False, sig=False, tile=edge_tile)

    # ---- GVPConv layers: one fused pallas_call per layer ----
    for layer in params["layers"]:
        s, v = gvp_conv_layer_apply(s, v, es, ev, src_col, dst_col, dst_row,
                                    layer, n_pad=n_pad, ns=ns, nv=nv,
                                    tile=edge_tile)

    # ---- W_out: fused LayerNorm + GVP((ns,nv) -> (ns,0)), ReLU scalar act ----
    out = ln_gvp_scalar_apply(s, v, params["out_ln"], params["out_gvp"],
                              tile=node_tile)
    return out[:n_nodes]


# ---------------------------------------------------------------------------
# Main
# ---------------------------------------------------------------------------

if __name__ == "__main__":
    key = jax.random.PRNGKey(0)
    k_par, k_vs, k_vv, k_es, k_ev, k_ei, k_seq = jax.random.split(key, 7)

    N, E = 8, 16
    NODE_IN = (6, 3)
    NODE_H = (32, 4)
    EDGE_IN = (32, 1)
    EDGE_H = (32, 1)

    params = init_params(k_par, NODE_IN, NODE_H, EDGE_IN, EDGE_H, num_layers=3)

    h_V = (jax.random.normal(k_vs, (N, NODE_IN[0]), _F32),
           jax.random.normal(k_vv, (3, N, NODE_IN[1]), _F32))
    h_E = (jax.random.normal(k_es, (E, EDGE_IN[0]), _F32),
           jax.random.normal(k_ev, (3, E, EDGE_IN[1]), _F32))
    edge_index = jax.random.randint(k_ei, (2, E), 0, N, dtype=jnp.int32)
    seq = jax.random.randint(k_seq, (N,), 0, 20, dtype=jnp.int32)

    fwd = jax.jit(gvp_embedding_forward)
    out = fwd(params, h_V, edge_index, h_E, seq)
    out = jax.block_until_ready(out)

    assert out.shape == (N, NODE_H[0]), out.shape
    assert bool(jnp.all(jnp.isfinite(out)))
    print("KERNEL_OK")
</pallas_src>

<mosaic_0001>
module attributes {stable_mosaic.version = 11 : i64} {
  func.func @_ln_gvp_kernel(%arg0: i32, %arg1: memref<16x32xf32, #tpu.memory_space<vmem>>, %arg2: memref<3x16x1xf32, #tpu.memory_space<vmem>>, %arg3: memref<1x32xf32, #tpu.memory_space<vmem>>, %arg4: memref<1x32xf32, #tpu.memory_space<vmem>>, %arg5: memref<1x1xf32, #tpu.memory_space<vmem>>, %arg6: memref<32x32xf32, #tpu.memory_space<vmem>>, %arg7: memref<1x32xf32, #tpu.memory_space<vmem>>, %arg8: memref<1x32xf32, #tpu.memory_space<vmem>>, %arg9: memref<1x1xf32, #tpu.memory_space<vmem>>, %arg10: memref<16x32xf32, #tpu.memory_space<vmem>>, %arg11: memref<3x16x1xf32, #tpu.memory_space<vmem>>) attributes {dimension_semantics = [#tpu.dimension_semantics<parallel>], iteration_bounds = array<i64: 1>, scalar_prefetch = 0 : i64, scratch_operands = 0 : i64, tpu.core_type = #tpu.core_type<tc>, window_params = [{transform_indices = @transform_0, window_bounds = array<i64: 16, 32>}, {transform_indices = @transform_1, window_bounds = array<i64: 3, 16, 1>}, {pipeline_mode = #tpu.pipeline_mode<synchronous>, transform_indices = @transform_2, window_bounds = array<i64: 1, 32>}, {pipeline_mode = #tpu.pipeline_mode<synchronous>, transform_indices = @transform_3, window_bounds = array<i64: 1, 32>}, {pipeline_mode = #tpu.pipeline_mode<synchronous>, transform_indices = @transform_4, window_bounds = array<i64: 1, 1>}, {pipeline_mode = #tpu.pipeline_mode<synchronous>, transform_indices = @transform_5, window_bounds = array<i64: 32, 32>}, {pipeline_mode = #tpu.pipeline_mode<synchronous>, transform_indices = @transform_6, window_bounds = array<i64: 1, 32>}, {pipeline_mode = #tpu.pipeline_mode<synchronous>, transform_indices = @transform_7, window_bounds = array<i64: 1, 32>}, {pipeline_mode = #tpu.pipeline_mode<synchronous>, transform_indices = @transform_8, window_bounds = array<i64: 1, 1>}, {transform_indices = @transform_9, window_bounds = array<i64: 16, 32>}, {transform_indices = @transform_10, window_bounds = array<i64: 3, 16, 1>}]} {
    %c0 = arith.constant 0 : index
    %c0_0 = arith.constant 0 : index
    %0 = vector.load %arg1[%c0, %c0_0] : memref<16x32xf32, #tpu.memory_space<vmem>>, vector<16x32xf32>
    %c0_1 = arith.constant 0 : index
    %c0_2 = arith.constant 0 : index
    %1 = vector.load %arg3[%c0_1, %c0_2] : memref<1x32xf32, #tpu.memory_space<vmem>>, vector<1x32xf32>
    %c0_3 = arith.constant 0 : index
    %c0_4 = arith.constant 0 : index
    %2 = vector.load %arg4[%c0_3, %c0_4] : memref<1x32xf32, #tpu.memory_space<vmem>>, vector<1x32xf32>
    %cst = arith.constant dense<0.000000e+00> : vector<16xf32>
    %3 = vector.multi_reduction <add>, %0, %cst [1] : vector<16x32xf32> to vector<16xf32>
    %4 = vector.shape_cast %3 : vector<16xf32> to vector<16x1xf32>
    %cst_5 = arith.constant 3.200000e+01 : f32
    %5 = vector.broadcast %cst_5 : f32 to vector<16x1xf32>
    %6 = arith.divf %4, %5 : vector<16x1xf32>
    %7 = vector.broadcast %6 : vector<16x1xf32> to vector<16x32xf32>
    %8 = arith.subf %0, %7 : vector<16x32xf32>
    %9 = vector.broadcast %6 : vector<16x1xf32> to vector<16x32xf32>
    %10 = arith.subf %0, %9 : vector<16x32xf32>
    %11 = arith.mulf %8, %10 : vector<16x32xf32>
    %cst_6 = arith.constant dense<0.000000e+00> : vector<16xf32>
    %12 = vector.multi_reduction <add>, %11, %cst_6 [1] : vector<16x32xf32> to vector<16xf32>
    %13 = vector.shape_cast %12 : vector<16xf32> to vector<16x1xf32>
    %cst_7 = arith.constant 3.200000e+01 : f32
    %14 = vector.broadcast %cst_7 : f32 to vector<16x1xf32>
    %15 = arith.divf %13, %14 : vector<16x1xf32>
    %16 = vector.broadcast %6 : vector<16x1xf32> to vector<16x32xf32>
    %17 = arith.subf %0, %16 : vector<16x32xf32>
    %cst_8 = arith.constant 9.99999974E-6 : f32
    %18 = vector.broadcast %cst_8 : f32 to vector<16x1xf32>
    %19 = arith.addf %15, %18 : vector<16x1xf32>
    %20 = math.rsqrt %19 : vector<16x1xf32>
    %21 = vector.broadcast %20 : vector<16x1xf32> to vector<16x32xf32>
    %22 = arith.mulf %17, %21 : vector<16x32xf32>
    %23 = vector.broadcast %1 : vector<1x32xf32> to vector<16x32xf32>
    %24 = arith.mulf %22, %23 : vector<16x32xf32>
    %25 = vector.broadcast %2 : vector<1x32xf32> to vector<16x32xf32>
    %26 = arith.addf %24, %25 : vector<16x32xf32>
    %c0_9 = arith.constant 0 : index
    %c0_10 = arith.constant 0 : index
    %c0_11 = arith.constant 0 : index
    %27 = vector.load %arg2[%c0_9, %c0_10, %c0_11] : memref<3x16x1xf32, #tpu.memory_space<vmem>>, vector<1x16x1xf32>
    %28 = vector.shape_cast %27 : vector<1x16x1xf32> to vector<16x1xf32>
    %c1 = arith.constant 1 : index
    %c0_12 = arith.constant 0 : index
    %c0_13 = arith.constant 0 : index
    %29 = vector.load %arg2[%c1, %c0_12, %c0_13] : memref<3x16x1xf32, #tpu.memory_space<vmem>>, vector<1x16x1xf32>
    %30 = vector.shape_cast %29 : vector<1x16x1xf32> to vector<16x1xf32>
    %c2 = arith.constant 2 : index
    %c0_14 = arith.constant 0 : index
    %c0_15 = arith.constant 0 : index
    %31 = vector.load %arg2[%c2, %c0_14, %c0_15] : memref<3x16x1xf32, #tpu.memory_space<vmem>>, vector<1x16x1xf32>
    %32 = vector.shape_cast %31 : vector<1x16x1xf32> to vector<16x1xf32>
    %33 = arith.mulf %28, %28 : vector<16x1xf32>
    %34 = arith.mulf %30, %30 : vector<16x1xf32>
    %35 = arith.addf %33, %34 : vector<16x1xf32>
    %36 = arith.mulf %32, %32 : vector<16x1xf32>
    %37 = arith.addf %35, %36 : vector<16x1xf32>
    %cst_16 = arith.constant 9.99999993E-9 : f32
    %38 = vector.broadcast %cst_16 : f32 to vector<16x1xf32>
    %39 = arith.maximumf %37, %38 : vector<16x1xf32>
    %cst_17 = arith.constant dense<0.000000e+00> : vector<16xf32>
    %40 = vector.multi_reduction <add>, %39, %cst_17 [1] : vector<16x1xf32> to vector<16xf32>
    %41 = vector.shape_cast %40 : vector<16xf32> to vector<16x1xf32>
    %cst_18 = arith.constant 1.000000e+00 : f32
    %42 = vector.broadcast %cst_18 : f32 to vector<16x1xf32>
    %43 = arith.divf %41, %42 : vector<16x1xf32>
    %44 = math.rsqrt %43 : vector<16x1xf32>
    %45 = arith.mulf %28, %44 : vector<16x1xf32>
    %46 = arith.mulf %30, %44 : vector<16x1xf32>
    %47 = arith.mulf %32, %44 : vector<16x1xf32>
    %c0_19 = arith.constant 0 : index
    %c0_20 = arith.constant 0 : index
    %48 = vector.load %arg5[%c0_19, %c0_20] : memref<1x1xf32, #tpu.memory_space<vmem>>, vector<1x1xf32>
    %c0_21 = arith.constant 0 : index
    %c0_22 = arith.constant 0 : index
    %49 = vector.load %arg6[%c0_21, %c0_22] : memref<32x32xf32, #tpu.memory_space<vmem>>, vector<32x32xf32>
    %c0_23 = arith.constant 0 : index
    %c0_24 = arith.constant 0 : index
    %50 = vector.load %arg7[%c0_23, %c0_24] : memref<1x32xf32, #tpu.memory_space<vmem>>, vector<1x32xf32>
    %c0_25 = arith.constant 0 : index
    %c0_26 = arith.constant 0 : index
    %51 = vector.load %arg8[%c0_25, %c0_26] : memref<1x32xf32, #tpu.memory_space<vmem>>, vector<1x32xf32>
    %c0_27 = arith.constant 0 : index
    %c0_28 = arith.constant 0 : index
    %52 = vector.load %arg9[%c0_27, %c0_28] : memref<1x1xf32, #tpu.memory_space<vmem>>, vector<1x1xf32>
    %cst_29 = arith.constant dense<0.000000e+00> : vector<16x1xf32>
    %53 = tpu.matmul %45, %48, %cst_29 {dimension_numbers = #tpu.dot_dimension_numbers<[1], [0], [0], [1], [0, 0, 1, 1], [], []>} : vector<16x1xf32>, vector<1x1xf32>, vector<16x1xf32> -> vector<16x1xf32>
    %cst_30 = arith.constant dense<0.000000e+00> : vector<16x1xf32>
    %54 = tpu.matmul %46, %48, %cst_30 {dimension_numbers = #tpu.dot_dimension_numbers<[1], [0], [0], [1], [0, 0, 1, 1], [], []>} : vector<16x1xf32>, vector<1x1xf32>, vector<16x1xf32> -> vector<16x1xf32>
    %cst_31 = arith.constant dense<0.000000e+00> : vector<16x1xf32>
    %55 = tpu.matmul %47, %48, %cst_31 {dimension_numbers = #tpu.dot_dimension_numbers<[1], [0], [0], [1], [0, 0, 1, 1], [], []>} : vector<16x1xf32>, vector<1x1xf32>, vector<16x1xf32> -> vector<16x1xf32>
    %cst_32 = arith.constant dense<0.000000e+00> : vector<16x32xf32>
    %56 = tpu.matmul %26, %49, %cst_32 {dimension_numbers = #tpu.dot_dimension_numbers<[1], [0], [0], [1], [0, 0, 1, 1], [], []>} : vector<16x32xf32>, vector<32x32xf32>, vector<16x32xf32> -> vector<16x32xf32>
    %57 = arith.mulf %53, %53 : vector<16x1xf32>
    %58 = arith.mulf %54, %54 : vector<16x1xf32>
    %59 = arith.addf %57, %58 : vector<16x1xf32>
    %60 = arith.mulf %55, %55 : vector<16x1xf32>
    %61 = arith.addf %59, %60 : vector<16x1xf32>
    %cst_33 = arith.constant 9.99999993E-9 : f32
    %62 = vector.broadcast %cst_33 : f32 to vector<16x1xf32>
    %63 = arith.maximumf %61, %62 : vector<16x1xf32>
    %64 = math.sqrt %63 : vector<16x1xf32>
    %cst_34 = arith.constant dense<0.000000e+00> : vector<16x32xf32>
    %65 = tpu.matmul %64, %50, %cst_34 {dimension_numbers = #tpu.dot_dimension_numbers<[1], [0], [0], [1], [0, 0, 1, 1], [], []>} : vector<16x1xf32>, vector<1x32xf32>, vector<16x32xf32> -> vector<16x32xf32>
    %66 = arith.addf %56, %65 : vector<16x32xf32>
    %67 = vector.broadcast %51 : vector<1x32xf32> to vector<16x32xf32>
    %68 = arith.addf %66, %67 : vector<16x32xf32>
    %cst_35 = arith.constant dense<0.000000e+00> : vector<16x1xf32>
    %69 = tpu.matmul %53, %52, %cst_35 {dimension_numbers = #tpu.dot_dimension_numbers<[1], [0], [0], [1], [0, 0, 1, 1], [], []>} : vector<16x1xf32>, vector<1x1xf32>, vector<16x1xf32> -> vector<16x1xf32>
    %cst_36 = arith.constant dense<0.000000e+00> : vector<16x1xf32>
    %70 = tpu.matmul %54, %52, %cst_36 {dimension_numbers = #tpu.dot_dimension_numbers<[1], [0], [0], [1], [0, 0, 1, 1], [], []>} : vector<16x1xf32>, vector<1x1xf32>, vector<16x1xf32> -> vector<16x1xf32>
    %cst_37 = arith.constant dense<0.000000e+00> : vector<16x1xf32>
    %71 = tpu.matmul %55, %52, %cst_37 {dimension_numbers = #tpu.dot_dimension_numbers<[1], [0], [0], [1], [0, 0, 1, 1], [], []>} : vector<16x1xf32>, vector<1x1xf32>, vector<16x1xf32> -> vector<16x1xf32>
    %c0_38 = arith.constant 0 : index
    %c0_39 = arith.constant 0 : index
    %72 = vector.load %arg10[%c0_38, %c0_39] : memref<16x32xf32, #tpu.memory_space<vmem>>, vector<16x32xf32>
    tpu.vector_store %arg10[%c0_38, %c0_39], %68 {strides = array<i32>} : memref<16x32xf32, #tpu.memory_space<vmem>>, vector<16x32xf32>,
    %c0_40 = arith.constant 0 : index
    %c0_41 = arith.constant 0 : index
    %c0_42 = arith.constant 0 : index
    %73 = vector.load %arg11[%c0_40, %c0_41, %c0_42] : memref<3x16x1xf32, #tpu.memory_space<vmem>>, vector<1x16x1xf32>
    %74 = vector.shape_cast %73 : vector<1x16x1xf32> to vector<16x1xf32>
    %75 = vector.shape_cast %69 : vector<16x1xf32> to vector<1x16x1xf32>
    tpu.vector_store %arg11[%c0_40, %c0_41, %c0_42], %75 {strides = array<i32>} : memref<3x16x1xf32, #tpu.memory_space<vmem>>, vector<1x16x1xf32>,
    %c1_43 = arith.constant 1 : index
    %c0_44 = arith.constant 0 : index
    %c0_45 = arith.constant 0 : index
    %76 = vector.load %arg11[%c1_43, %c0_44, %c0_45] : memref<3x16x1xf32, #tpu.memory_space<vmem>>, vector<1x16x1xf32>
    %77 = vector.shape_cast %76 : vector<1x16x1xf32> to vector<16x1xf32>
    %78 = vector.shape_cast %70 : vector<16x1xf32> to vector<1x16x1xf32>
    tpu.vector_store %arg11[%c1_43, %c0_44, %c0_45], %78 {strides = array<i32>} : memref<3x16x1xf32, #tpu.memory_space<vmem>>, vector<1x16x1xf32>,
    %c2_46 = arith.constant 2 : index
    %c0_47 = arith.constant 0 : index
    %c0_48 = arith.constant 0 : index
    %79 = vector.load %arg11[%c2_46, %c0_47, %c0_48] : memref<3x16x1xf32, #tpu.memory_space<vmem>>, vector<1x16x1xf32>
    %80 = vector.shape_cast %79 : vector<1x16x1xf32> to vector<16x1xf32>
    %81 = vector.shape_cast %71 : vector<16x1xf32> to vector<1x16x1xf32>
    tpu.vector_store %arg11[%c2_46, %c0_47, %c0_48], %81 {strides = array<i32>} : memref<3x16x1xf32, #tpu.memory_space<vmem>>, vector<1x16x1xf32>,
    return
  }
  func.func @transform_0(%arg0: i32) -> (i32, i32) {
    %c0_i32 = arith.constant 0 : i32
    %c0_i32_0 = arith.constant 0 : i32
    return %arg0, %c0_i32 : i32, i32
  }
  func.func @transform_1(%arg0: i32) -> (i32, i32, i32) {
    %c0_i32 = arith.constant 0 : i32
    %c0_i32_0 = arith.constant 0 : i32
    %c0_i32_1 = arith.constant 0 : i32
    return %c0_i32, %arg0, %c0_i32_0 : i32, i32, i32
  }
  func.func @transform_2(%arg0: i32) -> (i32, i32) {
    %c0_i32 = arith.constant 0 : i32
    %c0_i32_0 = arith.constant 0 : i32
    %c0_i32_1 = arith.constant 0 : i32
    return %c0_i32, %c0_i32_0 : i32, i32
  }
  func.func @transform_3(%arg0: i32) -> (i32, i32) {
    %c0_i32 = arith.constant 0 : i32
    %c0_i32_0 = arith.constant 0 : i32
    %c0_i32_1 = arith.constant 0 : i32
    return %c0_i32, %c0_i32_0 : i32, i32
  }
  func.func @transform_4(%arg0: i32) -> (i32, i32) {
    %c0_i32 = arith.constant 0 : i32
    %c0_i32_0 = arith.constant 0 : i32
    %c0_i32_1 = arith.constant 0 : i32
    return %c0_i32, %c0_i32_0 : i32, i32
  }
  func.func @transform_5(%arg0: i32) -> (i32, i32) {
    %c0_i32 = arith.constant 0 : i32
    %c0_i32_0 = arith.constant 0 : i32
    %c0_i32_1 = arith.constant 0 : i32
    return %c0_i32, %c0_i32_0 : i32, i32
  }
  func.func @transform_6(%arg0: i32) -> (i32, i32) {
    %c0_i32 = arith.constant 0 : i32
    %c0_i32_0 = arith.constant 0 : i32
    %c0_i32_1 = arith.constant 0 : i32
    return %c0_i32, %c0_i32_0 : i32, i32
  }
  func.func @transform_7(%arg0: i32) -> (i32, i32) {
    %c0_i32 = arith.constant 0 : i32
    %c0_i32_0 = arith.constant 0 : i32
    %c0_i32_1 = arith.constant 0 : i32
    return %c0_i32, %c0_i32_0 : i32, i32
  }
  func.func @transform_8(%arg0: i32) -> (i32, i32) {
    %c0_i32 = arith.constant 0 : i32
    %c0_i32_0 = arith.constant 0 : i32
    %c0_i32_1 = arith.constant 0 : i32
    return %c0_i32, %c0_i32_0 : i32, i32
  }
  func.func @transform_9(%arg0: i32) -> (i32, i32) {
    %c0_i32 = arith.constant 0 : i32
    %c0_i32_0 = arith.constant 0 : i32
    return %arg0, %c0_i32 : i32, i32
  }
  func.func @transform_10(%arg0: i32) -> (i32, i32, i32) {
    %c0_i32 = arith.constant 0 : i32
    %c0_i32_0 = arith.constant 0 : i32
    %c0_i32_1 = arith.constant 0 : i32
    return %c0_i32, %arg0, %c0_i32_0 : i32, i32, i32
  }
}

module attributes {stable_mosaic.version = 11 : i64} {
  func.func @_ln_gvp_kernel(%arg0: i32, %arg1: memref<8x26xf32, #tpu.memory_space<vmem>>, %arg2: memref<3x8x3xf32, #tpu.memory_space<vmem>>, %arg3: memref<1x26xf32, #tpu.memory_space<vmem>>, %arg4: memref<1x26xf32, #tpu.memory_space<vmem>>, %arg5: memref<3x4xf32, #tpu.memory_space<vmem>>, %arg6: memref<26x32xf32, #tpu.memory_space<vmem>>, %arg7: memref<4x32xf32, #tpu.memory_space<vmem>>, %arg8: memref<1x32xf32, #tpu.memory_space<vmem>>, %arg9: memref<4x4xf32, #tpu.memory_space<vmem>>, %arg10: memref<8x32xf32, #tpu.memory_space<vmem>>, %arg11: memref<3x8x4xf32, #tpu.memory_space<vmem>>) attributes {dimension_semantics = [#tpu.dimension_semantics<parallel>], iteration_bounds = array<i64: 1>, scalar_prefetch = 0 : i64, scratch_operands = 0 : i64, tpu.core_type = #tpu.core_type<tc>, window_params = [{transform_indices = @transform_0, window_bounds = array<i64: 8, 26>}, {transform_indices = @transform_1, window_bounds = array<i64: 3, 8, 3>}, {pipeline_mode = #tpu.pipeline_mode<synchronous>, transform_indices = @transform_2, window_bounds = array<i64: 1, 26>}, {pipeline_mode = #tpu.pipeline_mode<synchronous>, transform_indices = @transform_3, window_bounds = array<i64: 1, 26>}, {pipeline_mode = #tpu.pipeline_mode<synchronous>, transform_indices = @transform_4, window_bounds = array<i64: 3, 4>}, {pipeline_mode = #tpu.pipeline_mode<synchronous>, transform_indices = @transform_5, window_bounds = array<i64: 26, 32>}, {pipeline_mode = #tpu.pipeline_mode<synchronous>, transform_indices = @transform_6, window_bounds = array<i64: 4, 32>}, {pipeline_mode = #tpu.pipeline_mode<synchronous>, transform_indices = @transform_7, window_bounds = array<i64: 1, 32>}, {pipeline_mode = #tpu.pipeline_mode<synchronous>, transform_indices = @transform_8, window_bounds = array<i64: 4, 4>}, {transform_indices = @transform_9, window_bounds = array<i64: 8, 32>}, {transform_indices = @transform_10, window_bounds = array<i64: 3, 8, 4>}]} {
    %c0 = arith.constant 0 : index
    %c0_0 = arith.constant 0 : index
    %0 = vector.load %arg1[%c0, %c0_0] : memref<8x26xf32, #tpu.memory_space<vmem>>, vector<8x26xf32>
    %c0_1 = arith.constant 0 : index
    %c0_2 = arith.constant 0 : index
    %1 = vector.load %arg3[%c0_1, %c0_2] : memref<1x26xf32, #tpu.memory_space<vmem>>, vector<1x26xf32>
    %c0_3 = arith.constant 0 : index
    %c0_4 = arith.constant 0 : index
    %2 = vector.load %arg4[%c0_3, %c0_4] : memref<1x26xf32, #tpu.memory_space<vmem>>, vector<1x26xf32>
    %cst = arith.constant dense<0.000000e+00> : vector<8xf32>
    %3 = vector.multi_reduction <add>, %0, %cst [1] : vector<8x26xf32> to vector<8xf32>
    %4 = vector.shape_cast %3 : vector<8xf32> to vector<8x1xf32>
    %cst_5 = arith.constant 2.600000e+01 : f32
    %5 = vector.broadcast %cst_5 : f32 to vector<8x1xf32>
    %6 = arith.divf %4, %5 : vector<8x1xf32>
    %7 = vector.broadcast %6 : vector<8x1xf32> to vector<8x26xf32>
    %8 = arith.subf %0, %7 : vector<8x26xf32>
    %9 = vector.broadcast %6 : vector<8x1xf32> to vector<8x26xf32>
    %10 = arith.subf %0, %9 : vector<8x26xf32>
    %11 = arith.mulf %8, %10 : vector<8x26xf32>
    %cst_6 = arith.constant dense<0.000000e+00> : vector<8xf32>
    %12 = vector.multi_reduction <add>, %11, %cst_6 [1] : vector<8x26xf32> to vector<8xf32>
    %13 = vector.shape_cast %12 : vector<8xf32> to vector<8x1xf32>
    %cst_7 = arith.constant 2.600000e+01 : f32
    %14 = vector.broadcast %cst_7 : f32 to vector<8x1xf32>
    %15 = arith.divf %13, %14 : vector<8x1xf32>
    %16 = vector.broadcast %6 : vector<8x1xf32> to vector<8x26xf32>
    %17 = arith.subf %0, %16 : vector<8x26xf32>
    %cst_8 = arith.constant 9.99999974E-6 : f32
    %18 = vector.broadcast %cst_8 : f32 to vector<8x1xf32>
    %19 = arith.addf %15, %18 : vector<8x1xf32>
    %20 = math.rsqrt %19 : vector<8x1xf32>
    %21 = vector.broadcast %20 : vector<8x1xf32> to vector<8x26xf32>
    %22 = arith.mulf %17, %21 : vector<8x26xf32>
    %23 = vector.broadcast %1 : vector<1x26xf32> to vector<8x26xf32>
    %24 = arith.mulf %22, %23 : vector<8x26xf32>
    %25 = vector.broadcast %2 : vector<1x26xf32> to vector<8x26xf32>
    %26 = arith.addf %24, %25 : vector<8x26xf32>
    %c0_9 = arith.constant 0 : index
    %c0_10 = arith.constant 0 : index
    %c0_11 = arith.constant 0 : index
    %27 = vector.load %arg2[%c0_9, %c0_10, %c0_11] : memref<3x8x3xf32, #tpu.memory_space<vmem>>, vector<1x8x3xf32>
    %28 = vector.shape_cast %27 : vector<1x8x3xf32> to vector<8x3xf32>
    %c1 = arith.constant 1 : index
    %c0_12 = arith.constant 0 : index
    %c0_13 = arith.constant 0 : index
    %29 = vector.load %arg2[%c1, %c0_12, %c0_13] : memref<3x8x3xf32, #tpu.memory_space<vmem>>, vector<1x8x3xf32>
    %30 = vector.shape_cast %29 : vector<1x8x3xf32> to vector<8x3xf32>
    %c2 = arith.constant 2 : index
    %c0_14 = arith.constant 0 : index
    %c0_15 = arith.constant 0 : index
    %31 = vector.load %arg2[%c2, %c0_14, %c0_15] : memref<3x8x3xf32, #tpu.memory_space<vmem>>, vector<1x8x3xf32>
    %32 = vector.shape_cast %31 : vector<1x8x3xf32> to vector<8x3xf32>
    %33 = arith.mulf %28, %28 : vector<8x3xf32>
    %34 = arith.mulf %30, %30 : vector<8x3xf32>
    %35 = arith.addf %33, %34 : vector<8x3xf32>
    %36 = arith.mulf %32, %32 : vector<8x3xf32>
    %37 = arith.addf %35, %36 : vector<8x3xf32>
    %cst_16 = arith.constant 9.99999993E-9 : f32
    %38 = vector.broadcast %cst_16 : f32 to vector<8x3xf32>
    %39 = arith.maximumf %37, %38 : vector<8x3xf32>
    %cst_17 = arith.constant dense<0.000000e+00> : vector<8xf32>
    %40 = vector.multi_reduction <add>, %39, %cst_17 [1] : vector<8x3xf32> to vector<8xf32>
    %41 = vector.shape_cast %40 : vector<8xf32> to vector<8x1xf32>
    %cst_18 = arith.constant 3.000000e+00 : f32
    %42 = vector.broadcast %cst_18 : f32 to vector<8x1xf32>
    %43 = arith.divf %41, %42 : vector<8x1xf32>
    %44 = math.rsqrt %43 : vector<8x1xf32>
    %45 = vector.broadcast %44 : vector<8x1xf32> to vector<8x3xf32>
    %46 = arith.mulf %28, %45 : vector<8x3xf32>
    %47 = vector.broadcast %44 : vector<8x1xf32> to vector<8x3xf32>
    %48 = arith.mulf %30, %47 : vector<8x3xf32>
    %49 = vector.broadcast %44 : vector<8x1xf32> to vector<8x3xf32>
    %50 = arith.mulf %32, %49 : vector<8x3xf32>
    %c0_19 = arith.constant 0 : index
    %c0_20 = arith.constant 0 : index
    %51 = vector.load %arg5[%c0_19, %c0_20] : memref<3x4xf32, #tpu.memory_space<vmem>>, vector<3x4xf32>
    %c0_21 = arith.constant 0 : index
    %c0_22 = arith.constant 0 : index
    %52 = vector.load %arg6[%c0_21, %c0_22] : memref<26x32xf32, #tpu.memory_space<vmem>>, vector<26x32xf32>
    %c0_23 = arith.constant 0 : index
    %c0_24 = arith.constant 0 : index
    %53 = vector.load %arg7[%c0_23, %c0_24] : memref<4x32xf32, #tpu.memory_space<vmem>>, vector<4x32xf32>
    %c0_25 = arith.constant 0 : index
    %c0_26 = arith.constant 0 : index
    %54 = vector.load %arg8[%c0_25, %c0_26] : memref<1x32xf32, #tpu.memory_space<vmem>>, vector<1x32xf32>
    %c0_27 = arith.constant 0 : index
    %c0_28 = arith.constant 0 : index
    %55 = vector.load %arg9[%c0_27, %c0_28] : memref<4x4xf32, #tpu.memory_space<vmem>>, vector<4x4xf32>
    %cst_29 = arith.constant dense<0.000000e+00> : vector<8x4xf32>
    %56 = tpu.matmul %46, %51, %cst_29 {dimension_numbers = #tpu.dot_dimension_numbers<[1], [0], [0], [1], [0, 0, 1, 1], [], []>} : vector<8x3xf32>, vector<3x4xf32>, vector<8x4xf32> -> vector<8x4xf32>
    %cst_30 = arith.constant dense<0.000000e+00> : vector<8x4xf32>
    %57 = tpu.matmul %48, %51, %cst_30 {dimension_numbers = #tpu.dot_dimension_numbers<[1], [0], [0], [1], [0, 0, 1, 1], [], []>} : vector<8x3xf32>, vector<3x4xf32>, vector<8x4xf32> -> vector<8x4xf32>
    %cst_31 = arith.constant dense<0.000000e+00> : vector<8x4xf32>
    %58 = tpu.matmul %50, %51, %cst_31 {dimension_numbers = #tpu.dot_dimension_numbers<[1], [0], [0], [1], [0, 0, 1, 1], [], []>} : vector<8x3xf32>, vector<3x4xf32>, vector<8x4xf32> -> vector<8x4xf32>
    %cst_32 = arith.constant dense<0.000000e+00> : vector<8x32xf32>
    %59 = tpu.matmul %26, %52, %cst_32 {dimension_numbers = #tpu.dot_dimension_numbers<[1], [0], [0], [1], [0, 0, 1, 1], [], []>} : vector<8x26xf32>, vector<26x32xf32>, vector<8x32xf32> -> vector<8x32xf32>
    %60 = arith.mulf %56, %56 : vector<8x4xf32>
    %61 = arith.mulf %57, %57 : vector<8x4xf32>
    %62 = arith.addf %60, %61 : vector<8x4xf32>
    %63 = arith.mulf %58, %58 : vector<8x4xf32>
    %64 = arith.addf %62, %63 : vector<8x4xf32>
    %cst_33 = arith.constant 9.99999993E-9 : f32
    %65 = vector.broadcast %cst_33 : f32 to vector<8x4xf32>
    %66 = arith.maximumf %64, %65 : vector<8x4xf32>
    %67 = math.sqrt %66 : vector<8x4xf32>
    %cst_34 = arith.constant dense<0.000000e+00> : vector<8x32xf32>
    %68 = tpu.matmul %67, %53, %cst_34 {dimension_numbers = #tpu.dot_dimension_numbers<[1], [0], [0], [1], [0, 0, 1, 1], [], []>} : vector<8x4xf32>, vector<4x32xf32>, vector<8x32xf32> -> vector<8x32xf32>
    %69 = arith.addf %59, %68 : vector<8x32xf32>
    %70 = vector.broadcast %54 : vector<1x32xf32> to vector<8x32xf32>
    %71 = arith.addf %69, %70 : vector<8x32xf32>
    %cst_35 = arith.constant dense<0.000000e+00> : vector<8x4xf32>
    %72 = tpu.matmul %56, %55, %cst_35 {dimension_numbers = #tpu.dot_dimension_numbers<[1], [0], [0], [1], [0, 0, 1, 1], [], []>} : vector<8x4xf32>, vector<4x4xf32>, vector<8x4xf32> -> vector<8x4xf32>
    %cst_36 = arith.constant dense<0.000000e+00> : vector<8x4xf32>
    %73 = tpu.matmul %57, %55, %cst_36 {dimension_numbers = #tpu.dot_dimension_numbers<[1], [0], [0], [1], [0, 0, 1, 1], [], []>} : vector<8x4xf32>, vector<4x4xf32>, vector<8x4xf32> -> vector<8x4xf32>
    %cst_37 = arith.constant dense<0.000000e+00> : vector<8x4xf32>
    %74 = tpu.matmul %58, %55, %cst_37 {dimension_numbers = #tpu.dot_dimension_numbers<[1], [0], [0], [1], [0, 0, 1, 1], [], []>} : vector<8x4xf32>, vector<4x4xf32>, vector<8x4xf32> -> vector<8x4xf32>
    %c0_38 = arith.constant 0 : index
    %c0_39 = arith.constant 0 : index
    %75 = vector.load %arg10[%c0_38, %c0_39] : memref<8x32xf32, #tpu.memory_space<vmem>>, vector<8x32xf32>
    tpu.vector_store %arg10[%c0_38, %c0_39], %71 {strides = array<i32>} : memref<8x32xf32, #tpu.memory_space<vmem>>, vector<8x32xf32>,
    %c0_40 = arith.constant 0 : index
    %c0_41 = arith.constant 0 : index
    %c0_42 = arith.constant 0 : index
    %76 = vector.load %arg11[%c0_40, %c0_41, %c0_42] : memref<3x8x4xf32, #tpu.memory_space<vmem>>, vector<1x8x4xf32>
    %77 = vector.shape_cast %76 : vector<1x8x4xf32> to vector<8x4xf32>
    %78 = vector.shape_cast %72 : vector<8x4xf32> to vector<1x8x4xf32>
    tpu.vector_store %arg11[%c0_40, %c0_41, %c0_42], %78 {strides = array<i32>} : memref<3x8x4xf32, #tpu.memory_space<vmem>>, vector<1x8x4xf32>,
    %c1_43 = arith.constant 1 : index
    %c0_44 = arith.constant 0 : index
    %c0_45 = arith.constant 0 : index
    %79 = vector.load %arg11[%c1_43, %c0_44, %c0_45] : memref<3x8x4xf32, #tpu.memory_space<vmem>>, vector<1x8x4xf32>
    %80 = vector.shape_cast %79 : vector<1x8x4xf32> to vector<8x4xf32>
    %81 = vector.shape_cast %73 : vector<8x4xf32> to vector<1x8x4xf32>
    tpu.vector_store %arg11[%c1_43, %c0_44, %c0_45], %81 {strides = array<i32>} : memref<3x8x4xf32, #tpu.memory_space<vmem>>, vector<1x8x4xf32>,
    %c2_46 = arith.constant 2 : index
    %c0_47 = arith.constant 0 : index
    %c0_48 = arith.constant 0 : index
    %82 = vector.load %arg11[%c2_46, %c0_47, %c0_48] : memref<3x8x4xf32, #tpu.memory_space<vmem>>, vector<1x8x4xf32>
    %83 = vector.shape_cast %82 : vector<1x8x4xf32> to vector<8x4xf32>
    %84 = vector.shape_cast %74 : vector<8x4xf32> to vector<1x8x4xf32>
    tpu.vector_store %arg11[%c2_46, %c0_47, %c0_48], %84 {strides = array<i32>} : memref<3x8x4xf32, #tpu.memory_space<vmem>>, vector<1x8x4xf32>,
    return
  }
  func.func @transform_0(%arg0: i32) -> (i32, i32) {
    %c0_i32 = arith.constant 0 : i32
    %c0_i32_0 = arith.constant 0 : i32
    return %arg0, %c0_i32 : i32, i32
  }
  func.func @transform_1(%arg0: i32) -> (i32, i32, i32) {
    %c0_i32 = arith.constant 0 : i32
    %c0_i32_0 = arith.constant 0 : i32
    %c0_i32_1 = arith.constant 0 : i32
    return %c0_i32, %arg0, %c0_i32_0 : i32, i32, i32
  }
  func.func @transform_2(%arg0: i32) -> (i32, i32) {
    %c0_i32 = arith.constant 0 : i32
    %c0_i32_0 = arith.constant 0 : i32
    %c0_i32_1 = arith.constant 0 : i32
    return %c0_i32, %c0_i32_0 : i32, i32
  }
  func.func @transform_3(%arg0: i32) -> (i32, i32) {
    %c0_i32 = arith.constant 0 : i32
    %c0_i32_0 = arith.constant 0 : i32
    %c0_i32_1 = arith.constant 0 : i32
    return %c0_i32, %c0_i32_0 : i32, i32
  }
  func.func @transform_4(%arg0: i32) -> (i32, i32) {
    %c0_i32 = arith.constant 0 : i32
    %c0_i32_0 = arith.constant 0 : i32
    %c0_i32_1 = arith.constant 0 : i32
    return %c0_i32, %c0_i32_0 : i32, i32
  }
  func.func @transform_5(%arg0: i32) -> (i32, i32) {
    %c0_i32 = arith.constant 0 : i32
    %c0_i32_0 = arith.constant 0 : i32
    %c0_i32_1 = arith.constant 0 : i32
    return %c0_i32, %c0_i32_0 : i32, i32
  }
  func.func @transform_6(%arg0: i32) -> (i32, i32) {
    %c0_i32 = arith.constant 0 : i32
    %c0_i32_0 = arith.constant 0 : i32
    %c0_i32_1 = arith.constant 0 : i32
    return %c0_i32, %c0_i32_0 : i32, i32
  }
  func.func @transform_7(%arg0: i32) -> (i32, i32) {
    %c0_i32 = arith.constant 0 : i32
    %c0_i32_0 = arith.constant 0 : i32
    %c0_i32_1 = arith.constant 0 : i32
    return %c0_i32, %c0_i32_0 : i32, i32
  }
  func.func @transform_8(%arg0: i32) -> (i32, i32) {
    %c0_i32 = arith.constant 0 : i32
    %c0_i32_0 = arith.constant 0 : i32
    %c0_i32_1 = arith.constant 0 : i32
    return %c0_i32, %c0_i32_0 : i32, i32
  }
  func.func @transform_9(%arg0: i32) -> (i32, i32) {
    %c0_i32 = arith.constant 0 : i32
    %c0_i32_0 = arith.constant 0 : i32
    return %arg0, %c0_i32 : i32, i32
  }
  func.func @transform_10(%arg0: i32) -> (i32, i32, i32) {
    %c0_i32 = arith.constant 0 : i32
    %c0_i32_0 = arith.constant 0 : i32
    %c0_i32_1 = arith.constant 0 : i32
    return %c0_i32, %arg0, %c0_i32_0 : i32, i32, i32
  }
}

module attributes {stable_mosaic.version = 11 : i64} {
  func.func @_ln_gvp_scalar_kernel(%arg0: i32, %arg1: memref<8x32xf32, #tpu.memory_space<vmem>>, %arg2: memref<3x8x4xf32, #tpu.memory_space<vmem>>, %arg3: memref<1x32xf32, #tpu.memory_space<vmem>>, %arg4: memref<1x32xf32, #tpu.memory_space<vmem>>, %arg5: memref<4x4xf32, #tpu.memory_space<vmem>>, %arg6: memref<32x32xf32, #tpu.memory_space<vmem>>, %arg7: memref<4x32xf32, #tpu.memory_space<vmem>>, %arg8: memref<1x32xf32, #tpu.memory_space<vmem>>, %arg9: memref<8x32xf32, #tpu.memory_space<vmem>>) attributes {dimension_semantics = [#tpu.dimension_semantics<parallel>], iteration_bounds = array<i64: 1>, scalar_prefetch = 0 : i64, scratch_operands = 0 : i64, tpu.core_type = #tpu.core_type<tc>, window_params = [{transform_indices = @transform_0, window_bounds = array<i64: 8, 32>}, {transform_indices = @transform_1, window_bounds = array<i64: 3, 8, 4>}, {pipeline_mode = #tpu.pipeline_mode<synchronous>, transform_indices = @transform_2, window_bounds = array<i64: 1, 32>}, {pipeline_mode = #tpu.pipeline_mode<synchronous>, transform_indices = @transform_3, window_bounds = array<i64: 1, 32>}, {pipeline_mode = #tpu.pipeline_mode<synchronous>, transform_indices = @transform_4, window_bounds = array<i64: 4, 4>}, {pipeline_mode = #tpu.pipeline_mode<synchronous>, transform_indices = @transform_5, window_bounds = array<i64: 32, 32>}, {pipeline_mode = #tpu.pipeline_mode<synchronous>, transform_indices = @transform_6, window_bounds = array<i64: 4, 32>}, {pipeline_mode = #tpu.pipeline_mode<synchronous>, transform_indices = @transform_7, window_bounds = array<i64: 1, 32>}, {transform_indices = @transform_8, window_bounds = array<i64: 8, 32>}]} {
    %c0 = arith.constant 0 : index
    %c0_0 = arith.constant 0 : index
    %0 = vector.load %arg1[%c0, %c0_0] : memref<8x32xf32, #tpu.memory_space<vmem>>, vector<8x32xf32>
    %c0_1 = arith.constant 0 : index
    %c0_2 = arith.constant 0 : index
    %1 = vector.load %arg3[%c0_1, %c0_2] : memref<1x32xf32, #tpu.memory_space<vmem>>, vector<1x32xf32>
    %c0_3 = arith.constant 0 : index
    %c0_4 = arith.constant 0 : index
    %2 = vector.load %arg4[%c0_3, %c0_4] : memref<1x32xf32, #tpu.memory_space<vmem>>, vector<1x32xf32>
    %cst = arith.constant dense<0.000000e+00> : vector<8xf32>
    %3 = vector.multi_reduction <add>, %0, %cst [1] : vector<8x32xf32> to vector<8xf32>
    %4 = vector.shape_cast %3 : vector<8xf32> to vector<8x1xf32>
    %cst_5 = arith.constant 3.200000e+01 : f32
    %5 = vector.broadcast %cst_5 : f32 to vector<8x1xf32>
    %6 = arith.divf %4, %5 : vector<8x1xf32>
    %7 = vector.broadcast %6 : vector<8x1xf32> to vector<8x32xf32>
    %8 = arith.subf %0, %7 : vector<8x32xf32>
    %9 = vector.broadcast %6 : vector<8x1xf32> to vector<8x32xf32>
    %10 = arith.subf %0, %9 : vector<8x32xf32>
    %11 = arith.mulf %8, %10 : vector<8x32xf32>
    %cst_6 = arith.constant dense<0.000000e+00> : vector<8xf32>
    %12 = vector.multi_reduction <add>, %11, %cst_6 [1] : vector<8x32xf32> to vector<8xf32>
    %13 = vector.shape_cast %12 : vector<8xf32> to vector<8x1xf32>
    %cst_7 = arith.constant 3.200000e+01 : f32
    %14 = vector.broadcast %cst_7 : f32 to vector<8x1xf32>
    %15 = arith.divf %13, %14 : vector<8x1xf32>
    %16 = vector.broadcast %6 : vector<8x1xf32> to vector<8x32xf32>
    %17 = arith.subf %0, %16 : vector<8x32xf32>
    %cst_8 = arith.constant 9.99999974E-6 : f32
    %18 = vector.broadcast %cst_8 : f32 to vector<8x1xf32>
    %19 = arith.addf %15, %18 : vector<8x1xf32>
    %20 = math.rsqrt %19 : vector<8x1xf32>
    %21 = vector.broadcast %20 : vector<8x1xf32> to vector<8x32xf32>
    %22 = arith.mulf %17, %21 : vector<8x32xf32>
    %23 = vector.broadcast %1 : vector<1x32xf32> to vector<8x32xf32>
    %24 = arith.mulf %22, %23 : vector<8x32xf32>
    %25 = vector.broadcast %2 : vector<1x32xf32> to vector<8x32xf32>
    %26 = arith.addf %24, %25 : vector<8x32xf32>
    %c0_9 = arith.constant 0 : index
    %c0_10 = arith.constant 0 : index
    %c0_11 = arith.constant 0 : index
    %27 = vector.load %arg2[%c0_9, %c0_10, %c0_11] : memref<3x8x4xf32, #tpu.memory_space<vmem>>, vector<1x8x4xf32>
    %28 = vector.shape_cast %27 : vector<1x8x4xf32> to vector<8x4xf32>
    %c1 = arith.constant 1 : index
    %c0_12 = arith.constant 0 : index
    %c0_13 = arith.constant 0 : index
    %29 = vector.load %arg2[%c1, %c0_12, %c0_13] : memref<3x8x4xf32, #tpu.memory_space<vmem>>, vector<1x8x4xf32>
    %30 = vector.shape_cast %29 : vector<1x8x4xf32> to vector<8x4xf32>
    %c2 = arith.constant 2 : index
    %c0_14 = arith.constant 0 : index
    %c0_15 = arith.constant 0 : index
    %31 = vector.load %arg2[%c2, %c0_14, %c0_15] : memref<3x8x4xf32, #tpu.memory_space<vmem>>, vector<1x8x4xf32>
    %32 = vector.shape_cast %31 : vector<1x8x4xf32> to vector<8x4xf32>
    %33 = arith.mulf %28, %28 : vector<8x4xf32>
    %34 = arith.mulf %30, %30 : vector<8x4xf32>
    %35 = arith.addf %33, %34 : vector<8x4xf32>
    %36 = arith.mulf %32, %32 : vector<8x4xf32>
    %37 = arith.addf %35, %36 : vector<8x4xf32>
    %cst_16 = arith.constant 9.99999993E-9 : f32
    %38 = vector.broadcast %cst_16 : f32 to vector<8x4xf32>
    %39 = arith.maximumf %37, %38 : vector<8x4xf32>
    %cst_17 = arith.constant dense<0.000000e+00> : vector<8xf32>
    %40 = vector.multi_reduction <add>, %39, %cst_17 [1] : vector<8x4xf32> to vector<8xf32>
    %41 = vector.shape_cast %40 : vector<8xf32> to vector<8x1xf32>
    %cst_18 = arith.constant 4.000000e+00 : f32
    %42 = vector.broadcast %cst_18 : f32 to vector<8x1xf32>
    %43 = arith.divf %41, %42 : vector<8x1xf32>
    %44 = math.rsqrt %43 : vector<8x1xf32>
    %45 = vector.broadcast %44 : vector<8x1xf32> to vector<8x4xf32>
    %46 = arith.mulf %28, %45 : vector<8x4xf32>
    %47 = vector.broadcast %44 : vector<8x1xf32> to vector<8x4xf32>
    %48 = arith.mulf %30, %47 : vector<8x4xf32>
    %49 = vector.broadcast %44 : vector<8x1xf32> to vector<8x4xf32>
    %50 = arith.mulf %32, %49 : vector<8x4xf32>
    %c0_19 = arith.constant 0 : index
    %c0_20 = arith.constant 0 : index
    %51 = vector.load %arg5[%c0_19, %c0_20] : memref<4x4xf32, #tpu.memory_space<vmem>>, vector<4x4xf32>
    %cst_21 = arith.constant dense<0.000000e+00> : vector<8x4xf32>
    %52 = tpu.matmul %46, %51, %cst_21 {dimension_numbers = #tpu.dot_dimension_numbers<[1], [0], [0], [1], [0, 0, 1, 1], [], []>} : vector<8x4xf32>, vector<4x4xf32>, vector<8x4xf32> -> vector<8x4xf32>
    %cst_22 = arith.constant dense<0.000000e+00> : vector<8x4xf32>
    %53 = tpu.matmul %48, %51, %cst_22 {dimension_numbers = #tpu.dot_dimension_numbers<[1], [0], [0], [1], [0, 0, 1, 1], [], []>} : vector<8x4xf32>, vector<4x4xf32>, vector<8x4xf32> -> vector<8x4xf32>
    %cst_23 = arith.constant dense<0.000000e+00> : vector<8x4xf32>
    %54 = tpu.matmul %50, %51, %cst_23 {dimension_numbers = #tpu.dot_dimension_numbers<[1], [0], [0], [1], [0, 0, 1, 1], [], []>} : vector<8x4xf32>, vector<4x4xf32>, vector<8x4xf32> -> vector<8x4xf32>
    %55 = arith.mulf %52, %52 : vector<8x4xf32>
    %56 = arith.mulf %53, %53 : vector<8x4xf32>
    %57 = arith.addf %55, %56 : vector<8x4xf32>
    %58 = arith.mulf %54, %54 : vector<8x4xf32>
    %59 = arith.addf %57, %58 : vector<8x4xf32>
    %cst_24 = arith.constant 9.99999993E-9 : f32
    %60 = vector.broadcast %cst_24 : f32 to vector<8x4xf32>
    %61 = arith.maximumf %59, %60 : vector<8x4xf32>
    %62 = math.sqrt %61 : vector<8x4xf32>
    %c0_25 = arith.constant 0 : index
    %c0_26 = arith.constant 0 : index
    %63 = vector.load %arg6[%c0_25, %c0_26] : memref<32x32xf32, #tpu.memory_space<vmem>>, vector<32x32xf32>
    %cst_27 = arith.constant dense<0.000000e+00> : vector<8x32xf32>
    %64 = tpu.matmul %26, %63, %cst_27 {dimension_numbers = #tpu.dot_dimension_numbers<[1], [0], [0], [1], [0, 0, 1, 1], [], []>} : vector<8x32xf32>, vector<32x32xf32>, vector<8x32xf32> -> vector<8x32xf32>
    %c0_28 = arith.constant 0 : index
    %c0_29 = arith.constant 0 : index
    %65 = vector.load %arg7[%c0_28, %c0_29] : memref<4x32xf32, #tpu.memory_space<vmem>>, vector<4x32xf32>
    %cst_30 = arith.constant dense<0.000000e+00> : vector<8x32xf32>
    %66 = tpu.matmul %62, %65, %cst_30 {dimension_numbers = #tpu.dot_dimension_numbers<[1], [0], [0], [1], [0, 0, 1, 1], [], []>} : vector<8x4xf32>, vector<4x32xf32>, vector<8x32xf32> -> vector<8x32xf32>
    %67 = arith.addf %64, %66 : vector<8x32xf32>
    %c0_31 = arith.constant 0 : index
    %c0_32 = arith.constant 0 : index
    %68 = vector.load %arg8[%c0_31, %c0_32] : memref<1x32xf32, #tpu.memory_space<vmem>>, vector<1x32xf32>
    %69 = vector.broadcast %68 : vector<1x32xf32> to vector<8x32xf32>
    %70 = arith.addf %67, %69 : vector<8x32xf32>
    %cst_33 = arith.constant 0.000000e+00 : f32
    %71 = vector.broadcast %cst_33 : f32 to vector<8x32xf32>
    %72 = arith.maximumf %70, %71 : vector<8x32xf32>
    %c0_34 = arith.constant 0 : index
    %c0_35 = arith.constant 0 : index
    %73 = vector.load %arg9[%c0_34, %c0_35] : memref<8x32xf32, #tpu.memory_space<vmem>>, vector<8x32xf32>
    tpu.vector_store %arg9[%c0_34, %c0_35], %72 {strides = array<i32>} : memref<8x32xf32, #tpu.memory_space<vmem>>, vector<8x32xf32>,
    return
  }
  func.func @transform_0(%arg0: i32) -> (i32, i32) {
    %c0_i32 = arith.constant 0 : i32
    %c0_i32_0 = arith.constant 0 : i32
    return %arg0, %c0_i32 : i32, i32
  }
  func.func @transform_1(%arg0: i32) -> (i32, i32, i32) {
    %c0_i32 = arith.constant 0 : i32
    %c0_i32_0 = arith.constant 0 : i32
    %c0_i32_1 = arith.constant 0 : i32
    return %c0_i32, %arg0, %c0_i32_0 : i32, i32, i32
  }
  func.func @transform_2(%arg0: i32) -> (i32, i32) {
    %c0_i32 = arith.constant 0 : i32
    %c0_i32_0 = arith.constant 0 : i32
    %c0_i32_1 = arith.constant 0 : i32
    return %c0_i32, %c0_i32_0 : i32, i32
  }
  func.func @transform_3(%arg0: i32) -> (i32, i32) {
    %c0_i32 = arith.constant 0 : i32
    %c0_i32_0 = arith.constant 0 : i32
    %c0_i32_1 = arith.constant 0 : i32
    return %c0_i32, %c0_i32_0 : i32, i32
  }
  func.func @transform_4(%arg0: i32) -> (i32, i32) {
    %c0_i32 = arith.constant 0 : i32
    %c0_i32_0 = arith.constant 0 : i32
    %c0_i32_1 = arith.constant 0 : i32
    return %c0_i32, %c0_i32_0 : i32, i32
  }
  func.func @transform_5(%arg0: i32) -> (i32, i32) {
    %c0_i32 = arith.constant 0 : i32
    %c0_i32_0 = arith.constant 0 : i32
    %c0_i32_1 = arith.constant 0 : i32
    return %c0_i32, %c0_i32_0 : i32, i32
  }
  func.func @transform_6(%arg0: i32) -> (i32, i32) {
    %c0_i32 = arith.constant 0 : i32
    %c0_i32_0 = arith.constant 0 : i32
    %c0_i32_1 = arith.constant 0 : i32
    return %c0_i32, %c0_i32_0 : i32, i32
  }
  func.func @transform_7(%arg0: i32) -> (i32, i32) {
    %c0_i32 = arith.constant 0 : i32
    %c0_i32_0 = arith.constant 0 : i32
    %c0_i32_1 = arith.constant 0 : i32
    return %c0_i32, %c0_i32_0 : i32, i32
  }
  func.func @transform_8(%arg0: i32) -> (i32, i32) {
    %c0_i32 = arith.constant 0 : i32
    %c0_i32_0 = arith.constant 0 : i32
    return %arg0, %c0_i32 : i32, i32
  }
}

module attributes {stable_mosaic.version = 11 : i64} {
  func.func @_gvp_conv_layer_kernel(%arg0: i32, %arg1: memref<16x32xf32, #tpu.memory_space<vmem>>, %arg2: memref<3x16x1xf32, #tpu.memory_space<vmem>>, %arg3: memref<16x1xi32, #tpu.memory_space<vmem>>, %arg4: memref<16x1xi32, #tpu.memory_space<vmem>>, %arg5: memref<1x16xi32, #tpu.memory_space<vmem>>, %arg6: memref<8x32xf32, #tpu.memory_space<vmem>>, %arg7: memref<3x8x4xf32, #tpu.memory_space<vmem>>, %arg8: memref<4x9xf32, #tpu.memory_space<vmem>>, %arg9: memref<1x9xf32, #tpu.memory_space<vmem>>, %arg10: memref<4x9xf32, #tpu.memory_space<vmem>>, %arg11: memref<32x32xf32, #tpu.memory_space<vmem>>, %arg12: memref<32x32xf32, #tpu.memory_space<vmem>>, %arg13: memref<32x32xf32, #tpu.memory_space<vmem>>, %arg14: memref<9x32xf32, #tpu.memory_space<vmem>>, %arg15: memref<1x32xf32, #tpu.memory_space<vmem>>, %arg16: memref<9x4xf32, #tpu.memory_space<vmem>>, %arg17: memref<4x4xf32, #tpu.memory_space<vmem>>, %arg18: memref<32x32xf32, #tpu.memory_space<vmem>>, %arg19: memref<4x32xf32, #tpu.memory_space<vmem>>, %arg20: memref<1x32xf32, #tpu.memory_space<vmem>>, %arg21: memref<4x4xf32, #tpu.memory_space<vmem>>, %arg22: memref<4x4xf32, #tpu.memory_space<vmem>>, %arg23: memref<32x32xf32, #tpu.memory_space<vmem>>, %arg24: memref<4x32xf32, #tpu.memory_space<vmem>>, %arg25: memref<1x32xf32, #tpu.memory_space<vmem>>, %arg26: memref<4x4xf32, #tpu.memory_space<vmem>>, %arg27: memref<1x32xf32, #tpu.memory_space<vmem>>, %arg28: memref<1x32xf32, #tpu.memory_space<vmem>>, %arg29: memref<4x8xf32, #tpu.memory_space<vmem>>, %arg30: memref<32x128xf32, #tpu.memory_space<vmem>>, %arg31: memref<8x128xf32, #tpu.memory_space<vmem>>, %arg32: memref<1x128xf32, #tpu.memory_space<vmem>>, %arg33: memref<8x8xf32, #tpu.memory_space<vmem>>, %arg34: memref<8x8xf32, #tpu.memory_space<vmem>>, %arg35: memref<128x32xf32, #tpu.memory_space<vmem>>, %arg36: memref<8x32xf32, #tpu.memory_space<vmem>>, %arg37: memref<1x32xf32, #tpu.memory_space<vmem>>, %arg38: memref<8x4xf32, #tpu.memory_space<vmem>>, %arg39: memref<1x32xf32, #tpu.memory_space<vmem>>, %arg40: memref<1x32xf32, #tpu.memory_space<vmem>>, %arg41: memref<8x32xf32, #tpu.memory_space<vmem>>, %arg42: memref<3x8x4xf32, #tpu.memory_space<vmem>>, %arg43: memref<8x32xf32, #tpu.memory_space<vmem>>, %arg44: memref<3x8x4xf32, #tpu.memory_space<vmem>>, %arg45: memref<8x1xf32, #tpu.memory_space<vmem>>) attributes {dimension_semantics = [#tpu.dimension_semantics<arbitrary>], iteration_bounds = array<i64: 1>, scalar_prefetch = 0 : i64, scratch_operands = 3 : i64, tpu.core_type = #tpu.core_type<tc>, window_params = [{transform_indices = @transform_0, window_bounds = array<i64: 16, 32>}, {transform_indices = @transform_1, window_bounds = array<i64: 3, 16, 1>}, {transform_indices = @transform_2, window_bounds = array<i64: 16, 1>}, {transform_indices = @transform_3, window_bounds = array<i64: 16, 1>}, {transform_indices = @transform_4, window_bounds = array<i64: 1, 16>}, {pipeline_mode = #tpu.pipeline_mode<synchronous>, transform_indices = @transform_5, window_bounds = array<i64: 8, 32>}, {pipeline_mode = #tpu.pipeline_mode<synchronous>, transform_indices = @transform_6, window_bounds = array<i64: 3, 8, 4>}, {pipeline_mode = #tpu.pipeline_mode<synchronous>, transform_indices = @transform_7, window_bounds = array<i64: 4, 9>}, {pipeline_mode = #tpu.pipeline_mode<synchronous>, transform_indices = @transform_8, window_bounds = array<i64: 1, 9>}, {pipeline_mode = #tpu.pipeline_mode<synchronous>, transform_indices = @transform_9, window_bounds = array<i64: 4, 9>}, {pipeline_mode = #tpu.pipeline_mode<synchronous>, transform_indices = @transform_10, window_bounds = array<i64: 32, 32>}, {pipeline_mode = #tpu.pipeline_mode<synchronous>, transform_indices = @transform_11, window_bounds = array<i64: 32, 32>}, {pipeline_mode = #tpu.pipeline_mode<synchronous>, transform_indices = @transform_12, window_bounds = array<i64: 32, 32>}, {pipeline_mode = #tpu.pipeline_mode<synchronous>, transform_indices = @transform_13, window_bounds = array<i64: 9, 32>}, {pipeline_mode = #tpu.pipeline_mode<synchronous>, transform_indices = @transform_14, window_bounds = array<i64: 1, 32>}, {pipeline_mode = #tpu.pipeline_mode<synchronous>, transform_indices = @transform_15, window_bounds = array<i64: 9, 4>}, {pipeline_mode = #tpu.pipeline_mode<synchronous>, transform_indices = @transform_16, window_bounds = array<i64: 4, 4>}, {pipeline_mode = #tpu.pipeline_mode<synchronous>, transform_indices = @transform_17, window_bounds = array<i64: 32, 32>}, {pipeline_mode = #tpu.pipeline_mode<synchronous>, transform_indices = @transform_18, window_bounds = array<i64: 4, 32>}, {pipeline_mode = #tpu.pipeline_mode<synchronous>, transform_indices = @transform_19, window_bounds = array<i64: 1, 32>}, {pipeline_mode = #tpu.pipeline_mode<synchronous>, transform_indices = @transform_20, window_bounds = array<i64: 4, 4>}, {pipeline_mode = #tpu.pipeline_mode<synchronous>, transform_indices = @transform_21, window_bounds = array<i64: 4, 4>}, {pipeline_mode = #tpu.pipeline_mode<synchronous>, transform_indices = @transform_22, window_bounds = array<i64: 32, 32>}, {pipeline_mode = #tpu.pipeline_mode<synchronous>, transform_indices = @transform_23, window_bounds = array<i64: 4, 32>}, {pipeline_mode = #tpu.pipeline_mode<synchronous>, transform_indices = @transform_24, window_bounds = array<i64: 1, 32>}, {pipeline_mode = #tpu.pipeline_mode<synchronous>, transform_indices = @transform_25, window_bounds = array<i64: 4, 4>}, {pipeline_mode = #tpu.pipeline_mode<synchronous>, transform_indices = @transform_26, window_bounds = array<i64: 1, 32>}, {pipeline_mode = #tpu.pipeline_mode<synchronous>, transform_indices = @transform_27, window_bounds = array<i64: 1, 32>}, {pipeline_mode = #tpu.pipeline_mode<synchronous>, transform_indices = @transform_28, window_bounds = array<i64: 4, 8>}, {pipeline_mode = #tpu.pipeline_mode<synchronous>, transform_indices = @transform_29, window_bounds = array<i64: 32, 128>}, {pipeline_mode = #tpu.pipeline_mode<synchronous>, transform_indices = @transform_30, window_bounds = array<i64: 8, 128>}, {pipeline_mode = #tpu.pipeline_mode<synchronous>, transform_indices = @transform_31, window_bounds = array<i64: 1, 128>}, {pipeline_mode = #tpu.pipeline_mode<synchronous>, transform_indices = @transform_32, window_bounds = array<i64: 8, 8>}, {pipeline_mode = #tpu.pipeline_mode<synchronous>, transform_indices = @transform_33, window_bounds = array<i64: 8, 8>}, {pipeline_mode = #tpu.pipeline_mode<synchronous>, transform_indices = @transform_34, window_bounds = array<i64: 128, 32>}, {pipeline_mode = #tpu.pipeline_mode<synchronous>, transform_indices = @transform_35, window_bounds = array<i64: 8, 32>}, {pipeline_mode = #tpu.pipeline_mode<synchronous>, transform_indices = @transform_36, window_bounds = array<i64: 1, 32>}, {pipeline_mode = #tpu.pipeline_mode<synchronous>, transform_indices = @transform_37, window_bounds = array<i64: 8, 4>}, {pipeline_mode = #tpu.pipeline_mode<synchronous>, transform_indices = @transform_38, window_bounds = array<i64: 1, 32>}, {pipeline_mode = #tpu.pipeline_mode<synchronous>, transform_indices = @transform_39, window_bounds = array<i64: 1, 32>}, {pipeline_mode = #tpu.pipeline_mode<synchronous>, transform_indices = @transform_40, window_bounds = array<i64: 8, 32>}, {pipeline_mode = #tpu.pipeline_mode<synchronous>, transform_indices = @transform_41, window_bounds = array<i64: 3, 8, 4>}]} {
    %c0_i32 = arith.constant 0 : i32
    %0 = arith.cmpi eq, %arg0, %c0_i32 : i32
    %1 = arith.extui %0 : i1 to i32
    %c0_i32_0 = arith.constant 0 : i32
    %2 = arith.cmpi ne, %1, %c0_i32_0 : i32
    scf.if %2 {
      %cst_149 = arith.constant 0.000000e+00 : f32
      %207 = vector.broadcast %cst_149 : f32 to vector<8x32xf32>
      %c0_150 = arith.constant 0 : index
      %c0_151 = arith.constant 0 : index
      %208 = vector.load %arg43[%c0_150, %c0_151] : memref<8x32xf32, #tpu.memory_space<vmem>>, vector<8x32xf32>
      tpu.vector_store %arg43[%c0_150, %c0_151], %207 {strides = array<i32>} : memref<8x32xf32, #tpu.memory_space<vmem>>, vector<8x32xf32>,
      %cst_152 = arith.constant 0.000000e+00 : f32
      %209 = vector.broadcast %cst_152 : f32 to vector<3x8x4xf32>
      %c0_153 = arith.constant 0 : index
      %c0_154 = arith.constant 0 : index
      %c0_155 = arith.constant 0 : index
      %210 = vector.load %arg44[%c0_153, %c0_154, %c0_155] : memref<3x8x4xf32, #tpu.memory_space<vmem>>, vector<3x8x4xf32>
      tpu.vector_store %arg44[%c0_153, %c0_154, %c0_155], %209 {strides = array<i32>} : memref<3x8x4xf32, #tpu.memory_space<vmem>>, vector<3x8x4xf32>,
      %cst_156 = arith.constant 0.000000e+00 : f32
      %211 = vector.broadcast %cst_156 : f32 to vector<8x1xf32>
      %c0_157 = arith.constant 0 : index
      %c0_158 = arith.constant 0 : index
      %212 = vector.load %arg45[%c0_157, %c0_158] : memref<8x1xf32, #tpu.memory_space<vmem>>, vector<8x1xf32>
      tpu.vector_store %arg45[%c0_157, %c0_158], %211 {strides = array<i32>} : memref<8x1xf32, #tpu.memory_space<vmem>>, vector<8x1xf32>,
    } else {
    }
    %c0 = arith.constant 0 : index
    %c0_1 = arith.constant 0 : index
    %3 = vector.load %arg6[%c0, %c0_1] : memref<8x32xf32, #tpu.memory_space<vmem>>, vector<8x32xf32>
    %c0_2 = arith.constant 0 : index
    %c0_3 = arith.constant 0 : index
    %c0_4 = arith.constant 0 : index
    %4 = vector.load %arg7[%c0_2, %c0_3, %c0_4] : memref<3x8x4xf32, #tpu.memory_space<vmem>>, vector<1x8x4xf32>
    %5 = vector.shape_cast %4 : vector<1x8x4xf32> to vector<8x4xf32>
    %c1 = arith.constant 1 : index
    %c0_5 = arith.constant 0 : index
    %c0_6 = arith.constant 0 : index
    %6 = vector.load %arg7[%c1, %c0_5, %c0_6] : memref<3x8x4xf32, #tpu.memory_space<vmem>>, vector<1x8x4xf32>
    %7 = vector.shape_cast %6 : vector<1x8x4xf32> to vector<8x4xf32>
    %c2 = arith.constant 2 : index
    %c0_7 = arith.constant 0 : index
    %c0_8 = arith.constant 0 : index
    %8 = vector.load %arg7[%c2, %c0_7, %c0_8] : memref<3x8x4xf32, #tpu.memory_space<vmem>>, vector<1x8x4xf32>
    %9 = vector.shape_cast %8 : vector<1x8x4xf32> to vector<8x4xf32>
    %10 = tpu.iota {dimensions = array<i32: 1>} : vector<16x8xi32>
    %c0_9 = arith.constant 0 : index
    %c0_10 = arith.constant 0 : index
    %11 = vector.load %arg3[%c0_9, %c0_10] : memref<16x1xi32, #tpu.memory_space<vmem>>, vector<16x1xi32>
    %12 = vector.broadcast %11 : vector<16x1xi32> to vector<16x8xi32>
    %13 = arith.cmpi eq, %10, %12 : vector<16x8xi32>
    %14 = arith.extui %13 : vector<16x8xi1> to vector<16x8xi32>
    %15 = arith.sitofp %14 : vector<16x8xi32> to vector<16x8xf32>
    %c0_11 = arith.constant 0 : index
    %c0_12 = arith.constant 0 : index
    %16 = vector.load %arg4[%c0_11, %c0_12] : memref<16x1xi32, #tpu.memory_space<vmem>>, vector<16x1xi32>
    %17 = vector.broadcast %16 : vector<16x1xi32> to vector<16x8xi32>
    %18 = arith.cmpi eq, %10, %17 : vector<16x8xi32>
    %19 = arith.extui %18 : vector<16x8xi1> to vector<16x8xi32>
    %20 = arith.sitofp %19 : vector<16x8xi32> to vector<16x8xf32>
    %cst = arith.constant dense<0.000000e+00> : vector<16x32xf32>
    %21 = tpu.matmul %15, %3, %cst {dimension_numbers = #tpu.dot_dimension_numbers<[1], [0], [0], [1], [0, 0, 1, 1], [], []>} : vector<16x8xf32>, vector<8x32xf32>, vector<16x32xf32> -> vector<16x32xf32>
    %cst_13 = arith.constant dense<0.000000e+00> : vector<16x32xf32>
    %22 = tpu.matmul %20, %3, %cst_13 {dimension_numbers = #tpu.dot_dimension_numbers<[1], [0], [0], [1], [0, 0, 1, 1], [], []>} : vector<16x8xf32>, vector<8x32xf32>, vector<16x32xf32> -> vector<16x32xf32>
    %cst_14 = arith.constant dense<0.000000e+00> : vector<16x4xf32>
    %23 = tpu.matmul %15, %5, %cst_14 {dimension_numbers = #tpu.dot_dimension_numbers<[1], [0], [0], [1], [0, 0, 1, 1], [], []>} : vector<16x8xf32>, vector<8x4xf32>, vector<16x4xf32> -> vector<16x4xf32>
    %cst_15 = arith.constant dense<0.000000e+00> : vector<16x4xf32>
    %24 = tpu.matmul %15, %7, %cst_15 {dimension_numbers = #tpu.dot_dimension_numbers<[1], [0], [0], [1], [0, 0, 1, 1], [], []>} : vector<16x8xf32>, vector<8x4xf32>, vector<16x4xf32> -> vector<16x4xf32>
    %cst_16 = arith.constant dense<0.000000e+00> : vector<16x4xf32>
    %25 = tpu.matmul %15, %9, %cst_16 {dimension_numbers = #tpu.dot_dimension_numbers<[1], [0], [0], [1], [0, 0, 1, 1], [], []>} : vector<16x8xf32>, vector<8x4xf32>, vector<16x4xf32> -> vector<16x4xf32>
    %cst_17 = arith.constant dense<0.000000e+00> : vector<16x4xf32>
    %26 = tpu.matmul %20, %5, %cst_17 {dimension_numbers = #tpu.dot_dimension_numbers<[1], [0], [0], [1], [0, 0, 1, 1], [], []>} : vector<16x8xf32>, vector<8x4xf32>, vector<16x4xf32> -> vector<16x4xf32>
    %cst_18 = arith.constant dense<0.000000e+00> : vector<16x4xf32>
    %27 = tpu.matmul %20, %7, %cst_18 {dimension_numbers = #tpu.dot_dimension_numbers<[1], [0], [0], [1], [0, 0, 1, 1], [], []>} : vector<16x8xf32>, vector<8x4xf32>, vector<16x4xf32> -> vector<16x4xf32>
    %cst_19 = arith.constant dense<0.000000e+00> : vector<16x4xf32>
    %28 = tpu.matmul %20, %9, %cst_19 {dimension_numbers = #tpu.dot_dimension_numbers<[1], [0], [0], [1], [0, 0, 1, 1], [], []>} : vector<16x8xf32>, vector<8x4xf32>, vector<16x4xf32> -> vector<16x4xf32>
    %c0_20 = arith.constant 0 : index
    %c0_21 = arith.constant 0 : index
    %29 = vector.load %arg8[%c0_20, %c0_21] : memref<4x9xf32, #tpu.memory_space<vmem>>, vector<4x9xf32>
    %c0_22 = arith.constant 0 : index
    %c0_23 = arith.constant 0 : index
    %30 = vector.load %arg9[%c0_22, %c0_23] : memref<1x9xf32, #tpu.memory_space<vmem>>, vector<1x9xf32>
    %c0_24 = arith.constant 0 : index
    %c0_25 = arith.constant 0 : index
    %31 = vector.load %arg10[%c0_24, %c0_25] : memref<4x9xf32, #tpu.memory_space<vmem>>, vector<4x9xf32>
    %cst_26 = arith.constant dense<0.000000e+00> : vector<16x9xf32>
    %32 = tpu.matmul %23, %29, %cst_26 {dimension_numbers = #tpu.dot_dimension_numbers<[1], [0], [0], [1], [0, 0, 1, 1], [], []>} : vector<16x4xf32>, vector<4x9xf32>, vector<16x9xf32> -> vector<16x9xf32>
    %c0_27 = arith.constant 0 : index
    %c0_28 = arith.constant 0 : index
    %c0_29 = arith.constant 0 : index
    %33 = vector.load %arg2[%c0_27, %c0_28, %c0_29] : memref<3x16x1xf32, #tpu.memory_space<vmem>>, vector<1x16x1xf32>
    %34 = vector.shape_cast %33 : vector<1x16x1xf32> to vector<16x1xf32>
    %cst_30 = arith.constant dense<0.000000e+00> : vector<16x9xf32>
    %35 = tpu.matmul %34, %30, %cst_30 {dimension_numbers = #tpu.dot_dimension_numbers<[1], [0], [0], [1], [0, 0, 1, 1], [], []>} : vector<16x1xf32>, vector<1x9xf32>, vector<16x9xf32> -> vector<16x9xf32>
    %36 = arith.addf %32, %35 : vector<16x9xf32>
    %cst_31 = arith.constant dense<0.000000e+00> : vector<16x9xf32>
    %37 = tpu.matmul %26, %31, %cst_31 {dimension_numbers = #tpu.dot_dimension_numbers<[1], [0], [0], [1], [0, 0, 1, 1], [], []>} : vector<16x4xf32>, vector<4x9xf32>, vector<16x9xf32> -> vector<16x9xf32>
    %38 = arith.addf %36, %37 : vector<16x9xf32>
    %cst_32 = arith.constant dense<0.000000e+00> : vector<16x9xf32>
    %39 = tpu.matmul %24, %29, %cst_32 {dimension_numbers = #tpu.dot_dimension_numbers<[1], [0], [0], [1], [0, 0, 1, 1], [], []>} : vector<16x4xf32>, vector<4x9xf32>, vector<16x9xf32> -> vector<16x9xf32>
    %c1_33 = arith.constant 1 : index
    %c0_34 = arith.constant 0 : index
    %c0_35 = arith.constant 0 : index
    %40 = vector.load %arg2[%c1_33, %c0_34, %c0_35] : memref<3x16x1xf32, #tpu.memory_space<vmem>>, vector<1x16x1xf32>
    %41 = vector.shape_cast %40 : vector<1x16x1xf32> to vector<16x1xf32>
    %cst_36 = arith.constant dense<0.000000e+00> : vector<16x9xf32>
    %42 = tpu.matmul %41, %30, %cst_36 {dimension_numbers = #tpu.dot_dimension_numbers<[1], [0], [0], [1], [0, 0, 1, 1], [], []>} : vector<16x1xf32>, vector<1x9xf32>, vector<16x9xf32> -> vector<16x9xf32>
    %43 = arith.addf %39, %42 : vector<16x9xf32>
    %cst_37 = arith.constant dense<0.000000e+00> : vector<16x9xf32>
    %44 = tpu.matmul %27, %31, %cst_37 {dimension_numbers = #tpu.dot_dimension_numbers<[1], [0], [0], [1], [0, 0, 1, 1], [], []>} : vector<16x4xf32>, vector<4x9xf32>, vector<16x9xf32> -> vector<16x9xf32>
    %45 = arith.addf %43, %44 : vector<16x9xf32>
    %cst_38 = arith.constant dense<0.000000e+00> : vector<16x9xf32>
    %46 = tpu.matmul %25, %29, %cst_38 {dimension_numbers = #tpu.dot_dimension_numbers<[1], [0], [0], [1], [0, 0, 1, 1], [], []>} : vector<16x4xf32>, vector<4x9xf32>, vector<16x9xf32> -> vector<16x9xf32>
    %c2_39 = arith.constant 2 : index
    %c0_40 = arith.constant 0 : index
    %c0_41 = arith.constant 0 : index
    %47 = vector.load %arg2[%c2_39, %c0_40, %c0_41] : memref<3x16x1xf32, #tpu.memory_space<vmem>>, vector<1x16x1xf32>
    %48 = vector.shape_cast %47 : vector<1x16x1xf32> to vector<16x1xf32>
    %cst_42 = arith.constant dense<0.000000e+00> : vector<16x9xf32>
    %49 = tpu.matmul %48, %30, %cst_42 {dimension_numbers = #tpu.dot_dimension_numbers<[1], [0], [0], [1], [0, 0, 1, 1], [], []>} : vector<16x1xf32>, vector<1x9xf32>, vector<16x9xf32> -> vector<16x9xf32>
    %50 = arith.addf %46, %49 : vector<16x9xf32>
    %cst_43 = arith.constant dense<0.000000e+00> : vector<16x9xf32>
    %51 = tpu.matmul %28, %31, %cst_43 {dimension_numbers = #tpu.dot_dimension_numbers<[1], [0], [0], [1], [0, 0, 1, 1], [], []>} : vector<16x4xf32>, vector<4x9xf32>, vector<16x9xf32> -> vector<16x9xf32>
    %52 = arith.addf %50, %51 : vector<16x9xf32>
    %c0_44 = arith.constant 0 : index
    %c0_45 = arith.constant 0 : index
    %53 = vector.load %arg11[%c0_44, %c0_45] : memref<32x32xf32, #tpu.memory_space<vmem>>, vector<32x32xf32>
    %cst_46 = arith.constant dense<0.000000e+00> : vector<16x32xf32>
    %54 = tpu.matmul %21, %53, %cst_46 {dimension_numbers = #tpu.dot_dimension_numbers<[1], [0], [0], [1], [0, 0, 1, 1], [], []>} : vector<16x32xf32>, vector<32x32xf32>, vector<16x32xf32> -> vector<16x32xf32>
    %c0_47 = arith.constant 0 : index
    %c0_48 = arith.constant 0 : index
    %55 = vector.load %arg1[%c0_47, %c0_48] : memref<16x32xf32, #tpu.memory_space<vmem>>, vector<16x32xf32>
    %c0_49 = arith.constant 0 : index
    %c0_50 = arith.constant 0 : index
    %56 = vector.load %arg12[%c0_49, %c0_50] : memref<32x32xf32, #tpu.memory_space<vmem>>, vector<32x32xf32>
    %cst_51 = arith.constant dense<0.000000e+00> : vector<16x32xf32>
    %57 = tpu.matmul %55, %56, %cst_51 {dimension_numbers = #tpu.dot_dimension_numbers<[1], [0], [0], [1], [0, 0, 1, 1], [], []>} : vector<16x32xf32>, vector<32x32xf32>, vector<16x32xf32> -> vector<16x32xf32>
    %58 = arith.addf %54, %57 : vector<16x32xf32>
    %c0_52 = arith.constant 0 : index
    %c0_53 = arith.constant 0 : index
    %59 = vector.load %arg13[%c0_52, %c0_53] : memref<32x32xf32, #tpu.memory_space<vmem>>, vector<32x32xf32>
    %cst_54 = arith.constant dense<0.000000e+00> : vector<16x32xf32>
    %60 = tpu.matmul %22, %59, %cst_54 {dimension_numbers = #tpu.dot_dimension_numbers<[1], [0], [0], [1], [0, 0, 1, 1], [], []>} : vector<16x32xf32>, vector<32x32xf32>, vector<16x32xf32> -> vector<16x32xf32>
    %61 = arith.addf %58, %60 : vector<16x32xf32>
    %c0_55 = arith.constant 0 : index
    %c0_56 = arith.constant 0 : index
    %62 = vector.load %arg14[%c0_55, %c0_56] : memref<9x32xf32, #tpu.memory_space<vmem>>, vector<9x32xf32>
    %c0_57 = arith.constant 0 : index
    %c0_58 = arith.constant 0 : index
    %63 = vector.load %arg15[%c0_57, %c0_58] : memref<1x32xf32, #tpu.memory_space<vmem>>, vector<1x32xf32>
    %c0_59 = arith.constant 0 : index
    %c0_60 = arith.constant 0 : index
    %64 = vector.load %arg16[%c0_59, %c0_60] : memref<9x4xf32, #tpu.memory_space<vmem>>, vector<9x4xf32>
    %65 = arith.mulf %38, %38 : vector<16x9xf32>
    %66 = arith.mulf %45, %45 : vector<16x9xf32>
    %67 = arith.addf %65, %66 : vector<16x9xf32>
    %68 = arith.mulf %52, %52 : vector<16x9xf32>
    %69 = arith.addf %67, %68 : vector<16x9xf32>
    %cst_61 = arith.constant 9.99999993E-9 : f32
    %70 = vector.broadcast %cst_61 : f32 to vector<16x9xf32>
    %71 = arith.maximumf %69, %70 : vector<16x9xf32>
    %72 = math.sqrt %71 : vector<16x9xf32>
    %cst_62 = arith.constant dense<0.000000e+00> : vector<16x32xf32>
    %73 = tpu.matmul %72, %62, %cst_62 {dimension_numbers = #tpu.dot_dimension_numbers<[1], [0], [0], [1], [0, 0, 1, 1], [], []>} : vector<16x9xf32>, vector<9x32xf32>, vector<16x32xf32> -> vector<16x32xf32>
    %74 = arith.addf %61, %73 : vector<16x32xf32>
    %75 = vector.broadcast %63 : vector<1x32xf32> to vector<16x32xf32>
    %76 = arith.addf %74, %75 : vector<16x32xf32>
    %cst_63 = arith.constant dense<0.000000e+00> : vector<16x4xf32>
    %77 = tpu.matmul %38, %64, %cst_63 {dimension_numbers = #tpu.dot_dimension_numbers<[1], [0], [0], [1], [0, 0, 1, 1], [], []>} : vector<16x9xf32>, vector<9x4xf32>, vector<16x4xf32> -> vector<16x4xf32>
    %cst_64 = arith.constant dense<0.000000e+00> : vector<16x4xf32>
    %78 = tpu.matmul %45, %64, %cst_64 {dimension_numbers = #tpu.dot_dimension_numbers<[1], [0], [0], [1], [0, 0, 1, 1], [], []>} : vector<16x9xf32>, vector<9x4xf32>, vector<16x4xf32> -> vector<16x4xf32>
    %cst_65 = arith.constant dense<0.000000e+00> : vector<16x4xf32>
    %79 = tpu.matmul %52, %64, %cst_65 {dimension_numbers = #tpu.dot_dimension_numbers<[1], [0], [0], [1], [0, 0, 1, 1], [], []>} : vector<16x9xf32>, vector<9x4xf32>, vector<16x4xf32> -> vector<16x4xf32>
    %80 = arith.mulf %77, %77 : vector<16x4xf32>
    %81 = arith.mulf %78, %78 : vector<16x4xf32>
    %82 = arith.addf %80, %81 : vector<16x4xf32>
    %83 = arith.mulf %79, %79 : vector<16x4xf32>
    %84 = arith.addf %82, %83 : vector<16x4xf32>
    %cst_66 = arith.constant 9.99999993E-9 : f32
    %85 = vector.broadcast %cst_66 : f32 to vector<16x4xf32>
    %86 = arith.maximumf %84, %85 : vector<16x4xf32>
    %87 = math.sqrt %86 : vector<16x4xf32>
    %cst_67 = arith.constant 0.000000e+00 : f32
    %88 = vector.broadcast %cst_67 : f32 to vector<16x4xf32>
    %89 = arith.subf %88, %87 : vector<16x4xf32>
    %90 = math.exp %89 : vector<16x4xf32>
    %cst_68 = arith.constant 1.000000e+00 : f32
    %91 = vector.broadcast %cst_68 : f32 to vector<16x4xf32>
    %92 = arith.addf %91, %90 : vector<16x4xf32>
    %cst_69 = arith.constant 1.000000e+00 : f32
    %93 = vector.broadcast %cst_69 : f32 to vector<16x4xf32>
    %94 = arith.divf %93, %92 : vector<16x4xf32>
    %95 = arith.mulf %77, %94 : vector<16x4xf32>
    %96 = arith.mulf %78, %94 : vector<16x4xf32>
    %97 = arith.mulf %79, %94 : vector<16x4xf32>
    %cst_70 = arith.constant 0.000000e+00 : f32
    %98 = vector.broadcast %cst_70 : f32 to vector<16x32xf32>
    %99 = arith.maximumf %76, %98 : vector<16x32xf32>
    %c0_71 = arith.constant 0 : index
    %c0_72 = arith.constant 0 : index
    %100 = vector.load %arg17[%c0_71, %c0_72] : memref<4x4xf32, #tpu.memory_space<vmem>>, vector<4x4xf32>
    %c0_73 = arith.constant 0 : index
    %c0_74 = arith.constant 0 : index
    %101 = vector.load %arg18[%c0_73, %c0_74] : memref<32x32xf32, #tpu.memory_space<vmem>>, vector<32x32xf32>
    %c0_75 = arith.constant 0 : index
    %c0_76 = arith.constant 0 : index
    %102 = vector.load %arg19[%c0_75, %c0_76] : memref<4x32xf32, #tpu.memory_space<vmem>>, vector<4x32xf32>
    %c0_77 = arith.constant 0 : index
    %c0_78 = arith.constant 0 : index
    %103 = vector.load %arg20[%c0_77, %c0_78] : memref<1x32xf32, #tpu.memory_space<vmem>>, vector<1x32xf32>
    %c0_79 = arith.constant 0 : index
    %c0_80 = arith.constant 0 : index
    %104 = vector.load %arg21[%c0_79, %c0_80] : memref<4x4xf32, #tpu.memory_space<vmem>>, vector<4x4xf32>
    %cst_81 = arith.constant dense<0.000000e+00> : vector<16x4xf32>
    %105 = tpu.matmul %95, %100, %cst_81 {dimension_numbers = #tpu.dot_dimension_numbers<[1], [0], [0], [1], [0, 0, 1, 1], [], []>} : vector<16x4xf32>, vector<4x4xf32>, vector<16x4xf32> -> vector<16x4xf32>
    %cst_82 = arith.constant dense<0.000000e+00> : vector<16x4xf32>
    %106 = tpu.matmul %96, %100, %cst_82 {dimension_numbers = #tpu.dot_dimension_numbers<[1], [0], [0], [1], [0, 0, 1, 1], [], []>} : vector<16x4xf32>, vector<4x4xf32>, vector<16x4xf32> -> vector<16x4xf32>
    %cst_83 = arith.constant dense<0.000000e+00> : vector<16x4xf32>
    %107 = tpu.matmul %97, %100, %cst_83 {dimension_numbers = #tpu.dot_dimension_numbers<[1], [0], [0], [1], [0, 0, 1, 1], [], []>} : vector<16x4xf32>, vector<4x4xf32>, vector<16x4xf32> -> vector<16x4xf32>
    %cst_84 = arith.constant dense<0.000000e+00> : vector<16x32xf32>
    %108 = tpu.matmul %99, %101, %cst_84 {dimension_numbers = #tpu.dot_dimension_numbers<[1], [0], [0], [1], [0, 0, 1, 1], [], []>} : vector<16x32xf32>, vector<32x32xf32>, vector<16x32xf32> -> vector<16x32xf32>
    %109 = arith.mulf %105, %105 : vector<16x4xf32>
    %110 = arith.mulf %106, %106 : vector<16x4xf32>
    %111 = arith.addf %109, %110 : vector<16x4xf32>
    %112 = arith.mulf %107, %107 : vector<16x4xf32>
    %113 = arith.addf %111, %112 : vector<16x4xf32>
    %cst_85 = arith.constant 9.99999993E-9 : f32
    %114 = vector.broadcast %cst_85 : f32 to vector<16x4xf32>
    %115 = arith.maximumf %113, %114 : vector<16x4xf32>
    %116 = math.sqrt %115 : vector<16x4xf32>
    %cst_86 = arith.constant dense<0.000000e+00> : vector<16x32xf32>
    %117 = tpu.matmul %116, %102, %cst_86 {dimension_numbers = #tpu.dot_dimension_numbers<[1], [0], [0], [1], [0, 0, 1, 1], [], []>} : vector<16x4xf32>, vector<4x32xf32>, vector<16x32xf32> -> vector<16x32xf32>
    %118 = arith.addf %108, %117 : vector<16x32xf32>
    %119 = vector.broadcast %103 : vector<1x32xf32> to vector<16x32xf32>
    %120 = arith.addf %118, %119 : vector<16x32xf32>
    %cst_87 = arith.constant dense<0.000000e+00> : vector<16x4xf32>
    %121 = tpu.matmul %105, %104, %cst_87 {dimension_numbers = #tpu.dot_dimension_numbers<[1], [0], [0], [1], [0, 0, 1, 1], [], []>} : vector<16x4xf32>, vector<4x4xf32>, vector<16x4xf32> -> vector<16x4xf32>
    %cst_88 = arith.constant dense<0.000000e+00> : vector<16x4xf32>
    %122 = tpu.matmul %106, %104, %cst_88 {dimension_numbers = #tpu.dot_dimension_numbers<[1], [0], [0], [1], [0, 0, 1, 1], [], []>} : vector<16x4xf32>, vector<4x4xf32>, vector<16x4xf32> -> vector<16x4xf32>
    %cst_89 = arith.constant dense<0.000000e+00> : vector<16x4xf32>
    %123 = tpu.matmul %107, %104, %cst_89 {dimension_numbers = #tpu.dot_dimension_numbers<[1], [0], [0], [1], [0, 0, 1, 1], [], []>} : vector<16x4xf32>, vector<4x4xf32>, vector<16x4xf32> -> vector<16x4xf32>
    %124 = arith.mulf %121, %121 : vector<16x4xf32>
    %125 = arith.mulf %122, %122 : vector<16x4xf32>
    %126 = arith.addf %124, %125 : vector<16x4xf32>
    %127 = arith.mulf %123, %123 : vector<16x4xf32>
    %128 = arith.addf %126, %127 : vector<16x4xf32>
    %cst_90 = arith.constant 9.99999993E-9 : f32
    %129 = vector.broadcast %cst_90 : f32 to vector<16x4xf32>
    %130 = arith.maximumf %128, %129 : vector<16x4xf32>
    %131 = math.sqrt %130 : vector<16x4xf32>
    %cst_91 = arith.constant 0.000000e+00 : f32
    %132 = vector.broadcast %cst_91 : f32 to vector<16x4xf32>
    %133 = arith.subf %132, %131 : vector<16x4xf32>
    %134 = math.exp %133 : vector<16x4xf32>
    %cst_92 = arith.constant 1.000000e+00 : f32
    %135 = vector.broadcast %cst_92 : f32 to vector<16x4xf32>
    %136 = arith.addf %135, %134 : vector<16x4xf32>
    %cst_93 = arith.constant 1.000000e+00 : f32
    %137 = vector.broadcast %cst_93 : f32 to vector<16x4xf32>
    %138 = arith.divf %137, %136 : vector<16x4xf32>
    %139 = arith.mulf %121, %138 : vector<16x4xf32>
    %140 = arith.mulf %122, %138 : vector<16x4xf32>
    %141 = arith.mulf %123, %138 : vector<16x4xf32>
    %cst_94 = arith.constant 0.000000e+00 : f32
    %142 = vector.broadcast %cst_94 : f32 to vector<16x32xf32>
    %143 = arith.maximumf %120, %142 : vector<16x32xf32>
    %c0_95 = arith.constant 0 : index
    %c0_96 = arith.constant 0 : index
    %144 = vector.load %arg22[%c0_95, %c0_96] : memref<4x4xf32, #tpu.memory_space<vmem>>, vector<4x4xf32>
    %c0_97 = arith.constant 0 : index
    %c0_98 = arith.constant 0 : index
    %145 = vector.load %arg23[%c0_97, %c0_98] : memref<32x32xf32, #tpu.memory_space<vmem>>, vector<32x32xf32>
    %c0_99 = arith.constant 0 : index
    %c0_100 = arith.constant 0 : index
    %146 = vector.load %arg24[%c0_99, %c0_100] : memref<4x32xf32, #tpu.memory_space<vmem>>, vector<4x32xf32>
    %c0_101 = arith.constant 0 : index
    %c0_102 = arith.constant 0 : index
    %147 = vector.load %arg25[%c0_101, %c0_102] : memref<1x32xf32, #tpu.memory_space<vmem>>, vector<1x32xf32>
    %c0_103 = arith.constant 0 : index
    %c0_104 = arith.constant 0 : index
    %148 = vector.load %arg26[%c0_103, %c0_104] : memref<4x4xf32, #tpu.memory_space<vmem>>, vector<4x4xf32>
    %cst_105 = arith.constant dense<0.000000e+00> : vector<16x4xf32>
    %149 = tpu.matmul %139, %144, %cst_105 {dimension_numbers = #tpu.dot_dimension_numbers<[1], [0], [0], [1], [0, 0, 1, 1], [], []>} : vector<16x4xf32>, vector<4x4xf32>, vector<16x4xf32> -> vector<16x4xf32>
    %cst_106 = arith.constant dense<0.000000e+00> : vector<16x4xf32>
    %150 = tpu.matmul %140, %144, %cst_106 {dimension_numbers = #tpu.dot_dimension_numbers<[1], [0], [0], [1], [0, 0, 1, 1], [], []>} : vector<16x4xf32>, vector<4x4xf32>, vector<16x4xf32> -> vector<16x4xf32>
    %cst_107 = arith.constant dense<0.000000e+00> : vector<16x4xf32>
    %151 = tpu.matmul %141, %144, %cst_107 {dimension_numbers = #tpu.dot_dimension_numbers<[1], [0], [0], [1], [0, 0, 1, 1], [], []>} : vector<16x4xf32>, vector<4x4xf32>, vector<16x4xf32> -> vector<16x4xf32>
    %cst_108 = arith.constant dense<0.000000e+00> : vector<16x32xf32>
    %152 = tpu.matmul %143, %145, %cst_108 {dimension_numbers = #tpu.dot_dimension_numbers<[1], [0], [0], [1], [0, 0, 1, 1], [], []>} : vector<16x32xf32>, vector<32x32xf32>, vector<16x32xf32> -> vector<16x32xf32>
    %153 = arith.mulf %149, %149 : vector<16x4xf32>
    %154 = arith.mulf %150, %150 : vector<16x4xf32>
    %155 = arith.addf %153, %154 : vector<16x4xf32>
    %156 = arith.mulf %151, %151 : vector<16x4xf32>
    %157 = arith.addf %155, %156 : vector<16x4xf32>
    %cst_109 = arith.constant 9.99999993E-9 : f32
    %158 = vector.broadcast %cst_109 : f32 to vector<16x4xf32>
    %159 = arith.maximumf %157, %158 : vector<16x4xf32>
    %160 = math.sqrt %159 : vector<16x4xf32>
    %cst_110 = arith.constant dense<0.000000e+00> : vector<16x32xf32>
    %161 = tpu.matmul %160, %146, %cst_110 {dimension_numbers = #tpu.dot_dimension_numbers<[1], [0], [0], [1], [0, 0, 1, 1], [], []>} : vector<16x4xf32>, vector<4x32xf32>, vector<16x32xf32> -> vector<16x32xf32>
    %162 = arith.addf %152, %161 : vector<16x32xf32>
    %163 = vector.broadcast %147 : vector<1x32xf32> to vector<16x32xf32>
    %164 = arith.addf %162, %163 : vector<16x32xf32>
    %cst_111 = arith.constant dense<0.000000e+00> : vector<16x4xf32>
    %165 = tpu.matmul %149, %148, %cst_111 {dimension_numbers = #tpu.dot_dimension_numbers<[1], [0], [0], [1], [0, 0, 1, 1], [], []>} : vector<16x4xf32>, vector<4x4xf32>, vector<16x4xf32> -> vector<16x4xf32>
    %cst_112 = arith.constant dense<0.000000e+00> : vector<16x4xf32>
    %166 = tpu.matmul %150, %148, %cst_112 {dimension_numbers = #tpu.dot_dimension_numbers<[1], [0], [0], [1], [0, 0, 1, 1], [], []>} : vector<16x4xf32>, vector<4x4xf32>, vector<16x4xf32> -> vector<16x4xf32>
    %cst_113 = arith.constant dense<0.000000e+00> : vector<16x4xf32>
    %167 = tpu.matmul %151, %148, %cst_113 {dimension_numbers = #tpu.dot_dimension_numbers<[1], [0], [0], [1], [0, 0, 1, 1], [], []>} : vector<16x4xf32>, vector<4x4xf32>, vector<16x4xf32> -> vector<16x4xf32>
    %168 = tpu.iota {dimensions = array<i32: 0>} : vector<8x16xi32>
    %c0_114 = arith.constant 0 : index
    %c0_115 = arith.constant 0 : index
    %169 = vector.load %arg5[%c0_114, %c0_115] : memref<1x16xi32, #tpu.memory_space<vmem>>, vector<1x16xi32>
    %170 = vector.broadcast %169 : vector<1x16xi32> to vector<8x16xi32>
    %171 = arith.cmpi eq, %168, %170 : vector<8x16xi32>
    %172 = arith.extui %171 : vector<8x16xi1> to vector<8x16xi32>
    %173 = arith.sitofp %172 : vector<8x16xi32> to vector<8x16xf32>
    %c0_116 = arith.constant 0 : index
    %c0_117 = arith.constant 0 : index
    %174 = vector.load %arg43[%c0_116, %c0_117] : memref<8x32xf32, #tpu.memory_space<vmem>>, vector<8x32xf32>
    %cst_118 = arith.constant dense<0.000000e+00> : vector<8x32xf32>
    %175 = tpu.matmul %173, %164, %cst_118 {dimension_numbers = #tpu.dot_dimension_numbers<[1], [0], [0], [1], [0, 0, 1, 1], [], []>} : vector<8x16xf32>, vector<16x32xf32>, vector<8x32xf32> -> vector<8x32xf32>
    %176 = arith.addf %174, %175 : vector<8x32xf32>
    %c0_119 = arith.constant 0 : index
    %c0_120 = arith.constant 0 : index
    %177 = vector.load %arg43[%c0_119, %c0_120] : memref<8x32xf32, #tpu.memory_space<vmem>>, vector<8x32xf32>
    tpu.vector_store %arg43[%c0_119, %c0_120], %176 {strides = array<i32>} : memref<8x32xf32, #tpu.memory_space<vmem>>, vector<8x32xf32>,
    %c0_121 = arith.constant 0 : index
    %c0_122 = arith.constant 0 : index
    %c0_123 = arith.constant 0 : index
    %178 = vector.load %arg44[%c0_121, %c0_122, %c0_123] : memref<3x8x4xf32, #tpu.memory_space<vmem>>, vector<1x8x4xf32>
    %179 = vector.shape_cast %178 : vector<1x8x4xf32> to vector<8x4xf32>
    %cst_124 = arith.constant dense<0.000000e+00> : vector<8x4xf32>
    %180 = tpu.matmul %173, %165, %cst_124 {dimension_numbers = #tpu.dot_dimension_numbers<[1], [0], [0], [1], [0, 0, 1, 1], [], []>} : vector<8x16xf32>, vector<16x4xf32>, vector<8x4xf32> -> vector<8x4xf32>
    %181 = arith.addf %179, %180 : vector<8x4xf32>
    %c0_125 = arith.constant 0 : index
    %c0_126 = arith.constant 0 : index
    %c0_127 = arith.constant 0 : index
    %182 = vector.load %arg44[%c0_125, %c0_126, %c0_127] : memref<3x8x4xf32, #tpu.memory_space<vmem>>, vector<1x8x4xf32>
    %183 = vector.shape_cast %182 : vector<1x8x4xf32> to vector<8x4xf32>
    %184 = vector.shape_cast %181 : vector<8x4xf32> to vector<1x8x4xf32>
    tpu.vector_store %arg44[%c0_125, %c0_126, %c0_127], %184 {strides = array<i32>} : memref<3x8x4xf32, #tpu.memory_space<vmem>>, vector<1x8x4xf32>,
    %c1_128 = arith.constant 1 : index
    %c0_129 = arith.constant 0 : index
    %c0_130 = arith.constant 0 : index
    %185 = vector.load %arg44[%c1_128, %c0_129, %c0_130] : memref<3x8x4xf32, #tpu.memory_space<vmem>>, vector<1x8x4xf32>
    %186 = vector.shape_cast %185 : vector<1x8x4xf32> to vector<8x4xf32>
    %cst_131 = arith.constant dense<0.000000e+00> : vector<8x4xf32>
    %187 = tpu.matmul %173, %166, %cst_131 {dimension_numbers = #tpu.dot_dimension_numbers<[1], [0], [0], [1], [0, 0, 1, 1], [], []>} : vector<8x16xf32>, vector<16x4xf32>, vector<8x4xf32> -> vector<8x4xf32>
    %188 = arith.addf %186, %187 : vector<8x4xf32>
    %c1_132 = arith.constant 1 : index
    %c0_133 = arith.constant 0 : index
    %c0_134 = arith.constant 0 : index
    %189 = vector.load %arg44[%c1_132, %c0_133, %c0_134] : memref<3x8x4xf32, #tpu.memory_space<vmem>>, vector<1x8x4xf32>
    %190 = vector.shape_cast %189 : vector<1x8x4xf32> to vector<8x4xf32>
    %191 = vector.shape_cast %188 : vector<8x4xf32> to vector<1x8x4xf32>
    tpu.vector_store %arg44[%c1_132, %c0_133, %c0_134], %191 {strides = array<i32>} : memref<3x8x4xf32, #tpu.memory_space<vmem>>, vector<1x8x4xf32>,
    %c2_135 = arith.constant 2 : index
    %c0_136 = arith.constant 0 : index
    %c0_137 = arith.constant 0 : index
    %192 = vector.load %arg44[%c2_135, %c0_136, %c0_137] : memref<3x8x4xf32, #tpu.memory_space<vmem>>, vector<1x8x4xf32>
    %193 = vector.shape_cast %192 : vector<1x8x4xf32> to vector<8x4xf32>
    %cst_138 = arith.constant dense<0.000000e+00> : vector<8x4xf32>
    %194 = tpu.matmul %173, %167, %cst_138 {dimension_numbers = #tpu.dot_dimension_numbers<[1], [0], [0], [1], [0, 0, 1, 1], [], []>} : vector<8x16xf32>, vector<16x4xf32>, vector<8x4xf32> -> vector<8x4xf32>
    %195 = arith.addf %193, %194 : vector<8x4xf32>
    %c2_139 = arith.constant 2 : index
    %c0_140 = arith.constant 0 : index
    %c0_141 = arith.constant 0 : index
    %196 = vector.load %arg44[%c2_139, %c0_140, %c0_141] : memref<3x8x4xf32, #tpu.memory_space<vmem>>, vector<1x8x4xf32>
    %197 = vector.shape_cast %196 : vector<1x8x4xf32> to vector<8x4xf32>
    %198 = vector.shape_cast %195 : vector<8x4xf32> to vector<1x8x4xf32>
    tpu.vector_store %arg44[%c2_139, %c0_140, %c0_141], %198 {strides = array<i32>} : memref<3x8x4xf32, #tpu.memory_space<vmem>>, vector<1x8x4xf32>,
    %c0_142 = arith.constant 0 : index
    %c0_143 = arith.constant 0 : index
    %199 = vector.load %arg45[%c0_142, %c0_143] : memref<8x1xf32, #tpu.memory_space<vmem>>, vector<8x1xf32>
    %cst_144 = arith.constant dense<0.000000e+00> : vector<8xf32>
    %200 = vector.multi_reduction <add>, %173, %cst_144 [1] : vector<8x16xf32> to vector<8xf32>
    %201 = vector.shape_cast %200 : vector<8xf32> to vector<8x1xf32>
    %202 = arith.addf %199, %201 : vector<8x1xf32>
    %c0_145 = arith.constant 0 : index
    %c0_146 = arith.constant 0 : index
    %203 = vector.load %arg45[%c0_145, %c0_146] : memref<8x1xf32, #tpu.memory_space<vmem>>, vector<8x1xf32>
    tpu.vector_store %arg45[%c0_145, %c0_146], %202 {strides = array<i32>} : memref<8x1xf32, #tpu.memory_space<vmem>>, vector<8x1xf32>,
    %c0_i32_147 = arith.constant 0 : i32
    %204 = arith.cmpi eq, %arg0, %c0_i32_147 : i32
    %205 = arith.extui %204 : i1 to i32
    %c0_i32_148 = arith.constant 0 : i32
    %206 = arith.cmpi ne, %205, %c0_i32_148 : i32
    scf.if %206 {
      %c0_149 = arith.constant 0 : index
      %c0_150 = arith.constant 0 : index
      %207 = vector.load %arg45[%c0_149, %c0_150] : memref<8x1xf32, #tpu.memory_space<vmem>>, vector<8x1xf32>
      %cst_151 = arith.constant 1.000000e+00 : f32
      %208 = vector.broadcast %cst_151 : f32 to vector<8x1xf32>
      %209 = arith.maximumf %207, %208 : vector<8x1xf32>
      %cst_152 = arith.constant 1.000000e+00 : f32
      %210 = vector.broadcast %cst_152 : f32 to vector<8x1xf32>
      %211 = arith.divf %210, %209 : vector<8x1xf32>
      %c0_153 = arith.constant 0 : index
      %c0_154 = arith.constant 0 : index
      %212 = vector.load %arg43[%c0_153, %c0_154] : memref<8x32xf32, #tpu.memory_space<vmem>>, vector<8x32xf32>
      %213 = vector.broadcast %211 : vector<8x1xf32> to vector<8x32xf32>
      %214 = arith.mulf %212, %213 : vector<8x32xf32>
      %215 = arith.addf %3, %214 : vector<8x32xf32>
      %c0_155 = arith.constant 0 : index
      %c0_156 = arith.constant 0 : index
      %c0_157 = arith.constant 0 : index
      %216 = vector.load %arg44[%c0_155, %c0_156, %c0_157] : memref<3x8x4xf32, #tpu.memory_space<vmem>>, vector<1x8x4xf32>
      %217 = vector.shape_cast %216 : vector<1x8x4xf32> to vector<8x4xf32>
      %218 = vector.broadcast %211 : vector<8x1xf32> to vector<8x4xf32>
      %219 = arith.mulf %217, %218 : vector<8x4xf32>
      %220 = arith.addf %5, %219 : vector<8x4xf32>
      %c1_158 = arith.constant 1 : index
      %c0_159 = arith.constant 0 : index
      %c0_160 = arith.constant 0 : index
      %221 = vector.load %arg44[%c1_158, %c0_159, %c0_160] : memref<3x8x4xf32, #tpu.memory_space<vmem>>, vector<1x8x4xf32>
      %222 = vector.shape_cast %221 : vector<1x8x4xf32> to vector<8x4xf32>
      %223 = vector.broadcast %211 : vector<8x1xf32> to vector<8x4xf32>
      %224 = arith.mulf %222, %223 : vector<8x4xf32>
      %225 = arith.addf %7, %224 : vector<8x4xf32>
      %c2_161 = arith.constant 2 : index
      %c0_162 = arith.constant 0 : index
      %c0_163 = arith.constant 0 : index
      %226 = vector.load %arg44[%c2_161, %c0_162, %c0_163] : memref<3x8x4xf32, #tpu.memory_space<vmem>>, vector<1x8x4xf32>
      %227 = vector.shape_cast %226 : vector<1x8x4xf32> to vector<8x4xf32>
      %228 = vector.broadcast %211 : vector<8x1xf32> to vector<8x4xf32>
      %229 = arith.mulf %227, %228 : vector<8x4xf32>
      %230 = arith.addf %9, %229 : vector<8x4xf32>
      %c0_164 = arith.constant 0 : index
      %c0_165 = arith.constant 0 : index
      %231 = vector.load %arg27[%c0_164, %c0_165] : memref<1x32xf32, #tpu.memory_space<vmem>>, vector<1x32xf32>
      %c0_166 = arith.constant 0 : index
      %c0_167 = arith.constant 0 : index
      %232 = vector.load %arg28[%c0_166, %c0_167] : memref<1x32xf32, #tpu.memory_space<vmem>>, vector<1x32xf32>
      %cst_168 = arith.constant dense<0.000000e+00> : vector<8xf32>
      %233 = vector.multi_reduction <add>, %215, %cst_168 [1] : vector<8x32xf32> to vector<8xf32>
      %234 = vector.shape_cast %233 : vector<8xf32> to vector<8x1xf32>
      %cst_169 = arith.constant 3.200000e+01 : f32
      %235 = vector.broadcast %cst_169 : f32 to vector<8x1xf32>
      %236 = arith.divf %234, %235 : vector<8x1xf32>
      %237 = vector.broadcast %236 : vector<8x1xf32> to vector<8x32xf32>
      %238 = arith.subf %215, %237 : vector<8x32xf32>
      %239 = vector.broadcast %236 : vector<8x1xf32> to vector<8x32xf32>
      %240 = arith.subf %215, %239 : vector<8x32xf32>
      %241 = arith.mulf %238, %240 : vector<8x32xf32>
      %cst_170 = arith.constant dense<0.000000e+00> : vector<8xf32>
      %242 = vector.multi_reduction <add>, %241, %cst_170 [1] : vector<8x32xf32> to vector<8xf32>
      %243 = vector.shape_cast %242 : vector<8xf32> to vector<8x1xf32>
      %cst_171 = arith.constant 3.200000e+01 : f32
      %244 = vector.broadcast %cst_171 : f32 to vector<8x1xf32>
      %245 = arith.divf %243, %244 : vector<8x1xf32>
      %246 = vector.broadcast %236 : vector<8x1xf32> to vector<8x32xf32>
      %247 = arith.subf %215, %246 : vector<8x32xf32>
      %cst_172 = arith.constant 9.99999974E-6 : f32
      %248 = vector.broadcast %cst_172 : f32 to vector<8x1xf32>
      %249 = arith.addf %245, %248 : vector<8x1xf32>
      %250 = math.rsqrt %249 : vector<8x1xf32>
      %251 = vector.broadcast %250 : vector<8x1xf32> to vector<8x32xf32>
      %252 = arith.mulf %247, %251 : vector<8x32xf32>
      %253 = vector.broadcast %231 : vector<1x32xf32> to vector<8x32xf32>
      %254 = arith.mulf %252, %253 : vector<8x32xf32>
      %255 = vector.broadcast %232 : vector<1x32xf32> to vector<8x32xf32>
      %256 = arith.addf %254, %255 : vector<8x32xf32>
      %257 = arith.mulf %220, %220 : vector<8x4xf32>
      %258 = arith.mulf %225, %225 : vector<8x4xf32>
      %259 = arith.addf %257, %258 : vector<8x4xf32>
      %260 = arith.mulf %230, %230 : vector<8x4xf32>
      %261 = arith.addf %259, %260 : vector<8x4xf32>
      %cst_173 = arith.constant 9.99999993E-9 : f32
      %262 = vector.broadcast %cst_173 : f32 to vector<8x4xf32>
      %263 = arith.maximumf %261, %262 : vector<8x4xf32>
      %cst_174 = arith.constant dense<0.000000e+00> : vector<8xf32>
      %264 = vector.multi_reduction <add>, %263, %cst_174 [1] : vector<8x4xf32> to vector<8xf32>
      %265 = vector.shape_cast %264 : vector<8xf32> to vector<8x1xf32>
      %cst_175 = arith.constant 4.000000e+00 : f32
      %266 = vector.broadcast %cst_175 : f32 to vector<8x1xf32>
      %267 = arith.divf %265, %266 : vector<8x1xf32>
      %268 = math.rsqrt %267 : vector<8x1xf32>
      %269 = vector.broadcast %268 : vector<8x1xf32> to vector<8x4xf32>
      %270 = arith.mulf %220, %269 : vector<8x4xf32>
      %271 = vector.broadcast %268 : vector<8x1xf32> to vector<8x4xf32>
      %272 = arith.mulf %225, %271 : vector<8x4xf32>
      %273 = vector.broadcast %268 : vector<8x1xf32> to vector<8x4xf32>
      %274 = arith.mulf %230, %273 : vector<8x4xf32>
      %c0_176 = arith.constant 0 : index
      %c0_177 = arith.constant 0 : index
      %275 = vector.load %arg29[%c0_176, %c0_177] : memref<4x8xf32, #tpu.memory_space<vmem>>, vector<4x8xf32>
      %c0_178 = arith.constant 0 : index
      %c0_179 = arith.constant 0 : index
      %276 = vector.load %arg30[%c0_178, %c0_179] : memref<32x128xf32, #tpu.memory_space<vmem>>, vector<32x128xf32>
      %c0_180 = arith.constant 0 : index
      %c0_181 = arith.constant 0 : index
      %277 = vector.load %arg31[%c0_180, %c0_181] : memref<8x128xf32, #tpu.memory_space<vmem>>, vector<8x128xf32>
      %c0_182 = arith.constant 0 : index
      %c0_183 = arith.constant 0 : index
      %278 = vector.load %arg32[%c0_182, %c0_183] : memref<1x128xf32, #tpu.memory_space<vmem>>, vector<1x128xf32>
      %c0_184 = arith.constant 0 : index
      %c0_185 = arith.constant 0 : index
      %279 = vector.load %arg33[%c0_184, %c0_185] : memref<8x8xf32, #tpu.memory_space<vmem>>, vector<8x8xf32>
      %cst_186 = arith.constant dense<0.000000e+00> : vector<8x8xf32>
      %280 = tpu.matmul %270, %275, %cst_186 {dimension_numbers = #tpu.dot_dimension_numbers<[1], [0], [0], [1], [0, 0, 1, 1], [], []>} : vector<8x4xf32>, vector<4x8xf32>, vector<8x8xf32> -> vector<8x8xf32>
      %cst_187 = arith.constant dense<0.000000e+00> : vector<8x8xf32>
      %281 = tpu.matmul %272, %275, %cst_187 {dimension_numbers = #tpu.dot_dimension_numbers<[1], [0], [0], [1], [0, 0, 1, 1], [], []>} : vector<8x4xf32>, vector<4x8xf32>, vector<8x8xf32> -> vector<8x8xf32>
      %cst_188 = arith.constant dense<0.000000e+00> : vector<8x8xf32>
      %282 = tpu.matmul %274, %275, %cst_188 {dimension_numbers = #tpu.dot_dimension_numbers<[1], [0], [0], [1], [0, 0, 1, 1], [], []>} : vector<8x4xf32>, vector<4x8xf32>, vector<8x8xf32> -> vector<8x8xf32>
      %cst_189 = arith.constant dense<0.000000e+00> : vector<8x128xf32>
      %283 = tpu.matmul %256, %276, %cst_189 {dimension_numbers = #tpu.dot_dimension_numbers<[1], [0], [0], [1], [0, 0, 1, 1], [], []>} : vector<8x32xf32>, vector<32x128xf32>, vector<8x128xf32> -> vector<8x128xf32>
      %284 = arith.mulf %280, %280 : vector<8x8xf32>
      %285 = arith.mulf %281, %281 : vector<8x8xf32>
      %286 = arith.addf %284, %285 : vector<8x8xf32>
      %287 = arith.mulf %282, %282 : vector<8x8xf32>
      %288 = arith.addf %286, %287 : vector<8x8xf32>
      %cst_190 = arith.constant 9.99999993E-9 : f32
      %289 = vector.broadcast %cst_190 : f32 to vector<8x8xf32>
      %290 = arith.maximumf %288, %289 : vector<8x8xf32>
      %291 = math.sqrt %290 : vector<8x8xf32>
      %cst_191 = arith.constant dense<0.000000e+00> : vector<8x128xf32>
      %292 = tpu.matmul %291, %277, %cst_191 {dimension_numbers = #tpu.dot_dimension_numbers<[1], [0], [0], [1], [0, 0, 1, 1], [], []>} : vector<8x8xf32>, vector<8x128xf32>, vector<8x128xf32> -> vector<8x128xf32>
      %293 = arith.addf %283, %292 : vector<8x128xf32>
      %294 = vector.broadcast %278 : vector<1x128xf32> to vector<8x128xf32>
      %295 = arith.addf %293, %294 : vector<8x128xf32>
      %cst_192 = arith.constant dense<0.000000e+00> : vector<8x8xf32>
      %296 = tpu.matmul %280, %279, %cst_192 {dimension_numbers = #tpu.dot_dimension_numbers<[1], [0], [0], [1], [0, 0, 1, 1], [], []>} : vector<8x8xf32>, vector<8x8xf32>, vector<8x8xf32> -> vector<8x8xf32>
      %cst_193 = arith.constant dense<0.000000e+00> : vector<8x8xf32>
      %297 = tpu.matmul %281, %279, %cst_193 {dimension_numbers = #tpu.dot_dimension_numbers<[1], [0], [0], [1], [0, 0, 1, 1], [], []>} : vector<8x8xf32>, vector<8x8xf32>, vector<8x8xf32> -> vector<8x8xf32>
      %cst_194 = arith.constant dense<0.000000e+00> : vector<8x8xf32>
      %298 = tpu.matmul %282, %279, %cst_194 {dimension_numbers = #tpu.dot_dimension_numbers<[1], [0], [0], [1], [0, 0, 1, 1], [], []>} : vector<8x8xf32>, vector<8x8xf32>, vector<8x8xf32> -> vector<8x8xf32>
      %299 = arith.mulf %296, %296 : vector<8x8xf32>
      %300 = arith.mulf %297, %297 : vector<8x8xf32>
      %301 = arith.addf %299, %300 : vector<8x8xf32>
      %302 = arith.mulf %298, %298 : vector<8x8xf32>
      %303 = arith.addf %301, %302 : vector<8x8xf32>
      %cst_195 = arith.constant 9.99999993E-9 : f32
      %304 = vector.broadcast %cst_195 : f32 to vector<8x8xf32>
      %305 = arith.maximumf %303, %304 : vector<8x8xf32>
      %306 = math.sqrt %305 : vector<8x8xf32>
      %cst_196 = arith.constant 0.000000e+00 : f32
      %307 = vector.broadcast %cst_196 : f32 to vector<8x8xf32>
      %308 = arith.subf %307, %306 : vector<8x8xf32>
      %309 = math.exp %308 : vector<8x8xf32>
      %cst_197 = arith.constant 1.000000e+00 : f32
      %310 = vector.broadcast %cst_197 : f32 to vector<8x8xf32>
      %311 = arith.addf %310, %309 : vector<8x8xf32>
      %cst_198 = arith.constant 1.000000e+00 : f32
      %312 = vector.broadcast %cst_198 : f32 to vector<8x8xf32>
      %313 = arith.divf %312, %311 : vector<8x8xf32>
      %314 = arith.mulf %296, %313 : vector<8x8xf32>
      %315 = arith.mulf %297, %313 : vector<8x8xf32>
      %316 = arith.mulf %298, %313 : vector<8x8xf32>
      %cst_199 = arith.constant 0.000000e+00 : f32
      %317 = vector.broadcast %cst_199 : f32 to vector<8x128xf32>
      %318 = arith.maximumf %295, %317 : vector<8x128xf32>
      %c0_200 = arith.constant 0 : index
      %c0_201 = arith.constant 0 : index
      %319 = vector.load %arg34[%c0_200, %c0_201] : memref<8x8xf32, #tpu.memory_space<vmem>>, vector<8x8xf32>
      %c0_202 = arith.constant 0 : index
      %c0_203 = arith.constant 0 : index
      %320 = vector.load %arg35[%c0_202, %c0_203] : memref<128x32xf32, #tpu.memory_space<vmem>>, vector<128x32xf32>
      %c0_204 = arith.constant 0 : index
      %c0_205 = arith.constant 0 : index
      %321 = vector.load %arg36[%c0_204, %c0_205] : memref<8x32xf32, #tpu.memory_space<vmem>>, vector<8x32xf32>
      %c0_206 = arith.constant 0 : index
      %c0_207 = arith.constant 0 : index
      %322 = vector.load %arg37[%c0_206, %c0_207] : memref<1x32xf32, #tpu.memory_space<vmem>>, vector<1x32xf32>
      %c0_208 = arith.constant 0 : index
      %c0_209 = arith.constant 0 : index
      %323 = vector.load %arg38[%c0_208, %c0_209] : memref<8x4xf32, #tpu.memory_space<vmem>>, vector<8x4xf32>
      %cst_210 = arith.constant dense<0.000000e+00> : vector<8x8xf32>
      %324 = tpu.matmul %314, %319, %cst_210 {dimension_numbers = #tpu.dot_dimension_numbers<[1], [0], [0], [1], [0, 0, 1, 1], [], []>} : vector<8x8xf32>, vector<8x8xf32>, vector<8x8xf32> -> vector<8x8xf32>
      %cst_211 = arith.constant dense<0.000000e+00> : vector<8x8xf32>
      %325 = tpu.matmul %315, %319, %cst_211 {dimension_numbers = #tpu.dot_dimension_numbers<[1], [0], [0], [1], [0, 0, 1, 1], [], []>} : vector<8x8xf32>, vector<8x8xf32>, vector<8x8xf32> -> vector<8x8xf32>
      %cst_212 = arith.constant dense<0.000000e+00> : vector<8x8xf32>
      %326 = tpu.matmul %316, %319, %cst_212 {dimension_numbers = #tpu.dot_dimension_numbers<[1], [0], [0], [1], [0, 0, 1, 1], [], []>} : vector<8x8xf32>, vector<8x8xf32>, vector<8x8xf32> -> vector<8x8xf32>
      %cst_213 = arith.constant dense<0.000000e+00> : vector<8x32xf32>
      %327 = tpu.matmul %318, %320, %cst_213 {dimension_numbers = #tpu.dot_dimension_numbers<[1], [0], [0], [1], [0, 0, 1, 1], [], []>} : vector<8x128xf32>, vector<128x32xf32>, vector<8x32xf32> -> vector<8x32xf32>
      %328 = arith.mulf %324, %324 : vector<8x8xf32>
      %329 = arith.mulf %325, %325 : vector<8x8xf32>
      %330 = arith.addf %328, %329 : vector<8x8xf32>
      %331 = arith.mulf %326, %326 : vector<8x8xf32>
      %332 = arith.addf %330, %331 : vector<8x8xf32>
      %cst_214 = arith.constant 9.99999993E-9 : f32
      %333 = vector.broadcast %cst_214 : f32 to vector<8x8xf32>
      %334 = arith.maximumf %332, %333 : vector<8x8xf32>
      %335 = math.sqrt %334 : vector<8x8xf32>
      %cst_215 = arith.constant dense<0.000000e+00> : vector<8x32xf32>
      %336 = tpu.matmul %335, %321, %cst_215 {dimension_numbers = #tpu.dot_dimension_numbers<[1], [0], [0], [1], [0, 0, 1, 1], [], []>} : vector<8x8xf32>, vector<8x32xf32>, vector<8x32xf32> -> vector<8x32xf32>
      %337 = arith.addf %327, %336 : vector<8x32xf32>
      %338 = vector.broadcast %322 : vector<1x32xf32> to vector<8x32xf32>
      %339 = arith.addf %337, %338 : vector<8x32xf32>
      %cst_216 = arith.constant dense<0.000000e+00> : vector<8x4xf32>
      %340 = tpu.matmul %324, %323, %cst_216 {dimension_numbers = #tpu.dot_dimension_numbers<[1], [0], [0], [1], [0, 0, 1, 1], [], []>} : vector<8x8xf32>, vector<8x4xf32>, vector<8x4xf32> -> vector<8x4xf32>
      %cst_217 = arith.constant dense<0.000000e+00> : vector<8x4xf32>
      %341 = tpu.matmul %325, %323, %cst_217 {dimension_numbers = #tpu.dot_dimension_numbers<[1], [0], [0], [1], [0, 0, 1, 1], [], []>} : vector<8x8xf32>, vector<8x4xf32>, vector<8x4xf32> -> vector<8x4xf32>
      %cst_218 = arith.constant dense<0.000000e+00> : vector<8x4xf32>
      %342 = tpu.matmul %326, %323, %cst_218 {dimension_numbers = #tpu.dot_dimension_numbers<[1], [0], [0], [1], [0, 0, 1, 1], [], []>} : vector<8x8xf32>, vector<8x4xf32>, vector<8x4xf32> -> vector<8x4xf32>
      %343 = arith.addf %256, %339 : vector<8x32xf32>
      %c0_219 = arith.constant 0 : index
      %c0_220 = arith.constant 0 : index
      %344 = vector.load %arg39[%c0_219, %c0_220] : memref<1x32xf32, #tpu.memory_space<vmem>>, vector<1x32xf32>
      %c0_221 = arith.constant 0 : index
      %c0_222 = arith.constant 0 : index
      %345 = vector.load %arg40[%c0_221, %c0_222] : memref<1x32xf32, #tpu.memory_space<vmem>>, vector<1x32xf32>
      %cst_223 = arith.constant dense<0.000000e+00> : vector<8xf32>
      %346 = vector.multi_reduction <add>, %343, %cst_223 [1] : vector<8x32xf32> to vector<8xf32>
      %347 = vector.shape_cast %346 : vector<8xf32> to vector<8x1xf32>
      %cst_224 = arith.constant 3.200000e+01 : f32
      %348 = vector.broadcast %cst_224 : f32 to vector<8x1xf32>
      %349 = arith.divf %347, %348 : vector<8x1xf32>
      %350 = vector.broadcast %349 : vector<8x1xf32> to vector<8x32xf32>
      %351 = arith.subf %343, %350 : vector<8x32xf32>
      %352 = vector.broadcast %349 : vector<8x1xf32> to vector<8x32xf32>
      %353 = arith.subf %343, %352 : vector<8x32xf32>
      %354 = arith.mulf %351, %353 : vector<8x32xf32>
      %cst_225 = arith.constant dense<0.000000e+00> : vector<8xf32>
      %355 = vector.multi_reduction <add>, %354, %cst_225 [1] : vector<8x32xf32> to vector<8xf32>
      %356 = vector.shape_cast %355 : vector<8xf32> to vector<8x1xf32>
      %cst_226 = arith.constant 3.200000e+01 : f32
      %357 = vector.broadcast %cst_226 : f32 to vector<8x1xf32>
      %358 = arith.divf %356, %357 : vector<8x1xf32>
      %359 = vector.broadcast %349 : vector<8x1xf32> to vector<8x32xf32>
      %360 = arith.subf %343, %359 : vector<8x32xf32>
      %cst_227 = arith.constant 9.99999974E-6 : f32
      %361 = vector.broadcast %cst_227 : f32 to vector<8x1xf32>
      %362 = arith.addf %358, %361 : vector<8x1xf32>
      %363 = math.rsqrt %362 : vector<8x1xf32>
      %364 = vector.broadcast %363 : vector<8x1xf32> to vector<8x32xf32>
      %365 = arith.mulf %360, %364 : vector<8x32xf32>
      %366 = vector.broadcast %344 : vector<1x32xf32> to vector<8x32xf32>
      %367 = arith.mulf %365, %366 : vector<8x32xf32>
      %368 = vector.broadcast %345 : vector<1x32xf32> to vector<8x32xf32>
      %369 = arith.addf %367, %368 : vector<8x32xf32>
      %370 = arith.addf %270, %340 : vector<8x4xf32>
      %371 = arith.addf %272, %341 : vector<8x4xf32>
      %372 = arith.addf %274, %342 : vector<8x4xf32>
      %373 = arith.mulf %370, %370 : vector<8x4xf32>
      %374 = arith.mulf %371, %371 : vector<8x4xf32>
      %375 = arith.addf %373, %374 : vector<8x4xf32>
      %376 = arith.mulf %372, %372 : vector<8x4xf32>
      %377 = arith.addf %375, %376 : vector<8x4xf32>
      %cst_228 = arith.constant 9.99999993E-9 : f32
      %378 = vector.broadcast %cst_228 : f32 to vector<8x4xf32>
      %379 = arith.maximumf %377, %378 : vector<8x4xf32>
      %cst_229 = arith.constant dense<0.000000e+00> : vector<8xf32>
      %380 = vector.multi_reduction <add>, %379, %cst_229 [1] : vector<8x4xf32> to vector<8xf32>
      %381 = vector.shape_cast %380 : vector<8xf32> to vector<8x1xf32>
      %cst_230 = arith.constant 4.000000e+00 : f32
      %382 = vector.broadcast %cst_230 : f32 to vector<8x1xf32>
      %383 = arith.divf %381, %382 : vector<8x1xf32>
      %384 = math.rsqrt %383 : vector<8x1xf32>
      %385 = vector.broadcast %384 : vector<8x1xf32> to vector<8x4xf32>
      %386 = arith.mulf %370, %385 : vector<8x4xf32>
      %387 = vector.broadcast %384 : vector<8x1xf32> to vector<8x4xf32>
      %388 = arith.mulf %371, %387 : vector<8x4xf32>
      %389 = vector.broadcast %384 : vector<8x1xf32> to vector<8x4xf32>
      %390 = arith.mulf %372, %389 : vector<8x4xf32>
      %c0_231 = arith.constant 0 : index
      %c0_232 = arith.constant 0 : index
      %391 = vector.load %arg41[%c0_231, %c0_232] : memref<8x32xf32, #tpu.memory_space<vmem>>, vector<8x32xf32>
      tpu.vector_store %arg41[%c0_231, %c0_232], %369 {strides = array<i32>} : memref<8x32xf32, #tpu.memory_space<vmem>>, vector<8x32xf32>,
      %c0_233 = arith.constant 0 : index
      %c0_234 = arith.constant 0 : index
      %c0_235 = arith.constant 0 : index
      %392 = vector.load %arg42[%c0_233, %c0_234, %c0_235] : memref<3x8x4xf32, #tpu.memory_space<vmem>>, vector<1x8x4xf32>
      %393 = vector.shape_cast %392 : vector<1x8x4xf32> to vector<8x4xf32>
      %394 = vector.shape_cast %386 : vector<8x4xf32> to vector<1x8x4xf32>
      tpu.vector_store %arg42[%c0_233, %c0_234, %c0_235], %394 {strides = array<i32>} : memref<3x8x4xf32, #tpu.memory_space<vmem>>, vector<1x8x4xf32>,
      %c1_236 = arith.constant 1 : index
      %c0_237 = arith.constant 0 : index
      %c0_238 = arith.constant 0 : index
      %395 = vector.load %arg42[%c1_236, %c0_237, %c0_238] : memref<3x8x4xf32, #tpu.memory_space<vmem>>, vector<1x8x4xf32>
      %396 = vector.shape_cast %395 : vector<1x8x4xf32> to vector<8x4xf32>
      %397 = vector.shape_cast %388 : vector<8x4xf32> to vector<1x8x4xf32>
      tpu.vector_store %arg42[%c1_236, %c0_237, %c0_238], %397 {strides = array<i32>} : memref<3x8x4xf32, #tpu.memory_space<vmem>>, vector<1x8x4xf32>,
      %c2_239 = arith.constant 2 : index
      %c0_240 = arith.constant 0 : index
      %c0_241 = arith.constant 0 : index
      %398 = vector.load %arg42[%c2_239, %c0_240, %c0_241] : memref<3x8x4xf32, #tpu.memory_space<vmem>>, vector<1x8x4xf32>
      %399 = vector.shape_cast %398 : vector<1x8x4xf32> to vector<8x4xf32>
      %400 = vector.shape_cast %390 : vector<8x4xf32> to vector<1x8x4xf32>
      tpu.vector_store %arg42[%c2_239, %c0_240, %c0_241], %400 {strides = array<i32>} : memref<3x8x4xf32, #tpu.memory_space<vmem>>, vector<1x8x4xf32>,
    } else {
    }
    return
  }
  func.func @transform_0(%arg0: i32) -> (i32, i32) {
    %c0_i32 = arith.constant 0 : i32
    %c0_i32_0 = arith.constant 0 : i32
    return %arg0, %c0_i32 : i32, i32
  }
  func.func @transform_1(%arg0: i32) -> (i32, i32, i32) {
    %c0_i32 = arith.constant 0 : i32
    %c0_i32_0 = arith.constant 0 : i32
    %c0_i32_1 = arith.constant 0 : i32
    return %c0_i32, %arg0, %c0_i32_0 : i32, i32, i32
  }
  func.func @transform_2(%arg0: i32) -> (i32, i32) {
    %c0_i32 = arith.constant 0 : i32
    %c0_i32_0 = arith.constant 0 : i32
    return %arg0, %c0_i32 : i32, i32
  }
  func.func @transform_3(%arg0: i32) -> (i32, i32) {
    %c0_i32 = arith.constant 0 : i32
    %c0_i32_0 = arith.constant 0 : i32
    return %arg0, %c0_i32 : i32, i32
  }
  func.func @transform_4(%arg0: i32) -> (i32, i32) {
    %c0_i32 = arith.constant 0 : i32
    %c0_i32_0 = arith.constant 0 : i32
    return %c0_i32, %arg0 : i32, i32
  }
  func.func @transform_5(%arg0: i32) -> (i32, i32) {
    %c0_i32 = arith.constant 0 : i32
    %c0_i32_0 = arith.constant 0 : i32
    %c0_i32_1 = arith.constant 0 : i32
    return %c0_i32, %c0_i32_0 : i32, i32
  }
  func.func @transform_6(%arg0: i32) -> (i32, i32, i32) {
    %c0_i32 = arith.constant 0 : i32
    %c0_i32_0 = arith.constant 0 : i32
    %c0_i32_1 = arith.constant 0 : i32
    %c0_i32_2 = arith.constant 0 : i32
    return %c0_i32, %c0_i32_0, %c0_i32_1 : i32, i32, i32
  }
  func.func @transform_7(%arg0: i32) -> (i32, i32) {
    %c0_i32 = arith.constant 0 : i32
    %c0_i32_0 = arith.constant 0 : i32
    %c0_i32_1 = arith.constant 0 : i32
    return %c0_i32, %c0_i32_0 : i32, i32
  }
  func.func @transform_8(%arg0: i32) -> (i32, i32) {
    %c0_i32 = arith.constant 0 : i32
    %c0_i32_0 = arith.constant 0 : i32
    %c0_i32_1 = arith.constant 0 : i32
    return %c0_i32, %c0_i32_0 : i32, i32
  }
  func.func @transform_9(%arg0: i32) -> (i32, i32) {
    %c0_i32 = arith.constant 0 : i32
    %c0_i32_0 = arith.constant 0 : i32
    %c0_i32_1 = arith.constant 0 : i32
    return %c0_i32, %c0_i32_0 : i32, i32
  }
  func.func @transform_10(%arg0: i32) -> (i32, i32) {
    %c0_i32 = arith.constant 0 : i32
    %c0_i32_0 = arith.constant 0 : i32
    %c0_i32_1 = arith.constant 0 : i32
    return %c0_i32, %c0_i32_0 : i32, i32
  }
  func.func @transform_11(%arg0: i32) -> (i32, i32) {
    %c0_i32 = arith.constant 0 : i32
    %c0_i32_0 = arith.constant 0 : i32
    %c0_i32_1 = arith.constant 0 : i32
    return %c0_i32, %c0_i32_0 : i32, i32
  }
  func.func @transform_12(%arg0: i32) -> (i32, i32) {
    %c0_i32 = arith.constant 0 : i32
    %c0_i32_0 = arith.constant 0 : i32
    %c0_i32_1 = arith.constant 0 : i32
    return %c0_i32, %c0_i32_0 : i32, i32
  }
  func.func @transform_13(%arg0: i32) -> (i32, i32) {
    %c0_i32 = arith.constant 0 : i32
    %c0_i32_0 = arith.constant 0 : i32
    %c0_i32_1 = arith.constant 0 : i32
    return %c0_i32, %c0_i32_0 : i32, i32
  }
  func.func @transform_14(%arg0: i32) -> (i32, i32) {
    %c0_i32 = arith.constant 0 : i32
    %c0_i32_0 = arith.constant 0 : i32
    %c0_i32_1 = arith.constant 0 : i32
    return %c0_i32, %c0_i32_0 : i32, i32
  }
  func.func @transform_15(%arg0: i32) -> (i32, i32) {
    %c0_i32 = arith.constant 0 : i32
    %c0_i32_0 = arith.constant 0 : i32
    %c0_i32_1 = arith.constant 0 : i32
    return %c0_i32, %c0_i32_0 : i32, i32
  }
  func.func @transform_16(%arg0: i32) -> (i32, i32) {
    %c0_i32 = arith.constant 0 : i32
    %c0_i32_0 = arith.constant 0 : i32
    %c0_i32_1 = arith.constant 0 : i32
    return %c0_i32, %c0_i32_0 : i32, i32
  }
  func.func @transform_17(%arg0: i32) -> (i32, i32) {
    %c0_i32 = arith.constant 0 : i32
    %c0_i32_0 = arith.constant 0 : i32
    %c0_i32_1 = arith.constant 0 : i32
    return %c0_i32, %c0_i32_0 : i32, i32
  }
  func.func @transform_18(%arg0: i32) -> (i32, i32) {
    %c0_i32 = arith.constant 0 : i32
    %c0_i32_0 = arith.constant 0 : i32
    %c0_i32_1 = arith.constant 0 : i32
    return %c0_i32, %c0_i32_0 : i32, i32
  }
  func.func @transform_19(%arg0: i32) -> (i32, i32) {
    %c0_i32 = arith.constant 0 : i32
    %c0_i32_0 = arith.constant 0 : i32
    %c0_i32_1 = arith.constant 0 : i32
    return %c0_i32, %c0_i32_0 : i32, i32
  }
  func.func @transform_20(%arg0: i32) -> (i32, i32) {
    %c0_i32 = arith.constant 0 : i32
    %c0_i32_0 = arith.constant 0 : i32
    %c0_i32_1 = arith.constant 0 : i32
    return %c0_i32, %c0_i32_0 : i32, i32
  }
  func.func @transform_21(%arg0: i32) -> (i32, i32) {
    %c0_i32 = arith.constant 0 : i32
    %c0_i32_0 = arith.constant 0 : i32
    %c0_i32_1 = arith.constant 0 : i32
    return %c0_i32, %c0_i32_0 : i32, i32
  }
  func.func @transform_22(%arg0: i32) -> (i32, i32) {
    %c0_i32 = arith.constant 0 : i32
    %c0_i32_0 = arith.constant 0 : i32
    %c0_i32_1 = arith.constant 0 : i32
    return %c0_i32, %c0_i32_0 : i32, i32
  }
  func.func @transform_23(%arg0: i32) -> (i32, i32) {
    %c0_i32 = arith.constant 0 : i32
    %c0_i32_0 = arith.constant 0 : i32
    %c0_i32_1 = arith.constant 0 : i32
    return %c0_i32, %c0_i32_0 : i32, i32
  }
  func.func @transform_24(%arg0: i32) -> (i32, i32) {
    %c0_i32 = arith.constant 0 : i32
    %c0_i32_0 = arith.constant 0 : i32
    %c0_i32_1 = arith.constant 0 : i32
    return %c0_i32, %c0_i32_0 : i32, i32
  }
  func.func @transform_25(%arg0: i32) -> (i32, i32) {
    %c0_i32 = arith.constant 0 : i32
    %c0_i32_0 = arith.constant 0 : i32
    %c0_i32_1 = arith.constant 0 : i32
    return %c0_i32, %c0_i32_0 : i32, i32
  }
  func.func @transform_26(%arg0: i32) -> (i32, i32) {
    %c0_i32 = arith.constant 0 : i32
    %c0_i32_0 = arith.constant 0 : i32
    %c0_i32_1 = arith.constant 0 : i32
    return %c0_i32, %c0_i32_0 : i32, i32
  }
  func.func @transform_27(%arg0: i32) -> (i32, i32) {
    %c0_i32 = arith.constant 0 : i32
    %c0_i32_0 = arith.constant 0 : i32
    %c0_i32_1 = arith.constant 0 : i32
    return %c0_i32, %c0_i32_0 : i32, i32
  }
  func.func @transform_28(%arg0: i32) -> (i32, i32) {
    %c0_i32 = arith.constant 0 : i32
    %c0_i32_0 = arith.constant 0 : i32
    %c0_i32_1 = arith.constant 0 : i32
    return %c0_i32, %c0_i32_0 : i32, i32
  }
  func.func @transform_29(%arg0: i32) -> (i32, i32) {
    %c0_i32 = arith.constant 0 : i32
    %c0_i32_0 = arith.constant 0 : i32
    %c0_i32_1 = arith.constant 0 : i32
    return %c0_i32, %c0_i32_0 : i32, i32
  }
  func.func @transform_30(%arg0: i32) -> (i32, i32) {
    %c0_i32 = arith.constant 0 : i32
    %c0_i32_0 = arith.constant 0 : i32
    %c0_i32_1 = arith.constant 0 : i32
    return %c0_i32, %c0_i32_0 : i32, i32
  }
  func.func @transform_31(%arg0: i32) -> (i32, i32) {
    %c0_i32 = arith.constant 0 : i32
    %c0_i32_0 = arith.constant 0 : i32
    %c0_i32_1 = arith.constant 0 : i32
    return %c0_i32, %c0_i32_0 : i32, i32
  }
  func.func @transform_32(%arg0: i32) -> (i32, i32) {
    %c0_i32 = arith.constant 0 : i32
    %c0_i32_0 = arith.constant 0 : i32
    %c0_i32_1 = arith.constant 0 : i32
    return %c0_i32, %c0_i32_0 : i32, i32
  }
  func.func @transform_33(%arg0: i32) -> (i32, i32) {
    %c0_i32 = arith.constant 0 : i32
    %c0_i32_0 = arith.constant 0 : i32
    %c0_i32_1 = arith.constant 0 : i32
    return %c0_i32, %c0_i32_0 : i32, i32
  }
  func.func @transform_34(%arg0: i32) -> (i32, i32) {
    %c0_i32 = arith.constant 0 : i32
    %c0_i32_0 = arith.constant 0 : i32
    %c0_i32_1 = arith.constant 0 : i32
    return %c0_i32, %c0_i32_0 : i32, i32
  }
  func.func @transform_35(%arg0: i32) -> (i32, i32) {
    %c0_i32 = arith.constant 0 : i32
    %c0_i32_0 = arith.constant 0 : i32
    %c0_i32_1 = arith.constant 0 : i32
    return %c0_i32, %c0_i32_0 : i32, i32
  }
  func.func @transform_36(%arg0: i32) -> (i32, i32) {
    %c0_i32 = arith.constant 0 : i32
    %c0_i32_0 = arith.constant 0 : i32
    %c0_i32_1 = arith.constant 0 : i32
    return %c0_i32, %c0_i32_0 : i32, i32
  }
  func.func @transform_37(%arg0: i32) -> (i32, i32) {
    %c0_i32 = arith.constant 0 : i32
    %c0_i32_0 = arith.constant 0 : i32
    %c0_i32_1 = arith.constant 0 : i32
    return %c0_i32, %c0_i32_0 : i32, i32
  }
  func.func @transform_38(%arg0: i32) -> (i32, i32) {
    %c0_i32 = arith.constant 0 : i32
    %c0_i32_0 = arith.constant 0 : i32
    %c0_i32_1 = arith.constant 0 : i32
    return %c0_i32, %c0_i32_0 : i32, i32
  }
  func.func @transform_39(%arg0: i32) -> (i32, i32) {
    %c0_i32 = arith.constant 0 : i32
    %c0_i32_0 = arith.constant 0 : i32
    %c0_i32_1 = arith.constant 0 : i32
    return %c0_i32, %c0_i32_0 : i32, i32
  }
  func.func @transform_40(%arg0: i32) -> (i32, i32) {
    %c0_i32 = arith.constant 0 : i32
    %c0_i32_0 = arith.constant 0 : i32
    %c0_i32_1 = arith.constant 0 : i32
    return %c0_i32, %c0_i32_0 : i32, i32
  }
  func.func @transform_41(%arg0: i32) -> (i32, i32, i32) {
    %c0_i32 = arith.constant 0 : i32
    %c0_i32_0 = arith.constant 0 : i32
    %c0_i32_1 = arith.constant 0 : i32
    %c0_i32_2 = arith.constant 0 : i32
    return %c0_i32, %c0_i32_0, %c0_i32_1 : i32, i32, i32
  }
}

</mosaic_0001>

<llo_original>
// kernel: gvp_embedding_forward.11
$region0: #{gvp_embedding_forward.11}
  #allocation0 [shape = 'u32[]', space=smem, size = 0x4, offset = 0x4, fixed_abs, tag = 'smem constant byte address 0x4 - core index']
  #allocation1 [shape = 'u32[144,128]{1,0:T(1,128)}', space=vmem, size = 0x12000, scoped, tag = 'internal scratch']
  %s0 = inlined_call_operand.vmem [shape: f32[8,32], index: 0, kind: input, shape index: {}]
  %s1 = inlined_call_operand.vmem [shape: f32[3,8,4], index: 1, kind: input, shape index: {}]
  %s2 = inlined_call_operand.vmem [shape: f32[1,32], index: 2, kind: input, shape index: {}]
  %s3 = inlined_call_operand.vmem [shape: f32[1,32], index: 3, kind: input, shape index: {}]
  %s4 = inlined_call_operand.vmem [shape: f32[4,4], index: 4, kind: input, shape index: {}]
  %s5 = inlined_call_operand.vmem [shape: f32[32,32], index: 5, kind: input, shape index: {}]
  %s6 = inlined_call_operand.vmem [shape: f32[4,32], index: 6, kind: input, shape index: {}]
  %s7 = inlined_call_operand.vmem [shape: f32[1,32], index: 7, kind: input, shape index: {}]
  %s8 = inlined_call_operand.hbm [shape: f32[8,32], index: 8, kind: output, shape index: {}]
  %s9 = sld [smem:[#allocation0]]
  $region42: #{gvp_embedding_forward.11} parent=0
    _
  %s11 = ssub.s32 1, %s9
  %s12 = scalar_select 0, %s11, %s9
  $region1: #{gvp_embedding_forward.11} parent=0
    #allocation2 [shape = 'u8[4096]{0}', space=vmem, size = 0x1000, scoped, tag = 'output window, operand 0, single buffered']
    #allocation3 [shape = 's32[1]{0}', space=sflag, size = 0x4, scoped, tag = 'scoped memory for gvp_embedding_forward.11']
    %13 = vsyncpa [#allocation3], 0
    // Predicated region
    $region2: #{gvp_embedding_forward.11} parent=1 // pred_check
      _
    $region3: #{gvp_embedding_forward.11} parent=1 // pred_check_branch
      %15 = sbr.rel (0) target = $region5
    $region4: #{gvp_embedding_forward.11} parent=1 // pred_region
      _
    $region5: #{gvp_embedding_forward.11} parent=1 // pred_fallthru
      _
    // Predicated region
    $region6: #{gvp_embedding_forward.11} parent=1 // pred_check
      _
    $region7: #{gvp_embedding_forward.11} parent=1 // pred_check_branch
      %17 = sbr.rel (0) target = $region9
    $region8: #{gvp_embedding_forward.11} parent=1 // pred_region
      _
    $region9: #{gvp_embedding_forward.11} parent=1 // pred_fallthru
      _
    // Predicated region
    $region10: #{gvp_embedding_forward.11} parent=1 // pred_check
      _
    $region11: #{gvp_embedding_forward.11} parent=1 // pred_check_branch
      %19 = sbr.rel (0) target = $region13
    $region12: #{gvp_embedding_forward.11} parent=1 // pred_region
      _
    $region13: #{gvp_embedding_forward.11} parent=1 // pred_fallthru
      _
    // Predicated region
    $region14: #{gvp_embedding_forward.11} parent=1 // pred_check
      _
    $region15: #{gvp_embedding_forward.11} parent=1 // pred_check_branch
      %21 = sbr.rel (0) target = $region17
    $region16: #{gvp_embedding_forward.11} parent=1 // pred_region
      _
    $region17: #{gvp_embedding_forward.11} parent=1 // pred_fallthru
      _
    // Predicated region
    $region18: #{gvp_embedding_forward.11} parent=1 // pred_check
      _
    $region19: #{gvp_embedding_forward.11} parent=1 // pred_check_branch
      %23 = sbr.rel (0) target = $region21
    $region20: #{gvp_embedding_forward.11} parent=1 // pred_region
      _
    $region21: #{gvp_embedding_forward.11} parent=1 // pred_fallthru
      _
    // Predicated region
    $region22: #{gvp_embedding_forward.11} parent=1 // pred_check
      _
    $region23: #{gvp_embedding_forward.11} parent=1 // pred_check_branch
      %25 = sbr.rel (0) target = $region25
    $region24: #{gvp_embedding_forward.11} parent=1 // pred_region
      _
    $region25: #{gvp_embedding_forward.11} parent=1 // pred_fallthru
      _
    // Predicated region
    $region26: #{gvp_embedding_forward.11} parent=1 // pred_check
      _
    $region27: #{gvp_embedding_forward.11} parent=1 // pred_check_branch
      %27 = sbr.rel (0) target = $region29
    $region28: #{gvp_embedding_forward.11} parent=1 // pred_region
      _
    $region29: #{gvp_embedding_forward.11} parent=1 // pred_fallthru
      _
    // Predicated region
    $region30: #{gvp_embedding_forward.11} parent=1 // pred_check
      _
    $region31: #{gvp_embedding_forward.11} parent=1 // pred_check_branch
      %29 = sbr.rel (0) target = $region33
    $region32: #{gvp_embedding_forward.11} parent=1 // pred_region
      _
    $region33: #{gvp_embedding_forward.11} parent=1 // pred_fallthru
      _
    %v30 = vld [vmem:[%s0] sm:$0xff]
    %v31 = vld [vmem:[%s2] sm:$0x1]
    %v32 = vld [vmem:[%s3] sm:$0x1]
    %vm33 = vcmask 261120
    %v34 = vsel %vm33, %v30, 0.0
    %35 = vadd.xlane.f32.xlu0 %v34
    %v36 = vpop.xlane.xlu0 %35
    %v37 = vrcp.pop 32.0
    %v38 = vmul.f32 %v36, %v37
    %v39 = vsub.f32 %v30, %v38
    %v40 = vmul.f32 %v39, %v39
    %v41 = vsel %vm33, %v40, 0.0
    %42 = vadd.xlane.f32.xlu0 %v41
    %v43 = vpop.xlane.xlu0 %42
    %v44 = vmul.f32 %v43, %v37
    %v45 = vadd.f32 %v44, 1e-05
    %v46 = vrsqrt.pop %v45
    %v47 = vmul.f32 %v39, %v46
    %v49 = vlaneseq
    %v50 = vshrl.u32 %v49, 7
    %v51 = vsub.s32 0, %v50
    %v52 = vrot.slane %v31, %v51
    %v54 = vmul.f32 %v47, %v52
    %v56 = vlaneseq
    %v57 = vshrl.u32 %v56, 7
    %v58 = vsub.s32 0, %v57
    %v59 = vrot.slane %v32, %v58
    %v61 = vadd.f32 %v54, %v59
    %v62 = vld [vmem:[%s1] sm:$0xff]
    %s63 = scalar_lea.vmem %s1, 8
    %v64 = vld [vmem:[%s63] sm:$0xff]
    %s65 = scalar_lea.vmem %s1, 16
    %v66 = vld [vmem:[%s65] sm:$0xff]
    %v67 = vmul.f32 %v62, %v62
    %v68 = vmul.f32 %v64, %v64
    %v69 = vadd.f32 %v67, %v68
    %v70 = vmul.f32 %v66, %v66
    %v71 = vadd.f32 %v69, %v70
    %v72 = vmax.f32 %v71, 1e-08
    %vm73 = vcmask 31744
    %v74 = vsel %vm73, %v72, 0.0
    %75 = vadd.xlane.f32.xlu0 %v74
    %v76 = vpop.xlane.xlu0 %75
    %v77 = vrcp.pop 4.0
    %v78 = vmul.f32 %v76, %v77
    %v79 = vrsqrt.pop %v78
    %v80 = vmul.f32 %v62, %v79
    %v81 = vmul.f32 %v64, %v79
    %v82 = vmul.f32 %v66, %v79
    %v83 = vld [vmem:[%s4] sm:$0xf]
    %v85 = vsel %vm73, %v80, 0
    %vm87 = vcmask 1043456
    %v89 = vsel %vm87, %v83, 0
    %91 = vmatprep.subr.mxu0 0.0
    %92 = vmatpush1.msra.mxu0 0.0
    %93 = vmatprep.subr.mxu0 0.0
    %94 = vmatpush1.msra.mxu0 0.0
    %95 = vmatprep.subr.mxu0 0.0
    %96 = vmatpush1.msra.mxu0 0.0
    %97 = vmatprep.subr.mxu0 0.0
    %98 = vmatpush1.msra.mxu0 0.0
    %99 = vmatprep.subr.mxu0 0.0
    %100 = vmatpush1.msra.mxu0 0.0
    %101 = vmatprep.subr.mxu0 0.0
    %102 = vmatpush1.msra.mxu0 0.0
    %103 = vmatprep.subr.mxu0 0.0
    %104 = vmatpush1.msra.mxu0 0.0
    %105 = vmatprep.subr.mxu0 0.0
    %106 = vmatpush1.msra.mxu0 0.0
    %107 = vmatprep.subr.mxu0 0.0
    %108 = vmatpush1.msra.mxu0 0.0
    %109 = vmatprep.subr.mxu0 0.0
    %110 = vmatpush1.msra.mxu0 0.0
    %111 = vmatprep.subr.mxu0 0.0
    %112 = vmatpush1.msra.mxu0 0.0
    %113 = vmatprep.subr.mxu0 0.0
    %114 = vmatpush1.msra.mxu0 0.0
    %115 = vmatprep.subr.mxu0 0.0
    %116 = vmatpush1.msra.mxu0 0.0
    %117 = vmatprep.subr.mxu0 0.0
    %118 = vmatpush1.msra.mxu0 0.0
    %119 = vmatprep.subr.mxu0 0.0
    %120 = vmatpush1.msra.mxu0 0.0
    %121 = vmatprep.subr.mxu0 0.0
    %122 = vmatpush1.msra.mxu0 %v89
    %123 = vmatprep.subr.mxu0 0.0
    %124 = vmatpush2.msra.mxu0 0.0
    %125 = vmatprep.subr.mxu0 0.0
    %126 = vmatpush2.msra.mxu0 0.0
    %127 = vmatprep.subr.mxu0 0.0
    %128 = vmatpush2.msra.mxu0 0.0
    %129 = vmatprep.subr.mxu0 0.0
    %130 = vmatpush2.msra.mxu0 0.0
    %131 = vmatprep.subr.mxu0 0.0
    %132 = vmatpush2.msra.mxu0 0.0
    %133 = vmatprep.subr.mxu0 0.0
    %134 = vmatpush2.msra.mxu0 0.0
    %135 = vmatprep.subr.mxu0 0.0
    %136 = vmatpush2.msra.mxu0 0.0
    %137 = vmatprep.subr.mxu0 0.0
    %138 = vmatpush2.msra.mxu0 0.0
    %139 = vmatprep.subr.mxu0 0.0
    %140 = vmatpush2.msra.mxu0 0.0
    %141 = vmatprep.subr.mxu0 0.0
    %142 = vmatpush2.msra.mxu0 0.0
    %143 = vmatprep.subr.mxu0 0.0
    %144 = vmatpush2.msra.mxu0 0.0
    %145 = vmatprep.subr.mxu0 0.0
    %146 = vmatpush2.msra.mxu0 0.0
    %147 = vmatprep.subr.mxu0 0.0
    %148 = vmatpush2.msra.mxu0 0.0
    %149 = vmatprep.subr.mxu0 0.0
    %150 = vmatpush2.msra.mxu0 0.0
    %151 = vmatprep.subr.mxu0 0.0
    %152 = vmatpush2.msra.mxu0 0.0
    %153 = vmatprep.subr.mxu0 0.0
    %154 = vmatpush2.msra.mxu0 0.0
    %155 = vmatprep.mubr.f32.mxu0 0.0
    %156 = vmatmul.mubr.f32.gmra.mxu0 %v85
    %v157 = vpop.f32.mrf.mxu0
    %v158 = vadd.f32 0.0, %v157
    %v159 = vpop.f32.mrf.mxu0
    %160 = vdwg.mxu0
    %v162 = vsel %vm73, %v81, 0
    %164 = vmatprep.subr.mxu0 0.0
    %165 = vmatpush1.msra.mxu0 0.0
    %166 = vmatprep.subr.mxu0 0.0
    %167 = vmatpush1.msra.mxu0 0.0
    %168 = vmatprep.subr.mxu0 0.0
    %169 = vmatpush1.msra.mxu0 0.0
    %170 = vmatprep.subr.mxu0 0.0
    %171 = vmatpush1.msra.mxu0 0.0
    %172 = vmatprep.subr.mxu0 0.0
    %173 = vmatpush1.msra.mxu0 0.0
    %174 = vmatprep.subr.mxu0 0.0
    %175 = vmatpush1.msra.mxu0 0.0
    %176 = vmatprep.subr.mxu0 0.0
    %177 = vmatpush1.msra.mxu0 0.0
    %178 = vmatprep.subr.mxu0 0.0
    %179 = vmatpush1.msra.mxu0 0.0
    %180 = vmatprep.subr.mxu0 0.0
    %181 = vmatpush1.msra.mxu0 0.0
    %182 = vmatprep.subr.mxu0 0.0
    %183 = vmatpush1.msra.mxu0 0.0
    %184 = vmatprep.subr.mxu0 0.0
    %185 = vmatpush1.msra.mxu0 0.0
    %186 = vmatprep.subr.mxu0 0.0
    %187 = vmatpush1.msra.mxu0 0.0
    %188 = vmatprep.subr.mxu0 0.0
    %189 = vmatpush1.msra.mxu0 0.0
    %190 = vmatprep.subr.mxu0 0.0
    %191 = vmatpush1.msra.mxu0 0.0
    %192 = vmatprep.subr.mxu0 0.0
    %193 = vmatpush1.msra.mxu0 0.0
    %194 = vmatprep.subr.mxu0 0.0
    %195 = vmatpush1.msra.mxu0 %v89
    %196 = vmatprep.subr.mxu0 0.0
    %197 = vmatpush2.msra.mxu0 0.0
    %198 = vmatprep.subr.mxu0 0.0
    %199 = vmatpush2.msra.mxu0 0.0
    %200 = vmatprep.subr.mxu0 0.0
    %201 = vmatpush2.msra.mxu0 0.0
    %202 = vmatprep.subr.mxu0 0.0
    %203 = vmatpush2.msra.mxu0 0.0
    %204 = vmatprep.subr.mxu0 0.0
    %205 = vmatpush2.msra.mxu0 0.0
    %206 = vmatprep.subr.mxu0 0.0
    %207 = vmatpush2.msra.mxu0 0.0
    %208 = vmatprep.subr.mxu0 0.0
    %209 = vmatpush2.msra.mxu0 0.0
    %210 = vmatprep.subr.mxu0 0.0
    %211 = vmatpush2.msra.mxu0 0.0
    %212 = vmatprep.subr.mxu0 0.0
    %213 = vmatpush2.msra.mxu0 0.0
    %214 = vmatprep.subr.mxu0 0.0
    %215 = vmatpush2.msra.mxu0 0.0
    %216 = vmatprep.subr.mxu0 0.0
    %217 = vmatpush2.msra.mxu0 0.0
    %218 = vmatprep.subr.mxu0 0.0
    %219 = vmatpush2.msra.mxu0 0.0
    %220 = vmatprep.subr.mxu0 0.0
    %221 = vmatpush2.msra.mxu0 0.0
    %222 = vmatprep.subr.mxu0 0.0
    %223 = vmatpush2.msra.mxu0 0.0
    %224 = vmatprep.subr.mxu0 0.0
    %225 = vmatpush2.msra.mxu0 0.0
    %226 = vmatprep.subr.mxu0 0.0
    %227 = vmatpush2.msra.mxu0 0.0
    %228 = vmatprep.mubr.f32.mxu0 0.0
    %229 = vmatmul.mubr.f32.gmra.mxu0 %v162
    %v230 = vpop.f32.mrf.mxu0
    %v231 = vadd.f32 0.0, %v230
    %v232 = vpop.f32.mrf.mxu0
    %233 = vdwg.mxu0
    %v235 = vsel %vm73, %v82, 0
    %237 = vmatprep.subr.mxu0 0.0
    %238 = vmatpush1.msra.mxu0 0.0
    %239 = vmatprep.subr.mxu0 0.0
    %240 = vmatpush1.msra.mxu0 0.0
    %241 = vmatprep.subr.mxu0 0.0
    %242 = vmatpush1.msra.mxu0 0.0
    %243 = vmatprep.subr.mxu0 0.0
    %244 = vmatpush1.msra.mxu0 0.0
    %245 = vmatprep.subr.mxu0 0.0
    %246 = vmatpush1.msra.mxu0 0.0
    %247 = vmatprep.subr.mxu0 0.0
    %248 = vmatpush1.msra.mxu0 0.0
    %249 = vmatprep.subr.mxu0 0.0
    %250 = vmatpush1.msra.mxu0 0.0
    %251 = vmatprep.subr.mxu0 0.0
    %252 = vmatpush1.msra.mxu0 0.0
    %253 = vmatprep.subr.mxu0 0.0
    %254 = vmatpush1.msra.mxu0 0.0
    %255 = vmatprep.subr.mxu0 0.0
    %256 = vmatpush1.msra.mxu0 0.0
    %257 = vmatprep.subr.mxu0 0.0
    %258 = vmatpush1.msra.mxu0 0.0
    %259 = vmatprep.subr.mxu0 0.0
    %260 = vmatpush1.msra.mxu0 0.0
    %261 = vmatprep.subr.mxu0 0.0
    %262 = vmatpush1.msra.mxu0 0.0
    %263 = vmatprep.subr.mxu0 0.0
    %264 = vmatpush1.msra.mxu0 0.0
    %265 = vmatprep.subr.mxu0 0.0
    %266 = vmatpush1.msra.mxu0 0.0
    %267 = vmatprep.subr.mxu0 0.0
    %268 = vmatpush1.msra.mxu0 %v89
    %269 = vmatprep.subr.mxu0 0.0
    %270 = vmatpush2.msra.mxu0 0.0
    %271 = vmatprep.subr.mxu0 0.0
    %272 = vmatpush2.msra.mxu0 0.0
    %273 = vmatprep.subr.mxu0 0.0
    %274 = vmatpush2.msra.mxu0 0.0
    %275 = vmatprep.subr.mxu0 0.0
    %276 = vmatpush2.msra.mxu0 0.0
    %277 = vmatprep.subr.mxu0 0.0
    %278 = vmatpush2.msra.mxu0 0.0
    %279 = vmatprep.subr.mxu0 0.0
    %280 = vmatpush2.msra.mxu0 0.0
    %281 = vmatprep.subr.mxu0 0.0
    %282 = vmatpush2.msra.mxu0 0.0
    %283 = vmatprep.subr.mxu0 0.0
    %284 = vmatpush2.msra.mxu0 0.0
    %285 = vmatprep.subr.mxu0 0.0
    %286 = vmatpush2.msra.mxu0 0.0
    %287 = vmatprep.subr.mxu0 0.0
    %288 = vmatpush2.msra.mxu0 0.0
    %289 = vmatprep.subr.mxu0 0.0
    %290 = vmatpush2.msra.mxu0 0.0
    %291 = vmatprep.subr.mxu0 0.0
    %292 = vmatpush2.msra.mxu0 0.0
    %293 = vmatprep.subr.mxu0 0.0
    %294 = vmatpush2.msra.mxu0 0.0
    %295 = vmatprep.subr.mxu0 0.0
    %296 = vmatpush2.msra.mxu0 0.0
    %297 = vmatprep.subr.mxu0 0.0
    %298 = vmatpush2.msra.mxu0 0.0
    %299 = vmatprep.subr.mxu0 0.0
    %300 = vmatpush2.msra.mxu0 0.0
    %301 = vmatprep.mubr.f32.mxu0 0.0
    %302 = vmatmul.mubr.f32.gmra.mxu0 %v235
    %v303 = vpop.f32.mrf.mxu0
    %v304 = vadd.f32 0.0, %v303
    %v305 = vpop.f32.mrf.mxu0
    %306 = vdwg.mxu0
    %v307 = vmul.f32 %v158, %v158
    %v308 = vmul.f32 %v231, %v231
    %v309 = vadd.f32 %v307, %v308
    %v310 = vmul.f32 %v304, %v304
    %v311 = vadd.f32 %v309, %v310
    %v312 = vmax.f32 %v311, 1e-08
    %v313 = vrsqrt.pop %v312
    %v314 = vmul.f32 %v312, %v313
    %vm315 = vcmp.eq.f32.partialorder %v312, inf
    %v316 = vsel %vm315, %v312, %v314
    %vm317 = vcmp.eq.f32.partialorder %v312, 0.0
    %v318 = vand.u32 %v312, 2147483648
    %v319 = vsel %vm317, %v318, %v316
    %v320 = vld [vmem:[%s5] sm:$0xff]
    %v321 = vld [vmem:[%s5 + $0x8] sm:$0xff]
    %v322 = vld [vmem:[%s5 + $0x10] sm:$0xff]
    %v323 = vld [vmem:[%s5 + $0x18] sm:$0xff]
    %v324 = vld [vmem:[%s6] sm:$0xf]
    %v326 = vsel %vm73, %v319, 0
    %v329 = vsel %vm87, %v324, 0
    %331 = vmatprep.subr.mxu0 0.0
    %332 = vmatpush1.msra.mxu0 0.0
    %333 = vmatprep.subr.mxu0 0.0
    %334 = vmatpush1.msra.mxu0 0.0
    %335 = vmatprep.subr.mxu0 0.0
    %336 = vmatpush1.msra.mxu0 0.0
    %337 = vmatprep.subr.mxu0 0.0
    %338 = vmatpush1.msra.mxu0 0.0
    %339 = vmatprep.subr.mxu0 0.0
    %340 = vmatpush1.msra.mxu0 0.0
    %341 = vmatprep.subr.mxu0 0.0
    %342 = vmatpush1.msra.mxu0 0.0
    %343 = vmatprep.subr.mxu0 0.0
    %344 = vmatpush1.msra.mxu0 0.0
    %345 = vmatprep.subr.mxu0 0.0
    %346 = vmatpush1.msra.mxu0 0.0
    %347 = vmatprep.subr.mxu0 0.0
    %348 = vmatpush1.msra.mxu0 0.0
    %349 = vmatprep.subr.mxu0 0.0
    %350 = vmatpush1.msra.mxu0 0.0
    %351 = vmatprep.subr.mxu0 0.0
    %352 = vmatpush1.msra.mxu0 0.0
    %353 = vmatprep.subr.mxu0 0.0
    %354 = vmatpush1.msra.mxu0 0.0
    %355 = vmatprep.subr.mxu0 0.0
    %356 = vmatpush1.msra.mxu0 0.0
    %357 = vmatprep.subr.mxu0 0.0
    %358 = vmatpush1.msra.mxu0 0.0
    %359 = vmatprep.subr.mxu0 0.0
    %360 = vmatpush1.msra.mxu0 0.0
    %361 = vmatprep.subr.mxu0 0.0
    %362 = vmatpush1.msra.mxu0 %v329
    %363 = vmatprep.subr.mxu0 0.0
    %364 = vmatpush2.msra.mxu0 0.0
    %365 = vmatprep.subr.mxu0 0.0
    %366 = vmatpush2.msra.mxu0 0.0
    %367 = vmatprep.subr.mxu0 0.0
    %368 = vmatpush2.msra.mxu0 0.0
    %369 = vmatprep.subr.mxu0 0.0
    %370 = vmatpush2.msra.mxu0 0.0
    %371 = vmatprep.subr.mxu0 0.0
    %372 = vmatpush2.msra.mxu0 0.0
    %373 = vmatprep.subr.mxu0 0.0
    %374 = vmatpush2.msra.mxu0 0.0
    %375 = vmatprep.subr.mxu0 0.0
    %376 = vmatpush2.msra.mxu0 0.0
    %377 = vmatprep.subr.mxu0 0.0
    %378 = vmatpush2.msra.mxu0 0.0
    %379 = vmatprep.subr.mxu0 0.0
    %380 = vmatpush2.msra.mxu0 0.0
    %381 = vmatprep.subr.mxu0 0.0
    %382 = vmatpush2.msra.mxu0 0.0
    %383 = vmatprep.subr.mxu0 0.0
    %384 = vmatpush2.msra.mxu0 0.0
    %385 = vmatprep.subr.mxu0 0.0
    %386 = vmatpush2.msra.mxu0 0.0
    %387 = vmatprep.subr.mxu0 0.0
    %388 = vmatpush2.msra.mxu0 0.0
    %389 = vmatprep.subr.mxu0 0.0
    %390 = vmatpush2.msra.mxu0 0.0
    %391 = vmatprep.subr.mxu0 0.0
    %392 = vmatpush2.msra.mxu0 0.0
    %393 = vmatprep.subr.mxu0 0.0
    %394 = vmatpush2.msra.mxu0 0.0
    %395 = vmatprep.mubr.f32.mxu0 0.0
    %396 = vmatmul.mubr.f32.gmra.mxu0 %v326
    %v397 = vpop.f32.mrf.mxu0
    %v398 = vadd.f32 0.0, %v397
    %v399 = vpop.f32.mrf.mxu0
    %400 = vdwg.mxu0
    %v402 = vsel %vm33, %v61, 0
    %404 = vmatprep.subr.mxu0 0.0
    %405 = vmatpush1.msra.mxu0 0.0
    %406 = vmatprep.subr.mxu0 0.0
    %407 = vmatpush1.msra.mxu0 0.0
    %408 = vmatprep.subr.mxu0 0.0
    %409 = vmatpush1.msra.mxu0 0.0
    %410 = vmatprep.subr.mxu0 0.0
    %411 = vmatpush1.msra.mxu0 0.0
    %412 = vmatprep.subr.mxu0 0.0
    %413 = vmatpush1.msra.mxu0 0.0
    %414 = vmatprep.subr.mxu0 0.0
    %415 = vmatpush1.msra.mxu0 0.0
    %416 = vmatprep.subr.mxu0 0.0
    %417 = vmatpush1.msra.mxu0 0.0
    %418 = vmatprep.subr.mxu0 0.0
    %419 = vmatpush1.msra.mxu0 0.0
    %420 = vmatprep.subr.mxu0 0.0
    %421 = vmatpush1.msra.mxu0 0.0
    %422 = vmatprep.subr.mxu0 0.0
    %423 = vmatpush1.msra.mxu0 0.0
    %424 = vmatprep.subr.mxu0 0.0
    %425 = vmatpush1.msra.mxu0 0.0
    %426 = vmatprep.subr.mxu0 0.0
    %427 = vmatpush1.msra.mxu0 0.0
    %428 = vmatprep.subr.mxu0 0.0
    %429 = vmatpush1.msra.mxu0 %v323
    %430 = vmatprep.subr.mxu0 0.0
    %431 = vmatpush1.msra.mxu0 %v322
    %432 = vmatprep.subr.mxu0 0.0
    %433 = vmatpush1.msra.mxu0 %v321
    %434 = vmatprep.subr.mxu0 0.0
    %435 = vmatpush1.msra.mxu0 %v320
    %436 = vmatprep.subr.mxu0 0.0
    %437 = vmatpush2.msra.mxu0 0.0
    %438 = vmatprep.subr.mxu0 0.0
    %439 = vmatpush2.msra.mxu0 0.0
    %440 = vmatprep.subr.mxu0 0.0
    %441 = vmatpush2.msra.mxu0 0.0
    %442 = vmatprep.subr.mxu0 0.0
    %443 = vmatpush2.msra.mxu0 0.0
    %444 = vmatprep.subr.mxu0 0.0
    %445 = vmatpush2.msra.mxu0 0.0
    %446 = vmatprep.subr.mxu0 0.0
    %447 = vmatpush2.msra.mxu0 0.0
    %448 = vmatprep.subr.mxu0 0.0
    %449 = vmatpush2.msra.mxu0 0.0
    %450 = vmatprep.subr.mxu0 0.0
    %451 = vmatpush2.msra.mxu0 0.0
    %452 = vmatprep.subr.mxu0 0.0
    %453 = vmatpush2.msra.mxu0 0.0
    %454 = vmatprep.subr.mxu0 0.0
    %455 = vmatpush2.msra.mxu0 0.0
    %456 = vmatprep.subr.mxu0 0.0
    %457 = vmatpush2.msra.mxu0 0.0
    %458 = vmatprep.subr.mxu0 0.0
    %459 = vmatpush2.msra.mxu0 0.0
    %460 = vmatprep.subr.mxu0 0.0
    %461 = vmatpush2.msra.mxu0 0.0
    %462 = vmatprep.subr.mxu0 0.0
    %463 = vmatpush2.msra.mxu0 0.0
    %464 = vmatprep.subr.mxu0 0.0
    %465 = vmatpush2.msra.mxu0 0.0
    %466 = vmatprep.subr.mxu0 0.0
    %467 = vmatpush2.msra.mxu0 0.0
    %468 = vmatprep.mubr.f32.mxu0 0.0
    %469 = vmatmul.mubr.f32.gmra.mxu0 %v402
    %v470 = vpop.f32.mrf.mxu0
    %v471 = vadd.f32 %v398, %v470
    %v472 = vpop.f32.mrf.mxu0
    %473 = vdwg.mxu0
    %v474 = vld [vmem:[%s7] sm:$0x1]
    %v476 = vlaneseq
    %v477 = vshrl.u32 %v476, 7
    %v478 = vsub.s32 0, %v477
    %v479 = vrot.slane %v474, %v478
    %v481 = vadd.f32 %v471, %v479
    %v482 = vmax.f32 %v481, 0.0
    %483 = vst.msk [vmem:[#allocation2] sm:$0xff] %vm33, %v482
    // Predicated region
    $region34: #{gvp_embedding_forward.11} parent=1 // pred_check
      _
    $region35: #{gvp_embedding_forward.11} parent=1 // pred_check_branch
      %485 = sbr.rel (0) target = $region37
    $region36: #{gvp_embedding_forward.11} parent=1 // pred_region
      %s487 = ssub.s32 128, 128
      %488 = vsyncadd [#allocation3], %s487
      %s490 = sshll.u32 [#allocation2], 4
      %s491 = int_to_ptr.vmem [resolvable:$true] %s490
      %493 = dma.vmem_to_hbm [thread:$0]  %s491, 128, %s8, [#allocation3]
    $region37: #{gvp_embedding_forward.11} parent=1 // pred_fallthru
      _
    // Predicated region
    $region38: #{gvp_embedding_forward.11} parent=1 // pred_check
      _
    $region39: #{gvp_embedding_forward.11} parent=1 // pred_check_branch
      %495 = sbr.rel (0) target = $region41
    $region40: #{gvp_embedding_forward.11} parent=1 // pred_region
      %496 = dma.done [#allocation3], 128
    $region41: #{gvp_embedding_forward.11} parent=1 // pred_fallthru
      _
    %497 = vsyncpa [#allocation3], 1

// kernel: gvp_embedding_forward.7
$region0: #{gvp_embedding_forward.7}
  #allocation0 [shape = 'u32[]', space=smem, size = 0x4, offset = 0x4, fixed_abs, tag = 'smem constant byte address 0x4 - core index']
  #allocation1 [shape = 'u32[144,128]{1,0:T(1,128)}', space=vmem, size = 0x12000, scoped, tag = 'internal scratch']
  #allocation2 [shape = 'f32[1,1]{1,0:T(1,128)S(1)}', space=vmem, size = 0x200, scoped, tag = 'scoped memory for gvp_embedding_forward.7']
  #allocation3 [shape = 'f32[1,1]{1,0:T(1,128)S(1)}', space=vmem, size = 0x200, scoped, tag = 'scoped memory for gvp_embedding_forward.7']
  %s0 = inlined_call_operand.vmem [shape: f32[16,32], index: 0, kind: input, shape index: {}]
  %s1 = inlined_call_operand.vmem [shape: f32[3,16,1], index: 1, kind: input, shape index: {}]
  %s2 = inlined_call_operand.vmem [shape: f32[1,32], index: 2, kind: input, shape index: {}]
  %s3 = inlined_call_operand.vmem [shape: f32[1,32], index: 3, kind: input, shape index: {}]
  %s4 = inlined_call_operand.<no memory space> [shape: f32[1,1], index: 4, kind: input, shape index: {}]
  %s5 = inlined_call_operand.vmem [shape: f32[32,32], index: 5, kind: input, shape index: {}]
  %s6 = inlined_call_operand.vmem [shape: f32[1,32], index: 6, kind: input, shape index: {}]
  %s7 = inlined_call_operand.vmem [shape: f32[1,32], index: 7, kind: input, shape index: {}]
  %s8 = inlined_call_operand.<no memory space> [shape: f32[1,1], index: 8, kind: input, shape index: {}]
  %s9 = inlined_call_operand.vmem [shape: f32[16,32], index: 9, kind: output, shape index: {0}]
  %s10 = inlined_call_operand.vmem [shape: f32[3,16,1], index: 10, kind: output, shape index: {1}]
  %11 = xla_tuple %s9, %s10
  %s12 = sld [smem:[#allocation0]]
  $region54: #{gvp_embedding_forward.7} parent=0
    _
  %s14 = ssub.s32 1, %s12
  %s15 = scalar_select 0, %s14, %s12
  %v16 = vstv %s4
  %17 = vst [vmem:[#allocation2] sm:$0x1] %v16
  %v18 = vstv %s8
  %19 = vst [vmem:[#allocation3] sm:$0x1] %v18
  // Predicated region
  $region2: #{gvp_embedding_forward.7} parent=0 // pred_check
    _
  $region3: #{gvp_embedding_forward.7} parent=0 // pred_check_branch
    %21 = sbr.rel (0) target = $region5
  $region4: #{gvp_embedding_forward.7} parent=0 // pred_region
    _
  $region5: #{gvp_embedding_forward.7} parent=0 // pred_fallthru
    _
  // Predicated region
  $region6: #{gvp_embedding_forward.7} parent=0 // pred_check
    _
  $region7: #{gvp_embedding_forward.7} parent=0 // pred_check_branch
    %23 = sbr.rel (0) target = $region9
  $region8: #{gvp_embedding_forward.7} parent=0 // pred_region
    _
  $region9: #{gvp_embedding_forward.7} parent=0 // pred_fallthru
    _
  // Predicated region
  $region10: #{gvp_embedding_forward.7} parent=0 // pred_check
    _
  $region11: #{gvp_embedding_forward.7} parent=0 // pred_check_branch
    %25 = sbr.rel (0) target = $region13
  $region12: #{gvp_embedding_forward.7} parent=0 // pred_region
    _
  $region13: #{gvp_embedding_forward.7} parent=0 // pred_fallthru
    _
  // Predicated region
  $region14: #{gvp_embedding_forward.7} parent=0 // pred_check
    _
  $region15: #{gvp_embedding_forward.7} parent=0 // pred_check_branch
    %27 = sbr.rel (0) target = $region17
  $region16: #{gvp_embedding_forward.7} parent=0 // pred_region
    _
  $region17: #{gvp_embedding_forward.7} parent=0 // pred_fallthru
    _
  // Predicated region
  $region18: #{gvp_embedding_forward.7} parent=0 // pred_check
    _
  $region19: #{gvp_embedding_forward.7} parent=0 // pred_check_branch
    %29 = sbr.rel (0) target = $region21
  $region20: #{gvp_embedding_forward.7} parent=0 // pred_region
    _
  $region21: #{gvp_embedding_forward.7} parent=0 // pred_fallthru
    _
  // Predicated region
  $region22: #{gvp_embedding_forward.7} parent=0 // pred_check
    _
  $region23: #{gvp_embedding_forward.7} parent=0 // pred_check_branch
    %31 = sbr.rel (0) target = $region25
  $region24: #{gvp_embedding_forward.7} parent=0 // pred_region
    _
  $region25: #{gvp_embedding_forward.7} parent=0 // pred_fallthru
    _
  // Predicated region
  $region26: #{gvp_embedding_forward.7} parent=0 // pred_check
    _
  $region27: #{gvp_embedding_forward.7} parent=0 // pred_check_branch
    %33 = sbr.rel (0) target = $region29
  $region28: #{gvp_embedding_forward.7} parent=0 // pred_region
    _
  $region29: #{gvp_embedding_forward.7} parent=0 // pred_fallthru
    _
  // Predicated region
  $region30: #{gvp_embedding_forward.7} parent=0 // pred_check
    _
  $region31: #{gvp_embedding_forward.7} parent=0 // pred_check_branch
    %35 = sbr.rel (0) target = $region33
  $region32: #{gvp_embedding_forward.7} parent=0 // pred_region
    _
  $region33: #{gvp_embedding_forward.7} parent=0 // pred_fallthru
    _
  // Predicated region
  $region34: #{gvp_embedding_forward.7} parent=0 // pred_check
    _
  $region35: #{gvp_embedding_forward.7} parent=0 // pred_check_branch
    %37 = sbr.rel (0) target = $region37
  $region36: #{gvp_embedding_forward.7} parent=0 // pred_region
    _
  $region37: #{gvp_embedding_forward.7} parent=0 // pred_fallthru
    _
  %v38 = vld [vmem:[%s0] sm:$0xff]
  %v39 = vld [vmem:[%s0 + $0x8] sm:$0xff]
  %v40 = vld [vmem:[%s2] sm:$0x1]
  %v41 = vld [vmem:[%s3] sm:$0x1]
  %vm42 = vcmask 261120
  %v43 = vsel %vm42, %v38, 0.0
  %44 = vadd.xlane.f32.xlu0 %v43
  %v45 = vpop.xlane.xlu0 %44
  %v46 = vsel %vm42, %v39, 0.0
  %47 = vadd.xlane.f32.xlu0 %v46
  %v48 = vpop.xlane.xlu0 %47
  %v49 = vrcp.pop 32.0
  %v50 = vmul.f32 %v45, %v49
  %v51 = vmul.f32 %v48, %v49
  %v52 = vsub.f32 %v38, %v50
  %v53 = vsub.f32 %v39, %v51
  %v54 = vmul.f32 %v52, %v52
  %v55 = vmul.f32 %v53, %v53
  %v56 = vsel %vm42, %v54, 0.0
  %57 = vadd.xlane.f32.xlu0 %v56
  %v58 = vpop.xlane.xlu0 %57
  %v59 = vsel %vm42, %v55, 0.0
  %60 = vadd.xlane.f32.xlu0 %v59
  %v61 = vpop.xlane.xlu0 %60
  %v62 = vmul.f32 %v58, %v49
  %v63 = vmul.f32 %v61, %v49
  %v64 = vadd.f32 %v62, 1e-05
  %v65 = vadd.f32 %v63, 1e-05
  %v66 = vrsqrt.pop %v64
  %v67 = vrsqrt.pop %v65
  %v68 = vmul.f32 %v52, %v66
  %v69 = vmul.f32 %v53, %v67
  %v71 = vlaneseq
  %v72 = vshrl.u32 %v71, 7
  %v73 = vsub.s32 0, %v72
  %v74 = vrot.slane %v40, %v73
  %v76 = vmul.f32 %v68, %v74
  %v77 = vmul.f32 %v69, %v74
  %v79 = vlaneseq
  %v80 = vshrl.u32 %v79, 7
  %v81 = vsub.s32 0, %v80
  %v82 = vrot.slane %v41, %v81
  %v84 = vadd.f32 %v76, %v82
  %v85 = vadd.f32 %v77, %v82
  %v86 = vld [vmem:[%s1] sm:$0xff]
  %v87 = vld [vmem:[%s1 + $0x8] sm:$0xff]
  %s88 = scalar_lea.vmem %s1, 16
  %v89 = vld [vmem:[%s88] sm:$0xff]
  %v90 = vld [vmem:[%s88 + $0x8] sm:$0xff]
  %s91 = scalar_lea.vmem %s1, 32
  %v92 = vld [vmem:[%s91] sm:$0xff]
  %v93 = vld [vmem:[%s91 + $0x8] sm:$0xff]
  %v94 = vmul.f32 %v86, %v86
  %v95 = vmul.f32 %v87, %v87
  %v96 = vmul.f32 %v89, %v89
  %v97 = vmul.f32 %v90, %v90
  %v98 = vadd.f32 %v94, %v96
  %v99 = vadd.f32 %v95, %v97
  %v100 = vmul.f32 %v92, %v92
  %v101 = vmul.f32 %v93, %v93
  %v102 = vadd.f32 %v98, %v100
  %v103 = vadd.f32 %v99, %v101
  %v104 = vmax.f32 %v102, 1e-08
  %v105 = vmax.f32 %v103, 1e-08
  %v106 = vadd.f32 %v104, 0.0
  %v107 = vadd.f32 %v105, 0.0
  %v108 = vrsqrt.pop %v106
  %v109 = vrsqrt.pop %v107
  %v110 = vmul.f32 %v86, %v108
  %v111 = vmul.f32 %v87, %v109
  %v112 = vmul.f32 %v89, %v108
  %v113 = vmul.f32 %v90, %v109
  %v114 = vmul.f32 %v92, %v108
  %v115 = vmul.f32 %v93, %v109
  %v116 = vld [vmem:[#allocation2] sm:$0x1]
  %v117 = vld [vmem:[%s5] sm:$0xff]
  %v118 = vld [vmem:[%s5 + $0x8] sm:$0xff]
  %v119 = vld [vmem:[%s5 + $0x10] sm:$0xff]
  %v120 = vld [vmem:[%s5 + $0x18] sm:$0xff]
  %v121 = vld [vmem:[%s6] sm:$0x1]
  %v122 = vld [vmem:[%s7] sm:$0x1]
  %v123 = vld [vmem:[#allocation3] sm:$0x1]
  %vm124 = vcmask 7168
  %v126 = vsel %vm124, %v110, 0
  %v129 = vsel %vm124, %v111, 0
  %vm131 = vcmask 1040384
  %v133 = vsel %vm131, %v116, 0
  %135 = vmatprep.subr.mxu0 0.0
  %136 = vmatpush1.msra.mxu0 0.0
  %137 = vmatprep.subr.mxu0 0.0
  %138 = vmatpush1.msra.mxu0 0.0
  %139 = vmatprep.subr.mxu0 0.0
  %140 = vmatpush1.msra.mxu0 0.0
  %141 = vmatprep.subr.mxu0 0.0
  %142 = vmatpush1.msra.mxu0 0.0
  %143 = vmatprep.subr.mxu0 0.0
  %144 = vmatpush1.msra.mxu0 0.0
  %145 = vmatprep.subr.mxu0 0.0
  %146 = vmatpush1.msra.mxu0 0.0
  %147 = vmatprep.subr.mxu0 0.0
  %148 = vmatpush1.msra.mxu0 0.0
  %149 = vmatprep.subr.mxu0 0.0
  %150 = vmatpush1.msra.mxu0 0.0
  %151 = vmatprep.subr.mxu0 0.0
  %152 = vmatpush1.msra.mxu0 0.0
  %153 = vmatprep.subr.mxu0 0.0
  %154 = vmatpush1.msra.mxu0 0.0
  %155 = vmatprep.subr.mxu0 0.0
  %156 = vmatpush1.msra.mxu0 0.0
  %157 = vmatprep.subr.mxu0 0.0
  %158 = vmatpush1.msra.mxu0 0.0
  %159 = vmatprep.subr.mxu0 0.0
  %160 = vmatpush1.msra.mxu0 0.0
  %161 = vmatprep.subr.mxu0 0.0
  %162 = vmatpush1.msra.mxu0 0.0
  %163 = vmatprep.subr.mxu0 0.0
  %164 = vmatpush1.msra.mxu0 0.0
  %165 = vmatprep.subr.mxu0 0.0
  %166 = vmatpush1.msra.mxu0 %v133
  %167 = vmatprep.subr.mxu0 0.0
  %168 = vmatpush2.msra.mxu0 0.0
  %169 = vmatprep.subr.mxu0 0.0
  %170 = vmatpush2.msra.mxu0 0.0
  %171 = vmatprep.subr.mxu0 0.0
  %172 = vmatpush2.msra.mxu0 0.0
  %173 = vmatprep.subr.mxu0 0.0
  %174 = vmatpush2.msra.mxu0 0.0
  %175 = vmatprep.subr.mxu0 0.0
  %176 = vmatpush2.msra.mxu0 0.0
  %177 = vmatprep.subr.mxu0 0.0
  %178 = vmatpush2.msra.mxu0 0.0
  %179 = vmatprep.subr.mxu0 0.0
  %180 = vmatpush2.msra.mxu0 0.0
  %181 = vmatprep.subr.mxu0 0.0
  %182 = vmatpush2.msra.mxu0 0.0
  %183 = vmatprep.subr.mxu0 0.0
  %184 = vmatpush2.msra.mxu0 0.0
  %185 = vmatprep.subr.mxu0 0.0
  %186 = vmatpush2.msra.mxu0 0.0
  %187 = vmatprep.subr.mxu0 0.0
  %188 = vmatpush2.msra.mxu0 0.0
  %189 = vmatprep.subr.mxu0 0.0
  %190 = vmatpush2.msra.mxu0 0.0
  %191 = vmatprep.subr.mxu0 0.0
  %192 = vmatpush2.msra.mxu0 0.0
  %193 = vmatprep.subr.mxu0 0.0
  %194 = vmatpush2.msra.mxu0 0.0
  %195 = vmatprep.subr.mxu0 0.0
  %196 = vmatpush2.msra.mxu0 0.0
  %197 = vmatprep.subr.mxu0 0.0
  %198 = vmatpush2.msra.mxu0 0.0
  %199 = vmatprep.mubr.f32.mxu0 0.0
  %200 = vmatmul.mubr.f32.gmra.mxu0 %v126
  %v201 = vpop.f32.mrf.mxu0
  %v202 = vadd.f32 0.0, %v201
  %v203 = vpop.f32.mrf.mxu0
  %204 = vmatprep.mubr.f32.mxu0 0.0
  %205 = vmatmul.mubr.f32.gmra.mxu0 %v129
  %v206 = vpop.f32.mrf.mxu0
  %v207 = vadd.f32 0.0, %v206
  %v208 = vpop.f32.mrf.mxu0
  %209 = vdwg.mxu0
  %v211 = vsel %vm124, %v112, 0
  %v214 = vsel %vm124, %v113, 0
  %216 = vmatprep.subr.mxu0 0.0
  %217 = vmatpush1.msra.mxu0 0.0
  %218 = vmatprep.subr.mxu0 0.0
  %219 = vmatpush1.msra.mxu0 0.0
  %220 = vmatprep.subr.mxu0 0.0
  %221 = vmatpush1.msra.mxu0 0.0
  %222 = vmatprep.subr.mxu0 0.0
  %223 = vmatpush1.msra.mxu0 0.0
  %224 = vmatprep.subr.mxu0 0.0
  %225 = vmatpush1.msra.mxu0 0.0
  %226 = vmatprep.subr.mxu0 0.0
  %227 = vmatpush1.msra.mxu0 0.0
  %228 = vmatprep.subr.mxu0 0.0
  %229 = vmatpush1.msra.mxu0 0.0
  %230 = vmatprep.subr.mxu0 0.0
  %231 = vmatpush1.msra.mxu0 0.0
  %232 = vmatprep.subr.mxu0 0.0
  %233 = vmatpush1.msra.mxu0 0.0
  %234 = vmatprep.subr.mxu0 0.0
  %235 = vmatpush1.msra.mxu0 0.0
  %236 = vmatprep.subr.mxu0 0.0
  %237 = vmatpush1.msra.mxu0 0.0
  %238 = vmatprep.subr.mxu0 0.0
  %239 = vmatpush1.msra.mxu0 0.0
  %240 = vmatprep.subr.mxu0 0.0
  %241 = vmatpush1.msra.mxu0 0.0
  %242 = vmatprep.subr.mxu0 0.0
  %243 = vmatpush1.msra.mxu0 0.0
  %244 = vmatprep.subr.mxu0 0.0
  %245 = vmatpush1.msra.mxu0 0.0
  %246 = vmatprep.subr.mxu0 0.0
  %247 = vmatpush1.msra.mxu0 %v133
  %248 = vmatprep.subr.mxu0 0.0
  %249 = vmatpush2.msra.mxu0 0.0
  %250 = vmatprep.subr.mxu0 0.0
  %251 = vmatpush2.msra.mxu0 0.0
  %252 = vmatprep.subr.mxu0 0.0
  %253 = vmatpush2.msra.mxu0 0.0
  %254 = vmatprep.subr.mxu0 0.0
  %255 = vmatpush2.msra.mxu0 0.0
  %256 = vmatprep.subr.mxu0 0.0
  %257 = vmatpush2.msra.mxu0 0.0
  %258 = vmatprep.subr.mxu0 0.0
  %259 = vmatpush2.msra.mxu0 0.0
  %260 = vmatprep.subr.mxu0 0.0
  %261 = vmatpush2.msra.mxu0 0.0
  %262 = vmatprep.subr.mxu0 0.0
  %263 = vmatpush2.msra.mxu0 0.0
  %264 = vmatprep.subr.mxu0 0.0
  %265 = vmatpush2.msra.mxu0 0.0
  %266 = vmatprep.subr.mxu0 0.0
  %267 = vmatpush2.msra.mxu0 0.0
  %268 = vmatprep.subr.mxu0 0.0
  %269 = vmatpush2.msra.mxu0 0.0
  %270 = vmatprep.subr.mxu0 0.0
  %271 = vmatpush2.msra.mxu0 0.0
  %272 = vmatprep.subr.mxu0 0.0
  %273 = vmatpush2.msra.mxu0 0.0
  %274 = vmatprep.subr.mxu0 0.0
  %275 = vmatpush2.msra.mxu0 0.0
  %276 = vmatprep.subr.mxu0 0.0
  %277 = vmatpush2.msra.mxu0 0.0
  %278 = vmatprep.subr.mxu0 0.0
  %279 = vmatpush2.msra.mxu0 0.0
  %280 = vmatprep.mubr.f32.mxu0 0.0
  %281 = vmatmul.mubr.f32.gmra.mxu0 %v211
  %v282 = vpop.f32.mrf.mxu0
  %v283 = vadd.f32 0.0, %v282
  %v284 = vpop.f32.mrf.mxu0
  %285 = vmatprep.mubr.f32.mxu0 0.0
  %286 = vmatmul.mubr.f32.gmra.mxu0 %v214
  %v287 = vpop.f32.mrf.mxu0
  %v288 = vadd.f32 0.0, %v287
  %v289 = vpop.f32.mrf.mxu0
  %290 = vdwg.mxu0
  %v292 = vsel %vm124, %v114, 0
  %v295 = vsel %vm124, %v115, 0
  %297 = vmatprep.subr.mxu0 0.0
  %298 = vmatpush1.msra.mxu0 0.0
  %299 = vmatprep.subr.mxu0 0.0
  %300 = vmatpush1.msra.mxu0 0.0
  %301 = vmatprep.subr.mxu0 0.0
  %302 = vmatpush1.msra.mxu0 0.0
  %303 = vmatprep.subr.mxu0 0.0
  %304 = vmatpush1.msra.mxu0 0.0
  %305 = vmatprep.subr.mxu0 0.0
  %306 = vmatpush1.msra.mxu0 0.0
  %307 = vmatprep.subr.mxu0 0.0
  %308 = vmatpush1.msra.mxu0 0.0
  %309 = vmatprep.subr.mxu0 0.0
  %310 = vmatpush1.msra.mxu0 0.0
  %311 = vmatprep.subr.mxu0 0.0
  %312 = vmatpush1.msra.mxu0 0.0
  %313 = vmatprep.subr.mxu0 0.0
  %314 = vmatpush1.msra.mxu0 0.0
  %315 = vmatprep.subr.mxu0 0.0
  %316 = vmatpush1.msra.mxu0 0.0
  %317 = vmatprep.subr.mxu0 0.0
  %318 = vmatpush1.msra.mxu0 0.0
  %319 = vmatprep.subr.mxu0 0.0
  %320 = vmatpush1.msra.mxu0 0.0
  %321 = vmatprep.subr.mxu0 0.0
  %322 = vmatpush1.msra.mxu0 0.0
  %323 = vmatprep.subr.mxu0 0.0
  %324 = vmatpush1.msra.mxu0 0.0
  %325 = vmatprep.subr.mxu0 0.0
  %326 = vmatpush1.msra.mxu0 0.0
  %327 = vmatprep.subr.mxu0 0.0
  %328 = vmatpush1.msra.mxu0 %v133
  %329 = vmatprep.subr.mxu0 0.0
  %330 = vmatpush2.msra.mxu0 0.0
  %331 = vmatprep.subr.mxu0 0.0
  %332 = vmatpush2.msra.mxu0 0.0
  %333 = vmatprep.subr.mxu0 0.0
  %334 = vmatpush2.msra.mxu0 0.0
  %335 = vmatprep.subr.mxu0 0.0
  %336 = vmatpush2.msra.mxu0 0.0
  %337 = vmatprep.subr.mxu0 0.0
  %338 = vmatpush2.msra.mxu0 0.0
  %339 = vmatprep.subr.mxu0 0.0
  %340 = vmatpush2.msra.mxu0 0.0
  %341 = vmatprep.subr.mxu0 0.0
  %342 = vmatpush2.msra.mxu0 0.0
  %343 = vmatprep.subr.mxu0 0.0
  %344 = vmatpush2.msra.mxu0 0.0
  %345 = vmatprep.subr.mxu0 0.0
  %346 = vmatpush2.msra.mxu0 0.0
  %347 = vmatprep.subr.mxu0 0.0
  %348 = vmatpush2.msra.mxu0 0.0
  %349 = vmatprep.subr.mxu0 0.0
  %350 = vmatpush2.msra.mxu0 0.0
  %351 = vmatprep.subr.mxu0 0.0
  %352 = vmatpush2.msra.mxu0 0.0
  %353 = vmatprep.subr.mxu0 0.0
  %354 = vmatpush2.msra.mxu0 0.0
  %355 = vmatprep.subr.mxu0 0.0
  %356 = vmatpush2.msra.mxu0 0.0
  %357 = vmatprep.subr.mxu0 0.0
  %358 = vmatpush2.msra.mxu0 0.0
  %359 = vmatprep.subr.mxu0 0.0
  %360 = vmatpush2.msra.mxu0 0.0
  %361 = vmatprep.mubr.f32.mxu0 0.0
  %362 = vmatmul.mubr.f32.gmra.mxu0 %v292
  %v363 = vpop.f32.mrf.mxu0
  %v364 = vadd.f32 0.0, %v363
  %v365 = vpop.f32.mrf.mxu0
  %366 = vmatprep.mubr.f32.mxu0 0.0
  %367 = vmatmul.mubr.f32.gmra.mxu0 %v295
  %v368 = vpop.f32.mrf.mxu0
  %v369 = vadd.f32 0.0, %v368
  %v370 = vpop.f32.mrf.mxu0
  %371 = vdwg.mxu0
  %v372 = vmul.f32 %v202, %v202
  %v373 = vmul.f32 %v207, %v207
  %v374 = vmul.f32 %v283, %v283
  %v375 = vmul.f32 %v288, %v288
  %v376 = vadd.f32 %v372, %v374
  %v377 = vadd.f32 %v373, %v375
  %v378 = vmul.f32 %v364, %v364
  %v379 = vmul.f32 %v369, %v369
  %v380 = vadd.f32 %v376, %v378
  %v381 = vadd.f32 %v377, %v379
  %v382 = vmax.f32 %v380, 1e-08
  %v383 = vmax.f32 %v381, 1e-08
  %v384 = vrsqrt.pop %v382
  %v385 = vmul.f32 %v382, %v384
  %vm386 = vcmp.eq.f32.partialorder %v382, inf
  %v387 = vsel %vm386, %v382, %v385
  %vm388 = vcmp.eq.f32.partialorder %v382, 0.0
  %v389 = vand.u32 %v382, 2147483648
  %v390 = vsel %vm388, %v389, %v387
  %v391 = vrsqrt.pop %v383
  %v392 = vmul.f32 %v383, %v391
  %vm393 = vcmp.eq.f32.partialorder %v383, inf
  %v394 = vsel %vm393, %v383, %v392
  %vm395 = vcmp.eq.f32.partialorder %v383, 0.0
  %v396 = vand.u32 %v383, 2147483648
  %v397 = vsel %vm395, %v396, %v394
  %v399 = vsel %vm124, %v390, 0
  %v402 = vsel %vm124, %v397, 0
  %v405 = vsel %vm131, %v121, 0
  %407 = vmatprep.subr.mxu0 0.0
  %408 = vmatpush1.msra.mxu0 0.0
  %409 = vmatprep.subr.mxu0 0.0
  %410 = vmatpush1.msra.mxu0 0.0
  %411 = vmatprep.subr.mxu0 0.0
  %412 = vmatpush1.msra.mxu0 0.0
  %413 = vmatprep.subr.mxu0 0.0
  %414 = vmatpush1.msra.mxu0 0.0
  %415 = vmatprep.subr.mxu0 0.0
  %416 = vmatpush1.msra.mxu0 0.0
  %417 = vmatprep.subr.mxu0 0.0
  %418 = vmatpush1.msra.mxu0 0.0
  %419 = vmatprep.subr.mxu0 0.0
  %420 = vmatpush1.msra.mxu0 0.0
  %421 = vmatprep.subr.mxu0 0.0
  %422 = vmatpush1.msra.mxu0 0.0
  %423 = vmatprep.subr.mxu0 0.0
  %424 = vmatpush1.msra.mxu0 0.0
  %425 = vmatprep.subr.mxu0 0.0
  %426 = vmatpush1.msra.mxu0 0.0
  %427 = vmatprep.subr.mxu0 0.0
  %428 = vmatpush1.msra.mxu0 0.0
  %429 = vmatprep.subr.mxu0 0.0
  %430 = vmatpush1.msra.mxu0 0.0
  %431 = vmatprep.subr.mxu0 0.0
  %432 = vmatpush1.msra.mxu0 0.0
  %433 = vmatprep.subr.mxu0 0.0
  %434 = vmatpush1.msra.mxu0 0.0
  %435 = vmatprep.subr.mxu0 0.0
  %436 = vmatpush1.msra.mxu0 0.0
  %437 = vmatprep.subr.mxu0 0.0
  %438 = vmatpush1.msra.mxu0 %v405
  %439 = vmatprep.subr.mxu0 0.0
  %440 = vmatpush2.msra.mxu0 0.0
  %441 = vmatprep.subr.mxu0 0.0
  %442 = vmatpush2.msra.mxu0 0.0
  %443 = vmatprep.subr.mxu0 0.0
  %444 = vmatpush2.msra.mxu0 0.0
  %445 = vmatprep.subr.mxu0 0.0
  %446 = vmatpush2.msra.mxu0 0.0
  %447 = vmatprep.subr.mxu0 0.0
  %448 = vmatpush2.msra.mxu0 0.0
  %449 = vmatprep.subr.mxu0 0.0
  %450 = vmatpush2.msra.mxu0 0.0
  %451 = vmatprep.subr.mxu0 0.0
  %452 = vmatpush2.msra.mxu0 0.0
  %453 = vmatprep.subr.mxu0 0.0
  %454 = vmatpush2.msra.mxu0 0.0
  %455 = vmatprep.subr.mxu0 0.0
  %456 = vmatpush2.msra.mxu0 0.0
  %457 = vmatprep.subr.mxu0 0.0
  %458 = vmatpush2.msra.mxu0 0.0
  %459 = vmatprep.subr.mxu0 0.0
  %460 = vmatpush2.msra.mxu0 0.0
  %461 = vmatprep.subr.mxu0 0.0
  %462 = vmatpush2.msra.mxu0 0.0
  %463 = vmatprep.subr.mxu0 0.0
  %464 = vmatpush2.msra.mxu0 0.0
  %465 = vmatprep.subr.mxu0 0.0
  %466 = vmatpush2.msra.mxu0 0.0
  %467 = vmatprep.subr.mxu0 0.0
  %468 = vmatpush2.msra.mxu0 0.0
  %469 = vmatprep.subr.mxu0 0.0
  %470 = vmatpush2.msra.mxu0 0.0
  %471 = vmatprep.mubr.f32.mxu0 0.0
  %472 = vmatmul.mubr.f32.gmra.mxu0 %v399
  %v473 = vpop.f32.mrf.mxu0
  %v474 = vadd.f32 0.0, %v473
  %v475 = vpop.f32.mrf.mxu0
  %476 = vmatprep.mubr.f32.mxu0 0.0
  %477 = vmatmul.mubr.f32.gmra.mxu0 %v402
  %v478 = vpop.f32.mrf.mxu0
  %v479 = vadd.f32 0.0, %v478
  %v480 = vpop.f32.mrf.mxu0
  %481 = vdwg.mxu0
  %v483 = vsel %vm42, %v84, 0
  %v486 = vsel %vm42, %v85, 0
  %488 = vmatprep.subr.mxu0 0.0
  %489 = vmatpush1.msra.mxu0 0.0
  %490 = vmatprep.subr.mxu0 0.0
  %491 = vmatpush1.msra.mxu0 0.0
  %492 = vmatprep.subr.mxu0 0.0
  %493 = vmatpush1.msra.mxu0 0.0
  %494 = vmatprep.subr.mxu0 0.0
  %495 = vmatpush1.msra.mxu0 0.0
  %496 = vmatprep.subr.mxu0 0.0
  %497 = vmatpush1.msra.mxu0 0.0
  %498 = vmatprep.subr.mxu0 0.0
  %499 = vmatpush1.msra.mxu0 0.0
  %500 = vmatprep.subr.mxu0 0.0
  %501 = vmatpush1.msra.mxu0 0.0
  %502 = vmatprep.subr.mxu0 0.0
  %503 = vmatpush1.msra.mxu0 0.0
  %504 = vmatprep.subr.mxu0 0.0
  %505 = vmatpush1.msra.mxu0 0.0
  %506 = vmatprep.subr.mxu0 0.0
  %507 = vmatpush1.msra.mxu0 0.0
  %508 = vmatprep.subr.mxu0 0.0
  %509 = vmatpush1.msra.mxu0 0.0
  %510 = vmatprep.subr.mxu0 0.0
  %511 = vmatpush1.msra.mxu0 0.0
  %512 = vmatprep.subr.mxu0 0.0
  %513 = vmatpush1.msra.mxu0 %v120
  %514 = vmatprep.subr.mxu0 0.0
  %515 = vmatpush1.msra.mxu0 %v119
  %516 = vmatprep.subr.mxu0 0.0
  %517 = vmatpush1.msra.mxu0 %v118
  %518 = vmatprep.subr.mxu0 0.0
  %519 = vmatpush1.msra.mxu0 %v117
  %520 = vmatprep.subr.mxu0 0.0
  %521 = vmatpush2.msra.mxu0 0.0
  %522 = vmatprep.subr.mxu0 0.0
  %523 = vmatpush2.msra.mxu0 0.0
  %524 = vmatprep.subr.mxu0 0.0
  %525 = vmatpush2.msra.mxu0 0.0
  %526 = vmatprep.subr.mxu0 0.0
  %527 = vmatpush2.msra.mxu0 0.0
  %528 = vmatprep.subr.mxu0 0.0
  %529 = vmatpush2.msra.mxu0 0.0
  %530 = vmatprep.subr.mxu0 0.0
  %531 = vmatpush2.msra.mxu0 0.0
  %532 = vmatprep.subr.mxu0 0.0
  %533 = vmatpush2.msra.mxu0 0.0
  %534 = vmatprep.subr.mxu0 0.0
  %535 = vmatpush2.msra.mxu0 0.0
  %536 = vmatprep.subr.mxu0 0.0
  %537 = vmatpush2.msra.mxu0 0.0
  %538 = vmatprep.subr.mxu0 0.0
  %539 = vmatpush2.msra.mxu0 0.0
  %540 = vmatprep.subr.mxu0 0.0
  %541 = vmatpush2.msra.mxu0 0.0
  %542 = vmatprep.subr.mxu0 0.0
  %543 = vmatpush2.msra.mxu0 0.0
  %544 = vmatprep.subr.mxu0 0.0
  %545 = vmatpush2.msra.mxu0 0.0
  %546 = vmatprep.subr.mxu0 0.0
  %547 = vmatpush2.msra.mxu0 0.0
  %548 = vmatprep.subr.mxu0 0.0
  %549 = vmatpush2.msra.mxu0 0.0
  %550 = vmatprep.subr.mxu0 0.0
  %551 = vmatpush2.msra.mxu0 0.0
  %552 = vmatprep.mubr.f32.mxu0 0.0
  %553 = vmatmul.mubr.f32.gmra.mxu0 %v483
  %v554 = vpop.f32.mrf.mxu0
  %v555 = vadd.f32 %v474, %v554
  %v556 = vpop.f32.mrf.mxu0
  %557 = vmatprep.mubr.f32.mxu0 0.0
  %558 = vmatmul.mubr.f32.gmra.mxu0 %v486
  %v559 = vpop.f32.mrf.mxu0
  %v560 = vadd.f32 %v479, %v559
  %v561 = vpop.f32.mrf.mxu0
  %562 = vdwg.mxu0
  %v564 = vlaneseq
  %v565 = vshrl.u32 %v564, 7
  %v566 = vsub.s32 0, %v565
  %v567 = vrot.slane %v122, %v566
  %v569 = vadd.f32 %v555, %v567
  %v570 = vadd.f32 %v560, %v567
  %v572 = vsel %vm124, %v202, 0
  %v575 = vsel %vm124, %v207, 0
  %v578 = vsel %vm131, %v123, 0
  %580 = vmatprep.subr.mxu0 0.0
  %581 = vmatpush1.msra.mxu0 0.0
  %582 = vmatprep.subr.mxu0 0.0
  %583 = vmatpush1.msra.mxu0 0.0
  %584 = vmatprep.subr.mxu0 0.0
  %585 = vmatpush1.msra.mxu0 0.0
  %586 = vmatprep.subr.mxu0 0.0
  %587 = vmatpush1.msra.mxu0 0.0
  %588 = vmatprep.subr.mxu0 0.0
  %589 = vmatpush1.msra.mxu0 0.0
  %590 = vmatprep.subr.mxu0 0.0
  %591 = vmatpush1.msra.mxu0 0.0
  %592 = vmatprep.subr.mxu0 0.0
  %593 = vmatpush1.msra.mxu0 0.0
  %594 = vmatprep.subr.mxu0 0.0
  %595 = vmatpush1.msra.mxu0 0.0
  %596 = vmatprep.subr.mxu0 0.0
  %597 = vmatpush1.msra.mxu0 0.0
  %598 = vmatprep.subr.mxu0 0.0
  %599 = vmatpush1.msra.mxu0 0.0
  %600 = vmatprep.subr.mxu0 0.0
  %601 = vmatpush1.msra.mxu0 0.0
  %602 = vmatprep.subr.mxu0 0.0
  %603 = vmatpush1.msra.mxu0 0.0
  %604 = vmatprep.subr.mxu0 0.0
  %605 = vmatpush1.msra.mxu0 0.0
  %606 = vmatprep.subr.mxu0 0.0
  %607 = vmatpush1.msra.mxu0 0.0
  %608 = vmatprep.subr.mxu0 0.0
  %609 = vmatpush1.msra.mxu0 0.0
  %610 = vmatprep.subr.mxu0 0.0
  %611 = vmatpush1.msra.mxu0 %v578
  %612 = vmatprep.subr.mxu0 0.0
  %613 = vmatpush2.msra.mxu0 0.0
  %614 = vmatprep.subr.mxu0 0.0
  %615 = vmatpush2.msra.mxu0 0.0
  %616 = vmatprep.subr.mxu0 0.0
  %617 = vmatpush2.msra.mxu0 0.0
  %618 = vmatprep.subr.mxu0 0.0
  %619 = vmatpush2.msra.mxu0 0.0
  %620 = vmatprep.subr.mxu0 0.0
  %621 = vmatpush2.msra.mxu0 0.0
  %622 = vmatprep.subr.mxu0 0.0
  %623 = vmatpush2.msra.mxu0 0.0
  %624 = vmatprep.subr.mxu0 0.0
  %625 = vmatpush2.msra.mxu0 0.0
  %626 = vmatprep.subr.mxu0 0.0
  %627 = vmatpush2.msra.mxu0 0.0
  %628 = vmatprep.subr.mxu0 0.0
  %629 = vmatpush2.msra.mxu0 0.0
  %630 = vmatprep.subr.mxu0 0.0
  %631 = vmatpush2.msra.mxu0 0.0
  %632 = vmatprep.subr.mxu0 0.0
  %633 = vmatpush2.msra.mxu0 0.0
  %634 = vmatprep.subr.mxu0 0.0
  %635 = vmatpush2.msra.mxu0 0.0
  %636 = vmatprep.subr.mxu0 0.0
  %637 = vmatpush2.msra.mxu0 0.0
  %638 = vmatprep.subr.mxu0 0.0
  %639 = vmatpush2.msra.mxu0 0.0
  %640 = vmatprep.subr.mxu0 0.0
  %641 = vmatpush2.msra.mxu0 0.0
  %642 = vmatprep.subr.mxu0 0.0
  %643 = vmatpush2.msra.mxu0 0.0
  %644 = vmatprep.mubr.f32.mxu0 0.0
  %645 = vmatmul.mubr.f32.gmra.mxu0 %v572
  %v646 = vpop.f32.mrf.mxu0
  %v647 = vadd.f32 0.0, %v646
  %v648 = vpop.f32.mrf.mxu0
  %649 = vmatprep.mubr.f32.mxu0 0.0
  %650 = vmatmul.mubr.f32.gmra.mxu0 %v575
  %v651 = vpop.f32.mrf.mxu0
  %v652 = vadd.f32 0.0, %v651
  %v653 = vpop.f32.mrf.mxu0
  %654 = vdwg.mxu0
  %v656 = vsel %vm124, %v283, 0
  %v659 = vsel %vm124, %v288, 0
  %661 = vmatprep.subr.mxu0 0.0
  %662 = vmatpush1.msra.mxu0 0.0
  %663 = vmatprep.subr.mxu0 0.0
  %664 = vmatpush1.msra.mxu0 0.0
  %665 = vmatprep.subr.mxu0 0.0
  %666 = vmatpush1.msra.mxu0 0.0
  %667 = vmatprep.subr.mxu0 0.0
  %668 = vmatpush1.msra.mxu0 0.0
  %669 = vmatprep.subr.mxu0 0.0
  %670 = vmatpush1.msra.mxu0 0.0
  %671 = vmatprep.subr.mxu0 0.0
  %672 = vmatpush1.msra.mxu0 0.0
  %673 = vmatprep.subr.mxu0 0.0
  %674 = vmatpush1.msra.mxu0 0.0
  %675 = vmatprep.subr.mxu0 0.0
  %676 = vmatpush1.msra.mxu0 0.0
  %677 = vmatprep.subr.mxu0 0.0
  %678 = vmatpush1.msra.mxu0 0.0
  %679 = vmatprep.subr.mxu0 0.0
  %680 = vmatpush1.msra.mxu0 0.0
  %681 = vmatprep.subr.mxu0 0.0
  %682 = vmatpush1.msra.mxu0 0.0
  %683 = vmatprep.subr.mxu0 0.0
  %684 = vmatpush1.msra.mxu0 0.0
  %685 = vmatprep.subr.mxu0 0.0
  %686 = vmatpush1.msra.mxu0 0.0
  %687 = vmatprep.subr.mxu0 0.0
  %688 = vmatpush1.msra.mxu0 0.0
  %689 = vmatprep.subr.mxu0 0.0
  %690 = vmatpush1.msra.mxu0 0.0
  %691 = vmatprep.subr.mxu0 0.0
  %692 = vmatpush1.msra.mxu0 %v578
  %693 = vmatprep.subr.mxu0 0.0
  %694 = vmatpush2.msra.mxu0 0.0
  %695 = vmatprep.subr.mxu0 0.0
  %696 = vmatpush2.msra.mxu0 0.0
  %697 = vmatprep.subr.mxu0 0.0
  %698 = vmatpush2.msra.mxu0 0.0
  %699 = vmatprep.subr.mxu0 0.0
  %700 = vmatpush2.msra.mxu0 0.0
  %701 = vmatprep.subr.mxu0 0.0
  %702 = vmatpush2.msra.mxu0 0.0
  %703 = vmatprep.subr.mxu0 0.0
  %704 = vmatpush2.msra.mxu0 0.0
  %705 = vmatprep.subr.mxu0 0.0
  %706 = vmatpush2.msra.mxu0 0.0
  %707 = vmatprep.subr.mxu0 0.0
  %708 = vmatpush2.msra.mxu0 0.0
  %709 = vmatprep.subr.mxu0 0.0
  %710 = vmatpush2.msra.mxu0 0.0
  %711 = vmatprep.subr.mxu0 0.0
  %712 = vmatpush2.msra.mxu0 0.0
  %713 = vmatprep.subr.mxu0 0.0
  %714 = vmatpush2.msra.mxu0 0.0
  %715 = vmatprep.subr.mxu0 0.0
  %716 = vmatpush2.msra.mxu0 0.0
  %717 = vmatprep.subr.mxu0 0.0
  %718 = vmatpush2.msra.mxu0 0.0
  %719 = vmatprep.subr.mxu0 0.0
  %720 = vmatpush2.msra.mxu0 0.0
  %721 = vmatprep.subr.mxu0 0.0
  %722 = vmatpush2.msra.mxu0 0.0
  %723 = vmatprep.subr.mxu0 0.0
  %724 = vmatpush2.msra.mxu0 0.0
  %725 = vmatprep.mubr.f32.mxu0 0.0
  %726 = vmatmul.mubr.f32.gmra.mxu0 %v656
  %v727 = vpop.f32.mrf.mxu0
  %v728 = vadd.f32 0.0, %v727
  %v729 = vpop.f32.mrf.mxu0
  %730 = vmatprep.mubr.f32.mxu0 0.0
  %731 = vmatmul.mubr.f32.gmra.mxu0 %v659
  %v732 = vpop.f32.mrf.mxu0
  %v733 = vadd.f32 0.0, %v732
  %v734 = vpop.f32.mrf.mxu0
  %735 = vdwg.mxu0
  %v737 = vsel %vm124, %v364, 0
  %v740 = vsel %vm124, %v369, 0
  %742 = vmatprep.subr.mxu0 0.0
  %743 = vmatpush1.msra.mxu0 0.0
  %744 = vmatprep.subr.mxu0 0.0
  %745 = vmatpush1.msra.mxu0 0.0
  %746 = vmatprep.subr.mxu0 0.0
  %747 = vmatpush1.msra.mxu0 0.0
  %748 = vmatprep.subr.mxu0 0.0
  %749 = vmatpush1.msra.mxu0 0.0
  %750 = vmatprep.subr.mxu0 0.0
  %751 = vmatpush1.msra.mxu0 0.0
  %752 = vmatprep.subr.mxu0 0.0
  %753 = vmatpush1.msra.mxu0 0.0
  %754 = vmatprep.subr.mxu0 0.0
  %755 = vmatpush1.msra.mxu0 0.0
  %756 = vmatprep.subr.mxu0 0.0
  %757 = vmatpush1.msra.mxu0 0.0
  %758 = vmatprep.subr.mxu0 0.0
  %759 = vmatpush1.msra.mxu0 0.0
  %760 = vmatprep.subr.mxu0 0.0
  %761 = vmatpush1.msra.mxu0 0.0
  %762 = vmatprep.subr.mxu0 0.0
  %763 = vmatpush1.msra.mxu0 0.0
  %764 = vmatprep.subr.mxu0 0.0
  %765 = vmatpush1.msra.mxu0 0.0
  %766 = vmatprep.subr.mxu0 0.0
  %767 = vmatpush1.msra.mxu0 0.0
  %768 = vmatprep.subr.mxu0 0.0
  %769 = vmatpush1.msra.mxu0 0.0
  %770 = vmatprep.subr.mxu0 0.0
  %771 = vmatpush1.msra.mxu0 0.0
  %772 = vmatprep.subr.mxu0 0.0
  %773 = vmatpush1.msra.mxu0 %v578
  %774 = vmatprep.subr.mxu0 0.0
  %775 = vmatpush2.msra.mxu0 0.0
  %776 = vmatprep.subr.mxu0 0.0
  %777 = vmatpush2.msra.mxu0 0.0
  %778 = vmatprep.subr.mxu0 0.0
  %779 = vmatpush2.msra.mxu0 0.0
  %780 = vmatprep.subr.mxu0 0.0
  %781 = vmatpush2.msra.mxu0 0.0
  %782 = vmatprep.subr.mxu0 0.0
  %783 = vmatpush2.msra.mxu0 0.0
  %784 = vmatprep.subr.mxu0 0.0
  %785 = vmatpush2.msra.mxu0 0.0
  %786 = vmatprep.subr.mxu0 0.0
  %787 = vmatpush2.msra.mxu0 0.0
  %788 = vmatprep.subr.mxu0 0.0
  %789 = vmatpush2.msra.mxu0 0.0
  %790 = vmatprep.subr.mxu0 0.0
  %791 = vmatpush2.msra.mxu0 0.0
  %792 = vmatprep.subr.mxu0 0.0
  %793 = vmatpush2.msra.mxu0 0.0
  %794 = vmatprep.subr.mxu0 0.0
  %795 = vmatpush2.msra.mxu0 0.0
  %796 = vmatprep.subr.mxu0 0.0
  %797 = vmatpush2.msra.mxu0 0.0
  %798 = vmatprep.subr.mxu0 0.0
  %799 = vmatpush2.msra.mxu0 0.0
  %800 = vmatprep.subr.mxu0 0.0
  %801 = vmatpush2.msra.mxu0 0.0
  %802 = vmatprep.subr.mxu0 0.0
  %803 = vmatpush2.msra.mxu0 0.0
  %804 = vmatprep.subr.mxu0 0.0
  %805 = vmatpush2.msra.mxu0 0.0
  %806 = vmatprep.mubr.f32.mxu0 0.0
  %807 = vmatmul.mubr.f32.gmra.mxu0 %v737
  %v808 = vpop.f32.mrf.mxu0
  %v809 = vadd.f32 0.0, %v808
  %v810 = vpop.f32.mrf.mxu0
  %811 = vmatprep.mubr.f32.mxu0 0.0
  %812 = vmatmul.mubr.f32.gmra.mxu0 %v740
  %v813 = vpop.f32.mrf.mxu0
  %v814 = vadd.f32 0.0, %v813
  %v815 = vpop.f32.mrf.mxu0
  %816 = vdwg.mxu0
  %817 = vst.msk [vmem:[%s9] sm:$0xff] %vm42, %v569
  %818 = vst.msk [vmem:[%s9 + $0x8] sm:$0xff] %vm42, %v570
  %819 = vst.msk [vmem:[%s10] sm:$0xff] %vm124, %v647
  %820 = vst.msk [vmem:[%s10 + $0x8] sm:$0xff] %vm124, %v652
  %s821 = scalar_lea.vmem %s10, 16
  %822 = vst.msk [vmem:[%s821] sm:$0xff] %vm124, %v728
  %823 = vst.msk [vmem:[%s821 + $0x8] sm:$0xff] %vm124, %v733
  %s824 = scalar_lea.vmem %s10, 32
  %825 = vst.msk [vmem:[%s824] sm:$0xff] %vm124, %v809
  %826 = vst.msk [vmem:[%s824 + $0x8] sm:$0xff] %vm124, %v814
  // Predicated region
  $region38: #{gvp_embedding_forward.7} parent=0 // pred_check
    _
  $region39: #{gvp_embedding_forward.7} parent=0 // pred_check_branch
    %828 = sbr.rel (0) target = $region41
  $region40: #{gvp_embedding_forward.7} parent=0 // pred_region
    _
  $region41: #{gvp_embedding_forward.7} parent=0 // pred_fallthru
    _
  // Predicated region
  $region42: #{gvp_embedding_forward.7} parent=0 // pred_check
    _
  $region43: #{gvp_embedding_forward.7} parent=0 // pred_check_branch
    %830 = sbr.rel (0) target = $region45
  $region44: #{gvp_embedding_forward.7} parent=0 // pred_region
    _
  $region45: #{gvp_embedding_forward.7} parent=0 // pred_fallthru
    _
  // Predicated region
  $region46: #{gvp_embedding_forward.7} parent=0 // pred_check
    _
  $region47: #{gvp_embedding_forward.7} parent=0 // pred_check_branch
    %832 = sbr.rel (0) target = $region49
  $region48: #{gvp_embedding_forward.7} parent=0 // pred_region
    _
  $region49: #{gvp_embedding_forward.7} parent=0 // pred_fallthru
    _
  // Predicated region
  $region50: #{gvp_embedding_forward.7} parent=0 // pred_check
    _
  $region51: #{gvp_embedding_forward.7} parent=0 // pred_check_branch
    %834 = sbr.rel (0) target = $region53
  $region52: #{gvp_embedding_forward.7} parent=0 // pred_region
    _
  $region53: #{gvp_embedding_forward.7} parent=0 // pred_fallthru
    _

// kernel: gvp_embedding_forward.6
$region0: #{gvp_embedding_forward.6}
  #allocation0 [shape = 'u32[]', space=smem, size = 0x4, offset = 0x4, fixed_abs, tag = 'smem constant byte address 0x4 - core index']
  #allocation1 [shape = 'u32[144,128]{1,0:T(1,128)}', space=vmem, size = 0x12000, scoped, tag = 'internal scratch']
  %s0 = inlined_call_operand.vmem [shape: f32[8,26], index: 0, kind: input, shape index: {}]
  %s1 = inlined_call_operand.vmem [shape: f32[3,8,3], index: 1, kind: input, shape index: {}]
  %s2 = inlined_call_operand.vmem [shape: f32[1,26], index: 2, kind: input, shape index: {}]
  %s3 = inlined_call_operand.vmem [shape: f32[1,26], index: 3, kind: input, shape index: {}]
  %s4 = inlined_call_operand.vmem [shape: f32[3,4], index: 4, kind: input, shape index: {}]
  %s5 = inlined_call_operand.vmem [shape: f32[26,32], index: 5, kind: input, shape index: {}]
  %s6 = inlined_call_operand.vmem [shape: f32[4,32], index: 6, kind: input, shape index: {}]
  %s7 = inlined_call_operand.vmem [shape: f32[1,32], index: 7, kind: input, shape index: {}]
  %s8 = inlined_call_operand.vmem [shape: f32[4,4], index: 8, kind: input, shape index: {}]
  %s9 = inlined_call_operand.vmem [shape: f32[8,32], index: 9, kind: output, shape index: {0}]
  %s10 = inlined_call_operand.vmem [shape: f32[3,8,4], index: 10, kind: output, shape index: {1}]
  %11 = xla_tuple %s9, %s10
  %s12 = sld [smem:[#allocation0]]
  $region54: #{gvp_embedding_forward.6} parent=0
    _
  %s14 = ssub.s32 1, %s12
  %s15 = scalar_select 0, %s14, %s12
  // Predicated region
  $region2: #{gvp_embedding_forward.6} parent=0 // pred_check
    _
  $region3: #{gvp_embedding_forward.6} parent=0 // pred_check_branch
    %17 = sbr.rel (0) target = $region5
  $region4: #{gvp_embedding_forward.6} parent=0 // pred_region
    _
  $region5: #{gvp_embedding_forward.6} parent=0 // pred_fallthru
    _
  // Predicated region
  $region6: #{gvp_embedding_forward.6} parent=0 // pred_check
    _
  $region7: #{gvp_embedding_forward.6} parent=0 // pred_check_branch
    %19 = sbr.rel (0) target = $region9
  $region8: #{gvp_embedding_forward.6} parent=0 // pred_region
    _
  $region9: #{gvp_embedding_forward.6} parent=0 // pred_fallthru
    _
  // Predicated region
  $region10: #{gvp_embedding_forward.6} parent=0 // pred_check
    _
  $region11: #{gvp_embedding_forward.6} parent=0 // pred_check_branch
    %21 = sbr.rel (0) target = $region13
  $region12: #{gvp_embedding_forward.6} parent=0 // pred_region
    _
  $region13: #{gvp_embedding_forward.6} parent=0 // pred_fallthru
    _
  // Predicated region
  $region14: #{gvp_embedding_forward.6} parent=0 // pred_check
    _
  $region15: #{gvp_embedding_forward.6} parent=0 // pred_check_branch
    %23 = sbr.rel (0) target = $region17
  $region16: #{gvp_embedding_forward.6} parent=0 // pred_region
    _
  $region17: #{gvp_embedding_forward.6} parent=0 // pred_fallthru
    _
  // Predicated region
  $region18: #{gvp_embedding_forward.6} parent=0 // pred_check
    _
  $region19: #{gvp_embedding_forward.6} parent=0 // pred_check_branch
    %25 = sbr.rel (0) target = $region21
  $region20: #{gvp_embedding_forward.6} parent=0 // pred_region
    _
  $region21: #{gvp_embedding_forward.6} parent=0 // pred_fallthru
    _
  // Predicated region
  $region22: #{gvp_embedding_forward.6} parent=0 // pred_check
    _
  $region23: #{gvp_embedding_forward.6} parent=0 // pred_check_branch
    %27 = sbr.rel (0) target = $region25
  $region24: #{gvp_embedding_forward.6} parent=0 // pred_region
    _
  $region25: #{gvp_embedding_forward.6} parent=0 // pred_fallthru
    _
  // Predicated region
  $region26: #{gvp_embedding_forward.6} parent=0 // pred_check
    _
  $region27: #{gvp_embedding_forward.6} parent=0 // pred_check_branch
    %29 = sbr.rel (0) target = $region29
  $region28: #{gvp_embedding_forward.6} parent=0 // pred_region
    _
  $region29: #{gvp_embedding_forward.6} parent=0 // pred_fallthru
    _
  // Predicated region
  $region30: #{gvp_embedding_forward.6} parent=0 // pred_check
    _
  $region31: #{gvp_embedding_forward.6} parent=0 // pred_check_branch
    %31 = sbr.rel (0) target = $region33
  $region32: #{gvp_embedding_forward.6} parent=0 // pred_region
    _
  $region33: #{gvp_embedding_forward.6} parent=0 // pred_fallthru
    _
  // Predicated region
  $region34: #{gvp_embedding_forward.6} parent=0 // pred_check
    _
  $region35: #{gvp_embedding_forward.6} parent=0 // pred_check_branch
    %33 = sbr.rel (0) target = $region37
  $region36: #{gvp_embedding_forward.6} parent=0 // pred_region
    _
  $region37: #{gvp_embedding_forward.6} parent=0 // pred_fallthru
    _
  %v34 = vld [vmem:[%s0] sm:$0xff]
  %v35 = vld [vmem:[%s2] sm:$0x1]
  %v36 = vld [vmem:[%s3] sm:$0x1]
  %vm37 = vcmask 211968
  %v38 = vsel %vm37, %v34, 0.0
  %39 = vadd.xlane.f32.xlu0 %v38
  %v40 = vpop.xlane.xlu0 %39
  %v41 = vrcp.pop 26.0
  %v42 = vmul.f32 %v40, %v41
  %v43 = vsub.f32 %v34, %v42
  %v44 = vmul.f32 %v43, %v43
  %v45 = vsel %vm37, %v44, 0.0
  %46 = vadd.xlane.f32.xlu0 %v45
  %v47 = vpop.xlane.xlu0 %46
  %v48 = vmul.f32 %v47, %v41
  %v49 = vadd.f32 %v48, 1e-05
  %v50 = vrsqrt.pop %v49
  %v51 = vmul.f32 %v43, %v50
  %v53 = vlaneseq
  %v54 = vshrl.u32 %v53, 7
  %v55 = vsub.s32 0, %v54
  %v56 = vrot.slane %v35, %v55
  %v58 = vmul.f32 %v51, %v56
  %v60 = vlaneseq
  %v61 = vshrl.u32 %v60, 7
  %v62 = vsub.s32 0, %v61
  %v63 = vrot.slane %v36, %v62
  %v65 = vadd.f32 %v58, %v63
  %v66 = vld [vmem:[%s1] sm:$0xff]
  %s67 = scalar_lea.vmem %s1, 8
  %v68 = vld [vmem:[%s67] sm:$0xff]
  %s69 = scalar_lea.vmem %s1, 16
  %v70 = vld [vmem:[%s69] sm:$0xff]
  %v71 = vmul.f32 %v66, %v66
  %v72 = vmul.f32 %v68, %v68
  %v73 = vadd.f32 %v71, %v72
  %v74 = vmul.f32 %v70, %v70
  %v75 = vadd.f32 %v73, %v74
  %v76 = vmax.f32 %v75, 1e-08
  %vm77 = vcmask 23552
  %v78 = vsel %vm77, %v76, 0.0
  %79 = vadd.xlane.f32.xlu0 %v78
  %v80 = vpop.xlane.xlu0 %79
  %v81 = vrcp.pop 3.0
  %v82 = vmul.f32 %v80, %v81
  %v83 = vrsqrt.pop %v82
  %v84 = vmul.f32 %v66, %v83
  %v85 = vmul.f32 %v68, %v83
  %v86 = vmul.f32 %v70, %v83
  %v87 = vld [vmem:[%s4] sm:$0x7]
  %v88 = vld [vmem:[%s5] sm:$0xff]
  %v89 = vld [vmem:[%s5 + $0x8] sm:$0xff]
  %v90 = vld [vmem:[%s5 + $0x10] sm:$0xff]
  %v91 = vld [vmem:[%s5 + $0x18] sm:$0x3]
  %v92 = vld [vmem:[%s6] sm:$0xf]
  %v93 = vld [vmem:[%s7] sm:$0x1]
  %v94 = vld [vmem:[%s8] sm:$0xf]
  %v96 = vsel %vm77, %v84, 0
  %vm98 = vcmask 1042432
  %v100 = vsel %vm98, %v87, 0
  %102 = vmatprep.subr.mxu0 0.0
  %103 = vmatpush1.msra.mxu0 0.0
  %104 = vmatprep.subr.mxu0 0.0
  %105 = vmatpush1.msra.mxu0 0.0
  %106 = vmatprep.subr.mxu0 0.0
  %107 = vmatpush1.msra.mxu0 0.0
  %108 = vmatprep.subr.mxu0 0.0
  %109 = vmatpush1.msra.mxu0 0.0
  %110 = vmatprep.subr.mxu0 0.0
  %111 = vmatpush1.msra.mxu0 0.0
  %112 = vmatprep.subr.mxu0 0.0
  %113 = vmatpush1.msra.mxu0 0.0
  %114 = vmatprep.subr.mxu0 0.0
  %115 = vmatpush1.msra.mxu0 0.0
  %116 = vmatprep.subr.mxu0 0.0
  %117 = vmatpush1.msra.mxu0 0.0
  %118 = vmatprep.subr.mxu0 0.0
  %119 = vmatpush1.msra.mxu0 0.0
  %120 = vmatprep.subr.mxu0 0.0
  %121 = vmatpush1.msra.mxu0 0.0
  %122 = vmatprep.subr.mxu0 0.0
  %123 = vmatpush1.msra.mxu0 0.0
  %124 = vmatprep.subr.mxu0 0.0
  %125 = vmatpush1.msra.mxu0 0.0
  %126 = vmatprep.subr.mxu0 0.0
  %127 = vmatpush1.msra.mxu0 0.0
  %128 = vmatprep.subr.mxu0 0.0
  %129 = vmatpush1.msra.mxu0 0.0
  %130 = vmatprep.subr.mxu0 0.0
  %131 = vmatpush1.msra.mxu0 0.0
  %132 = vmatprep.subr.mxu0 0.0
  %133 = vmatpush1.msra.mxu0 %v100
  %134 = vmatprep.subr.mxu0 0.0
  %135 = vmatpush2.msra.mxu0 0.0
  %136 = vmatprep.subr.mxu0 0.0
  %137 = vmatpush2.msra.mxu0 0.0
  %138 = vmatprep.subr.mxu0 0.0
  %139 = vmatpush2.msra.mxu0 0.0
  %140 = vmatprep.subr.mxu0 0.0
  %141 = vmatpush2.msra.mxu0 0.0
  %142 = vmatprep.subr.mxu0 0.0
  %143 = vmatpush2.msra.mxu0 0.0
  %144 = vmatprep.subr.mxu0 0.0
  %145 = vmatpush2.msra.mxu0 0.0
  %146 = vmatprep.subr.mxu0 0.0
  %147 = vmatpush2.msra.mxu0 0.0
  %148 = vmatprep.subr.mxu0 0.0
  %149 = vmatpush2.msra.mxu0 0.0
  %150 = vmatprep.subr.mxu0 0.0
  %151 = vmatpush2.msra.mxu0 0.0
  %152 = vmatprep.subr.mxu0 0.0
  %153 = vmatpush2.msra.mxu0 0.0
  %154 = vmatprep.subr.mxu0 0.0
  %155 = vmatpush2.msra.mxu0 0.0
  %156 = vmatprep.subr.mxu0 0.0
  %157 = vmatpush2.msra.mxu0 0.0
  %158 = vmatprep.subr.mxu0 0.0
  %159 = vmatpush2.msra.mxu0 0.0
  %160 = vmatprep.subr.mxu0 0.0
  %161 = vmatpush2.msra.mxu0 0.0
  %162 = vmatprep.subr.mxu0 0.0
  %163 = vmatpush2.msra.mxu0 0.0
  %164 = vmatprep.subr.mxu0 0.0
  %165 = vmatpush2.msra.mxu0 0.0
  %166 = vmatprep.mubr.f32.mxu0 0.0
  %167 = vmatmul.mubr.f32.gmra.mxu0 %v96
  %v168 = vpop.f32.mrf.mxu0
  %v169 = vadd.f32 0.0, %v168
  %v170 = vpop.f32.mrf.mxu0
  %171 = vdwg.mxu0
  %v173 = vsel %vm77, %v85, 0
  %175 = vmatprep.subr.mxu0 0.0
  %176 = vmatpush1.msra.mxu0 0.0
  %177 = vmatprep.subr.mxu0 0.0
  %178 = vmatpush1.msra.mxu0 0.0
  %179 = vmatprep.subr.mxu0 0.0
  %180 = vmatpush1.msra.mxu0 0.0
  %181 = vmatprep.subr.mxu0 0.0
  %182 = vmatpush1.msra.mxu0 0.0
  %183 = vmatprep.subr.mxu0 0.0
  %184 = vmatpush1.msra.mxu0 0.0
  %185 = vmatprep.subr.mxu0 0.0
  %186 = vmatpush1.msra.mxu0 0.0
  %187 = vmatprep.subr.mxu0 0.0
  %188 = vmatpush1.msra.mxu0 0.0
  %189 = vmatprep.subr.mxu0 0.0
  %190 = vmatpush1.msra.mxu0 0.0
  %191 = vmatprep.subr.mxu0 0.0
  %192 = vmatpush1.msra.mxu0 0.0
  %193 = vmatprep.subr.mxu0 0.0
  %194 = vmatpush1.msra.mxu0 0.0
  %195 = vmatprep.subr.mxu0 0.0
  %196 = vmatpush1.msra.mxu0 0.0
  %197 = vmatprep.subr.mxu0 0.0
  %198 = vmatpush1.msra.mxu0 0.0
  %199 = vmatprep.subr.mxu0 0.0
  %200 = vmatpush1.msra.mxu0 0.0
  %201 = vmatprep.subr.mxu0 0.0
  %202 = vmatpush1.msra.mxu0 0.0
  %203 = vmatprep.subr.mxu0 0.0
  %204 = vmatpush1.msra.mxu0 0.0
  %205 = vmatprep.subr.mxu0 0.0
  %206 = vmatpush1.msra.mxu0 %v100
  %207 = vmatprep.subr.mxu0 0.0
  %208 = vmatpush2.msra.mxu0 0.0
  %209 = vmatprep.subr.mxu0 0.0
  %210 = vmatpush2.msra.mxu0 0.0
  %211 = vmatprep.subr.mxu0 0.0
  %212 = vmatpush2.msra.mxu0 0.0
  %213 = vmatprep.subr.mxu0 0.0
  %214 = vmatpush2.msra.mxu0 0.0
  %215 = vmatprep.subr.mxu0 0.0
  %216 = vmatpush2.msra.mxu0 0.0
  %217 = vmatprep.subr.mxu0 0.0
  %218 = vmatpush2.msra.mxu0 0.0
  %219 = vmatprep.subr.mxu0 0.0
  %220 = vmatpush2.msra.mxu0 0.0
  %221 = vmatprep.subr.mxu0 0.0
  %222 = vmatpush2.msra.mxu0 0.0
  %223 = vmatprep.subr.mxu0 0.0
  %224 = vmatpush2.msra.mxu0 0.0
  %225 = vmatprep.subr.mxu0 0.0
  %226 = vmatpush2.msra.mxu0 0.0
  %227 = vmatprep.subr.mxu0 0.0
  %228 = vmatpush2.msra.mxu0 0.0
  %229 = vmatprep.subr.mxu0 0.0
  %230 = vmatpush2.msra.mxu0 0.0
  %231 = vmatprep.subr.mxu0 0.0
  %232 = vmatpush2.msra.mxu0 0.0
  %233 = vmatprep.subr.mxu0 0.0
  %234 = vmatpush2.msra.mxu0 0.0
  %235 = vmatprep.subr.mxu0 0.0
  %236 = vmatpush2.msra.mxu0 0.0
  %237 = vmatprep.subr.mxu0 0.0
  %238 = vmatpush2.msra.mxu0 0.0
  %239 = vmatprep.mubr.f32.mxu0 0.0
  %240 = vmatmul.mubr.f32.gmra.mxu0 %v173
  %v241 = vpop.f32.mrf.mxu0
  %v242 = vadd.f32 0.0, %v241
  %v243 = vpop.f32.mrf.mxu0
  %244 = vdwg.mxu0
  %v246 = vsel %vm77, %v86, 0
  %248 = vmatprep.subr.mxu0 0.0
  %249 = vmatpush1.msra.mxu0 0.0
  %250 = vmatprep.subr.mxu0 0.0
  %251 = vmatpush1.msra.mxu0 0.0
  %252 = vmatprep.subr.mxu0 0.0
  %253 = vmatpush1.msra.mxu0 0.0
  %254 = vmatprep.subr.mxu0 0.0
  %255 = vmatpush1.msra.mxu0 0.0
  %256 = vmatprep.subr.mxu0 0.0
  %257 = vmatpush1.msra.mxu0 0.0
  %258 = vmatprep.subr.mxu0 0.0
  %259 = vmatpush1.msra.mxu0 0.0
  %260 = vmatprep.subr.mxu0 0.0
  %261 = vmatpush1.msra.mxu0 0.0
  %262 = vmatprep.subr.mxu0 0.0
  %263 = vmatpush1.msra.mxu0 0.0
  %264 = vmatprep.subr.mxu0 0.0
  %265 = vmatpush1.msra.mxu0 0.0
  %266 = vmatprep.subr.mxu0 0.0
  %267 = vmatpush1.msra.mxu0 0.0
  %268 = vmatprep.subr.mxu0 0.0
  %269 = vmatpush1.msra.mxu0 0.0
  %270 = vmatprep.subr.mxu0 0.0
  %271 = vmatpush1.msra.mxu0 0.0
  %272 = vmatprep.subr.mxu0 0.0
  %273 = vmatpush1.msra.mxu0 0.0
  %274 = vmatprep.subr.mxu0 0.0
  %275 = vmatpush1.msra.mxu0 0.0
  %276 = vmatprep.subr.mxu0 0.0
  %277 = vmatpush1.msra.mxu0 0.0
  %278 = vmatprep.subr.mxu0 0.0
  %279 = vmatpush1.msra.mxu0 %v100
  %280 = vmatprep.subr.mxu0 0.0
  %281 = vmatpush2.msra.mxu0 0.0
  %282 = vmatprep.subr.mxu0 0.0
  %283 = vmatpush2.msra.mxu0 0.0
  %284 = vmatprep.subr.mxu0 0.0
  %285 = vmatpush2.msra.mxu0 0.0
  %286 = vmatprep.subr.mxu0 0.0
  %287 = vmatpush2.msra.mxu0 0.0
  %288 = vmatprep.subr.mxu0 0.0
  %289 = vmatpush2.msra.mxu0 0.0
  %290 = vmatprep.subr.mxu0 0.0
  %291 = vmatpush2.msra.mxu0 0.0
  %292 = vmatprep.subr.mxu0 0.0
  %293 = vmatpush2.msra.mxu0 0.0
  %294 = vmatprep.subr.mxu0 0.0
  %295 = vmatpush2.msra.mxu0 0.0
  %296 = vmatprep.subr.mxu0 0.0
  %297 = vmatpush2.msra.mxu0 0.0
  %298 = vmatprep.subr.mxu0 0.0
  %299 = vmatpush2.msra.mxu0 0.0
  %300 = vmatprep.subr.mxu0 0.0
  %301 = vmatpush2.msra.mxu0 0.0
  %302 = vmatprep.subr.mxu0 0.0
  %303 = vmatpush2.msra.mxu0 0.0
  %304 = vmatprep.subr.mxu0 0.0
  %305 = vmatpush2.msra.mxu0 0.0
  %306 = vmatprep.subr.mxu0 0.0
  %307 = vmatpush2.msra.mxu0 0.0
  %308 = vmatprep.subr.mxu0 0.0
  %309 = vmatpush2.msra.mxu0 0.0
  %310 = vmatprep.subr.mxu0 0.0
  %311 = vmatpush2.msra.mxu0 0.0
  %312 = vmatprep.mubr.f32.mxu0 0.0
  %313 = vmatmul.mubr.f32.gmra.mxu0 %v246
  %v314 = vpop.f32.mrf.mxu0
  %v315 = vadd.f32 0.0, %v314
  %v316 = vpop.f32.mrf.mxu0
  %317 = vdwg.mxu0
  %v318 = vmul.f32 %v169, %v169
  %v319 = vmul.f32 %v242, %v242
  %v320 = vadd.f32 %v318, %v319
  %v321 = vmul.f32 %v315, %v315
  %v322 = vadd.f32 %v320, %v321
  %v323 = vmax.f32 %v322, 1e-08
  %v324 = vrsqrt.pop %v323
  %v325 = vmul.f32 %v323, %v324
  %vm326 = vcmp.eq.f32.partialorder %v323, inf
  %v327 = vsel %vm326, %v323, %v325
  %vm328 = vcmp.eq.f32.partialorder %v323, 0.0
  %v329 = vand.u32 %v323, 2147483648
  %v330 = vsel %vm328, %v329, %v327
  %vm331 = vcmask 31744
  %v333 = vsel %vm331, %v330, 0
  %vm335 = vcmask 1043456
  %v337 = vsel %vm335, %v92, 0
  %339 = vmatprep.subr.mxu0 0.0
  %340 = vmatpush1.msra.mxu0 0.0
  %341 = vmatprep.subr.mxu0 0.0
  %342 = vmatpush1.msra.mxu0 0.0
  %343 = vmatprep.subr.mxu0 0.0
  %344 = vmatpush1.msra.mxu0 0.0
  %345 = vmatprep.subr.mxu0 0.0
  %346 = vmatpush1.msra.mxu0 0.0
  %347 = vmatprep.subr.mxu0 0.0
  %348 = vmatpush1.msra.mxu0 0.0
  %349 = vmatprep.subr.mxu0 0.0
  %350 = vmatpush1.msra.mxu0 0.0
  %351 = vmatprep.subr.mxu0 0.0
  %352 = vmatpush1.msra.mxu0 0.0
  %353 = vmatprep.subr.mxu0 0.0
  %354 = vmatpush1.msra.mxu0 0.0
  %355 = vmatprep.subr.mxu0 0.0
  %356 = vmatpush1.msra.mxu0 0.0
  %357 = vmatprep.subr.mxu0 0.0
  %358 = vmatpush1.msra.mxu0 0.0
  %359 = vmatprep.subr.mxu0 0.0
  %360 = vmatpush1.msra.mxu0 0.0
  %361 = vmatprep.subr.mxu0 0.0
  %362 = vmatpush1.msra.mxu0 0.0
  %363 = vmatprep.subr.mxu0 0.0
  %364 = vmatpush1.msra.mxu0 0.0
  %365 = vmatprep.subr.mxu0 0.0
  %366 = vmatpush1.msra.mxu0 0.0
  %367 = vmatprep.subr.mxu0 0.0
  %368 = vmatpush1.msra.mxu0 0.0
  %369 = vmatprep.subr.mxu0 0.0
  %370 = vmatpush1.msra.mxu0 %v337
  %371 = vmatprep.subr.mxu0 0.0
  %372 = vmatpush2.msra.mxu0 0.0
  %373 = vmatprep.subr.mxu0 0.0
  %374 = vmatpush2.msra.mxu0 0.0
  %375 = vmatprep.subr.mxu0 0.0
  %376 = vmatpush2.msra.mxu0 0.0
  %377 = vmatprep.subr.mxu0 0.0
  %378 = vmatpush2.msra.mxu0 0.0
  %379 = vmatprep.subr.mxu0 0.0
  %380 = vmatpush2.msra.mxu0 0.0
  %381 = vmatprep.subr.mxu0 0.0
  %382 = vmatpush2.msra.mxu0 0.0
  %383 = vmatprep.subr.mxu0 0.0
  %384 = vmatpush2.msra.mxu0 0.0
  %385 = vmatprep.subr.mxu0 0.0
  %386 = vmatpush2.msra.mxu0 0.0
  %387 = vmatprep.subr.mxu0 0.0
  %388 = vmatpush2.msra.mxu0 0.0
  %389 = vmatprep.subr.mxu0 0.0
  %390 = vmatpush2.msra.mxu0 0.0
  %391 = vmatprep.subr.mxu0 0.0
  %392 = vmatpush2.msra.mxu0 0.0
  %393 = vmatprep.subr.mxu0 0.0
  %394 = vmatpush2.msra.mxu0 0.0
  %395 = vmatprep.subr.mxu0 0.0
  %396 = vmatpush2.msra.mxu0 0.0
  %397 = vmatprep.subr.mxu0 0.0
  %398 = vmatpush2.msra.mxu0 0.0
  %399 = vmatprep.subr.mxu0 0.0
  %400 = vmatpush2.msra.mxu0 0.0
  %401 = vmatprep.subr.mxu0 0.0
  %402 = vmatpush2.msra.mxu0 0.0
  %403 = vmatprep.mubr.f32.mxu0 0.0
  %404 = vmatmul.mubr.f32.gmra.mxu0 %v333
  %v405 = vpop.f32.mrf.mxu0
  %v406 = vadd.f32 0.0, %v405
  %v407 = vpop.f32.mrf.mxu0
  %408 = vdwg.mxu0
  %v410 = vsel %vm37, %v65, 0
  %vm412 = vcmask 1041408
  %v414 = vsel %vm412, %v91, 0
  %416 = vmatprep.subr.mxu0 0.0
  %417 = vmatpush1.msra.mxu0 0.0
  %418 = vmatprep.subr.mxu0 0.0
  %419 = vmatpush1.msra.mxu0 0.0
  %420 = vmatprep.subr.mxu0 0.0
  %421 = vmatpush1.msra.mxu0 0.0
  %422 = vmatprep.subr.mxu0 0.0
  %423 = vmatpush1.msra.mxu0 0.0
  %424 = vmatprep.subr.mxu0 0.0
  %425 = vmatpush1.msra.mxu0 0.0
  %426 = vmatprep.subr.mxu0 0.0
  %427 = vmatpush1.msra.mxu0 0.0
  %428 = vmatprep.subr.mxu0 0.0
  %429 = vmatpush1.msra.mxu0 0.0
  %430 = vmatprep.subr.mxu0 0.0
  %431 = vmatpush1.msra.mxu0 0.0
  %432 = vmatprep.subr.mxu0 0.0
  %433 = vmatpush1.msra.mxu0 0.0
  %434 = vmatprep.subr.mxu0 0.0
  %435 = vmatpush1.msra.mxu0 0.0
  %436 = vmatprep.subr.mxu0 0.0
  %437 = vmatpush1.msra.mxu0 0.0
  %438 = vmatprep.subr.mxu0 0.0
  %439 = vmatpush1.msra.mxu0 0.0
  %440 = vmatprep.subr.mxu0 0.0
  %441 = vmatpush1.msra.mxu0 %v414
  %442 = vmatprep.subr.mxu0 0.0
  %443 = vmatpush1.msra.mxu0 %v90
  %444 = vmatprep.subr.mxu0 0.0
  %445 = vmatpush1.msra.mxu0 %v89
  %446 = vmatprep.subr.mxu0 0.0
  %447 = vmatpush1.msra.mxu0 %v88
  %448 = vmatprep.subr.mxu0 0.0
  %449 = vmatpush2.msra.mxu0 0.0
  %450 = vmatprep.subr.mxu0 0.0
  %451 = vmatpush2.msra.mxu0 0.0
  %452 = vmatprep.subr.mxu0 0.0
  %453 = vmatpush2.msra.mxu0 0.0
  %454 = vmatprep.subr.mxu0 0.0
  %455 = vmatpush2.msra.mxu0 0.0
  %456 = vmatprep.subr.mxu0 0.0
  %457 = vmatpush2.msra.mxu0 0.0
  %458 = vmatprep.subr.mxu0 0.0
  %459 = vmatpush2.msra.mxu0 0.0
  %460 = vmatprep.subr.mxu0 0.0
  %461 = vmatpush2.msra.mxu0 0.0
  %462 = vmatprep.subr.mxu0 0.0
  %463 = vmatpush2.msra.mxu0 0.0
  %464 = vmatprep.subr.mxu0 0.0
  %465 = vmatpush2.msra.mxu0 0.0
  %466 = vmatprep.subr.mxu0 0.0
  %467 = vmatpush2.msra.mxu0 0.0
  %468 = vmatprep.subr.mxu0 0.0
  %469 = vmatpush2.msra.mxu0 0.0
  %470 = vmatprep.subr.mxu0 0.0
  %471 = vmatpush2.msra.mxu0 0.0
  %472 = vmatprep.subr.mxu0 0.0
  %473 = vmatpush2.msra.mxu0 0.0
  %474 = vmatprep.subr.mxu0 0.0
  %475 = vmatpush2.msra.mxu0 0.0
  %476 = vmatprep.subr.mxu0 0.0
  %477 = vmatpush2.msra.mxu0 0.0
  %478 = vmatprep.subr.mxu0 0.0
  %479 = vmatpush2.msra.mxu0 0.0
  %480 = vmatprep.mubr.f32.mxu0 0.0
  %481 = vmatmul.mubr.f32.gmra.mxu0 %v410
  %v482 = vpop.f32.mrf.mxu0
  %v483 = vadd.f32 %v406, %v482
  %v484 = vpop.f32.mrf.mxu0
  %485 = vdwg.mxu0
  %v487 = vlaneseq
  %v488 = vshrl.u32 %v487, 7
  %v489 = vsub.s32 0, %v488
  %v490 = vrot.slane %v93, %v489
  %v492 = vadd.f32 %v483, %v490
  %v494 = vsel %vm331, %v169, 0
  %v497 = vsel %vm335, %v94, 0
  %499 = vmatprep.subr.mxu0 0.0
  %500 = vmatpush1.msra.mxu0 0.0
  %501 = vmatprep.subr.mxu0 0.0
  %502 = vmatpush1.msra.mxu0 0.0
  %503 = vmatprep.subr.mxu0 0.0
  %504 = vmatpush1.msra.mxu0 0.0
  %505 = vmatprep.subr.mxu0 0.0
  %506 = vmatpush1.msra.mxu0 0.0
  %507 = vmatprep.subr.mxu0 0.0
  %508 = vmatpush1.msra.mxu0 0.0
  %509 = vmatprep.subr.mxu0 0.0
  %510 = vmatpush1.msra.mxu0 0.0
  %511 = vmatprep.subr.mxu0 0.0
  %512 = vmatpush1.msra.mxu0 0.0
  %513 = vmatprep.subr.mxu0 0.0
  %514 = vmatpush1.msra.mxu0 0.0
  %515 = vmatprep.subr.mxu0 0.0
  %516 = vmatpush1.msra.mxu0 0.0
  %517 = vmatprep.subr.mxu0 0.0
  %518 = vmatpush1.msra.mxu0 0.0
  %519 = vmatprep.subr.mxu0 0.0
  %520 = vmatpush1.msra.mxu0 0.0
  %521 = vmatprep.subr.mxu0 0.0
  %522 = vmatpush1.msra.mxu0 0.0
  %523 = vmatprep.subr.mxu0 0.0
  %524 = vmatpush1.msra.mxu0 0.0
  %525 = vmatprep.subr.mxu0 0.0
  %526 = vmatpush1.msra.mxu0 0.0
  %527 = vmatprep.subr.mxu0 0.0
  %528 = vmatpush1.msra.mxu0 0.0
  %529 = vmatprep.subr.mxu0 0.0
  %530 = vmatpush1.msra.mxu0 %v497
  %531 = vmatprep.subr.mxu0 0.0
  %532 = vmatpush2.msra.mxu0 0.0
  %533 = vmatprep.subr.mxu0 0.0
  %534 = vmatpush2.msra.mxu0 0.0
  %535 = vmatprep.subr.mxu0 0.0
  %536 = vmatpush2.msra.mxu0 0.0
  %537 = vmatprep.subr.mxu0 0.0
  %538 = vmatpush2.msra.mxu0 0.0
  %539 = vmatprep.subr.mxu0 0.0
  %540 = vmatpush2.msra.mxu0 0.0
  %541 = vmatprep.subr.mxu0 0.0
  %542 = vmatpush2.msra.mxu0 0.0
  %543 = vmatprep.subr.mxu0 0.0
  %544 = vmatpush2.msra.mxu0 0.0
  %545 = vmatprep.subr.mxu0 0.0
  %546 = vmatpush2.msra.mxu0 0.0
  %547 = vmatprep.subr.mxu0 0.0
  %548 = vmatpush2.msra.mxu0 0.0
  %549 = vmatprep.subr.mxu0 0.0
  %550 = vmatpush2.msra.mxu0 0.0
  %551 = vmatprep.subr.mxu0 0.0
  %552 = vmatpush2.msra.mxu0 0.0
  %553 = vmatprep.subr.mxu0 0.0
  %554 = vmatpush2.msra.mxu0 0.0
  %555 = vmatprep.subr.mxu0 0.0
  %556 = vmatpush2.msra.mxu0 0.0
  %557 = vmatprep.subr.mxu0 0.0
  %558 = vmatpush2.msra.mxu0 0.0
  %559 = vmatprep.subr.mxu0 0.0
  %560 = vmatpush2.msra.mxu0 0.0
  %561 = vmatprep.subr.mxu0 0.0
  %562 = vmatpush2.msra.mxu0 0.0
  %563 = vmatprep.mubr.f32.mxu0 0.0
  %564 = vmatmul.mubr.f32.gmra.mxu0 %v494
  %v565 = vpop.f32.mrf.mxu0
  %v566 = vadd.f32 0.0, %v565
  %v567 = vpop.f32.mrf.mxu0
  %568 = vdwg.mxu0
  %v570 = vsel %vm331, %v242, 0
  %572 = vmatprep.subr.mxu0 0.0
  %573 = vmatpush1.msra.mxu0 0.0
  %574 = vmatprep.subr.mxu0 0.0
  %575 = vmatpush1.msra.mxu0 0.0
  %576 = vmatprep.subr.mxu0 0.0
  %577 = vmatpush1.msra.mxu0 0.0
  %578 = vmatprep.subr.mxu0 0.0
  %579 = vmatpush1.msra.mxu0 0.0
  %580 = vmatprep.subr.mxu0 0.0
  %581 = vmatpush1.msra.mxu0 0.0
  %582 = vmatprep.subr.mxu0 0.0
  %583 = vmatpush1.msra.mxu0 0.0
  %584 = vmatprep.subr.mxu0 0.0
  %585 = vmatpush1.msra.mxu0 0.0
  %586 = vmatprep.subr.mxu0 0.0
  %587 = vmatpush1.msra.mxu0 0.0
  %588 = vmatprep.subr.mxu0 0.0
  %589 = vmatpush1.msra.mxu0 0.0
  %590 = vmatprep.subr.mxu0 0.0
  %591 = vmatpush1.msra.mxu0 0.0
  %592 = vmatprep.subr.mxu0 0.0
  %593 = vmatpush1.msra.mxu0 0.0
  %594 = vmatprep.subr.mxu0 0.0
  %595 = vmatpush1.msra.mxu0 0.0
  %596 = vmatprep.subr.mxu0 0.0
  %597 = vmatpush1.msra.mxu0 0.0
  %598 = vmatprep.subr.mxu0 0.0
  %599 = vmatpush1.msra.mxu0 0.0
  %600 = vmatprep.subr.mxu0 0.0
  %601 = vmatpush1.msra.mxu0 0.0
  %602 = vmatprep.subr.mxu0 0.0
  %603 = vmatpush1.msra.mxu0 %v497
  %604 = vmatprep.subr.mxu0 0.0
  %605 = vmatpush2.msra.mxu0 0.0
  %606 = vmatprep.subr.mxu0 0.0
  %607 = vmatpush2.msra.mxu0 0.0
  %608 = vmatprep.subr.mxu0 0.0
  %609 = vmatpush2.msra.mxu0 0.0
  %610 = vmatprep.subr.mxu0 0.0
  %611 = vmatpush2.msra.mxu0 0.0
  %612 = vmatprep.subr.mxu0 0.0
  %613 = vmatpush2.msra.mxu0 0.0
  %614 = vmatprep.subr.mxu0 0.0
  %615 = vmatpush2.msra.mxu0 0.0
  %616 = vmatprep.subr.mxu0 0.0
  %617 = vmatpush2.msra.mxu0 0.0
  %618 = vmatprep.subr.mxu0 0.0
  %619 = vmatpush2.msra.mxu0 0.0
  %620 = vmatprep.subr.mxu0 0.0
  %621 = vmatpush2.msra.mxu0 0.0
  %622 = vmatprep.subr.mxu0 0.0
  %623 = vmatpush2.msra.mxu0 0.0
  %624 = vmatprep.subr.mxu0 0.0
  %625 = vmatpush2.msra.mxu0 0.0
  %626 = vmatprep.subr.mxu0 0.0
  %627 = vmatpush2.msra.mxu0 0.0
  %628 = vmatprep.subr.mxu0 0.0
  %629 = vmatpush2.msra.mxu0 0.0
  %630 = vmatprep.subr.mxu0 0.0
  %631 = vmatpush2.msra.mxu0 0.0
  %632 = vmatprep.subr.mxu0 0.0
  %633 = vmatpush2.msra.mxu0 0.0
  %634 = vmatprep.subr.mxu0 0.0
  %635 = vmatpush2.msra.mxu0 0.0
  %636 = vmatprep.mubr.f32.mxu0 0.0
  %637 = vmatmul.mubr.f32.gmra.mxu0 %v570
  %v638 = vpop.f32.mrf.mxu0
  %v639 = vadd.f32 0.0, %v638
  %v640 = vpop.f32.mrf.mxu0
  %641 = vdwg.mxu0
  %v643 = vsel %vm331, %v315, 0
  %645 = vmatprep.subr.mxu0 0.0
  %646 = vmatpush1.msra.mxu0 0.0
  %647 = vmatprep.subr.mxu0 0.0
  %648 = vmatpush1.msra.mxu0 0.0
  %649 = vmatprep.subr.mxu0 0.0
  %650 = vmatpush1.msra.mxu0 0.0
  %651 = vmatprep.subr.mxu0 0.0
  %652 = vmatpush1.msra.mxu0 0.0
  %653 = vmatprep.subr.mxu0 0.0
  %654 = vmatpush1.msra.mxu0 0.0
  %655 = vmatprep.subr.mxu0 0.0
  %656 = vmatpush1.msra.mxu0 0.0
  %657 = vmatprep.subr.mxu0 0.0
  %658 = vmatpush1.msra.mxu0 0.0
  %659 = vmatprep.subr.mxu0 0.0
  %660 = vmatpush1.msra.mxu0 0.0
  %661 = vmatprep.subr.mxu0 0.0
  %662 = vmatpush1.msra.mxu0 0.0
  %663 = vmatprep.subr.mxu0 0.0
  %664 = vmatpush1.msra.mxu0 0.0
  %665 = vmatprep.subr.mxu0 0.0
  %666 = vmatpush1.msra.mxu0 0.0
  %667 = vmatprep.subr.mxu0 0.0
  %668 = vmatpush1.msra.mxu0 0.0
  %669 = vmatprep.subr.mxu0 0.0
  %670 = vmatpush1.msra.mxu0 0.0
  %671 = vmatprep.subr.mxu0 0.0
  %672 = vmatpush1.msra.mxu0 0.0
  %673 = vmatprep.subr.mxu0 0.0
  %674 = vmatpush1.msra.mxu0 0.0
  %675 = vmatprep.subr.mxu0 0.0
  %676 = vmatpush1.msra.mxu0 %v497
  %677 = vmatprep.subr.mxu0 0.0
  %678 = vmatpush2.msra.mxu0 0.0
  %679 = vmatprep.subr.mxu0 0.0
  %680 = vmatpush2.msra.mxu0 0.0
  %681 = vmatprep.subr.mxu0 0.0
  %682 = vmatpush2.msra.mxu0 0.0
  %683 = vmatprep.subr.mxu0 0.0
  %684 = vmatpush2.msra.mxu0 0.0
  %685 = vmatprep.subr.mxu0 0.0
  %686 = vmatpush2.msra.mxu0 0.0
  %687 = vmatprep.subr.mxu0 0.0
  %688 = vmatpush2.msra.mxu0 0.0
  %689 = vmatprep.subr.mxu0 0.0
  %690 = vmatpush2.msra.mxu0 0.0
  %691 = vmatprep.subr.mxu0 0.0
  %692 = vmatpush2.msra.mxu0 0.0
  %693 = vmatprep.subr.mxu0 0.0
  %694 = vmatpush2.msra.mxu0 0.0
  %695 = vmatprep.subr.mxu0 0.0
  %696 = vmatpush2.msra.mxu0 0.0
  %697 = vmatprep.subr.mxu0 0.0
  %698 = vmatpush2.msra.mxu0 0.0
  %699 = vmatprep.subr.mxu0 0.0
  %700 = vmatpush2.msra.mxu0 0.0
  %701 = vmatprep.subr.mxu0 0.0
  %702 = vmatpush2.msra.mxu0 0.0
  %703 = vmatprep.subr.mxu0 0.0
  %704 = vmatpush2.msra.mxu0 0.0
  %705 = vmatprep.subr.mxu0 0.0
  %706 = vmatpush2.msra.mxu0 0.0
  %707 = vmatprep.subr.mxu0 0.0
  %708 = vmatpush2.msra.mxu0 0.0
  %709 = vmatprep.mubr.f32.mxu0 0.0
  %710 = vmatmul.mubr.f32.gmra.mxu0 %v643
  %v711 = vpop.f32.mrf.mxu0
  %v712 = vadd.f32 0.0, %v711
  %v713 = vpop.f32.mrf.mxu0
  %714 = vdwg.mxu0
  %vm715 = vcmask 261120
  %716 = vst.msk [vmem:[%s9] sm:$0xff] %vm715, %v492
  %717 = vst.msk [vmem:[%s10] sm:$0xff] %vm331, %v566
  %s718 = scalar_lea.vmem %s10, 8
  %719 = vst.msk [vmem:[%s718] sm:$0xff] %vm331, %v639
  %s720 = scalar_lea.vmem %s10, 16
  %721 = vst.msk [vmem:[%s720] sm:$0xff] %vm331, %v712
  // Predicated region
  $region38: #{gvp_embedding_forward.6} parent=0 // pred_check
    _
  $region39: #{gvp_embedding_forward.6} parent=0 // pred_check_branch
    %723 = sbr.rel (0) target = $region41
  $region40: #{gvp_embedding_forward.6} parent=0 // pred_region
    _
  $region41: #{gvp_embedding_forward.6} parent=0 // pred_fallthru
    _
  // Predicated region
  $region42: #{gvp_embedding_forward.6} parent=0 // pred_check
    _
  $region43: #{gvp_embedding_forward.6} parent=0 // pred_check_branch
    %725 = sbr.rel (0) target = $region45
  $region44: #{gvp_embedding_forward.6} parent=0 // pred_region
    _
  $region45: #{gvp_embedding_forward.6} parent=0 // pred_fallthru
    _
  // Predicated region
  $region46: #{gvp_embedding_forward.6} parent=0 // pred_check
    _
  $region47: #{gvp_embedding_forward.6} parent=0 // pred_check_branch
    %727 = sbr.rel (0) target = $region49
  $region48: #{gvp_embedding_forward.6} parent=0 // pred_region
    _
  $region49: #{gvp_embedding_forward.6} parent=0 // pred_fallthru
    _
  // Predicated region
  $region50: #{gvp_embedding_forward.6} parent=0 // pred_check
    _
  $region51: #{gvp_embedding_forward.6} parent=0 // pred_check_branch
    %729 = sbr.rel (0) target = $region53
  $region52: #{gvp_embedding_forward.6} parent=0 // pred_region
    _
  $region53: #{gvp_embedding_forward.6} parent=0 // pred_fallthru
    _

// kernel: gvp_embedding_forward.8
$region0: #{gvp_embedding_forward.8}
  #allocation0 [shape = 'u32[]', space=smem, size = 0x4, offset = 0x4, fixed_abs, tag = 'smem constant byte address 0x4 - core index']
  #allocation1 [shape = 'u32[144,128]{1,0:T(1,128)}', space=vmem, size = 0x12000, scoped, tag = 'internal scratch']
  #allocation2 [shape = 'f32[8,32]{1,0:T(8,128)}', space=vmem, size = 0x1000, scoped, tag = 'scratch operand']
  #allocation3 [shape = 'f32[3,8,4]{2,1,0:T(8,128)}', space=vmem, size = 0x3000, scoped, tag = 'scratch operand']
  #allocation4 [shape = 'f32[8,1]{1,0:T(8,128)}', space=vmem, size = 0x1000, scoped, tag = 'scratch operand']
  %s0 = inlined_call_operand.smem [shape: u32[42], index: -1, kind: input, shape index: {}]
  %s1 = sld [smem:[%s0]]
  %s2 = scalar_lea.smem %s0, 1
  %s3 = sld [smem:[%s2]]
  %s4 = scalar_lea.smem %s0, 2
  %s5 = sld [smem:[%s4]]
  %s6 = scalar_lea.smem %s0, 3
  %s7 = sld [smem:[%s6]]
  %s8 = scalar_lea.smem %s0, 4
  %s9 = sld [smem:[%s8]]
  %s10 = scalar_lea.smem %s0, 5
  %s11 = sld [smem:[%s10]]
  %s12 = scalar_lea.smem %s0, 6
  %s13 = sld [smem:[%s12]]
  %s14 = scalar_lea.smem %s0, 7
  %s15 = sld [smem:[%s14]]
  %s16 = scalar_lea.smem %s0, 8
  %s17 = sld [smem:[%s16]]
  %s18 = scalar_lea.smem %s0, 9
  %s19 = sld [smem:[%s18]]
  %s20 = scalar_lea.smem %s0, 10
  %s21 = sld [smem:[%s20]]
  %s22 = scalar_lea.smem %s0, 11
  %s23 = sld [smem:[%s22]]
  %s24 = scalar_lea.smem %s0, 12
  %s25 = sld [smem:[%s24]]
  %s26 = scalar_lea.smem %s0, 13
  %s27 = sld [smem:[%s26]]
  %s28 = scalar_lea.smem %s0, 14
  %s29 = sld [smem:[%s28]]
  %s30 = scalar_lea.smem %s0, 15
  %s31 = sld [smem:[%s30]]
  %s32 = scalar_lea.smem %s0, 16
  %s33 = sld [smem:[%s32]]
  %s34 = scalar_lea.smem %s0, 17
  %s35 = sld [smem:[%s34]]
  %s36 = scalar_lea.smem %s0, 18
  %s37 = sld [smem:[%s36]]
  %s38 = scalar_lea.smem %s0, 19
  %s39 = sld [smem:[%s38]]
  %s40 = scalar_lea.smem %s0, 20
  %s41 = sld [smem:[%s40]]
  %s42 = scalar_lea.smem %s0, 21
  %s43 = sld [smem:[%s42]]
  %s44 = scalar_lea.smem %s0, 22
  %s45 = sld [smem:[%s44]]
  %s46 = scalar_lea.smem %s0, 23
  %s47 = sld [smem:[%s46]]
  %s48 = scalar_lea.smem %s0, 24
  %s49 = sld [smem:[%s48]]
  %s50 = scalar_lea.smem %s0, 25
  %s51 = sld [smem:[%s50]]
  %s52 = scalar_lea.smem %s0, 26
  %s53 = sld [smem:[%s52]]
  %s54 = scalar_lea.smem %s0, 27
  %s55 = sld [smem:[%s54]]
  %s56 = scalar_lea.smem %s0, 28
  %s57 = sld [smem:[%s56]]
  %s58 = scalar_lea.smem %s0, 29
  %s59 = sld [smem:[%s58]]
  %s60 = scalar_lea.smem %s0, 30
  %s61 = sld [smem:[%s60]]
  %s62 = scalar_lea.smem %s0, 31
  %s63 = sld [smem:[%s62]]
  %s64 = scalar_lea.smem %s0, 32
  %s65 = sld [smem:[%s64]]
  %s66 = scalar_lea.smem %s0, 33
  %s67 = sld [smem:[%s66]]
  %s68 = scalar_lea.smem %s0, 34
  %s69 = sld [smem:[%s68]]
  %s70 = scalar_lea.smem %s0, 35
  %s71 = sld [smem:[%s70]]
  %s72 = scalar_lea.smem %s0, 36
  %s73 = sld [smem:[%s72]]
  %s74 = scalar_lea.smem %s0, 37
  %s75 = sld [smem:[%s74]]
  %s76 = scalar_lea.smem %s0, 38
  %s77 = sld [smem:[%s76]]
  %s78 = scalar_lea.smem %s0, 39
  %s79 = sld [smem:[%s78]]
  %s80 = scalar_lea.smem %s0, 40
  %s81 = sld [smem:[%s80]]
  %s82 = scalar_lea.smem %s0, 41
  %s83 = sld [smem:[%s82]]
  %84 = xla_tuple %s81, %s83
  %s85 = sld [smem:[#allocation0]]
  $region186: #{gvp_embedding_forward.8} parent=0
    _
  %s87 = ssub.s32 1, %s85
  %s88 = scalar_select 0, %s87, %s85
  // Predicated region
  $region2: #{gvp_embedding_forward.8} parent=0 // pred_check
    _
  $region3: #{gvp_embedding_forward.8} parent=0 // pred_check_branch
    %90 = sbr.rel (0) target = $region5
  $region4: #{gvp_embedding_forward.8} parent=0 // pred_region
    _
  $region5: #{gvp_embedding_forward.8} parent=0 // pred_fallthru
    _
  // Predicated region
  $region6: #{gvp_embedding_forward.8} parent=0 // pred_check
    _
  $region7: #{gvp_embedding_forward.8} parent=0 // pred_check_branch
    %92 = sbr.rel (0) target = $region9
  $region8: #{gvp_embedding_forward.8} parent=0 // pred_region
    _
  $region9: #{gvp_embedding_forward.8} parent=0 // pred_fallthru
    _
  // Predicated region
  $region10: #{gvp_embedding_forward.8} parent=0 // pred_check
    _
  $region11: #{gvp_embedding_forward.8} parent=0 // pred_check_branch
    %94 = sbr.rel (0) target = $region13
  $region12: #{gvp_embedding_forward.8} parent=0 // pred_region
    _
  $region13: #{gvp_embedding_forward.8} parent=0 // pred_fallthru
    _
  // Predicated region
  $region14: #{gvp_embedding_forward.8} parent=0 // pred_check
    _
  $region15: #{gvp_embedding_forward.8} parent=0 // pred_check_branch
    %96 = sbr.rel (0) target = $region17
  $region16: #{gvp_embedding_forward.8} parent=0 // pred_region
    _
  $region17: #{gvp_embedding_forward.8} parent=0 // pred_fallthru
    _
  // Predicated region
  $region18: #{gvp_embedding_forward.8} parent=0 // pred_check
    _
  $region19: #{gvp_embedding_forward.8} parent=0 // pred_check_branch
    %98 = sbr.rel (0) target = $region21
  $region20: #{gvp_embedding_forward.8} parent=0 // pred_region
    _
  $region21: #{gvp_embedding_forward.8} parent=0 // pred_fallthru
    _
  // Predicated region
  $region22: #{gvp_embedding_forward.8} parent=0 // pred_check
    _
  $region23: #{gvp_embedding_forward.8} parent=0 // pred_check_branch
    %100 = sbr.rel (0) target = $region25
  $region24: #{gvp_embedding_forward.8} parent=0 // pred_region
    _
  $region25: #{gvp_embedding_forward.8} parent=0 // pred_fallthru
    _
  // Predicated region
  $region26: #{gvp_embedding_forward.8} parent=0 // pred_check
    _
  $region27: #{gvp_embedding_forward.8} parent=0 // pred_check_branch
    %102 = sbr.rel (0) target = $region29
  $region28: #{gvp_embedding_forward.8} parent=0 // pred_region
    _
  $region29: #{gvp_embedding_forward.8} parent=0 // pred_fallthru
    _
  // Predicated region
  $region30: #{gvp_embedding_forward.8} parent=0 // pred_check
    _
  $region31: #{gvp_embedding_forward.8} parent=0 // pred_check_branch
    %104 = sbr.rel (0) target = $region33
  $region32: #{gvp_embedding_forward.8} parent=0 // pred_region
    _
  $region33: #{gvp_embedding_forward.8} parent=0 // pred_fallthru
    _
  // Predicated region
  $region34: #{gvp_embedding_forward.8} parent=0 // pred_check
    _
  $region35: #{gvp_embedding_forward.8} parent=0 // pred_check_branch
    %106 = sbr.rel (0) target = $region37
  $region36: #{gvp_embedding_forward.8} parent=0 // pred_region
    _
  $region37: #{gvp_embedding_forward.8} parent=0 // pred_fallthru
    _
  // Predicated region
  $region38: #{gvp_embedding_forward.8} parent=0 // pred_check
    _
  $region39: #{gvp_embedding_forward.8} parent=0 // pred_check_branch
    %108 = sbr.rel (0) target = $region41
  $region40: #{gvp_embedding_forward.8} parent=0 // pred_region
    _
  $region41: #{gvp_embedding_forward.8} parent=0 // pred_fallthru
    _
  // Predicated region
  $region42: #{gvp_embedding_forward.8} parent=0 // pred_check
    _
  $region43: #{gvp_embedding_forward.8} parent=0 // pred_check_branch
    %110 = sbr.rel (0) target = $region45
  $region44: #{gvp_embedding_forward.8} parent=0 // pred_region
    _
  $region45: #{gvp_embedding_forward.8} parent=0 // pred_fallthru
    _
  // Predicated region
  $region46: #{gvp_embedding_forward.8} parent=0 // pred_check
    _
  $region47: #{gvp_embedding_forward.8} parent=0 // pred_check_branch
    %112 = sbr.rel (0) target = $region49
  $region48: #{gvp_embedding_forward.8} parent=0 // pred_region
    _
  $region49: #{gvp_embedding_forward.8} parent=0 // pred_fallthru
    _
  // Predicated region
  $region50: #{gvp_embedding_forward.8} parent=0 // pred_check
    _
  $region51: #{gvp_embedding_forward.8} parent=0 // pred_check_branch
    %114 = sbr.rel (0) target = $region53
  $region52: #{gvp_embedding_forward.8} parent=0 // pred_region
    _
  $region53: #{gvp_embedding_forward.8} parent=0 // pred_fallthru
    _
  // Predicated region
  $region54: #{gvp_embedding_forward.8} parent=0 // pred_check
    _
  $region55: #{gvp_embedding_forward.8} parent=0 // pred_check_branch
    %116 = sbr.rel (0) target = $region57
  $region56: #{gvp_embedding_forward.8} parent=0 // pred_region
    _
  $region57: #{gvp_embedding_forward.8} parent=0 // pred_fallthru
    _
  // Predicated region
  $region58: #{gvp_embedding_forward.8} parent=0 // pred_check
    _
  $region59: #{gvp_embedding_forward.8} parent=0 // pred_check_branch
    %118 = sbr.rel (0) target = $region61
  $region60: #{gvp_embedding_forward.8} parent=0 // pred_region
    _
  $region61: #{gvp_embedding_forward.8} parent=0 // pred_fallthru
    _
  // Predicated region
  $region62: #{gvp_embedding_forward.8} parent=0 // pred_check
    _
  $region63: #{gvp_embedding_forward.8} parent=0 // pred_check_branch
    %120 = sbr.rel (0) target = $region65
  $region64: #{gvp_embedding_forward.8} parent=0 // pred_region
    _
  $region65: #{gvp_embedding_forward.8} parent=0 // pred_fallthru
    _
  // Predicated region
  $region66: #{gvp_embedding_forward.8} parent=0 // pred_check
    _
  $region67: #{gvp_embedding_forward.8} parent=0 // pred_check_branch
    %122 = sbr.rel (0) target = $region69
  $region68: #{gvp_embedding_forward.8} parent=0 // pred_region
    _
  $region69: #{gvp_embedding_forward.8} parent=0 // pred_fallthru
    _
  // Predicated region
  $region70: #{gvp_embedding_forward.8} parent=0 // pred_check
    _
  $region71: #{gvp_embedding_forward.8} parent=0 // pred_check_branch
    %124 = sbr.rel (0) target = $region73
  $region72: #{gvp_embedding_forward.8} parent=0 // pred_region
    _
  $region73: #{gvp_embedding_forward.8} parent=0 // pred_fallthru
    _
  // Predicated region
  $region74: #{gvp_embedding_forward.8} parent=0 // pred_check
    _
  $region75: #{gvp_embedding_forward.8} parent=0 // pred_check_branch
    %126 = sbr.rel (0) target = $region77
  $region76: #{gvp_embedding_forward.8} parent=0 // pred_region
    _
  $region77: #{gvp_embedding_forward.8} parent=0 // pred_fallthru
    _
  // Predicated region
  $region78: #{gvp_embedding_forward.8} parent=0 // pred_check
    _
  $region79: #{gvp_embedding_forward.8} parent=0 // pred_check_branch
    %128 = sbr.rel (0) target = $region81
  $region80: #{gvp_embedding_forward.8} parent=0 // pred_region
    _
  $region81: #{gvp_embedding_forward.8} parent=0 // pred_fallthru
    _
  // Predicated region
  $region82: #{gvp_embedding_forward.8} parent=0 // pred_check
    _
  $region83: #{gvp_embedding_forward.8} parent=0 // pred_check_branch
    %130 = sbr.rel (0) target = $region85
  $region84: #{gvp_embedding_forward.8} parent=0 // pred_region
    _
  $region85: #{gvp_embedding_forward.8} parent=0 // pred_fallthru
    _
  // Predicated region
  $region86: #{gvp_embedding_forward.8} parent=0 // pred_check
    _
  $region87: #{gvp_embedding_forward.8} parent=0 // pred_check_branch
    %132 = sbr.rel (0) target = $region89
  $region88: #{gvp_embedding_forward.8} parent=0 // pred_region
    _
  $region89: #{gvp_embedding_forward.8} parent=0 // pred_fallthru
    _
  // Predicated region
  $region90: #{gvp_embedding_forward.8} parent=0 // pred_check
    _
  $region91: #{gvp_embedding_forward.8} parent=0 // pred_check_branch
    %134 = sbr.rel (0) target = $region93
  $region92: #{gvp_embedding_forward.8} parent=0 // pred_region
    _
  $region93: #{gvp_embedding_forward.8} parent=0 // pred_fallthru
    _
  // Predicated region
  $region94: #{gvp_embedding_forward.8} parent=0 // pred_check
    _
  $region95: #{gvp_embedding_forward.8} parent=0 // pred_check_branch
    %136 = sbr.rel (0) target = $region97
  $region96: #{gvp_embedding_forward.8} parent=0 // pred_region
    _
  $region97: #{gvp_embedding_forward.8} parent=0 // pred_fallthru
    _
  // Predicated region
  $region98: #{gvp_embedding_forward.8} parent=0 // pred_check
    _
  $region99: #{gvp_embedding_forward.8} parent=0 // pred_check_branch
    %138 = sbr.rel (0) target = $region101
  $region100: #{gvp_embedding_forward.8} parent=0 // pred_region
    _
  $region101: #{gvp_embedding_forward.8} parent=0 // pred_fallthru
    _
  // Predicated region
  $region102: #{gvp_embedding_forward.8} parent=0 // pred_check
    _
  $region103: #{gvp_embedding_forward.8} parent=0 // pred_check_branch
    %140 = sbr.rel (0) target = $region105
  $region104: #{gvp_embedding_forward.8} parent=0 // pred_region
    _
  $region105: #{gvp_embedding_forward.8} parent=0 // pred_fallthru
    _
  // Predicated region
  $region106: #{gvp_embedding_forward.8} parent=0 // pred_check
    _
  $region107: #{gvp_embedding_forward.8} parent=0 // pred_check_branch
    %142 = sbr.rel (0) target = $region109
  $region108: #{gvp_embedding_forward.8} parent=0 // pred_region
    _
  $region109: #{gvp_embedding_forward.8} parent=0 // pred_fallthru
    _
  // Predicated region
  $region110: #{gvp_embedding_forward.8} parent=0 // pred_check
    _
  $region111: #{gvp_embedding_forward.8} parent=0 // pred_check_branch
    %144 = sbr.rel (0) target = $region113
  $region112: #{gvp_embedding_forward.8} parent=0 // pred_region
    _
  $region113: #{gvp_embedding_forward.8} parent=0 // pred_fallthru
    _
  // Predicated region
  $region114: #{gvp_embedding_forward.8} parent=0 // pred_check
    _
  $region115: #{gvp_embedding_forward.8} parent=0 // pred_check_branch
    %146 = sbr.rel (0) target = $region117
  $region116: #{gvp_embedding_forward.8} parent=0 // pred_region
    _
  $region117: #{gvp_embedding_forward.8} parent=0 // pred_fallthru
    _
  // Predicated region
  $region118: #{gvp_embedding_forward.8} parent=0 // pred_check
    _
  $region119: #{gvp_embedding_forward.8} parent=0 // pred_check_branch
    %148 = sbr.rel (0) target = $region121
  $region120: #{gvp_embedding_forward.8} parent=0 // pred_region
    _
  $region121: #{gvp_embedding_forward.8} parent=0 // pred_fallthru
    _
  // Predicated region
  $region122: #{gvp_embedding_forward.8} parent=0 // pred_check
    _
  $region123: #{gvp_embedding_forward.8} parent=0 // pred_check_branch
    %150 = sbr.rel (0) target = $region125
  $region124: #{gvp_embedding_forward.8} parent=0 // pred_region
    _
  $region125: #{gvp_embedding_forward.8} parent=0 // pred_fallthru
    _
  // Predicated region
  $region126: #{gvp_embedding_forward.8} parent=0 // pred_check
    _
  $region127: #{gvp_embedding_forward.8} parent=0 // pred_check_branch
    %152 = sbr.rel (0) target = $region129
  $region128: #{gvp_embedding_forward.8} parent=0 // pred_region
    _
  $region129: #{gvp_embedding_forward.8} parent=0 // pred_fallthru
    _
  // Predicated region
  $region130: #{gvp_embedding_forward.8} parent=0 // pred_check
    _
  $region131: #{gvp_embedding_forward.8} parent=0 // pred_check_branch
    %154 = sbr.rel (0) target = $region133
  $region132: #{gvp_embedding_forward.8} parent=0 // pred_region
    _
  $region133: #{gvp_embedding_forward.8} parent=0 // pred_fallthru
    _
  // Predicated region
  $region134: #{gvp_embedding_forward.8} parent=0 // pred_check
    _
  $region135: #{gvp_embedding_forward.8} parent=0 // pred_check_branch
    %156 = sbr.rel (0) target = $region137
  $region136: #{gvp_embedding_forward.8} parent=0 // pred_region
    _
  $region137: #{gvp_embedding_forward.8} parent=0 // pred_fallthru
    _
  // Predicated region
  $region138: #{gvp_embedding_forward.8} parent=0 // pred_check
    _
  $region139: #{gvp_embedding_forward.8} parent=0 // pred_check_branch
    %158 = sbr.rel (0) target = $region141
  $region140: #{gvp_embedding_forward.8} parent=0 // pred_region
    _
  $region141: #{gvp_embedding_forward.8} parent=0 // pred_fallthru
    _
  // Predicated region
  $region142: #{gvp_embedding_forward.8} parent=0 // pred_check
    _
  $region143: #{gvp_embedding_forward.8} parent=0 // pred_check_branch
    %160 = sbr.rel (0) target = $region145
  $region144: #{gvp_embedding_forward.8} parent=0 // pred_region
    _
  $region145: #{gvp_embedding_forward.8} parent=0 // pred_fallthru
    _
  // Predicated region
  $region146: #{gvp_embedding_forward.8} parent=0 // pred_check
    _
  $region147: #{gvp_embedding_forward.8} parent=0 // pred_check_branch
    %162 = sbr.rel (0) target = $region149
  $region148: #{gvp_embedding_forward.8} parent=0 // pred_region
    _
  $region149: #{gvp_embedding_forward.8} parent=0 // pred_fallthru
    _
  // Predicated region
  $region150: #{gvp_embedding_forward.8} parent=0 // pred_check
    _
  $region151: #{gvp_embedding_forward.8} parent=0 // pred_check_branch
    %164 = sbr.rel (0) target = $region153
  $region152: #{gvp_embedding_forward.8} parent=0 // pred_region
    _
  $region153: #{gvp_embedding_forward.8} parent=0 // pred_fallthru
    _
  // Predicated region
  $region154: #{gvp_embedding_forward.8} parent=0 // pred_check
    _
  $region155: #{gvp_embedding_forward.8} parent=0 // pred_check_branch
    %166 = sbr.rel (0) target = $region157
  $region156: #{gvp_embedding_forward.8} parent=0 // pred_region
    _
  $region157: #{gvp_embedding_forward.8} parent=0 // pred_fallthru
    _
  // Predicated region
  $region158: #{gvp_embedding_forward.8} parent=0 // pred_check
    _
  $region159: #{gvp_embedding_forward.8} parent=0 // pred_check_branch
    %168 = sbr.rel (0) target = $region161
  $region160: #{gvp_embedding_forward.8} parent=0 // pred_region
    _
  $region161: #{gvp_embedding_forward.8} parent=0 // pred_fallthru
    _
  %p169 = scmp.eq.s32.totalorder 0, 0
  // Predicated region
  $region162: #{gvp_embedding_forward.8} parent=0 // pred_check
    %p170 = pneg %p169
  $region163: #{gvp_embedding_forward.8} parent=0 // pred_check_branch
    %172 = sbr.rel (%p170) target = $region165
  $region164: #{gvp_embedding_forward.8} parent=0 // pred_region
    %vm173 = vcmask 261120
    %174 = vst.msk [vmem:[#allocation2] sm:$0xff] %vm173, 0.0
    %vm175 = vcmask 31744
    %176 = vst.msk [vmem:[#allocation3] sm:$0xff] %vm175, 0.0
    %177 = vst.msk [vmem:[#allocation3 + $0x8] sm:$0xff] %vm175, 0.0
    %178 = vst.msk [vmem:[#allocation3 + $0x10] sm:$0xff] %vm175, 0.0
    %vm179 = vcmask 7168
    %180 = vst.msk [vmem:[#allocation4] sm:$0xff] %vm179, 0.0
  $region165: #{gvp_embedding_forward.8} parent=0 // pred_fallthru
    _
  %v181 = vld [vmem:[%s11] sm:$0xff]
  %v182 = vld [vmem:[%s13] sm:$0xff]
  %s183 = scalar_lea.vmem %s13, 8
  %v184 = vld [vmem:[%s183] sm:$0xff]
  %s185 = scalar_lea.vmem %s13, 16
  %v186 = vld [vmem:[%s185] sm:$0xff]
  %v187 = vlaneseq
  %v188 = vand.u32 %v187, 127
  %v189 = vld [vmem:[%s5] sm:$0xff]
  %v190 = vld [vmem:[%s5 + $0x8] sm:$0xff]
  %191 = vset.pattern.permute.xlu0 0
  %192 = vperm.xlu0 %191, %v189
  %v193 = vpop.permute.xlu0 %192
  %194 = vset.pattern.permute.xlu0 0
  %195 = vperm.xlu0 %194, %v190
  %v196 = vpop.permute.xlu0 %195
  %vm197 = vcmp.eq.s32.totalorder %v188, %v193
  %vm198 = vcmp.eq.s32.totalorder %v188, %v196
  %v199 = vsel %vm197, 1, 0
  %v200 = vsel %vm198, 1, 0
  %v201 = vcvt.s32.f32 %v199
  %v202 = vcvt.s32.f32 %v200
  %v203 = vld [vmem:[%s7] sm:$0xff]
  %v204 = vld [vmem:[%s7 + $0x8] sm:$0xff]
  %205 = vset.pattern.permute.xlu0 0
  %206 = vperm.xlu0 %205, %v203
  %v207 = vpop.permute.xlu0 %206
  %208 = vset.pattern.permute.xlu0 0
  %209 = vperm.xlu0 %208, %v204
  %v210 = vpop.permute.xlu0 %209
  %vm211 = vcmp.eq.s32.totalorder %v188, %v207
  %vm212 = vcmp.eq.s32.totalorder %v188, %v210
  %v213 = vsel %vm211, 1, 0
  %v214 = vsel %vm212, 1, 0
  %v215 = vcvt.s32.f32 %v213
  %v216 = vcvt.s32.f32 %v214
  %vm217 = vcmask 64512
  %v219 = vsel %vm217, %v201, 0
  %v222 = vsel %vm217, %v202, 0
  %224 = vmatprep.subr.mxu0 0.0
  %225 = vmatpush1.msra.mxu0 0.0
  %226 = vmatprep.subr.mxu0 0.0
  %227 = vmatpush1.msra.mxu0 0.0
  %228 = vmatprep.subr.mxu0 0.0
  %229 = vmatpush1.msra.mxu0 0.0
  %230 = vmatprep.subr.mxu0 0.0
  %231 = vmatpush1.msra.mxu0 0.0
  %232 = vmatprep.subr.mxu0 0.0
  %233 = vmatpush1.msra.mxu0 0.0
  %234 = vmatprep.subr.mxu0 0.0
  %235 = vmatpush1.msra.mxu0 0.0
  %236 = vmatprep.subr.mxu0 0.0
  %237 = vmatpush1.msra.mxu0 0.0
  %238 = vmatprep.subr.mxu0 0.0
  %239 = vmatpush1.msra.mxu0 0.0
  %240 = vmatprep.subr.mxu0 0.0
  %241 = vmatpush1.msra.mxu0 0.0
  %242 = vmatprep.subr.mxu0 0.0
  %243 = vmatpush1.msra.mxu0 0.0
  %244 = vmatprep.subr.mxu0 0.0
  %245 = vmatpush1.msra.mxu0 0.0
  %246 = vmatprep.subr.mxu0 0.0
  %247 = vmatpush1.msra.mxu0 0.0
  %248 = vmatprep.subr.mxu0 0.0
  %249 = vmatpush1.msra.mxu0 0.0
  %250 = vmatprep.subr.mxu0 0.0
  %251 = vmatpush1.msra.mxu0 0.0
  %252 = vmatprep.subr.mxu0 0.0
  %253 = vmatpush1.msra.mxu0 0.0
  %254 = vmatprep.subr.mxu0 0.0
  %255 = vmatpush1.msra.mxu0 %v181
  %256 = vmatprep.subr.mxu0 0.0
  %257 = vmatpush2.msra.mxu0 0.0
  %258 = vmatprep.subr.mxu0 0.0
  %259 = vmatpush2.msra.mxu0 0.0
  %260 = vmatprep.subr.mxu0 0.0
  %261 = vmatpush2.msra.mxu0 0.0
  %262 = vmatprep.subr.mxu0 0.0
  %263 = vmatpush2.msra.mxu0 0.0
  %264 = vmatprep.subr.mxu0 0.0
  %265 = vmatpush2.msra.mxu0 0.0
  %266 = vmatprep.subr.mxu0 0.0
  %267 = vmatpush2.msra.mxu0 0.0
  %268 = vmatprep.subr.mxu0 0.0
  %269 = vmatpush2.msra.mxu0 0.0
  %270 = vmatprep.subr.mxu0 0.0
  %271 = vmatpush2.msra.mxu0 0.0
  %272 = vmatprep.subr.mxu0 0.0
  %273 = vmatpush2.msra.mxu0 0.0
  %274 = vmatprep.subr.mxu0 0.0
  %275 = vmatpush2.msra.mxu0 0.0
  %276 = vmatprep.subr.mxu0 0.0
  %277 = vmatpush2.msra.mxu0 0.0
  %278 = vmatprep.subr.mxu0 0.0
  %279 = vmatpush2.msra.mxu0 0.0
  %280 = vmatprep.subr.mxu0 0.0
  %281 = vmatpush2.msra.mxu0 0.0
  %282 = vmatprep.subr.mxu0 0.0
  %283 = vmatpush2.msra.mxu0 0.0
  %284 = vmatprep.subr.mxu0 0.0
  %285 = vmatpush2.msra.mxu0 0.0
  %286 = vmatprep.subr.mxu0 0.0
  %287 = vmatpush2.msra.mxu0 0.0
  %288 = vmatprep.mubr.f32.mxu0 0.0
  %289 = vmatmul.mubr.f32.gmra.mxu0 %v219
  %v290 = vpop.f32.mrf.mxu0
  %v291 = vadd.f32 0.0, %v290
  %v292 = vpop.f32.mrf.mxu0
  %293 = vmatprep.mubr.f32.mxu0 0.0
  %294 = vmatmul.mubr.f32.gmra.mxu0 %v222
  %v295 = vpop.f32.mrf.mxu0
  %v296 = vadd.f32 0.0, %v295
  %v297 = vpop.f32.mrf.mxu0
  %298 = vdwg.mxu0
  %v300 = vsel %vm217, %v215, 0
  %v303 = vsel %vm217, %v216, 0
  %305 = vmatprep.subr.mxu0 0.0
  %306 = vmatpush1.msra.mxu0 0.0
  %307 = vmatprep.subr.mxu0 0.0
  %308 = vmatpush1.msra.mxu0 0.0
  %309 = vmatprep.subr.mxu0 0.0
  %310 = vmatpush1.msra.mxu0 0.0
  %311 = vmatprep.subr.mxu0 0.0
  %312 = vmatpush1.msra.mxu0 0.0
  %313 = vmatprep.subr.mxu0 0.0
  %314 = vmatpush1.msra.mxu0 0.0
  %315 = vmatprep.subr.mxu0 0.0
  %316 = vmatpush1.msra.mxu0 0.0
  %317 = vmatprep.subr.mxu0 0.0
  %318 = vmatpush1.msra.mxu0 0.0
  %319 = vmatprep.subr.mxu0 0.0
  %320 = vmatpush1.msra.mxu0 0.0
  %321 = vmatprep.subr.mxu0 0.0
  %322 = vmatpush1.msra.mxu0 0.0
  %323 = vmatprep.subr.mxu0 0.0
  %324 = vmatpush1.msra.mxu0 0.0
  %325 = vmatprep.subr.mxu0 0.0
  %326 = vmatpush1.msra.mxu0 0.0
  %327 = vmatprep.subr.mxu0 0.0
  %328 = vmatpush1.msra.mxu0 0.0
  %329 = vmatprep.subr.mxu0 0.0
  %330 = vmatpush1.msra.mxu0 0.0
  %331 = vmatprep.subr.mxu0 0.0
  %332 = vmatpush1.msra.mxu0 0.0
  %333 = vmatprep.subr.mxu0 0.0
  %334 = vmatpush1.msra.mxu0 0.0
  %335 = vmatprep.subr.mxu0 0.0
  %336 = vmatpush1.msra.mxu0 %v181
  %337 = vmatprep.subr.mxu0 0.0
  %338 = vmatpush2.msra.mxu0 0.0
  %339 = vmatprep.subr.mxu0 0.0
  %340 = vmatpush2.msra.mxu0 0.0
  %341 = vmatprep.subr.mxu0 0.0
  %342 = vmatpush2.msra.mxu0 0.0
  %343 = vmatprep.subr.mxu0 0.0
  %344 = vmatpush2.msra.mxu0 0.0
  %345 = vmatprep.subr.mxu0 0.0
  %346 = vmatpush2.msra.mxu0 0.0
  %347 = vmatprep.subr.mxu0 0.0
  %348 = vmatpush2.msra.mxu0 0.0
  %349 = vmatprep.subr.mxu0 0.0
  %350 = vmatpush2.msra.mxu0 0.0
  %351 = vmatprep.subr.mxu0 0.0
  %352 = vmatpush2.msra.mxu0 0.0
  %353 = vmatprep.subr.mxu0 0.0
  %354 = vmatpush2.msra.mxu0 0.0
  %355 = vmatprep.subr.mxu0 0.0
  %356 = vmatpush2.msra.mxu0 0.0
  %357 = vmatprep.subr.mxu0 0.0
  %358 = vmatpush2.msra.mxu0 0.0
  %359 = vmatprep.subr.mxu0 0.0
  %360 = vmatpush2.msra.mxu0 0.0
  %361 = vmatprep.subr.mxu0 0.0
  %362 = vmatpush2.msra.mxu0 0.0
  %363 = vmatprep.subr.mxu0 0.0
  %364 = vmatpush2.msra.mxu0 0.0
  %365 = vmatprep.subr.mxu0 0.0
  %366 = vmatpush2.msra.mxu0 0.0
  %367 = vmatprep.subr.mxu0 0.0
  %368 = vmatpush2.msra.mxu0 0.0
  %369 = vmatprep.mubr.f32.mxu0 0.0
  %370 = vmatmul.mubr.f32.gmra.mxu0 %v300
  %v371 = vpop.f32.mrf.mxu0
  %v372 = vadd.f32 0.0, %v371
  %v373 = vpop.f32.mrf.mxu0
  %374 = vmatprep.mubr.f32.mxu0 0.0
  %375 = vmatmul.mubr.f32.gmra.mxu0 %v303
  %v376 = vpop.f32.mrf.mxu0
  %v377 = vadd.f32 0.0, %v376
  %v378 = vpop.f32.mrf.mxu0
  %379 = vdwg.mxu0
  %380 = vmatprep.subr.mxu0 0.0
  %381 = vmatpush1.msra.mxu0 0.0
  %382 = vmatprep.subr.mxu0 0.0
  %383 = vmatpush1.msra.mxu0 0.0
  %384 = vmatprep.subr.mxu0 0.0
  %385 = vmatpush1.msra.mxu0 0.0
  %386 = vmatprep.subr.mxu0 0.0
  %387 = vmatpush1.msra.mxu0 0.0
  %388 = vmatprep.subr.mxu0 0.0
  %389 = vmatpush1.msra.mxu0 0.0
  %390 = vmatprep.subr.mxu0 0.0
  %391 = vmatpush1.msra.mxu0 0.0
  %392 = vmatprep.subr.mxu0 0.0
  %393 = vmatpush1.msra.mxu0 0.0
  %394 = vmatprep.subr.mxu0 0.0
  %395 = vmatpush1.msra.mxu0 0.0
  %396 = vmatprep.subr.mxu0 0.0
  %397 = vmatpush1.msra.mxu0 0.0
  %398 = vmatprep.subr.mxu0 0.0
  %399 = vmatpush1.msra.mxu0 0.0
  %400 = vmatprep.subr.mxu0 0.0
  %401 = vmatpush1.msra.mxu0 0.0
  %402 = vmatprep.subr.mxu0 0.0
  %403 = vmatpush1.msra.mxu0 0.0
  %404 = vmatprep.subr.mxu0 0.0
  %405 = vmatpush1.msra.mxu0 0.0
  %406 = vmatprep.subr.mxu0 0.0
  %407 = vmatpush1.msra.mxu0 0.0
  %408 = vmatprep.subr.mxu0 0.0
  %409 = vmatpush1.msra.mxu0 0.0
  %410 = vmatprep.subr.mxu0 0.0
  %411 = vmatpush1.msra.mxu0 %v182
  %412 = vmatprep.subr.mxu0 0.0
  %413 = vmatpush2.msra.mxu0 0.0
  %414 = vmatprep.subr.mxu0 0.0
  %415 = vmatpush2.msra.mxu0 0.0
  %416 = vmatprep.subr.mxu0 0.0
  %417 = vmatpush2.msra.mxu0 0.0
  %418 = vmatprep.subr.mxu0 0.0
  %419 = vmatpush2.msra.mxu0 0.0
  %420 = vmatprep.subr.mxu0 0.0
  %421 = vmatpush2.msra.mxu0 0.0
  %422 = vmatprep.subr.mxu0 0.0
  %423 = vmatpush2.msra.mxu0 0.0
  %424 = vmatprep.subr.mxu0 0.0
  %425 = vmatpush2.msra.mxu0 0.0
  %426 = vmatprep.subr.mxu0 0.0
  %427 = vmatpush2.msra.mxu0 0.0
  %428 = vmatprep.subr.mxu0 0.0
  %429 = vmatpush2.msra.mxu0 0.0
  %430 = vmatprep.subr.mxu0 0.0
  %431 = vmatpush2.msra.mxu0 0.0
  %432 = vmatprep.subr.mxu0 0.0
  %433 = vmatpush2.msra.mxu0 0.0
  %434 = vmatprep.subr.mxu0 0.0
  %435 = vmatpush2.msra.mxu0 0.0
  %436 = vmatprep.subr.mxu0 0.0
  %437 = vmatpush2.msra.mxu0 0.0
  %438 = vmatprep.subr.mxu0 0.0
  %439 = vmatpush2.msra.mxu0 0.0
  %440 = vmatprep.subr.mxu0 0.0
  %441 = vmatpush2.msra.mxu0 0.0
  %442 = vmatprep.subr.mxu0 0.0
  %443 = vmatpush2.msra.mxu0 0.0
  %444 = vmatprep.mubr.f32.mxu0 0.0
  %445 = vmatmul.mubr.f32.gmra.mxu0 %v219
  %v446 = vpop.f32.mrf.mxu0
  %v447 = vadd.f32 0.0, %v446
  %v448 = vpop.f32.mrf.mxu0
  %449 = vmatprep.mubr.f32.mxu0 0.0
  %450 = vmatmul.mubr.f32.gmra.mxu0 %v222
  %v451 = vpop.f32.mrf.mxu0
  %v452 = vadd.f32 0.0, %v451
  %v453 = vpop.f32.mrf.mxu0
  %454 = vdwg.mxu0
  %455 = vmatprep.subr.mxu0 0.0
  %456 = vmatpush1.msra.mxu0 0.0
  %457 = vmatprep.subr.mxu0 0.0
  %458 = vmatpush1.msra.mxu0 0.0
  %459 = vmatprep.subr.mxu0 0.0
  %460 = vmatpush1.msra.mxu0 0.0
  %461 = vmatprep.subr.mxu0 0.0
  %462 = vmatpush1.msra.mxu0 0.0
  %463 = vmatprep.subr.mxu0 0.0
  %464 = vmatpush1.msra.mxu0 0.0
  %465 = vmatprep.subr.mxu0 0.0
  %466 = vmatpush1.msra.mxu0 0.0
  %467 = vmatprep.subr.mxu0 0.0
  %468 = vmatpush1.msra.mxu0 0.0
  %469 = vmatprep.subr.mxu0 0.0
  %470 = vmatpush1.msra.mxu0 0.0
  %471 = vmatprep.subr.mxu0 0.0
  %472 = vmatpush1.msra.mxu0 0.0
  %473 = vmatprep.subr.mxu0 0.0
  %474 = vmatpush1.msra.mxu0 0.0
  %475 = vmatprep.subr.mxu0 0.0
  %476 = vmatpush1.msra.mxu0 0.0
  %477 = vmatprep.subr.mxu0 0.0
  %478 = vmatpush1.msra.mxu0 0.0
  %479 = vmatprep.subr.mxu0 0.0
  %480 = vmatpush1.msra.mxu0 0.0
  %481 = vmatprep.subr.mxu0 0.0
  %482 = vmatpush1.msra.mxu0 0.0
  %483 = vmatprep.subr.mxu0 0.0
  %484 = vmatpush1.msra.mxu0 0.0
  %485 = vmatprep.subr.mxu0 0.0
  %486 = vmatpush1.msra.mxu0 %v184
  %487 = vmatprep.subr.mxu0 0.0
  %488 = vmatpush2.msra.mxu0 0.0
  %489 = vmatprep.subr.mxu0 0.0
  %490 = vmatpush2.msra.mxu0 0.0
  %491 = vmatprep.subr.mxu0 0.0
  %492 = vmatpush2.msra.mxu0 0.0
  %493 = vmatprep.subr.mxu0 0.0
  %494 = vmatpush2.msra.mxu0 0.0
  %495 = vmatprep.subr.mxu0 0.0
  %496 = vmatpush2.msra.mxu0 0.0
  %497 = vmatprep.subr.mxu0 0.0
  %498 = vmatpush2.msra.mxu0 0.0
  %499 = vmatprep.subr.mxu0 0.0
  %500 = vmatpush2.msra.mxu0 0.0
  %501 = vmatprep.subr.mxu0 0.0
  %502 = vmatpush2.msra.mxu0 0.0
  %503 = vmatprep.subr.mxu0 0.0
  %504 = vmatpush2.msra.mxu0 0.0
  %505 = vmatprep.subr.mxu0 0.0
  %506 = vmatpush2.msra.mxu0 0.0
  %507 = vmatprep.subr.mxu0 0.0
  %508 = vmatpush2.msra.mxu0 0.0
  %509 = vmatprep.subr.mxu0 0.0
  %510 = vmatpush2.msra.mxu0 0.0
  %511 = vmatprep.subr.mxu0 0.0
  %512 = vmatpush2.msra.mxu0 0.0
  %513 = vmatprep.subr.mxu0 0.0
  %514 = vmatpush2.msra.mxu0 0.0
  %515 = vmatprep.subr.mxu0 0.0
  %516 = vmatpush2.msra.mxu0 0.0
  %517 = vmatprep.subr.mxu0 0.0
  %518 = vmatpush2.msra.mxu0 0.0
  %519 = vmatprep.mubr.f32.mxu0 0.0
  %520 = vmatmul.mubr.f32.gmra.mxu0 %v219
  %v521 = vpop.f32.mrf.mxu0
  %v522 = vadd.f32 0.0, %v521
  %v523 = vpop.f32.mrf.mxu0
  %524 = vmatprep.mubr.f32.mxu0 0.0
  %525 = vmatmul.mubr.f32.gmra.mxu0 %v222
  %v526 = vpop.f32.mrf.mxu0
  %v527 = vadd.f32 0.0, %v526
  %v528 = vpop.f32.mrf.mxu0
  %529 = vdwg.mxu0
  %530 = vmatprep.subr.mxu0 0.0
  %531 = vmatpush1.msra.mxu0 0.0
  %532 = vmatprep.subr.mxu0 0.0
  %533 = vmatpush1.msra.mxu0 0.0
  %534 = vmatprep.subr.mxu0 0.0
  %535 = vmatpush1.msra.mxu0 0.0
  %536 = vmatprep.subr.mxu0 0.0
  %537 = vmatpush1.msra.mxu0 0.0
  %538 = vmatprep.subr.mxu0 0.0
  %539 = vmatpush1.msra.mxu0 0.0
  %540 = vmatprep.subr.mxu0 0.0
  %541 = vmatpush1.msra.mxu0 0.0
  %542 = vmatprep.subr.mxu0 0.0
  %543 = vmatpush1.msra.mxu0 0.0
  %544 = vmatprep.subr.mxu0 0.0
  %545 = vmatpush1.msra.mxu0 0.0
  %546 = vmatprep.subr.mxu0 0.0
  %547 = vmatpush1.msra.mxu0 0.0
  %548 = vmatprep.subr.mxu0 0.0
  %549 = vmatpush1.msra.mxu0 0.0
  %550 = vmatprep.subr.mxu0 0.0
  %551 = vmatpush1.msra.mxu0 0.0
  %552 = vmatprep.subr.mxu0 0.0
  %553 = vmatpush1.msra.mxu0 0.0
  %554 = vmatprep.subr.mxu0 0.0
  %555 = vmatpush1.msra.mxu0 0.0
  %556 = vmatprep.subr.mxu0 0.0
  %557 = vmatpush1.msra.mxu0 0.0
  %558 = vmatprep.subr.mxu0 0.0
  %559 = vmatpush1.msra.mxu0 0.0
  %560 = vmatprep.subr.mxu0 0.0
  %561 = vmatpush1.msra.mxu0 %v186
  %562 = vmatprep.subr.mxu0 0.0
  %563 = vmatpush2.msra.mxu0 0.0
  %564 = vmatprep.subr.mxu0 0.0
  %565 = vmatpush2.msra.mxu0 0.0
  %566 = vmatprep.subr.mxu0 0.0
  %567 = vmatpush2.msra.mxu0 0.0
  %568 = vmatprep.subr.mxu0 0.0
  %569 = vmatpush2.msra.mxu0 0.0
  %570 = vmatprep.subr.mxu0 0.0
  %571 = vmatpush2.msra.mxu0 0.0
  %572 = vmatprep.subr.mxu0 0.0
  %573 = vmatpush2.msra.mxu0 0.0
  %574 = vmatprep.subr.mxu0 0.0
  %575 = vmatpush2.msra.mxu0 0.0
  %576 = vmatprep.subr.mxu0 0.0
  %577 = vmatpush2.msra.mxu0 0.0
  %578 = vmatprep.subr.mxu0 0.0
  %579 = vmatpush2.msra.mxu0 0.0
  %580 = vmatprep.subr.mxu0 0.0
  %581 = vmatpush2.msra.mxu0 0.0
  %582 = vmatprep.subr.mxu0 0.0
  %583 = vmatpush2.msra.mxu0 0.0
  %584 = vmatprep.subr.mxu0 0.0
  %585 = vmatpush2.msra.mxu0 0.0
  %586 = vmatprep.subr.mxu0 0.0
  %587 = vmatpush2.msra.mxu0 0.0
  %588 = vmatprep.subr.mxu0 0.0
  %589 = vmatpush2.msra.mxu0 0.0
  %590 = vmatprep.subr.mxu0 0.0
  %591 = vmatpush2.msra.mxu0 0.0
  %592 = vmatprep.subr.mxu0 0.0
  %593 = vmatpush2.msra.mxu0 0.0
  %594 = vmatprep.mubr.f32.mxu0 0.0
  %595 = vmatmul.mubr.f32.gmra.mxu0 %v219
  %v596 = vpop.f32.mrf.mxu0
  %v597 = vadd.f32 0.0, %v596
  %v598 = vpop.f32.mrf.mxu0
  %599 = vmatprep.mubr.f32.mxu0 0.0
  %600 = vmatmul.mubr.f32.gmra.mxu0 %v222
  %v601 = vpop.f32.mrf.mxu0
  %v602 = vadd.f32 0.0, %v601
  %v603 = vpop.f32.mrf.mxu0
  %604 = vdwg.mxu0
  %605 = vmatprep.subr.mxu0 0.0
  %606 = vmatpush1.msra.mxu0 0.0
  %607 = vmatprep.subr.mxu0 0.0
  %608 = vmatpush1.msra.mxu0 0.0
  %609 = vmatprep.subr.mxu0 0.0
  %610 = vmatpush1.msra.mxu0 0.0
  %611 = vmatprep.subr.mxu0 0.0
  %612 = vmatpush1.msra.mxu0 0.0
  %613 = vmatprep.subr.mxu0 0.0
  %614 = vmatpush1.msra.mxu0 0.0
  %615 = vmatprep.subr.mxu0 0.0
  %616 = vmatpush1.msra.mxu0 0.0
  %617 = vmatprep.subr.mxu0 0.0
  %618 = vmatpush1.msra.mxu0 0.0
  %619 = vmatprep.subr.mxu0 0.0
  %620 = vmatpush1.msra.mxu0 0.0
  %621 = vmatprep.subr.mxu0 0.0
  %622 = vmatpush1.msra.mxu0 0.0
  %623 = vmatprep.subr.mxu0 0.0
  %624 = vmatpush1.msra.mxu0 0.0
  %625 = vmatprep.subr.mxu0 0.0
  %626 = vmatpush1.msra.mxu0 0.0
  %627 = vmatprep.subr.mxu0 0.0
  %628 = vmatpush1.msra.mxu0 0.0
  %629 = vmatprep.subr.mxu0 0.0
  %630 = vmatpush1.msra.mxu0 0.0
  %631 = vmatprep.subr.mxu0 0.0
  %632 = vmatpush1.msra.mxu0 0.0
  %633 = vmatprep.subr.mxu0 0.0
  %634 = vmatpush1.msra.mxu0 0.0
  %635 = vmatprep.subr.mxu0 0.0
  %636 = vmatpush1.msra.mxu0 %v182
  %637 = vmatprep.subr.mxu0 0.0
  %638 = vmatpush2.msra.mxu0 0.0
  %639 = vmatprep.subr.mxu0 0.0
  %640 = vmatpush2.msra.mxu0 0.0
  %641 = vmatprep.subr.mxu0 0.0
  %642 = vmatpush2.msra.mxu0 0.0
  %643 = vmatprep.subr.mxu0 0.0
  %644 = vmatpush2.msra.mxu0 0.0
  %645 = vmatprep.subr.mxu0 0.0
  %646 = vmatpush2.msra.mxu0 0.0
  %647 = vmatprep.subr.mxu0 0.0
  %648 = vmatpush2.msra.mxu0 0.0
  %649 = vmatprep.subr.mxu0 0.0
  %650 = vmatpush2.msra.mxu0 0.0
  %651 = vmatprep.subr.mxu0 0.0
  %652 = vmatpush2.msra.mxu0 0.0
  %653 = vmatprep.subr.mxu0 0.0
  %654 = vmatpush2.msra.mxu0 0.0
  %655 = vmatprep.subr.mxu0 0.0
  %656 = vmatpush2.msra.mxu0 0.0
  %657 = vmatprep.subr.mxu0 0.0
  %658 = vmatpush2.msra.mxu0 0.0
  %659 = vmatprep.subr.mxu0 0.0
  %660 = vmatpush2.msra.mxu0 0.0
  %661 = vmatprep.subr.mxu0 0.0
  %662 = vmatpush2.msra.mxu0 0.0
  %663 = vmatprep.subr.mxu0 0.0
  %664 = vmatpush2.msra.mxu0 0.0
  %665 = vmatprep.subr.mxu0 0.0
  %666 = vmatpush2.msra.mxu0 0.0
  %667 = vmatprep.subr.mxu0 0.0
  %668 = vmatpush2.msra.mxu0 0.0
  %669 = vmatprep.mubr.f32.mxu0 0.0
  %670 = vmatmul.mubr.f32.gmra.mxu0 %v300
  %v671 = vpop.f32.mrf.mxu0
  %v672 = vadd.f32 0.0, %v671
  %v673 = vpop.f32.mrf.mxu0
  %674 = vmatprep.mubr.f32.mxu0 0.0
  %675 = vmatmul.mubr.f32.gmra.mxu0 %v303
  %v676 = vpop.f32.mrf.mxu0
  %v677 = vadd.f32 0.0, %v676
  %v678 = vpop.f32.mrf.mxu0
  %679 = vdwg.mxu0
  %680 = vmatprep.subr.mxu0 0.0
  %681 = vmatpush1.msra.mxu0 0.0
  %682 = vmatprep.subr.mxu0 0.0
  %683 = vmatpush1.msra.mxu0 0.0
  %684 = vmatprep.subr.mxu0 0.0
  %685 = vmatpush1.msra.mxu0 0.0
  %686 = vmatprep.subr.mxu0 0.0
  %687 = vmatpush1.msra.mxu0 0.0
  %688 = vmatprep.subr.mxu0 0.0
  %689 = vmatpush1.msra.mxu0 0.0
  %690 = vmatprep.subr.mxu0 0.0
  %691 = vmatpush1.msra.mxu0 0.0
  %692 = vmatprep.subr.mxu0 0.0
  %693 = vmatpush1.msra.mxu0 0.0
  %694 = vmatprep.subr.mxu0 0.0
  %695 = vmatpush1.msra.mxu0 0.0
  %696 = vmatprep.subr.mxu0 0.0
  %697 = vmatpush1.msra.mxu0 0.0
  %698 = vmatprep.subr.mxu0 0.0
  %699 = vmatpush1.msra.mxu0 0.0
  %700 = vmatprep.subr.mxu0 0.0
  %701 = vmatpush1.msra.mxu0 0.0
  %702 = vmatprep.subr.mxu0 0.0
  %703 = vmatpush1.msra.mxu0 0.0
  %704 = vmatprep.subr.mxu0 0.0
  %705 = vmatpush1.msra.mxu0 0.0
  %706 = vmatprep.subr.mxu0 0.0
  %707 = vmatpush1.msra.mxu0 0.0
  %708 = vmatprep.subr.mxu0 0.0
  %709 = vmatpush1.msra.mxu0 0.0
  %710 = vmatprep.subr.mxu0 0.0
  %711 = vmatpush1.msra.mxu0 %v184
  %712 = vmatprep.subr.mxu0 0.0
  %713 = vmatpush2.msra.mxu0 0.0
  %714 = vmatprep.subr.mxu0 0.0
  %715 = vmatpush2.msra.mxu0 0.0
  %716 = vmatprep.subr.mxu0 0.0
  %717 = vmatpush2.msra.mxu0 0.0
  %718 = vmatprep.subr.mxu0 0.0
  %719 = vmatpush2.msra.mxu0 0.0
  %720 = vmatprep.subr.mxu0 0.0
  %721 = vmatpush2.msra.mxu0 0.0
  %722 = vmatprep.subr.mxu0 0.0
  %723 = vmatpush2.msra.mxu0 0.0
  %724 = vmatprep.subr.mxu0 0.0
  %725 = vmatpush2.msra.mxu0 0.0
  %726 = vmatprep.subr.mxu0 0.0
  %727 = vmatpush2.msra.mxu0 0.0
  %728 = vmatprep.subr.mxu0 0.0
  %729 = vmatpush2.msra.mxu0 0.0
  %730 = vmatprep.subr.mxu0 0.0
  %731 = vmatpush2.msra.mxu0 0.0
  %732 = vmatprep.subr.mxu0 0.0
  %733 = vmatpush2.msra.mxu0 0.0
  %734 = vmatprep.subr.mxu0 0.0
  %735 = vmatpush2.msra.mxu0 0.0
  %736 = vmatprep.subr.mxu0 0.0
  %737 = vmatpush2.msra.mxu0 0.0
  %738 = vmatprep.subr.mxu0 0.0
  %739 = vmatpush2.msra.mxu0 0.0
  %740 = vmatprep.subr.mxu0 0.0
  %741 = vmatpush2.msra.mxu0 0.0
  %742 = vmatprep.subr.mxu0 0.0
  %743 = vmatpush2.msra.mxu0 0.0
  %744 = vmatprep.mubr.f32.mxu0 0.0
  %745 = vmatmul.mubr.f32.gmra.mxu0 %v300
  %v746 = vpop.f32.mrf.mxu0
  %v747 = vadd.f32 0.0, %v746
  %v748 = vpop.f32.mrf.mxu0
  %749 = vmatprep.mubr.f32.mxu0 0.0
  %750 = vmatmul.mubr.f32.gmra.mxu0 %v303
  %v751 = vpop.f32.mrf.mxu0
  %v752 = vadd.f32 0.0, %v751
  %v753 = vpop.f32.mrf.mxu0
  %754 = vdwg.mxu0
  %755 = vmatprep.subr.mxu0 0.0
  %756 = vmatpush1.msra.mxu0 0.0
  %757 = vmatprep.subr.mxu0 0.0
  %758 = vmatpush1.msra.mxu0 0.0
  %759 = vmatprep.subr.mxu0 0.0
  %760 = vmatpush1.msra.mxu0 0.0
  %761 = vmatprep.subr.mxu0 0.0
  %762 = vmatpush1.msra.mxu0 0.0
  %763 = vmatprep.subr.mxu0 0.0
  %764 = vmatpush1.msra.mxu0 0.0
  %765 = vmatprep.subr.mxu0 0.0
  %766 = vmatpush1.msra.mxu0 0.0
  %767 = vmatprep.subr.mxu0 0.0
  %768 = vmatpush1.msra.mxu0 0.0
  %769 = vmatprep.subr.mxu0 0.0
  %770 = vmatpush1.msra.mxu0 0.0
  %771 = vmatprep.subr.mxu0 0.0
  %772 = vmatpush1.msra.mxu0 0.0
  %773 = vmatprep.subr.mxu0 0.0
  %774 = vmatpush1.msra.mxu0 0.0
  %775 = vmatprep.subr.mxu0 0.0
  %776 = vmatpush1.msra.mxu0 0.0
  %777 = vmatprep.subr.mxu0 0.0
  %778 = vmatpush1.msra.mxu0 0.0
  %779 = vmatprep.subr.mxu0 0.0
  %780 = vmatpush1.msra.mxu0 0.0
  %781 = vmatprep.subr.mxu0 0.0
  %782 = vmatpush1.msra.mxu0 0.0
  %783 = vmatprep.subr.mxu0 0.0
  %784 = vmatpush1.msra.mxu0 0.0
  %785 = vmatprep.subr.mxu0 0.0
  %786 = vmatpush1.msra.mxu0 %v186
  %787 = vmatprep.subr.mxu0 0.0
  %788 = vmatpush2.msra.mxu0 0.0
  %789 = vmatprep.subr.mxu0 0.0
  %790 = vmatpush2.msra.mxu0 0.0
  %791 = vmatprep.subr.mxu0 0.0
  %792 = vmatpush2.msra.mxu0 0.0
  %793 = vmatprep.subr.mxu0 0.0
  %794 = vmatpush2.msra.mxu0 0.0
  %795 = vmatprep.subr.mxu0 0.0
  %796 = vmatpush2.msra.mxu0 0.0
  %797 = vmatprep.subr.mxu0 0.0
  %798 = vmatpush2.msra.mxu0 0.0
  %799 = vmatprep.subr.mxu0 0.0
  %800 = vmatpush2.msra.mxu0 0.0
  %801 = vmatprep.subr.mxu0 0.0
  %802 = vmatpush2.msra.mxu0 0.0
  %803 = vmatprep.subr.mxu0 0.0
  %804 = vmatpush2.msra.mxu0 0.0
  %805 = vmatprep.subr.mxu0 0.0
  %806 = vmatpush2.msra.mxu0 0.0
  %807 = vmatprep.subr.mxu0 0.0
  %808 = vmatpush2.msra.mxu0 0.0
  %809 = vmatprep.subr.mxu0 0.0
  %810 = vmatpush2.msra.mxu0 0.0
  %811 = vmatprep.subr.mxu0 0.0
  %812 = vmatpush2.msra.mxu0 0.0
  %813 = vmatprep.subr.mxu0 0.0
  %814 = vmatpush2.msra.mxu0 0.0
  %815 = vmatprep.subr.mxu0 0.0
  %816 = vmatpush2.msra.mxu0 0.0
  %817 = vmatprep.subr.mxu0 0.0
  %818 = vmatpush2.msra.mxu0 0.0
  %819 = vmatprep.mubr.f32.mxu0 0.0
  %820 = vmatmul.mubr.f32.gmra.mxu0 %v300
  %v821 = vpop.f32.mrf.mxu0
  %v822 = vadd.f32 0.0, %v821
  %v823 = vpop.f32.mrf.mxu0
  %824 = vmatprep.mubr.f32.mxu0 0.0
  %825 = vmatmul.mubr.f32.gmra.mxu0 %v303
  %v826 = vpop.f32.mrf.mxu0
  %v827 = vadd.f32 0.0, %v826
  %v828 = vpop.f32.mrf.mxu0
  %829 = vdwg.mxu0
  %v830 = vld [vmem:[%s15] sm:$0xf]
  %v831 = vld [vmem:[%s17] sm:$0x1]
  %v832 = vld [vmem:[%s19] sm:$0xf]
  %v833 = vld [vmem:[%s3] sm:$0xff]
  %v834 = vld [vmem:[%s3 + $0x8] sm:$0xff]
  %vm835 = vcmask 7168
  %v837 = vsel %vm835, %v833, 0
  %v840 = vsel %vm835, %v834, 0
  %vm842 = vcmask 1040384
  %v844 = vsel %vm842, %v831, 0
  %846 = vmatprep.subr.mxu0 0.0
  %847 = vmatpush1.msra.mxu0 0.0
  %848 = vmatprep.subr.mxu0 0.0
  %849 = vmatpush1.msra.mxu0 0.0
  %850 = vmatprep.subr.mxu0 0.0
  %851 = vmatpush1.msra.mxu0 0.0
  %852 = vmatprep.subr.mxu0 0.0
  %853 = vmatpush1.msra.mxu0 0.0
  %854 = vmatprep.subr.mxu0 0.0
  %855 = vmatpush1.msra.mxu0 0.0
  %856 = vmatprep.subr.mxu0 0.0
  %857 = vmatpush1.msra.mxu0 0.0
  %858 = vmatprep.subr.mxu0 0.0
  %859 = vmatpush1.msra.mxu0 0.0
  %860 = vmatprep.subr.mxu0 0.0
  %861 = vmatpush1.msra.mxu0 0.0
  %862 = vmatprep.subr.mxu0 0.0
  %863 = vmatpush1.msra.mxu0 0.0
  %864 = vmatprep.subr.mxu0 0.0
  %865 = vmatpush1.msra.mxu0 0.0
  %866 = vmatprep.subr.mxu0 0.0
  %867 = vmatpush1.msra.mxu0 0.0
  %868 = vmatprep.subr.mxu0 0.0
  %869 = vmatpush1.msra.mxu0 0.0
  %870 = vmatprep.subr.mxu0 0.0
  %871 = vmatpush1.msra.mxu0 0.0
  %872 = vmatprep.subr.mxu0 0.0
  %873 = vmatpush1.msra.mxu0 0.0
  %874 = vmatprep.subr.mxu0 0.0
  %875 = vmatpush1.msra.mxu0 0.0
  %876 = vmatprep.subr.mxu0 0.0
  %877 = vmatpush1.msra.mxu0 %v844
  %878 = vmatprep.subr.mxu0 0.0
  %879 = vmatpush2.msra.mxu0 0.0
  %880 = vmatprep.subr.mxu0 0.0
  %881 = vmatpush2.msra.mxu0 0.0
  %882 = vmatprep.subr.mxu0 0.0
  %883 = vmatpush2.msra.mxu0 0.0
  %884 = vmatprep.subr.mxu0 0.0
  %885 = vmatpush2.msra.mxu0 0.0
  %886 = vmatprep.subr.mxu0 0.0
  %887 = vmatpush2.msra.mxu0 0.0
  %888 = vmatprep.subr.mxu0 0.0
  %889 = vmatpush2.msra.mxu0 0.0
  %890 = vmatprep.subr.mxu0 0.0
  %891 = vmatpush2.msra.mxu0 0.0
  %892 = vmatprep.subr.mxu0 0.0
  %893 = vmatpush2.msra.mxu0 0.0
  %894 = vmatprep.subr.mxu0 0.0
  %895 = vmatpush2.msra.mxu0 0.0
  %896 = vmatprep.subr.mxu0 0.0
  %897 = vmatpush2.msra.mxu0 0.0
  %898 = vmatprep.subr.mxu0 0.0
  %899 = vmatpush2.msra.mxu0 0.0
  %900 = vmatprep.subr.mxu0 0.0
  %901 = vmatpush2.msra.mxu0 0.0
  %902 = vmatprep.subr.mxu0 0.0
  %903 = vmatpush2.msra.mxu0 0.0
  %904 = vmatprep.subr.mxu0 0.0
  %905 = vmatpush2.msra.mxu0 0.0
  %906 = vmatprep.subr.mxu0 0.0
  %907 = vmatpush2.msra.mxu0 0.0
  %908 = vmatprep.subr.mxu0 0.0
  %909 = vmatpush2.msra.mxu0 0.0
  %910 = vmatprep.mubr.f32.mxu0 0.0
  %911 = vmatmul.mubr.f32.gmra.mxu0 %v837
  %v912 = vpop.f32.mrf.mxu0
  %v913 = vadd.f32 0.0, %v912
  %v914 = vpop.f32.mrf.mxu0
  %915 = vmatprep.mubr.f32.mxu0 0.0
  %916 = vmatmul.mubr.f32.gmra.mxu0 %v840
  %v917 = vpop.f32.mrf.mxu0
  %v918 = vadd.f32 0.0, %v917
  %v919 = vpop.f32.mrf.mxu0
  %920 = vdwg.mxu0
  %vm921 = vcmask 31744
  %v923 = vsel %vm921, %v447, 0
  %v926 = vsel %vm921, %v452, 0
  %vm928 = vcmask 1043456
  %v930 = vsel %vm928, %v830, 0
  %932 = vmatprep.subr.mxu0 0.0
  %933 = vmatpush1.msra.mxu0 0.0
  %934 = vmatprep.subr.mxu0 0.0
  %935 = vmatpush1.msra.mxu0 0.0
  %936 = vmatprep.subr.mxu0 0.0
  %937 = vmatpush1.msra.mxu0 0.0
  %938 = vmatprep.subr.mxu0 0.0
  %939 = vmatpush1.msra.mxu0 0.0
  %940 = vmatprep.subr.mxu0 0.0
  %941 = vmatpush1.msra.mxu0 0.0
  %942 = vmatprep.subr.mxu0 0.0
  %943 = vmatpush1.msra.mxu0 0.0
  %944 = vmatprep.subr.mxu0 0.0
  %945 = vmatpush1.msra.mxu0 0.0
  %946 = vmatprep.subr.mxu0 0.0
  %947 = vmatpush1.msra.mxu0 0.0
  %948 = vmatprep.subr.mxu0 0.0
  %949 = vmatpush1.msra.mxu0 0.0
  %950 = vmatprep.subr.mxu0 0.0
  %951 = vmatpush1.msra.mxu0 0.0
  %952 = vmatprep.subr.mxu0 0.0
  %953 = vmatpush1.msra.mxu0 0.0
  %954 = vmatprep.subr.mxu0 0.0
  %955 = vmatpush1.msra.mxu0 0.0
  %956 = vmatprep.subr.mxu0 0.0
  %957 = vmatpush1.msra.mxu0 0.0
  %958 = vmatprep.subr.mxu0 0.0
  %959 = vmatpush1.msra.mxu0 0.0
  %960 = vmatprep.subr.mxu0 0.0
  %961 = vmatpush1.msra.mxu0 0.0
  %962 = vmatprep.subr.mxu0 0.0
  %963 = vmatpush1.msra.mxu0 %v930
  %964 = vmatprep.subr.mxu0 0.0
  %965 = vmatpush2.msra.mxu0 0.0
  %966 = vmatprep.subr.mxu0 0.0
  %967 = vmatpush2.msra.mxu0 0.0
  %968 = vmatprep.subr.mxu0 0.0
  %969 = vmatpush2.msra.mxu0 0.0
  %970 = vmatprep.subr.mxu0 0.0
  %971 = vmatpush2.msra.mxu0 0.0
  %972 = vmatprep.subr.mxu0 0.0
  %973 = vmatpush2.msra.mxu0 0.0
  %974 = vmatprep.subr.mxu0 0.0
  %975 = vmatpush2.msra.mxu0 0.0
  %976 = vmatprep.subr.mxu0 0.0
  %977 = vmatpush2.msra.mxu0 0.0
  %978 = vmatprep.subr.mxu0 0.0
  %979 = vmatpush2.msra.mxu0 0.0
  %980 = vmatprep.subr.mxu0 0.0
  %981 = vmatpush2.msra.mxu0 0.0
  %982 = vmatprep.subr.mxu0 0.0
  %983 = vmatpush2.msra.mxu0 0.0
  %984 = vmatprep.subr.mxu0 0.0
  %985 = vmatpush2.msra.mxu0 0.0
  %986 = vmatprep.subr.mxu0 0.0
  %987 = vmatpush2.msra.mxu0 0.0
  %988 = vmatprep.subr.mxu0 0.0
  %989 = vmatpush2.msra.mxu0 0.0
  %990 = vmatprep.subr.mxu0 0.0
  %991 = vmatpush2.msra.mxu0 0.0
  %992 = vmatprep.subr.mxu0 0.0
  %993 = vmatpush2.msra.mxu0 0.0
  %994 = vmatprep.subr.mxu0 0.0
  %995 = vmatpush2.msra.mxu0 0.0
  %996 = vmatprep.mubr.f32.mxu0 0.0
  %997 = vmatmul.mubr.f32.gmra.mxu0 %v923
  %v998 = vpop.f32.mrf.mxu0
  %v999 = vadd.f32 %v913, %v998
  %v1000 = vpop.f32.mrf.mxu0
  %1001 = vmatprep.mubr.f32.mxu0 0.0
  %1002 = vmatmul.mubr.f32.gmra.mxu0 %v926
  %v1003 = vpop.f32.mrf.mxu0
  %v1004 = vadd.f32 %v918, %v1003
  %v1005 = vpop.f32.mrf.mxu0
  %1006 = vdwg.mxu0
  %v1008 = vsel %vm921, %v672, 0
  %v1011 = vsel %vm921, %v677, 0
  %v1014 = vsel %vm928, %v832, 0
  %1016 = vmatprep.subr.mxu0 0.0
  %1017 = vmatpush1.msra.mxu0 0.0
  %1018 = vmatprep.subr.mxu0 0.0
  %1019 = vmatpush1.msra.mxu0 0.0
  %1020 = vmatprep.subr.mxu0 0.0
  %1021 = vmatpush1.msra.mxu0 0.0
  %1022 = vmatprep.subr.mxu0 0.0
  %1023 = vmatpush1.msra.mxu0 0.0
  %1024 = vmatprep.subr.mxu0 0.0
  %1025 = vmatpush1.msra.mxu0 0.0
  %1026 = vmatprep.subr.mxu0 0.0
  %1027 = vmatpush1.msra.mxu0 0.0
  %1028 = vmatprep.subr.mxu0 0.0
  %1029 = vmatpush1.msra.mxu0 0.0
  %1030 = vmatprep.subr.mxu0 0.0
  %1031 = vmatpush1.msra.mxu0 0.0
  %1032 = vmatprep.subr.mxu0 0.0
  %1033 = vmatpush1.msra.mxu0 0.0
  %1034 = vmatprep.subr.mxu0 0.0
  %1035 = vmatpush1.msra.mxu0 0.0
  %1036 = vmatprep.subr.mxu0 0.0
  %1037 = vmatpush1.msra.mxu0 0.0
  %1038 = vmatprep.subr.mxu0 0.0
  %1039 = vmatpush1.msra.mxu0 0.0
  %1040 = vmatprep.subr.mxu0 0.0
  %1041 = vmatpush1.msra.mxu0 0.0
  %1042 = vmatprep.subr.mxu0 0.0
  %1043 = vmatpush1.msra.mxu0 0.0
  %1044 = vmatprep.subr.mxu0 0.0
  %1045 = vmatpush1.msra.mxu0 0.0
  %1046 = vmatprep.subr.mxu0 0.0
  %1047 = vmatpush1.msra.mxu0 %v1014
  %1048 = vmatprep.subr.mxu0 0.0
  %1049 = vmatpush2.msra.mxu0 0.0
  %1050 = vmatprep.subr.mxu0 0.0
  %1051 = vmatpush2.msra.mxu0 0.0
  %1052 = vmatprep.subr.mxu0 0.0
  %1053 = vmatpush2.msra.mxu0 0.0
  %1054 = vmatprep.subr.mxu0 0.0
  %1055 = vmatpush2.msra.mxu0 0.0
  %1056 = vmatprep.subr.mxu0 0.0
  %1057 = vmatpush2.msra.mxu0 0.0
  %1058 = vmatprep.subr.mxu0 0.0
  %1059 = vmatpush2.msra.mxu0 0.0
  %1060 = vmatprep.subr.mxu0 0.0
  %1061 = vmatpush2.msra.mxu0 0.0
  %1062 = vmatprep.subr.mxu0 0.0
  %1063 = vmatpush2.msra.mxu0 0.0
  %1064 = vmatprep.subr.mxu0 0.0
  %1065 = vmatpush2.msra.mxu0 0.0
  %1066 = vmatprep.subr.mxu0 0.0
  %1067 = vmatpush2.msra.mxu0 0.0
  %1068 = vmatprep.subr.mxu0 0.0
  %1069 = vmatpush2.msra.mxu0 0.0
  %1070 = vmatprep.subr.mxu0 0.0
  %1071 = vmatpush2.msra.mxu0 0.0
  %1072 = vmatprep.subr.mxu0 0.0
  %1073 = vmatpush2.msra.mxu0 0.0
  %1074 = vmatprep.subr.mxu0 0.0
  %1075 = vmatpush2.msra.mxu0 0.0
  %1076 = vmatprep.subr.mxu0 0.0
  %1077 = vmatpush2.msra.mxu0 0.0
  %1078 = vmatprep.subr.mxu0 0.0
  %1079 = vmatpush2.msra.mxu0 0.0
  %1080 = vmatprep.mubr.f32.mxu0 0.0
  %1081 = vmatmul.mubr.f32.gmra.mxu0 %v1008
  %v1082 = vpop.f32.mrf.mxu0
  %v1083 = vadd.f32 0.0, %v1082
  %v1084 = vpop.f32.mrf.mxu0
  %1085 = vmatprep.mubr.f32.mxu0 0.0
  %1086 = vmatmul.mubr.f32.gmra.mxu0 %v1011
  %v1087 = vpop.f32.mrf.mxu0
  %v1088 = vadd.f32 0.0, %v1087
  %v1089 = vpop.f32.mrf.mxu0
  %1090 = vdwg.mxu0
  %v1091 = vadd.f32 %v999, %v1083
  %v1092 = vadd.f32 %v1004, %v1088
  %s1093 = scalar_lea.vmem %s3, 16
  %v1094 = vld [vmem:[%s1093] sm:$0xff]
  %v1095 = vld [vmem:[%s1093 + $0x8] sm:$0xff]
  %v1097 = vsel %vm835, %v1094, 0
  %v1100 = vsel %vm835, %v1095, 0
  %1102 = vmatprep.subr.mxu0 0.0
  %1103 = vmatpush1.msra.mxu0 0.0
  %1104 = vmatprep.subr.mxu0 0.0
  %1105 = vmatpush1.msra.mxu0 0.0
  %1106 = vmatprep.subr.mxu0 0.0
  %1107 = vmatpush1.msra.mxu0 0.0
  %1108 = vmatprep.subr.mxu0 0.0
  %1109 = vmatpush1.msra.mxu0 0.0
  %1110 = vmatprep.subr.mxu0 0.0
  %1111 = vmatpush1.msra.mxu0 0.0
  %1112 = vmatprep.subr.mxu0 0.0
  %1113 = vmatpush1.msra.mxu0 0.0
  %1114 = vmatprep.subr.mxu0 0.0
  %1115 = vmatpush1.msra.mxu0 0.0
  %1116 = vmatprep.subr.mxu0 0.0
  %1117 = vmatpush1.msra.mxu0 0.0
  %1118 = vmatprep.subr.mxu0 0.0
  %1119 = vmatpush1.msra.mxu0 0.0
  %1120 = vmatprep.subr.mxu0 0.0
  %1121 = vmatpush1.msra.mxu0 0.0
  %1122 = vmatprep.subr.mxu0 0.0
  %1123 = vmatpush1.msra.mxu0 0.0
  %1124 = vmatprep.subr.mxu0 0.0
  %1125 = vmatpush1.msra.mxu0 0.0
  %1126 = vmatprep.subr.mxu0 0.0
  %1127 = vmatpush1.msra.mxu0 0.0
  %1128 = vmatprep.subr.mxu0 0.0
  %1129 = vmatpush1.msra.mxu0 0.0
  %1130 = vmatprep.subr.mxu0 0.0
  %1131 = vmatpush1.msra.mxu0 0.0
  %1132 = vmatprep.subr.mxu0 0.0
  %1133 = vmatpush1.msra.mxu0 %v844
  %1134 = vmatprep.subr.mxu0 0.0
  %1135 = vmatpush2.msra.mxu0 0.0
  %1136 = vmatprep.subr.mxu0 0.0
  %1137 = vmatpush2.msra.mxu0 0.0
  %1138 = vmatprep.subr.mxu0 0.0
  %1139 = vmatpush2.msra.mxu0 0.0
  %1140 = vmatprep.subr.mxu0 0.0
  %1141 = vmatpush2.msra.mxu0 0.0
  %1142 = vmatprep.subr.mxu0 0.0
  %1143 = vmatpush2.msra.mxu0 0.0
  %1144 = vmatprep.subr.mxu0 0.0
  %1145 = vmatpush2.msra.mxu0 0.0
  %1146 = vmatprep.subr.mxu0 0.0
  %1147 = vmatpush2.msra.mxu0 0.0
  %1148 = vmatprep.subr.mxu0 0.0
  %1149 = vmatpush2.msra.mxu0 0.0
  %1150 = vmatprep.subr.mxu0 0.0
  %1151 = vmatpush2.msra.mxu0 0.0
  %1152 = vmatprep.subr.mxu0 0.0
  %1153 = vmatpush2.msra.mxu0 0.0
  %1154 = vmatprep.subr.mxu0 0.0
  %1155 = vmatpush2.msra.mxu0 0.0
  %1156 = vmatprep.subr.mxu0 0.0
  %1157 = vmatpush2.msra.mxu0 0.0
  %1158 = vmatprep.subr.mxu0 0.0
  %1159 = vmatpush2.msra.mxu0 0.0
  %1160 = vmatprep.subr.mxu0 0.0
  %1161 = vmatpush2.msra.mxu0 0.0
  %1162 = vmatprep.subr.mxu0 0.0
  %1163 = vmatpush2.msra.mxu0 0.0
  %1164 = vmatprep.subr.mxu0 0.0
  %1165 = vmatpush2.msra.mxu0 0.0
  %1166 = vmatprep.mubr.f32.mxu0 0.0
  %1167 = vmatmul.mubr.f32.gmra.mxu0 %v1097
  %v1168 = vpop.f32.mrf.mxu0
  %v1169 = vadd.f32 0.0, %v1168
  %v1170 = vpop.f32.mrf.mxu0
  %1171 = vmatprep.mubr.f32.mxu0 0.0
  %1172 = vmatmul.mubr.f32.gmra.mxu0 %v1100
  %v1173 = vpop.f32.mrf.mxu0
  %v1174 = vadd.f32 0.0, %v1173
  %v1175 = vpop.f32.mrf.mxu0
  %1176 = vdwg.mxu0
  %v1178 = vsel %vm921, %v522, 0
  %v1181 = vsel %vm921, %v527, 0
  %1183 = vmatprep.subr.mxu0 0.0
  %1184 = vmatpush1.msra.mxu0 0.0
  %1185 = vmatprep.subr.mxu0 0.0
  %1186 = vmatpush1.msra.mxu0 0.0
  %1187 = vmatprep.subr.mxu0 0.0
  %1188 = vmatpush1.msra.mxu0 0.0
  %1189 = vmatprep.subr.mxu0 0.0
  %1190 = vmatpush1.msra.mxu0 0.0
  %1191 = vmatprep.subr.mxu0 0.0
  %1192 = vmatpush1.msra.mxu0 0.0
  %1193 = vmatprep.subr.mxu0 0.0
  %1194 = vmatpush1.msra.mxu0 0.0
  %1195 = vmatprep.subr.mxu0 0.0
  %1196 = vmatpush1.msra.mxu0 0.0
  %1197 = vmatprep.subr.mxu0 0.0
  %1198 = vmatpush1.msra.mxu0 0.0
  %1199 = vmatprep.subr.mxu0 0.0
  %1200 = vmatpush1.msra.mxu0 0.0
  %1201 = vmatprep.subr.mxu0 0.0
  %1202 = vmatpush1.msra.mxu0 0.0
  %1203 = vmatprep.subr.mxu0 0.0
  %1204 = vmatpush1.msra.mxu0 0.0
  %1205 = vmatprep.subr.mxu0 0.0
  %1206 = vmatpush1.msra.mxu0 0.0
  %1207 = vmatprep.subr.mxu0 0.0
  %1208 = vmatpush1.msra.mxu0 0.0
  %1209 = vmatprep.subr.mxu0 0.0
  %1210 = vmatpush1.msra.mxu0 0.0
  %1211 = vmatprep.subr.mxu0 0.0
  %1212 = vmatpush1.msra.mxu0 0.0
  %1213 = vmatprep.subr.mxu0 0.0
  %1214 = vmatpush1.msra.mxu0 %v930
  %1215 = vmatprep.subr.mxu0 0.0
  %1216 = vmatpush2.msra.mxu0 0.0
  %1217 = vmatprep.subr.mxu0 0.0
  %1218 = vmatpush2.msra.mxu0 0.0
  %1219 = vmatprep.subr.mxu0 0.0
  %1220 = vmatpush2.msra.mxu0 0.0
  %1221 = vmatprep.subr.mxu0 0.0
  %1222 = vmatpush2.msra.mxu0 0.0
  %1223 = vmatprep.subr.mxu0 0.0
  %1224 = vmatpush2.msra.mxu0 0.0
  %1225 = vmatprep.subr.mxu0 0.0
  %1226 = vmatpush2.msra.mxu0 0.0
  %1227 = vmatprep.subr.mxu0 0.0
  %1228 = vmatpush2.msra.mxu0 0.0
  %1229 = vmatprep.subr.mxu0 0.0
  %1230 = vmatpush2.msra.mxu0 0.0
  %1231 = vmatprep.subr.mxu0 0.0
  %1232 = vmatpush2.msra.mxu0 0.0
  %1233 = vmatprep.subr.mxu0 0.0
  %1234 = vmatpush2.msra.mxu0 0.0
  %1235 = vmatprep.subr.mxu0 0.0
  %1236 = vmatpush2.msra.mxu0 0.0
  %1237 = vmatprep.subr.mxu0 0.0
  %1238 = vmatpush2.msra.mxu0 0.0
  %1239 = vmatprep.subr.mxu0 0.0
  %1240 = vmatpush2.msra.mxu0 0.0
  %1241 = vmatprep.subr.mxu0 0.0
  %1242 = vmatpush2.msra.mxu0 0.0
  %1243 = vmatprep.subr.mxu0 0.0
  %1244 = vmatpush2.msra.mxu0 0.0
  %1245 = vmatprep.subr.mxu0 0.0
  %1246 = vmatpush2.msra.mxu0 0.0
  %1247 = vmatprep.mubr.f32.mxu0 0.0
  %1248 = vmatmul.mubr.f32.gmra.mxu0 %v1178
  %v1249 = vpop.f32.mrf.mxu0
  %v1250 = vadd.f32 %v1169, %v1249
  %v1251 = vpop.f32.mrf.mxu0
  %1252 = vmatprep.mubr.f32.mxu0 0.0
  %1253 = vmatmul.mubr.f32.gmra.mxu0 %v1181
  %v1254 = vpop.f32.mrf.mxu0
  %v1255 = vadd.f32 %v1174, %v1254
  %v1256 = vpop.f32.mrf.mxu0
  %1257 = vdwg.mxu0
  %v1259 = vsel %vm921, %v747, 0
  %v1262 = vsel %vm921, %v752, 0
  %1264 = vmatprep.subr.mxu0 0.0
  %1265 = vmatpush1.msra.mxu0 0.0
  %1266 = vmatprep.subr.mxu0 0.0
  %1267 = vmatpush1.msra.mxu0 0.0
  %1268 = vmatprep.subr.mxu0 0.0
  %1269 = vmatpush1.msra.mxu0 0.0
  %1270 = vmatprep.subr.mxu0 0.0
  %1271 = vmatpush1.msra.mxu0 0.0
  %1272 = vmatprep.subr.mxu0 0.0
  %1273 = vmatpush1.msra.mxu0 0.0
  %1274 = vmatprep.subr.mxu0 0.0
  %1275 = vmatpush1.msra.mxu0 0.0
  %1276 = vmatprep.subr.mxu0 0.0
  %1277 = vmatpush1.msra.mxu0 0.0
  %1278 = vmatprep.subr.mxu0 0.0
  %1279 = vmatpush1.msra.mxu0 0.0
  %1280 = vmatprep.subr.mxu0 0.0
  %1281 = vmatpush1.msra.mxu0 0.0
  %1282 = vmatprep.subr.mxu0 0.0
  %1283 = vmatpush1.msra.mxu0 0.0
  %1284 = vmatprep.subr.mxu0 0.0
  %1285 = vmatpush1.msra.mxu0 0.0
  %1286 = vmatprep.subr.mxu0 0.0
  %1287 = vmatpush1.msra.mxu0 0.0
  %1288 = vmatprep.subr.mxu0 0.0
  %1289 = vmatpush1.msra.mxu0 0.0
  %1290 = vmatprep.subr.mxu0 0.0
  %1291 = vmatpush1.msra.mxu0 0.0
  %1292 = vmatprep.subr.mxu0 0.0
  %1293 = vmatpush1.msra.mxu0 0.0
  %1294 = vmatprep.subr.mxu0 0.0
  %1295 = vmatpush1.msra.mxu0 %v1014
  %1296 = vmatprep.subr.mxu0 0.0
  %1297 = vmatpush2.msra.mxu0 0.0
  %1298 = vmatprep.subr.mxu0 0.0
  %1299 = vmatpush2.msra.mxu0 0.0
  %1300 = vmatprep.subr.mxu0 0.0
  %1301 = vmatpush2.msra.mxu0 0.0
  %1302 = vmatprep.subr.mxu0 0.0
  %1303 = vmatpush2.msra.mxu0 0.0
  %1304 = vmatprep.subr.mxu0 0.0
  %1305 = vmatpush2.msra.mxu0 0.0
  %1306 = vmatprep.subr.mxu0 0.0
  %1307 = vmatpush2.msra.mxu0 0.0
  %1308 = vmatprep.subr.mxu0 0.0
  %1309 = vmatpush2.msra.mxu0 0.0
  %1310 = vmatprep.subr.mxu0 0.0
  %1311 = vmatpush2.msra.mxu0 0.0
  %1312 = vmatprep.subr.mxu0 0.0
  %1313 = vmatpush2.msra.mxu0 0.0
  %1314 = vmatprep.subr.mxu0 0.0
  %1315 = vmatpush2.msra.mxu0 0.0
  %1316 = vmatprep.subr.mxu0 0.0
  %1317 = vmatpush2.msra.mxu0 0.0
  %1318 = vmatprep.subr.mxu0 0.0
  %1319 = vmatpush2.msra.mxu0 0.0
  %1320 = vmatprep.subr.mxu0 0.0
  %1321 = vmatpush2.msra.mxu0 0.0
  %1322 = vmatprep.subr.mxu0 0.0
  %1323 = vmatpush2.msra.mxu0 0.0
  %1324 = vmatprep.subr.mxu0 0.0
  %1325 = vmatpush2.msra.mxu0 0.0
  %1326 = vmatprep.subr.mxu0 0.0
  %1327 = vmatpush2.msra.mxu0 0.0
  %1328 = vmatprep.mubr.f32.mxu0 0.0
  %1329 = vmatmul.mubr.f32.gmra.mxu0 %v1259
  %v1330 = vpop.f32.mrf.mxu0
  %v1331 = vadd.f32 0.0, %v1330
  %v1332 = vpop.f32.mrf.mxu0
  %1333 = vmatprep.mubr.f32.mxu0 0.0
  %1334 = vmatmul.mubr.f32.gmra.mxu0 %v1262
  %v1335 = vpop.f32.mrf.mxu0
  %v1336 = vadd.f32 0.0, %v1335
  %v1337 = vpop.f32.mrf.mxu0
  %1338 = vdwg.mxu0
  %v1339 = vadd.f32 %v1250, %v1331
  %v1340 = vadd.f32 %v1255, %v1336
  %s1341 = scalar_lea.vmem %s3, 32
  %v1342 = vld [vmem:[%s1341] sm:$0xff]
  %v1343 = vld [vmem:[%s1341 + $0x8] sm:$0xff]
  %v1345 = vsel %vm835, %v1342, 0
  %v1348 = vsel %vm835, %v1343, 0
  %1350 = vmatprep.subr.mxu0 0.0
  %1351 = vmatpush1.msra.mxu0 0.0
  %1352 = vmatprep.subr.mxu0 0.0
  %1353 = vmatpush1.msra.mxu0 0.0
  %1354 = vmatprep.subr.mxu0 0.0
  %1355 = vmatpush1.msra.mxu0 0.0
  %1356 = vmatprep.subr.mxu0 0.0
  %1357 = vmatpush1.msra.mxu0 0.0
  %1358 = vmatprep.subr.mxu0 0.0
  %1359 = vmatpush1.msra.mxu0 0.0
  %1360 = vmatprep.subr.mxu0 0.0
  %1361 = vmatpush1.msra.mxu0 0.0
  %1362 = vmatprep.subr.mxu0 0.0
  %1363 = vmatpush1.msra.mxu0 0.0
  %1364 = vmatprep.subr.mxu0 0.0
  %1365 = vmatpush1.msra.mxu0 0.0
  %1366 = vmatprep.subr.mxu0 0.0
  %1367 = vmatpush1.msra.mxu0 0.0
  %1368 = vmatprep.subr.mxu0 0.0
  %1369 = vmatpush1.msra.mxu0 0.0
  %1370 = vmatprep.subr.mxu0 0.0
  %1371 = vmatpush1.msra.mxu0 0.0
  %1372 = vmatprep.subr.mxu0 0.0
  %1373 = vmatpush1.msra.mxu0 0.0
  %1374 = vmatprep.subr.mxu0 0.0
  %1375 = vmatpush1.msra.mxu0 0.0
  %1376 = vmatprep.subr.mxu0 0.0
  %1377 = vmatpush1.msra.mxu0 0.0
  %1378 = vmatprep.subr.mxu0 0.0
  %1379 = vmatpush1.msra.mxu0 0.0
  %1380 = vmatprep.subr.mxu0 0.0
  %1381 = vmatpush1.msra.mxu0 %v844
  %1382 = vmatprep.subr.mxu0 0.0
  %1383 = vmatpush2.msra.mxu0 0.0
  %1384 = vmatprep.subr.mxu0 0.0
  %1385 = vmatpush2.msra.mxu0 0.0
  %1386 = vmatprep.subr.mxu0 0.0
  %1387 = vmatpush2.msra.mxu0 0.0
  %1388 = vmatprep.subr.mxu0 0.0
  %1389 = vmatpush2.msra.mxu0 0.0
  %1390 = vmatprep.subr.mxu0 0.0
  %1391 = vmatpush2.msra.mxu0 0.0
  %1392 = vmatprep.subr.mxu0 0.0
  %1393 = vmatpush2.msra.mxu0 0.0
  %1394 = vmatprep.subr.mxu0 0.0
  %1395 = vmatpush2.msra.mxu0 0.0
  %1396 = vmatprep.subr.mxu0 0.0
  %1397 = vmatpush2.msra.mxu0 0.0
  %1398 = vmatprep.subr.mxu0 0.0
  %1399 = vmatpush2.msra.mxu0 0.0
  %1400 = vmatprep.subr.mxu0 0.0
  %1401 = vmatpush2.msra.mxu0 0.0
  %1402 = vmatprep.subr.mxu0 0.0
  %1403 = vmatpush2.msra.mxu0 0.0
  %1404 = vmatprep.subr.mxu0 0.0
  %1405 = vmatpush2.msra.mxu0 0.0
  %1406 = vmatprep.subr.mxu0 0.0
  %1407 = vmatpush2.msra.mxu0 0.0
  %1408 = vmatprep.subr.mxu0 0.0
  %1409 = vmatpush2.msra.mxu0 0.0
  %1410 = vmatprep.subr.mxu0 0.0
  %1411 = vmatpush2.msra.mxu0 0.0
  %1412 = vmatprep.subr.mxu0 0.0
  %1413 = vmatpush2.msra.mxu0 0.0
  %1414 = vmatprep.mubr.f32.mxu0 0.0
  %1415 = vmatmul.mubr.f32.gmra.mxu0 %v1345
  %v1416 = vpop.f32.mrf.mxu0
  %v1417 = vadd.f32 0.0, %v1416
  %v1418 = vpop.f32.mrf.mxu0
  %1419 = vmatprep.mubr.f32.mxu0 0.0
  %1420 = vmatmul.mubr.f32.gmra.mxu0 %v1348
  %v1421 = vpop.f32.mrf.mxu0
  %v1422 = vadd.f32 0.0, %v1421
  %v1423 = vpop.f32.mrf.mxu0
  %1424 = vdwg.mxu0
  %v1426 = vsel %vm921, %v597, 0
  %v1429 = vsel %vm921, %v602, 0
  %1431 = vmatprep.subr.mxu0 0.0
  %1432 = vmatpush1.msra.mxu0 0.0
  %1433 = vmatprep.subr.mxu0 0.0
  %1434 = vmatpush1.msra.mxu0 0.0
  %1435 = vmatprep.subr.mxu0 0.0
  %1436 = vmatpush1.msra.mxu0 0.0
  %1437 = vmatprep.subr.mxu0 0.0
  %1438 = vmatpush1.msra.mxu0 0.0
  %1439 = vmatprep.subr.mxu0 0.0
  %1440 = vmatpush1.msra.mxu0 0.0
  %1441 = vmatprep.subr.mxu0 0.0
  %1442 = vmatpush1.msra.mxu0 0.0
  %1443 = vmatprep.subr.mxu0 0.0
  %1444 = vmatpush1.msra.mxu0 0.0
  %1445 = vmatprep.subr.mxu0 0.0
  %1446 = vmatpush1.msra.mxu0 0.0
  %1447 = vmatprep.subr.mxu0 0.0
  %1448 = vmatpush1.msra.mxu0 0.0
  %1449 = vmatprep.subr.mxu0 0.0
  %1450 = vmatpush1.msra.mxu0 0.0
  %1451 = vmatprep.subr.mxu0 0.0
  %1452 = vmatpush1.msra.mxu0 0.0
  %1453 = vmatprep.subr.mxu0 0.0
  %1454 = vmatpush1.msra.mxu0 0.0
  %1455 = vmatprep.subr.mxu0 0.0
  %1456 = vmatpush1.msra.mxu0 0.0
  %1457 = vmatprep.subr.mxu0 0.0
  %1458 = vmatpush1.msra.mxu0 0.0
  %1459 = vmatprep.subr.mxu0 0.0
  %1460 = vmatpush1.msra.mxu0 0.0
  %1461 = vmatprep.subr.mxu0 0.0
  %1462 = vmatpush1.msra.mxu0 %v930
  %1463 = vmatprep.subr.mxu0 0.0
  %1464 = vmatpush2.msra.mxu0 0.0
  %1465 = vmatprep.subr.mxu0 0.0
  %1466 = vmatpush2.msra.mxu0 0.0
  %1467 = vmatprep.subr.mxu0 0.0
  %1468 = vmatpush2.msra.mxu0 0.0
  %1469 = vmatprep.subr.mxu0 0.0
  %1470 = vmatpush2.msra.mxu0 0.0
  %1471 = vmatprep.subr.mxu0 0.0
  %1472 = vmatpush2.msra.mxu0 0.0
  %1473 = vmatprep.subr.mxu0 0.0
  %1474 = vmatpush2.msra.mxu0 0.0
  %1475 = vmatprep.subr.mxu0 0.0
  %1476 = vmatpush2.msra.mxu0 0.0
  %1477 = vmatprep.subr.mxu0 0.0
  %1478 = vmatpush2.msra.mxu0 0.0
  %1479 = vmatprep.subr.mxu0 0.0
  %1480 = vmatpush2.msra.mxu0 0.0
  %1481 = vmatprep.subr.mxu0 0.0
  %1482 = vmatpush2.msra.mxu0 0.0
  %1483 = vmatprep.subr.mxu0 0.0
  %1484 = vmatpush2.msra.mxu0 0.0
  %1485 = vmatprep.subr.mxu0 0.0
  %1486 = vmatpush2.msra.mxu0 0.0
  %1487 = vmatprep.subr.mxu0 0.0
  %1488 = vmatpush2.msra.mxu0 0.0
  %1489 = vmatprep.subr.mxu0 0.0
  %1490 = vmatpush2.msra.mxu0 0.0
  %1491 = vmatprep.subr.mxu0 0.0
  %1492 = vmatpush2.msra.mxu0 0.0
  %1493 = vmatprep.subr.mxu0 0.0
  %1494 = vmatpush2.msra.mxu0 0.0
  %1495 = vmatprep.mubr.f32.mxu0 0.0
  %1496 = vmatmul.mubr.f32.gmra.mxu0 %v1426
  %v1497 = vpop.f32.mrf.mxu0
  %v1498 = vadd.f32 %v1417, %v1497
  %v1499 = vpop.f32.mrf.mxu0
  %1500 = vmatprep.mubr.f32.mxu0 0.0
  %1501 = vmatmul.mubr.f32.gmra.mxu0 %v1429
  %v1502 = vpop.f32.mrf.mxu0
  %v1503 = vadd.f32 %v1422, %v1502
  %v1504 = vpop.f32.mrf.mxu0
  %1505 = vdwg.mxu0
  %v1507 = vsel %vm921, %v822, 0
  %v1510 = vsel %vm921, %v827, 0
  %1512 = vmatprep.subr.mxu0 0.0
  %1513 = vmatpush1.msra.mxu0 0.0
  %1514 = vmatprep.subr.mxu0 0.0
  %1515 = vmatpush1.msra.mxu0 0.0
  %1516 = vmatprep.subr.mxu0 0.0
  %1517 = vmatpush1.msra.mxu0 0.0
  %1518 = vmatprep.subr.mxu0 0.0
  %1519 = vmatpush1.msra.mxu0 0.0
  %1520 = vmatprep.subr.mxu0 0.0
  %1521 = vmatpush1.msra.mxu0 0.0
  %1522 = vmatprep.subr.mxu0 0.0
  %1523 = vmatpush1.msra.mxu0 0.0
  %1524 = vmatprep.subr.mxu0 0.0
  %1525 = vmatpush1.msra.mxu0 0.0
  %1526 = vmatprep.subr.mxu0 0.0
  %1527 = vmatpush1.msra.mxu0 0.0
  %1528 = vmatprep.subr.mxu0 0.0
  %1529 = vmatpush1.msra.mxu0 0.0
  %1530 = vmatprep.subr.mxu0 0.0
  %1531 = vmatpush1.msra.mxu0 0.0
  %1532 = vmatprep.subr.mxu0 0.0
  %1533 = vmatpush1.msra.mxu0 0.0
  %1534 = vmatprep.subr.mxu0 0.0
  %1535 = vmatpush1.msra.mxu0 0.0
  %1536 = vmatprep.subr.mxu0 0.0
  %1537 = vmatpush1.msra.mxu0 0.0
  %1538 = vmatprep.subr.mxu0 0.0
  %1539 = vmatpush1.msra.mxu0 0.0
  %1540 = vmatprep.subr.mxu0 0.0
  %1541 = vmatpush1.msra.mxu0 0.0
  %1542 = vmatprep.subr.mxu0 0.0
  %1543 = vmatpush1.msra.mxu0 %v1014
  %1544 = vmatprep.subr.mxu0 0.0
  %1545 = vmatpush2.msra.mxu0 0.0
  %1546 = vmatprep.subr.mxu0 0.0
  %1547 = vmatpush2.msra.mxu0 0.0
  %1548 = vmatprep.subr.mxu0 0.0
  %1549 = vmatpush2.msra.mxu0 0.0
  %1550 = vmatprep.subr.mxu0 0.0
  %1551 = vmatpush2.msra.mxu0 0.0
  %1552 = vmatprep.subr.mxu0 0.0
  %1553 = vmatpush2.msra.mxu0 0.0
  %1554 = vmatprep.subr.mxu0 0.0
  %1555 = vmatpush2.msra.mxu0 0.0
  %1556 = vmatprep.subr.mxu0 0.0
  %1557 = vmatpush2.msra.mxu0 0.0
  %1558 = vmatprep.subr.mxu0 0.0
  %1559 = vmatpush2.msra.mxu0 0.0
  %1560 = vmatprep.subr.mxu0 0.0
  %1561 = vmatpush2.msra.mxu0 0.0
  %1562 = vmatprep.subr.mxu0 0.0
  %1563 = vmatpush2.msra.mxu0 0.0
  %1564 = vmatprep.subr.mxu0 0.0
  %1565 = vmatpush2.msra.mxu0 0.0
  %1566 = vmatprep.subr.mxu0 0.0
  %1567 = vmatpush2.msra.mxu0 0.0
  %1568 = vmatprep.subr.mxu0 0.0
  %1569 = vmatpush2.msra.mxu0 0.0
  %1570 = vmatprep.subr.mxu0 0.0
  %1571 = vmatpush2.msra.mxu0 0.0
  %1572 = vmatprep.subr.mxu0 0.0
  %1573 = vmatpush2.msra.mxu0 0.0
  %1574 = vmatprep.subr.mxu0 0.0
  %1575 = vmatpush2.msra.mxu0 0.0
  %1576 = vmatprep.mubr.f32.mxu0 0.0
  %1577 = vmatmul.mubr.f32.gmra.mxu0 %v1507
  %v1578 = vpop.f32.mrf.mxu0
  %v1579 = vadd.f32 0.0, %v1578
  %v1580 = vpop.f32.mrf.mxu0
  %1581 = vmatprep.mubr.f32.mxu0 0.0
  %1582 = vmatmul.mubr.f32.gmra.mxu0 %v1510
  %v1583 = vpop.f32.mrf.mxu0
  %v1584 = vadd.f32 0.0, %v1583
  %v1585 = vpop.f32.mrf.mxu0
  %1586 = vdwg.mxu0
  %v1587 = vadd.f32 %v1498, %v1579
  %v1588 = vadd.f32 %v1503, %v1584
  %v1589 = vld [vmem:[%s21] sm:$0xff]
  %v1590 = vld [vmem:[%s21 + $0x8] sm:$0xff]
  %v1591 = vld [vmem:[%s21 + $0x10] sm:$0xff]
  %v1592 = vld [vmem:[%s21 + $0x18] sm:$0xff]
  %v1593 = vld [vmem:[%s1] sm:$0xff]
  %v1594 = vld [vmem:[%s1 + $0x8] sm:$0xff]
  %v1595 = vld [vmem:[%s23] sm:$0xff]
  %v1596 = vld [vmem:[%s23 + $0x8] sm:$0xff]
  %v1597 = vld [vmem:[%s23 + $0x10] sm:$0xff]
  %v1598 = vld [vmem:[%s23 + $0x18] sm:$0xff]
  %vm1599 = vcmask 261120
  %v1601 = vsel %vm1599, %v1593, 0
  %v1604 = vsel %vm1599, %v1594, 0
  %1606 = vmatprep.subr.mxu0 0.0
  %1607 = vmatpush1.msra.mxu0 0.0
  %1608 = vmatprep.subr.mxu0 0.0
  %1609 = vmatpush1.msra.mxu0 0.0
  %1610 = vmatprep.subr.mxu0 0.0
  %1611 = vmatpush1.msra.mxu0 0.0
  %1612 = vmatprep.subr.mxu0 0.0
  %1613 = vmatpush1.msra.mxu0 0.0
  %1614 = vmatprep.subr.mxu0 0.0
  %1615 = vmatpush1.msra.mxu0 0.0
  %1616 = vmatprep.subr.mxu0 0.0
  %1617 = vmatpush1.msra.mxu0 0.0
  %1618 = vmatprep.subr.mxu0 0.0
  %1619 = vmatpush1.msra.mxu0 0.0
  %1620 = vmatprep.subr.mxu0 0.0
  %1621 = vmatpush1.msra.mxu0 0.0
  %1622 = vmatprep.subr.mxu0 0.0
  %1623 = vmatpush1.msra.mxu0 0.0
  %1624 = vmatprep.subr.mxu0 0.0
  %1625 = vmatpush1.msra.mxu0 0.0
  %1626 = vmatprep.subr.mxu0 0.0
  %1627 = vmatpush1.msra.mxu0 0.0
  %1628 = vmatprep.subr.mxu0 0.0
  %1629 = vmatpush1.msra.mxu0 0.0
  %1630 = vmatprep.subr.mxu0 0.0
  %1631 = vmatpush1.msra.mxu0 %v1598
  %1632 = vmatprep.subr.mxu0 0.0
  %1633 = vmatpush1.msra.mxu0 %v1597
  %1634 = vmatprep.subr.mxu0 0.0
  %1635 = vmatpush1.msra.mxu0 %v1596
  %1636 = vmatprep.subr.mxu0 0.0
  %1637 = vmatpush1.msra.mxu0 %v1595
  %1638 = vmatprep.subr.mxu0 0.0
  %1639 = vmatpush2.msra.mxu0 0.0
  %1640 = vmatprep.subr.mxu0 0.0
  %1641 = vmatpush2.msra.mxu0 0.0
  %1642 = vmatprep.subr.mxu0 0.0
  %1643 = vmatpush2.msra.mxu0 0.0
  %1644 = vmatprep.subr.mxu0 0.0
  %1645 = vmatpush2.msra.mxu0 0.0
  %1646 = vmatprep.subr.mxu0 0.0
  %1647 = vmatpush2.msra.mxu0 0.0
  %1648 = vmatprep.subr.mxu0 0.0
  %1649 = vmatpush2.msra.mxu0 0.0
  %1650 = vmatprep.subr.mxu0 0.0
  %1651 = vmatpush2.msra.mxu0 0.0
  %1652 = vmatprep.subr.mxu0 0.0
  %1653 = vmatpush2.msra.mxu0 0.0
  %1654 = vmatprep.subr.mxu0 0.0
  %1655 = vmatpush2.msra.mxu0 0.0
  %1656 = vmatprep.subr.mxu0 0.0
  %1657 = vmatpush2.msra.mxu0 0.0
  %1658 = vmatprep.subr.mxu0 0.0
  %1659 = vmatpush2.msra.mxu0 0.0
  %1660 = vmatprep.subr.mxu0 0.0
  %1661 = vmatpush2.msra.mxu0 0.0
  %1662 = vmatprep.subr.mxu0 0.0
  %1663 = vmatpush2.msra.mxu0 0.0
  %1664 = vmatprep.subr.mxu0 0.0
  %1665 = vmatpush2.msra.mxu0 0.0
  %1666 = vmatprep.subr.mxu0 0.0
  %1667 = vmatpush2.msra.mxu0 0.0
  %1668 = vmatprep.subr.mxu0 0.0
  %1669 = vmatpush2.msra.mxu0 0.0
  %1670 = vmatprep.mubr.f32.mxu0 0.0
  %1671 = vmatmul.mubr.f32.gmra.mxu0 %v1601
  %v1672 = vpop.f32.mrf.mxu0
  %v1673 = vadd.f32 0.0, %v1672
  %v1674 = vpop.f32.mrf.mxu0
  %1675 = vmatprep.mubr.f32.mxu0 0.0
  %1676 = vmatmul.mubr.f32.gmra.mxu0 %v1604
  %v1677 = vpop.f32.mrf.mxu0
  %v1678 = vadd.f32 0.0, %v1677
  %v1679 = vpop.f32.mrf.mxu0
  %1680 = vdwg.mxu0
  %v1682 = vsel %vm1599, %v291, 0
  %v1685 = vsel %vm1599, %v296, 0
  %1687 = vmatprep.subr.mxu0 0.0
  %1688 = vmatpush1.msra.mxu0 0.0
  %1689 = vmatprep.subr.mxu0 0.0
  %1690 = vmatpush1.msra.mxu0 0.0
  %1691 = vmatprep.subr.mxu0 0.0
  %1692 = vmatpush1.msra.mxu0 0.0
  %1693 = vmatprep.subr.mxu0 0.0
  %1694 = vmatpush1.msra.mxu0 0.0
  %1695 = vmatprep.subr.mxu0 0.0
  %1696 = vmatpush1.msra.mxu0 0.0
  %1697 = vmatprep.subr.mxu0 0.0
  %1698 = vmatpush1.msra.mxu0 0.0
  %1699 = vmatprep.subr.mxu0 0.0
  %1700 = vmatpush1.msra.mxu0 0.0
  %1701 = vmatprep.subr.mxu0 0.0
  %1702 = vmatpush1.msra.mxu0 0.0
  %1703 = vmatprep.subr.mxu0 0.0
  %1704 = vmatpush1.msra.mxu0 0.0
  %1705 = vmatprep.subr.mxu0 0.0
  %1706 = vmatpush1.msra.mxu0 0.0
  %1707 = vmatprep.subr.mxu0 0.0
  %1708 = vmatpush1.msra.mxu0 0.0
  %1709 = vmatprep.subr.mxu0 0.0
  %1710 = vmatpush1.msra.mxu0 0.0
  %1711 = vmatprep.subr.mxu0 0.0
  %1712 = vmatpush1.msra.mxu0 %v1592
  %1713 = vmatprep.subr.mxu0 0.0
  %1714 = vmatpush1.msra.mxu0 %v1591
  %1715 = vmatprep.subr.mxu0 0.0
  %1716 = vmatpush1.msra.mxu0 %v1590
  %1717 = vmatprep.subr.mxu0 0.0
  %1718 = vmatpush1.msra.mxu0 %v1589
  %1719 = vmatprep.subr.mxu0 0.0
  %1720 = vmatpush2.msra.mxu0 0.0
  %1721 = vmatprep.subr.mxu0 0.0
  %1722 = vmatpush2.msra.mxu0 0.0
  %1723 = vmatprep.subr.mxu0 0.0
  %1724 = vmatpush2.msra.mxu0 0.0
  %1725 = vmatprep.subr.mxu0 0.0
  %1726 = vmatpush2.msra.mxu0 0.0
  %1727 = vmatprep.subr.mxu0 0.0
  %1728 = vmatpush2.msra.mxu0 0.0
  %1729 = vmatprep.subr.mxu0 0.0
  %1730 = vmatpush2.msra.mxu0 0.0
  %1731 = vmatprep.subr.mxu0 0.0
  %1732 = vmatpush2.msra.mxu0 0.0
  %1733 = vmatprep.subr.mxu0 0.0
  %1734 = vmatpush2.msra.mxu0 0.0
  %1735 = vmatprep.subr.mxu0 0.0
  %1736 = vmatpush2.msra.mxu0 0.0
  %1737 = vmatprep.subr.mxu0 0.0
  %1738 = vmatpush2.msra.mxu0 0.0
  %1739 = vmatprep.subr.mxu0 0.0
  %1740 = vmatpush2.msra.mxu0 0.0
  %1741 = vmatprep.subr.mxu0 0.0
  %1742 = vmatpush2.msra.mxu0 0.0
  %1743 = vmatprep.subr.mxu0 0.0
  %1744 = vmatpush2.msra.mxu0 0.0
  %1745 = vmatprep.subr.mxu0 0.0
  %1746 = vmatpush2.msra.mxu0 0.0
  %1747 = vmatprep.subr.mxu0 0.0
  %1748 = vmatpush2.msra.mxu0 0.0
  %1749 = vmatprep.subr.mxu0 0.0
  %1750 = vmatpush2.msra.mxu0 0.0
  %1751 = vmatprep.mubr.f32.mxu0 0.0
  %1752 = vmatmul.mubr.f32.gmra.mxu0 %v1682
  %v1753 = vpop.f32.mrf.mxu0
  %v1754 = vadd.f32 %v1673, %v1753
  %v1755 = vpop.f32.mrf.mxu0
  %1756 = vmatprep.mubr.f32.mxu0 0.0
  %1757 = vmatmul.mubr.f32.gmra.mxu0 %v1685
  %v1758 = vpop.f32.mrf.mxu0
  %v1759 = vadd.f32 %v1678, %v1758
  %v1760 = vpop.f32.mrf.mxu0
  %1761 = vdwg.mxu0
  %v1762 = vld [vmem:[%s25] sm:$0xff]
  %v1763 = vld [vmem:[%s25 + $0x8] sm:$0xff]
  %v1764 = vld [vmem:[%s25 + $0x10] sm:$0xff]
  %v1765 = vld [vmem:[%s25 + $0x18] sm:$0xff]
  %v1767 = vsel %vm1599, %v372, 0
  %v1770 = vsel %vm1599, %v377, 0
  %1772 = vmatprep.subr.mxu0 0.0
  %1773 = vmatpush1.msra.mxu0 0.0
  %1774 = vmatprep.subr.mxu0 0.0
  %1775 = vmatpush1.msra.mxu0 0.0
  %1776 = vmatprep.subr.mxu0 0.0
  %1777 = vmatpush1.msra.mxu0 0.0
  %1778 = vmatprep.subr.mxu0 0.0
  %1779 = vmatpush1.msra.mxu0 0.0
  %1780 = vmatprep.subr.mxu0 0.0
  %1781 = vmatpush1.msra.mxu0 0.0
  %1782 = vmatprep.subr.mxu0 0.0
  %1783 = vmatpush1.msra.mxu0 0.0
  %1784 = vmatprep.subr.mxu0 0.0
  %1785 = vmatpush1.msra.mxu0 0.0
  %1786 = vmatprep.subr.mxu0 0.0
  %1787 = vmatpush1.msra.mxu0 0.0
  %1788 = vmatprep.subr.mxu0 0.0
  %1789 = vmatpush1.msra.mxu0 0.0
  %1790 = vmatprep.subr.mxu0 0.0
  %1791 = vmatpush1.msra.mxu0 0.0
  %1792 = vmatprep.subr.mxu0 0.0
  %1793 = vmatpush1.msra.mxu0 0.0
  %1794 = vmatprep.subr.mxu0 0.0
  %1795 = vmatpush1.msra.mxu0 0.0
  %1796 = vmatprep.subr.mxu0 0.0
  %1797 = vmatpush1.msra.mxu0 %v1765
  %1798 = vmatprep.subr.mxu0 0.0
  %1799 = vmatpush1.msra.mxu0 %v1764
  %1800 = vmatprep.subr.mxu0 0.0
  %1801 = vmatpush1.msra.mxu0 %v1763
  %1802 = vmatprep.subr.mxu0 0.0
  %1803 = vmatpush1.msra.mxu0 %v1762
  %1804 = vmatprep.subr.mxu0 0.0
  %1805 = vmatpush2.msra.mxu0 0.0
  %1806 = vmatprep.subr.mxu0 0.0
  %1807 = vmatpush2.msra.mxu0 0.0
  %1808 = vmatprep.subr.mxu0 0.0
  %1809 = vmatpush2.msra.mxu0 0.0
  %1810 = vmatprep.subr.mxu0 0.0
  %1811 = vmatpush2.msra.mxu0 0.0
  %1812 = vmatprep.subr.mxu0 0.0
  %1813 = vmatpush2.msra.mxu0 0.0
  %1814 = vmatprep.subr.mxu0 0.0
  %1815 = vmatpush2.msra.mxu0 0.0
  %1816 = vmatprep.subr.mxu0 0.0
  %1817 = vmatpush2.msra.mxu0 0.0
  %1818 = vmatprep.subr.mxu0 0.0
  %1819 = vmatpush2.msra.mxu0 0.0
  %1820 = vmatprep.subr.mxu0 0.0
  %1821 = vmatpush2.msra.mxu0 0.0
  %1822 = vmatprep.subr.mxu0 0.0
  %1823 = vmatpush2.msra.mxu0 0.0
  %1824 = vmatprep.subr.mxu0 0.0
  %1825 = vmatpush2.msra.mxu0 0.0
  %1826 = vmatprep.subr.mxu0 0.0
  %1827 = vmatpush2.msra.mxu0 0.0
  %1828 = vmatprep.subr.mxu0 0.0
  %1829 = vmatpush2.msra.mxu0 0.0
  %1830 = vmatprep.subr.mxu0 0.0
  %1831 = vmatpush2.msra.mxu0 0.0
  %1832 = vmatprep.subr.mxu0 0.0
  %1833 = vmatpush2.msra.mxu0 0.0
  %1834 = vmatprep.subr.mxu0 0.0
  %1835 = vmatpush2.msra.mxu0 0.0
  %1836 = vmatprep.mubr.f32.mxu0 0.0
  %1837 = vmatmul.mubr.f32.gmra.mxu0 %v1767
  %v1838 = vpop.f32.mrf.mxu0
  %v1839 = vadd.f32 0.0, %v1838
  %v1840 = vpop.f32.mrf.mxu0
  %1841 = vmatprep.mubr.f32.mxu0 0.0
  %1842 = vmatmul.mubr.f32.gmra.mxu0 %v1770
  %v1843 = vpop.f32.mrf.mxu0
  %v1844 = vadd.f32 0.0, %v1843
  %v1845 = vpop.f32.mrf.mxu0
  %1846 = vdwg.mxu0
  %v1847 = vadd.f32 %v1754, %v1839
  %v1848 = vadd.f32 %v1759, %v1844
  %v1849 = vld [vmem:[%s27] sm:$0xff]
  %v1850 = vld [vmem:[%s27 + $0x8] sm:$0x1]
  %v1851 = vld [vmem:[%s29] sm:$0x1]
  %v1852 = vld [vmem:[%s31] sm:$0xff]
  %v1853 = vld [vmem:[%s31 + $0x8] sm:$0x1]
  %v1854 = vmul.f32 %v1091, %v1091
  %v1855 = vmul.f32 %v1092, %v1092
  %v1856 = vmul.f32 %v1339, %v1339
  %v1857 = vmul.f32 %v1340, %v1340
  %v1858 = vadd.f32 %v1854, %v1856
  %v1859 = vadd.f32 %v1855, %v1857
  %v1860 = vmul.f32 %v1587, %v1587
  %v1861 = vmul.f32 %v1588, %v1588
  %v1862 = vadd.f32 %v1858, %v1860
  %v1863 = vadd.f32 %v1859, %v1861
  %v1864 = vmax.f32 %v1862, 1e-08
  %v1865 = vmax.f32 %v1863, 1e-08
  %v1866 = vrsqrt.pop %v1864
  %v1867 = vmul.f32 %v1864, %v1866
  %vm1868 = vcmp.eq.f32.partialorder %v1864, inf
  %v1869 = vsel %vm1868, %v1864, %v1867
  %vm1870 = vcmp.eq.f32.partialorder %v1864, 0.0
  %v1871 = vand.u32 %v1864, 2147483648
  %v1872 = vsel %vm1870, %v1871, %v1869
  %v1873 = vrsqrt.pop %v1865
  %v1874 = vmul.f32 %v1865, %v1873
  %vm1875 = vcmp.eq.f32.partialorder %v1865, inf
  %v1876 = vsel %vm1875, %v1865, %v1874
  %vm1877 = vcmp.eq.f32.partialorder %v1865, 0.0
  %v1878 = vand.u32 %v1865, 2147483648
  %v1879 = vsel %vm1877, %v1878, %v1876
  %vm1880 = vcmask 72704
  %v1882 = vsel %vm1880, %v1872, 0
  %v1885 = vsel %vm1880, %v1879, 0
  %v1888 = vsel %vm842, %v1850, 0
  %1890 = vmatprep.subr.mxu0 0.0
  %1891 = vmatpush1.msra.mxu0 0.0
  %1892 = vmatprep.subr.mxu0 0.0
  %1893 = vmatpush1.msra.mxu0 0.0
  %1894 = vmatprep.subr.mxu0 0.0
  %1895 = vmatpush1.msra.mxu0 0.0
  %1896 = vmatprep.subr.mxu0 0.0
  %1897 = vmatpush1.msra.mxu0 0.0
  %1898 = vmatprep.subr.mxu0 0.0
  %1899 = vmatpush1.msra.mxu0 0.0
  %1900 = vmatprep.subr.mxu0 0.0
  %1901 = vmatpush1.msra.mxu0 0.0
  %1902 = vmatprep.subr.mxu0 0.0
  %1903 = vmatpush1.msra.mxu0 0.0
  %1904 = vmatprep.subr.mxu0 0.0
  %1905 = vmatpush1.msra.mxu0 0.0
  %1906 = vmatprep.subr.mxu0 0.0
  %1907 = vmatpush1.msra.mxu0 0.0
  %1908 = vmatprep.subr.mxu0 0.0
  %1909 = vmatpush1.msra.mxu0 0.0
  %1910 = vmatprep.subr.mxu0 0.0
  %1911 = vmatpush1.msra.mxu0 0.0
  %1912 = vmatprep.subr.mxu0 0.0
  %1913 = vmatpush1.msra.mxu0 0.0
  %1914 = vmatprep.subr.mxu0 0.0
  %1915 = vmatpush1.msra.mxu0 0.0
  %1916 = vmatprep.subr.mxu0 0.0
  %1917 = vmatpush1.msra.mxu0 0.0
  %1918 = vmatprep.subr.mxu0 0.0
  %1919 = vmatpush1.msra.mxu0 %v1888
  %1920 = vmatprep.subr.mxu0 0.0
  %1921 = vmatpush1.msra.mxu0 %v1849
  %1922 = vmatprep.subr.mxu0 0.0
  %1923 = vmatpush2.msra.mxu0 0.0
  %1924 = vmatprep.subr.mxu0 0.0
  %1925 = vmatpush2.msra.mxu0 0.0
  %1926 = vmatprep.subr.mxu0 0.0
  %1927 = vmatpush2.msra.mxu0 0.0
  %1928 = vmatprep.subr.mxu0 0.0
  %1929 = vmatpush2.msra.mxu0 0.0
  %1930 = vmatprep.subr.mxu0 0.0
  %1931 = vmatpush2.msra.mxu0 0.0
  %1932 = vmatprep.subr.mxu0 0.0
  %1933 = vmatpush2.msra.mxu0 0.0
  %1934 = vmatprep.subr.mxu0 0.0
  %1935 = vmatpush2.msra.mxu0 0.0
  %1936 = vmatprep.subr.mxu0 0.0
  %1937 = vmatpush2.msra.mxu0 0.0
  %1938 = vmatprep.subr.mxu0 0.0
  %1939 = vmatpush2.msra.mxu0 0.0
  %1940 = vmatprep.subr.mxu0 0.0
  %1941 = vmatpush2.msra.mxu0 0.0
  %1942 = vmatprep.subr.mxu0 0.0
  %1943 = vmatpush2.msra.mxu0 0.0
  %1944 = vmatprep.subr.mxu0 0.0
  %1945 = vmatpush2.msra.mxu0 0.0
  %1946 = vmatprep.subr.mxu0 0.0
  %1947 = vmatpush2.msra.mxu0 0.0
  %1948 = vmatprep.subr.mxu0 0.0
  %1949 = vmatpush2.msra.mxu0 0.0
  %1950 = vmatprep.subr.mxu0 0.0
  %1951 = vmatpush2.msra.mxu0 0.0
  %1952 = vmatprep.subr.mxu0 0.0
  %1953 = vmatpush2.msra.mxu0 0.0
  %1954 = vmatprep.mubr.f32.mxu0 0.0
  %1955 = vmatmul.mubr.f32.gmra.mxu0 %v1882
  %v1956 = vpop.f32.mrf.mxu0
  %v1957 = vadd.f32 0.0, %v1956
  %v1958 = vpop.f32.mrf.mxu0
  %1959 = vmatprep.mubr.f32.mxu0 0.0
  %1960 = vmatmul.mubr.f32.gmra.mxu0 %v1885
  %v1961 = vpop.f32.mrf.mxu0
  %v1962 = vadd.f32 0.0, %v1961
  %v1963 = vpop.f32.mrf.mxu0
  %1964 = vdwg.mxu0
  %v1965 = vadd.f32 %v1847, %v1957
  %v1966 = vadd.f32 %v1848, %v1962
  %v1968 = vlaneseq
  %v1969 = vshrl.u32 %v1968, 7
  %v1970 = vsub.s32 0, %v1969
  %v1971 = vrot.slane %v1851, %v1970
  %v1973 = vadd.f32 %v1965, %v1971
  %v1974 = vadd.f32 %v1966, %v1971
  %v1976 = vsel %vm1880, %v1091, 0
  %v1979 = vsel %vm1880, %v1092, 0
  %v1982 = vsel %vm842, %v1853, 0
  %1984 = vmatprep.subr.mxu0 0.0
  %1985 = vmatpush1.msra.mxu0 0.0
  %1986 = vmatprep.subr.mxu0 0.0
  %1987 = vmatpush1.msra.mxu0 0.0
  %1988 = vmatprep.subr.mxu0 0.0
  %1989 = vmatpush1.msra.mxu0 0.0
  %1990 = vmatprep.subr.mxu0 0.0
  %1991 = vmatpush1.msra.mxu0 0.0
  %1992 = vmatprep.subr.mxu0 0.0
  %1993 = vmatpush1.msra.mxu0 0.0
  %1994 = vmatprep.subr.mxu0 0.0
  %1995 = vmatpush1.msra.mxu0 0.0
  %1996 = vmatprep.subr.mxu0 0.0
  %1997 = vmatpush1.msra.mxu0 0.0
  %1998 = vmatprep.subr.mxu0 0.0
  %1999 = vmatpush1.msra.mxu0 0.0
  %2000 = vmatprep.subr.mxu0 0.0
  %2001 = vmatpush1.msra.mxu0 0.0
  %2002 = vmatprep.subr.mxu0 0.0
  %2003 = vmatpush1.msra.mxu0 0.0
  %2004 = vmatprep.subr.mxu0 0.0
  %2005 = vmatpush1.msra.mxu0 0.0
  %2006 = vmatprep.subr.mxu0 0.0
  %2007 = vmatpush1.msra.mxu0 0.0
  %2008 = vmatprep.subr.mxu0 0.0
  %2009 = vmatpush1.msra.mxu0 0.0
  %2010 = vmatprep.subr.mxu0 0.0
  %2011 = vmatpush1.msra.mxu0 0.0
  %2012 = vmatprep.subr.mxu0 0.0
  %2013 = vmatpush1.msra.mxu0 %v1982
  %2014 = vmatprep.subr.mxu0 0.0
  %2015 = vmatpush1.msra.mxu0 %v1852
  %2016 = vmatprep.subr.mxu0 0.0
  %2017 = vmatpush2.msra.mxu0 0.0
  %2018 = vmatprep.subr.mxu0 0.0
  %2019 = vmatpush2.msra.mxu0 0.0
  %2020 = vmatprep.subr.mxu0 0.0
  %2021 = vmatpush2.msra.mxu0 0.0
  %2022 = vmatprep.subr.mxu0 0.0
  %2023 = vmatpush2.msra.mxu0 0.0
  %2024 = vmatprep.subr.mxu0 0.0
  %2025 = vmatpush2.msra.mxu0 0.0
  %2026 = vmatprep.subr.mxu0 0.0
  %2027 = vmatpush2.msra.mxu0 0.0
  %2028 = vmatprep.subr.mxu0 0.0
  %2029 = vmatpush2.msra.mxu0 0.0
  %2030 = vmatprep.subr.mxu0 0.0
  %2031 = vmatpush2.msra.mxu0 0.0
  %2032 = vmatprep.subr.mxu0 0.0
  %2033 = vmatpush2.msra.mxu0 0.0
  %2034 = vmatprep.subr.mxu0 0.0
  %2035 = vmatpush2.msra.mxu0 0.0
  %2036 = vmatprep.subr.mxu0 0.0
  %2037 = vmatpush2.msra.mxu0 0.0
  %2038 = vmatprep.subr.mxu0 0.0
  %2039 = vmatpush2.msra.mxu0 0.0
  %2040 = vmatprep.subr.mxu0 0.0
  %2041 = vmatpush2.msra.mxu0 0.0
  %2042 = vmatprep.subr.mxu0 0.0
  %2043 = vmatpush2.msra.mxu0 0.0
  %2044 = vmatprep.subr.mxu0 0.0
  %2045 = vmatpush2.msra.mxu0 0.0
  %2046 = vmatprep.subr.mxu0 0.0
  %2047 = vmatpush2.msra.mxu0 0.0
  %2048 = vmatprep.mubr.f32.mxu0 0.0
  %2049 = vmatmul.mubr.f32.gmra.mxu0 %v1976
  %v2050 = vpop.f32.mrf.mxu0
  %v2051 = vadd.f32 0.0, %v2050
  %v2052 = vpop.f32.mrf.mxu0
  %2053 = vmatprep.mubr.f32.mxu0 0.0
  %2054 = vmatmul.mubr.f32.gmra.mxu0 %v1979
  %v2055 = vpop.f32.mrf.mxu0
  %v2056 = vadd.f32 0.0, %v2055
  %v2057 = vpop.f32.mrf.mxu0
  %2058 = vdwg.mxu0
  %v2060 = vsel %vm1880, %v1339, 0
  %v2063 = vsel %vm1880, %v1340, 0
  %2065 = vmatprep.subr.mxu0 0.0
  %2066 = vmatpush1.msra.mxu0 0.0
  %2067 = vmatprep.subr.mxu0 0.0
  %2068 = vmatpush1.msra.mxu0 0.0
  %2069 = vmatprep.subr.mxu0 0.0
  %2070 = vmatpush1.msra.mxu0 0.0
  %2071 = vmatprep.subr.mxu0 0.0
  %2072 = vmatpush1.msra.mxu0 0.0
  %2073 = vmatprep.subr.mxu0 0.0
  %2074 = vmatpush1.msra.mxu0 0.0
  %2075 = vmatprep.subr.mxu0 0.0
  %2076 = vmatpush1.msra.mxu0 0.0
  %2077 = vmatprep.subr.mxu0 0.0
  %2078 = vmatpush1.msra.mxu0 0.0
  %2079 = vmatprep.subr.mxu0 0.0
  %2080 = vmatpush1.msra.mxu0 0.0
  %2081 = vmatprep.subr.mxu0 0.0
  %2082 = vmatpush1.msra.mxu0 0.0
  %2083 = vmatprep.subr.mxu0 0.0
  %2084 = vmatpush1.msra.mxu0 0.0
  %2085 = vmatprep.subr.mxu0 0.0
  %2086 = vmatpush1.msra.mxu0 0.0
  %2087 = vmatprep.subr.mxu0 0.0
  %2088 = vmatpush1.msra.mxu0 0.0
  %2089 = vmatprep.subr.mxu0 0.0
  %2090 = vmatpush1.msra.mxu0 0.0
  %2091 = vmatprep.subr.mxu0 0.0
  %2092 = vmatpush1.msra.mxu0 0.0
  %2093 = vmatprep.subr.mxu0 0.0
  %2094 = vmatpush1.msra.mxu0 %v1982
  %2095 = vmatprep.subr.mxu0 0.0
  %2096 = vmatpush1.msra.mxu0 %v1852
  %2097 = vmatprep.subr.mxu0 0.0
  %2098 = vmatpush2.msra.mxu0 0.0
  %2099 = vmatprep.subr.mxu0 0.0
  %2100 = vmatpush2.msra.mxu0 0.0
  %2101 = vmatprep.subr.mxu0 0.0
  %2102 = vmatpush2.msra.mxu0 0.0
  %2103 = vmatprep.subr.mxu0 0.0
  %2104 = vmatpush2.msra.mxu0 0.0
  %2105 = vmatprep.subr.mxu0 0.0
  %2106 = vmatpush2.msra.mxu0 0.0
  %2107 = vmatprep.subr.mxu0 0.0
  %2108 = vmatpush2.msra.mxu0 0.0
  %2109 = vmatprep.subr.mxu0 0.0
  %2110 = vmatpush2.msra.mxu0 0.0
  %2111 = vmatprep.subr.mxu0 0.0
  %2112 = vmatpush2.msra.mxu0 0.0
  %2113 = vmatprep.subr.mxu0 0.0
  %2114 = vmatpush2.msra.mxu0 0.0
  %2115 = vmatprep.subr.mxu0 0.0
  %2116 = vmatpush2.msra.mxu0 0.0
  %2117 = vmatprep.subr.mxu0 0.0
  %2118 = vmatpush2.msra.mxu0 0.0
  %2119 = vmatprep.subr.mxu0 0.0
  %2120 = vmatpush2.msra.mxu0 0.0
  %2121 = vmatprep.subr.mxu0 0.0
  %2122 = vmatpush2.msra.mxu0 0.0
  %2123 = vmatprep.subr.mxu0 0.0
  %2124 = vmatpush2.msra.mxu0 0.0
  %2125 = vmatprep.subr.mxu0 0.0
  %2126 = vmatpush2.msra.mxu0 0.0
  %2127 = vmatprep.subr.mxu0 0.0
  %2128 = vmatpush2.msra.mxu0 0.0
  %2129 = vmatprep.mubr.f32.mxu0 0.0
  %2130 = vmatmul.mubr.f32.gmra.mxu0 %v2060
  %v2131 = vpop.f32.mrf.mxu0
  %v2132 = vadd.f32 0.0, %v2131
  %v2133 = vpop.f32.mrf.mxu0
  %2134 = vmatprep.mubr.f32.mxu0 0.0
  %2135 = vmatmul.mubr.f32.gmra.mxu0 %v2063
  %v2136 = vpop.f32.mrf.mxu0
  %v2137 = vadd.f32 0.0, %v2136
  %v2138 = vpop.f32.mrf.mxu0
  %2139 = vdwg.mxu0
  %v2141 = vsel %vm1880, %v1587, 0
  %v2144 = vsel %vm1880, %v1588, 0
  %2146 = vmatprep.subr.mxu0 0.0
  %2147 = vmatpush1.msra.mxu0 0.0
  %2148 = vmatprep.subr.mxu0 0.0
  %2149 = vmatpush1.msra.mxu0 0.0
  %2150 = vmatprep.subr.mxu0 0.0
  %2151 = vmatpush1.msra.mxu0 0.0
  %2152 = vmatprep.subr.mxu0 0.0
  %2153 = vmatpush1.msra.mxu0 0.0
  %2154 = vmatprep.subr.mxu0 0.0
  %2155 = vmatpush1.msra.mxu0 0.0
  %2156 = vmatprep.subr.mxu0 0.0
  %2157 = vmatpush1.msra.mxu0 0.0
  %2158 = vmatprep.subr.mxu0 0.0
  %2159 = vmatpush1.msra.mxu0 0.0
  %2160 = vmatprep.subr.mxu0 0.0
  %2161 = vmatpush1.msra.mxu0 0.0
  %2162 = vmatprep.subr.mxu0 0.0
  %2163 = vmatpush1.msra.mxu0 0.0
  %2164 = vmatprep.subr.mxu0 0.0
  %2165 = vmatpush1.msra.mxu0 0.0
  %2166 = vmatprep.subr.mxu0 0.0
  %2167 = vmatpush1.msra.mxu0 0.0
  %2168 = vmatprep.subr.mxu0 0.0
  %2169 = vmatpush1.msra.mxu0 0.0
  %2170 = vmatprep.subr.mxu0 0.0
  %2171 = vmatpush1.msra.mxu0 0.0
  %2172 = vmatprep.subr.mxu0 0.0
  %2173 = vmatpush1.msra.mxu0 0.0
  %2174 = vmatprep.subr.mxu0 0.0
  %2175 = vmatpush1.msra.mxu0 %v1982
  %2176 = vmatprep.subr.mxu0 0.0
  %2177 = vmatpush1.msra.mxu0 %v1852
  %2178 = vmatprep.subr.mxu0 0.0
  %2179 = vmatpush2.msra.mxu0 0.0
  %2180 = vmatprep.subr.mxu0 0.0
  %2181 = vmatpush2.msra.mxu0 0.0
  %2182 = vmatprep.subr.mxu0 0.0
  %2183 = vmatpush2.msra.mxu0 0.0
  %2184 = vmatprep.subr.mxu0 0.0
  %2185 = vmatpush2.msra.mxu0 0.0
  %2186 = vmatprep.subr.mxu0 0.0
  %2187 = vmatpush2.msra.mxu0 0.0
  %2188 = vmatprep.subr.mxu0 0.0
  %2189 = vmatpush2.msra.mxu0 0.0
  %2190 = vmatprep.subr.mxu0 0.0
  %2191 = vmatpush2.msra.mxu0 0.0
  %2192 = vmatprep.subr.mxu0 0.0
  %2193 = vmatpush2.msra.mxu0 0.0
  %2194 = vmatprep.subr.mxu0 0.0
  %2195 = vmatpush2.msra.mxu0 0.0
  %2196 = vmatprep.subr.mxu0 0.0
  %2197 = vmatpush2.msra.mxu0 0.0
  %2198 = vmatprep.subr.mxu0 0.0
  %2199 = vmatpush2.msra.mxu0 0.0
  %2200 = vmatprep.subr.mxu0 0.0
  %2201 = vmatpush2.msra.mxu0 0.0
  %2202 = vmatprep.subr.mxu0 0.0
  %2203 = vmatpush2.msra.mxu0 0.0
  %2204 = vmatprep.subr.mxu0 0.0
  %2205 = vmatpush2.msra.mxu0 0.0
  %2206 = vmatprep.subr.mxu0 0.0
  %2207 = vmatpush2.msra.mxu0 0.0
  %2208 = vmatprep.subr.mxu0 0.0
  %2209 = vmatpush2.msra.mxu0 0.0
  %2210 = vmatprep.mubr.f32.mxu0 0.0
  %2211 = vmatmul.mubr.f32.gmra.mxu0 %v2141
  %v2212 = vpop.f32.mrf.mxu0
  %v2213 = vadd.f32 0.0, %v2212
  %v2214 = vpop.f32.mrf.mxu0
  %2215 = vmatprep.mubr.f32.mxu0 0.0
  %2216 = vmatmul.mubr.f32.gmra.mxu0 %v2144
  %v2217 = vpop.f32.mrf.mxu0
  %v2218 = vadd.f32 0.0, %v2217
  %v2219 = vpop.f32.mrf.mxu0
  %2220 = vdwg.mxu0
  %v2221 = vmul.f32 %v2051, %v2051
  %v2222 = vmul.f32 %v2056, %v2056
  %v2223 = vmul.f32 %v2132, %v2132
  %v2224 = vmul.f32 %v2137, %v2137
  %v2225 = vadd.f32 %v2221, %v2223
  %v2226 = vadd.f32 %v2222, %v2224
  %v2227 = vmul.f32 %v2213, %v2213
  %v2228 = vmul.f32 %v2218, %v2218
  %v2229 = vadd.f32 %v2225, %v2227
  %v2230 = vadd.f32 %v2226, %v2228
  %v2231 = vmax.f32 %v2229, 1e-08
  %v2232 = vmax.f32 %v2230, 1e-08
  %v2233 = vrsqrt.pop %v2231
  %v2234 = vmul.f32 %v2231, %v2233
  %vm2235 = vcmp.eq.f32.partialorder %v2231, inf
  %v2236 = vsel %vm2235, %v2231, %v2234
  %vm2237 = vcmp.eq.f32.partialorder %v2231, 0.0
  %v2238 = vand.u32 %v2231, 2147483648
  %v2239 = vsel %vm2237, %v2238, %v2236
  %v2240 = vrsqrt.pop %v2232
  %v2241 = vmul.f32 %v2232, %v2240
  %vm2242 = vcmp.eq.f32.partialorder %v2232, inf
  %v2243 = vsel %vm2242, %v2232, %v2241
  %vm2244 = vcmp.eq.f32.partialorder %v2232, 0.0
  %v2245 = vand.u32 %v2232, 2147483648
  %v2246 = vsel %vm2244, %v2245, %v2243
  %v2247 = vsub.f32 0.0, %v2239
  %v2248 = vsub.f32 0.0, %v2246
  %v2249 = vmul.f32 %v2247, 1.442695
  %v2250 = vpow.pop %v2249
  %v2251 = vmul.f32 %v2248, 1.442695
  %v2252 = vpow.pop %v2251
  %v2253 = vadd.f32 %v2250, 1.0
  %v2254 = vadd.f32 %v2252, 1.0
  %v2255 = vrcp.pop %v2253
  %v2256 = vmul.f32 1.0, %v2255
  %v2257 = vrcp.pop %v2254
  %v2258 = vmul.f32 1.0, %v2257
  %v2259 = vmul.f32 %v2051, %v2256
  %v2260 = vmul.f32 %v2056, %v2258
  %v2261 = vmul.f32 %v2132, %v2256
  %v2262 = vmul.f32 %v2137, %v2258
  %v2263 = vmul.f32 %v2213, %v2256
  %v2264 = vmul.f32 %v2218, %v2258
  %v2265 = vmax.f32 %v1973, 0.0
  %v2266 = vmax.f32 %v1974, 0.0
  %v2267 = vld [vmem:[%s33] sm:$0xf]
  %v2268 = vld [vmem:[%s35] sm:$0xff]
  %v2269 = vld [vmem:[%s35 + $0x8] sm:$0xff]
  %v2270 = vld [vmem:[%s35 + $0x10] sm:$0xff]
  %v2271 = vld [vmem:[%s35 + $0x18] sm:$0xff]
  %v2272 = vld [vmem:[%s37] sm:$0xf]
  %v2273 = vld [vmem:[%s39] sm:$0x1]
  %v2274 = vld [vmem:[%s41] sm:$0xf]
  %v2276 = vsel %vm921, %v2259, 0
  %v2279 = vsel %vm921, %v2260, 0
  %v2282 = vsel %vm928, %v2267, 0
  %2284 = vmatprep.subr.mxu0 0.0
  %2285 = vmatpush1.msra.mxu0 0.0
  %2286 = vmatprep.subr.mxu0 0.0
  %2287 = vmatpush1.msra.mxu0 0.0
  %2288 = vmatprep.subr.mxu0 0.0
  %2289 = vmatpush1.msra.mxu0 0.0
  %2290 = vmatprep.subr.mxu0 0.0
  %2291 = vmatpush1.msra.mxu0 0.0
  %2292 = vmatprep.subr.mxu0 0.0
  %2293 = vmatpush1.msra.mxu0 0.0
  %2294 = vmatprep.subr.mxu0 0.0
  %2295 = vmatpush1.msra.mxu0 0.0
  %2296 = vmatprep.subr.mxu0 0.0
  %2297 = vmatpush1.msra.mxu0 0.0
  %2298 = vmatprep.subr.mxu0 0.0
  %2299 = vmatpush1.msra.mxu0 0.0
  %2300 = vmatprep.subr.mxu0 0.0
  %2301 = vmatpush1.msra.mxu0 0.0
  %2302 = vmatprep.subr.mxu0 0.0
  %2303 = vmatpush1.msra.mxu0 0.0
  %2304 = vmatprep.subr.mxu0 0.0
  %2305 = vmatpush1.msra.mxu0 0.0
  %2306 = vmatprep.subr.mxu0 0.0
  %2307 = vmatpush1.msra.mxu0 0.0
  %2308 = vmatprep.subr.mxu0 0.0
  %2309 = vmatpush1.msra.mxu0 0.0
  %2310 = vmatprep.subr.mxu0 0.0
  %2311 = vmatpush1.msra.mxu0 0.0
  %2312 = vmatprep.subr.mxu0 0.0
  %2313 = vmatpush1.msra.mxu0 0.0
  %2314 = vmatprep.subr.mxu0 0.0
  %2315 = vmatpush1.msra.mxu0 %v2282
  %2316 = vmatprep.subr.mxu0 0.0
  %2317 = vmatpush2.msra.mxu0 0.0
  %2318 = vmatprep.subr.mxu0 0.0
  %2319 = vmatpush2.msra.mxu0 0.0
  %2320 = vmatprep.subr.mxu0 0.0
  %2321 = vmatpush2.msra.mxu0 0.0
  %2322 = vmatprep.subr.mxu0 0.0
  %2323 = vmatpush2.msra.mxu0 0.0
  %2324 = vmatprep.subr.mxu0 0.0
  %2325 = vmatpush2.msra.mxu0 0.0
  %2326 = vmatprep.subr.mxu0 0.0
  %2327 = vmatpush2.msra.mxu0 0.0
  %2328 = vmatprep.subr.mxu0 0.0
  %2329 = vmatpush2.msra.mxu0 0.0
  %2330 = vmatprep.subr.mxu0 0.0
  %2331 = vmatpush2.msra.mxu0 0.0
  %2332 = vmatprep.subr.mxu0 0.0
  %2333 = vmatpush2.msra.mxu0 0.0
  %2334 = vmatprep.subr.mxu0 0.0
  %2335 = vmatpush2.msra.mxu0 0.0
  %2336 = vmatprep.subr.mxu0 0.0
  %2337 = vmatpush2.msra.mxu0 0.0
  %2338 = vmatprep.subr.mxu0 0.0
  %2339 = vmatpush2.msra.mxu0 0.0
  %2340 = vmatprep.subr.mxu0 0.0
  %2341 = vmatpush2.msra.mxu0 0.0
  %2342 = vmatprep.subr.mxu0 0.0
  %2343 = vmatpush2.msra.mxu0 0.0
  %2344 = vmatprep.subr.mxu0 0.0
  %2345 = vmatpush2.msra.mxu0 0.0
  %2346 = vmatprep.subr.mxu0 0.0
  %2347 = vmatpush2.msra.mxu0 0.0
  %2348 = vmatprep.mubr.f32.mxu0 0.0
  %2349 = vmatmul.mubr.f32.gmra.mxu0 %v2276
  %v2350 = vpop.f32.mrf.mxu0
  %v2351 = vadd.f32 0.0, %v2350
  %v2352 = vpop.f32.mrf.mxu0
  %2353 = vmatprep.mubr.f32.mxu0 0.0
  %2354 = vmatmul.mubr.f32.gmra.mxu0 %v2279
  %v2355 = vpop.f32.mrf.mxu0
  %v2356 = vadd.f32 0.0, %v2355
  %v2357 = vpop.f32.mrf.mxu0
  %2358 = vdwg.mxu0
  %v2360 = vsel %vm921, %v2261, 0
  %v2363 = vsel %vm921, %v2262, 0
  %2365 = vmatprep.subr.mxu0 0.0
  %2366 = vmatpush1.msra.mxu0 0.0
  %2367 = vmatprep.subr.mxu0 0.0
  %2368 = vmatpush1.msra.mxu0 0.0
  %2369 = vmatprep.subr.mxu0 0.0
  %2370 = vmatpush1.msra.mxu0 0.0
  %2371 = vmatprep.subr.mxu0 0.0
  %2372 = vmatpush1.msra.mxu0 0.0
  %2373 = vmatprep.subr.mxu0 0.0
  %2374 = vmatpush1.msra.mxu0 0.0
  %2375 = vmatprep.subr.mxu0 0.0
  %2376 = vmatpush1.msra.mxu0 0.0
  %2377 = vmatprep.subr.mxu0 0.0
  %2378 = vmatpush1.msra.mxu0 0.0
  %2379 = vmatprep.subr.mxu0 0.0
  %2380 = vmatpush1.msra.mxu0 0.0
  %2381 = vmatprep.subr.mxu0 0.0
  %2382 = vmatpush1.msra.mxu0 0.0
  %2383 = vmatprep.subr.mxu0 0.0
  %2384 = vmatpush1.msra.mxu0 0.0
  %2385 = vmatprep.subr.mxu0 0.0
  %2386 = vmatpush1.msra.mxu0 0.0
  %2387 = vmatprep.subr.mxu0 0.0
  %2388 = vmatpush1.msra.mxu0 0.0
  %2389 = vmatprep.subr.mxu0 0.0
  %2390 = vmatpush1.msra.mxu0 0.0
  %2391 = vmatprep.subr.mxu0 0.0
  %2392 = vmatpush1.msra.mxu0 0.0
  %2393 = vmatprep.subr.mxu0 0.0
  %2394 = vmatpush1.msra.mxu0 0.0
  %2395 = vmatprep.subr.mxu0 0.0
  %2396 = vmatpush1.msra.mxu0 %v2282
  %2397 = vmatprep.subr.mxu0 0.0
  %2398 = vmatpush2.msra.mxu0 0.0
  %2399 = vmatprep.subr.mxu0 0.0
  %2400 = vmatpush2.msra.mxu0 0.0
  %2401 = vmatprep.subr.mxu0 0.0
  %2402 = vmatpush2.msra.mxu0 0.0
  %2403 = vmatprep.subr.mxu0 0.0
  %2404 = vmatpush2.msra.mxu0 0.0
  %2405 = vmatprep.subr.mxu0 0.0
  %2406 = vmatpush2.msra.mxu0 0.0
  %2407 = vmatprep.subr.mxu0 0.0
  %2408 = vmatpush2.msra.mxu0 0.0
  %2409 = vmatprep.subr.mxu0 0.0
  %2410 = vmatpush2.msra.mxu0 0.0
  %2411 = vmatprep.subr.mxu0 0.0
  %2412 = vmatpush2.msra.mxu0 0.0
  %2413 = vmatprep.subr.mxu0 0.0
  %2414 = vmatpush2.msra.mxu0 0.0
  %2415 = vmatprep.subr.mxu0 0.0
  %2416 = vmatpush2.msra.mxu0 0.0
  %2417 = vmatprep.subr.mxu0 0.0
  %2418 = vmatpush2.msra.mxu0 0.0
  %2419 = vmatprep.subr.mxu0 0.0
  %2420 = vmatpush2.msra.mxu0 0.0
  %2421 = vmatprep.subr.mxu0 0.0
  %2422 = vmatpush2.msra.mxu0 0.0
  %2423 = vmatprep.subr.mxu0 0.0
  %2424 = vmatpush2.msra.mxu0 0.0
  %2425 = vmatprep.subr.mxu0 0.0
  %2426 = vmatpush2.msra.mxu0 0.0
  %2427 = vmatprep.subr.mxu0 0.0
  %2428 = vmatpush2.msra.mxu0 0.0
  %2429 = vmatprep.mubr.f32.mxu0 0.0
  %2430 = vmatmul.mubr.f32.gmra.mxu0 %v2360
  %v2431 = vpop.f32.mrf.mxu0
  %v2432 = vadd.f32 0.0, %v2431
  %v2433 = vpop.f32.mrf.mxu0
  %2434 = vmatprep.mubr.f32.mxu0 0.0
  %2435 = vmatmul.mubr.f32.gmra.mxu0 %v2363
  %v2436 = vpop.f32.mrf.mxu0
  %v2437 = vadd.f32 0.0, %v2436
  %v2438 = vpop.f32.mrf.mxu0
  %2439 = vdwg.mxu0
  %v2441 = vsel %vm921, %v2263, 0
  %v2444 = vsel %vm921, %v2264, 0
  %2446 = vmatprep.subr.mxu0 0.0
  %2447 = vmatpush1.msra.mxu0 0.0
  %2448 = vmatprep.subr.mxu0 0.0
  %2449 = vmatpush1.msra.mxu0 0.0
  %2450 = vmatprep.subr.mxu0 0.0
  %2451 = vmatpush1.msra.mxu0 0.0
  %2452 = vmatprep.subr.mxu0 0.0
  %2453 = vmatpush1.msra.mxu0 0.0
  %2454 = vmatprep.subr.mxu0 0.0
  %2455 = vmatpush1.msra.mxu0 0.0
  %2456 = vmatprep.subr.mxu0 0.0
  %2457 = vmatpush1.msra.mxu0 0.0
  %2458 = vmatprep.subr.mxu0 0.0
  %2459 = vmatpush1.msra.mxu0 0.0
  %2460 = vmatprep.subr.mxu0 0.0
  %2461 = vmatpush1.msra.mxu0 0.0
  %2462 = vmatprep.subr.mxu0 0.0
  %2463 = vmatpush1.msra.mxu0 0.0
  %2464 = vmatprep.subr.mxu0 0.0
  %2465 = vmatpush1.msra.mxu0 0.0
  %2466 = vmatprep.subr.mxu0 0.0
  %2467 = vmatpush1.msra.mxu0 0.0
  %2468 = vmatprep.subr.mxu0 0.0
  %2469 = vmatpush1.msra.mxu0 0.0
  %2470 = vmatprep.subr.mxu0 0.0
  %2471 = vmatpush1.msra.mxu0 0.0
  %2472 = vmatprep.subr.mxu0 0.0
  %2473 = vmatpush1.msra.mxu0 0.0
  %2474 = vmatprep.subr.mxu0 0.0
  %2475 = vmatpush1.msra.mxu0 0.0
  %2476 = vmatprep.subr.mxu0 0.0
  %2477 = vmatpush1.msra.mxu0 %v2282
  %2478 = vmatprep.subr.mxu0 0.0
  %2479 = vmatpush2.msra.mxu0 0.0
  %2480 = vmatprep.subr.mxu0 0.0
  %2481 = vmatpush2.msra.mxu0 0.0
  %2482 = vmatprep.subr.mxu0 0.0
  %2483 = vmatpush2.msra.mxu0 0.0
  %2484 = vmatprep.subr.mxu0 0.0
  %2485 = vmatpush2.msra.mxu0 0.0
  %2486 = vmatprep.subr.mxu0 0.0
  %2487 = vmatpush2.msra.mxu0 0.0
  %2488 = vmatprep.subr.mxu0 0.0
  %2489 = vmatpush2.msra.mxu0 0.0
  %2490 = vmatprep.subr.mxu0 0.0
  %2491 = vmatpush2.msra.mxu0 0.0
  %2492 = vmatprep.subr.mxu0 0.0
  %2493 = vmatpush2.msra.mxu0 0.0
  %2494 = vmatprep.subr.mxu0 0.0
  %2495 = vmatpush2.msra.mxu0 0.0
  %2496 = vmatprep.subr.mxu0 0.0
  %2497 = vmatpush2.msra.mxu0 0.0
  %2498 = vmatprep.subr.mxu0 0.0
  %2499 = vmatpush2.msra.mxu0 0.0
  %2500 = vmatprep.subr.mxu0 0.0
  %2501 = vmatpush2.msra.mxu0 0.0
  %2502 = vmatprep.subr.mxu0 0.0
  %2503 = vmatpush2.msra.mxu0 0.0
  %2504 = vmatprep.subr.mxu0 0.0
  %2505 = vmatpush2.msra.mxu0 0.0
  %2506 = vmatprep.subr.mxu0 0.0
  %2507 = vmatpush2.msra.mxu0 0.0
  %2508 = vmatprep.subr.mxu0 0.0
  %2509 = vmatpush2.msra.mxu0 0.0
  %2510 = vmatprep.mubr.f32.mxu0 0.0
  %2511 = vmatmul.mubr.f32.gmra.mxu0 %v2441
  %v2512 = vpop.f32.mrf.mxu0
  %v2513 = vadd.f32 0.0, %v2512
  %v2514 = vpop.f32.mrf.mxu0
  %2515 = vmatprep.mubr.f32.mxu0 0.0
  %2516 = vmatmul.mubr.f32.gmra.mxu0 %v2444
  %v2517 = vpop.f32.mrf.mxu0
  %v2518 = vadd.f32 0.0, %v2517
  %v2519 = vpop.f32.mrf.mxu0
  %2520 = vdwg.mxu0
  %v2521 = vmul.f32 %v2351, %v2351
  %v2522 = vmul.f32 %v2356, %v2356
  %v2523 = vmul.f32 %v2432, %v2432
  %v2524 = vmul.f32 %v2437, %v2437
  %v2525 = vadd.f32 %v2521, %v2523
  %v2526 = vadd.f32 %v2522, %v2524
  %v2527 = vmul.f32 %v2513, %v2513
  %v2528 = vmul.f32 %v2518, %v2518
  %v2529 = vadd.f32 %v2525, %v2527
  %v2530 = vadd.f32 %v2526, %v2528
  %v2531 = vmax.f32 %v2529, 1e-08
  %v2532 = vmax.f32 %v2530, 1e-08
  %v2533 = vrsqrt.pop %v2531
  %v2534 = vmul.f32 %v2531, %v2533
  %vm2535 = vcmp.eq.f32.partialorder %v2531, inf
  %v2536 = vsel %vm2535, %v2531, %v2534
  %vm2537 = vcmp.eq.f32.partialorder %v2531, 0.0
  %v2538 = vand.u32 %v2531, 2147483648
  %v2539 = vsel %vm2537, %v2538, %v2536
  %v2540 = vrsqrt.pop %v2532
  %v2541 = vmul.f32 %v2532, %v2540
  %vm2542 = vcmp.eq.f32.partialorder %v2532, inf
  %v2543 = vsel %vm2542, %v2532, %v2541
  %vm2544 = vcmp.eq.f32.partialorder %v2532, 0.0
  %v2545 = vand.u32 %v2532, 2147483648
  %v2546 = vsel %vm2544, %v2545, %v2543
  %v2548 = vsel %vm921, %v2539, 0
  %v2551 = vsel %vm921, %v2546, 0
  %v2554 = vsel %vm928, %v2272, 0
  %2556 = vmatprep.subr.mxu0 0.0
  %2557 = vmatpush1.msra.mxu0 0.0
  %2558 = vmatprep.subr.mxu0 0.0
  %2559 = vmatpush1.msra.mxu0 0.0
  %2560 = vmatprep.subr.mxu0 0.0
  %2561 = vmatpush1.msra.mxu0 0.0
  %2562 = vmatprep.subr.mxu0 0.0
  %2563 = vmatpush1.msra.mxu0 0.0
  %2564 = vmatprep.subr.mxu0 0.0
  %2565 = vmatpush1.msra.mxu0 0.0
  %2566 = vmatprep.subr.mxu0 0.0
  %2567 = vmatpush1.msra.mxu0 0.0
  %2568 = vmatprep.subr.mxu0 0.0
  %2569 = vmatpush1.msra.mxu0 0.0
  %2570 = vmatprep.subr.mxu0 0.0
  %2571 = vmatpush1.msra.mxu0 0.0
  %2572 = vmatprep.subr.mxu0 0.0
  %2573 = vmatpush1.msra.mxu0 0.0
  %2574 = vmatprep.subr.mxu0 0.0
  %2575 = vmatpush1.msra.mxu0 0.0
  %2576 = vmatprep.subr.mxu0 0.0
  %2577 = vmatpush1.msra.mxu0 0.0
  %2578 = vmatprep.subr.mxu0 0.0
  %2579 = vmatpush1.msra.mxu0 0.0
  %2580 = vmatprep.subr.mxu0 0.0
  %2581 = vmatpush1.msra.mxu0 0.0
  %2582 = vmatprep.subr.mxu0 0.0
  %2583 = vmatpush1.msra.mxu0 0.0
  %2584 = vmatprep.subr.mxu0 0.0
  %2585 = vmatpush1.msra.mxu0 0.0
  %2586 = vmatprep.subr.mxu0 0.0
  %2587 = vmatpush1.msra.mxu0 %v2554
  %2588 = vmatprep.subr.mxu0 0.0
  %2589 = vmatpush2.msra.mxu0 0.0
  %2590 = vmatprep.subr.mxu0 0.0
  %2591 = vmatpush2.msra.mxu0 0.0
  %2592 = vmatprep.subr.mxu0 0.0
  %2593 = vmatpush2.msra.mxu0 0.0
  %2594 = vmatprep.subr.mxu0 0.0
  %2595 = vmatpush2.msra.mxu0 0.0
  %2596 = vmatprep.subr.mxu0 0.0
  %2597 = vmatpush2.msra.mxu0 0.0
  %2598 = vmatprep.subr.mxu0 0.0
  %2599 = vmatpush2.msra.mxu0 0.0
  %2600 = vmatprep.subr.mxu0 0.0
  %2601 = vmatpush2.msra.mxu0 0.0
  %2602 = vmatprep.subr.mxu0 0.0
  %2603 = vmatpush2.msra.mxu0 0.0
  %2604 = vmatprep.subr.mxu0 0.0
  %2605 = vmatpush2.msra.mxu0 0.0
  %2606 = vmatprep.subr.mxu0 0.0
  %2607 = vmatpush2.msra.mxu0 0.0
  %2608 = vmatprep.subr.mxu0 0.0
  %2609 = vmatpush2.msra.mxu0 0.0
  %2610 = vmatprep.subr.mxu0 0.0
  %2611 = vmatpush2.msra.mxu0 0.0
  %2612 = vmatprep.subr.mxu0 0.0
  %2613 = vmatpush2.msra.mxu0 0.0
  %2614 = vmatprep.subr.mxu0 0.0
  %2615 = vmatpush2.msra.mxu0 0.0
  %2616 = vmatprep.subr.mxu0 0.0
  %2617 = vmatpush2.msra.mxu0 0.0
  %2618 = vmatprep.subr.mxu0 0.0
  %2619 = vmatpush2.msra.mxu0 0.0
  %2620 = vmatprep.mubr.f32.mxu0 0.0
  %2621 = vmatmul.mubr.f32.gmra.mxu0 %v2548
  %v2622 = vpop.f32.mrf.mxu0
  %v2623 = vadd.f32 0.0, %v2622
  %v2624 = vpop.f32.mrf.mxu0
  %2625 = vmatprep.mubr.f32.mxu0 0.0
  %2626 = vmatmul.mubr.f32.gmra.mxu0 %v2551
  %v2627 = vpop.f32.mrf.mxu0
  %v2628 = vadd.f32 0.0, %v2627
  %v2629 = vpop.f32.mrf.mxu0
  %2630 = vdwg.mxu0
  %v2632 = vsel %vm1599, %v2265, 0
  %v2635 = vsel %vm1599, %v2266, 0
  %2637 = vmatprep.subr.mxu0 0.0
  %2638 = vmatpush1.msra.mxu0 0.0
  %2639 = vmatprep.subr.mxu0 0.0
  %2640 = vmatpush1.msra.mxu0 0.0
  %2641 = vmatprep.subr.mxu0 0.0
  %2642 = vmatpush1.msra.mxu0 0.0
  %2643 = vmatprep.subr.mxu0 0.0
  %2644 = vmatpush1.msra.mxu0 0.0
  %2645 = vmatprep.subr.mxu0 0.0
  %2646 = vmatpush1.msra.mxu0 0.0
  %2647 = vmatprep.subr.mxu0 0.0
  %2648 = vmatpush1.msra.mxu0 0.0
  %2649 = vmatprep.subr.mxu0 0.0
  %2650 = vmatpush1.msra.mxu0 0.0
  %2651 = vmatprep.subr.mxu0 0.0
  %2652 = vmatpush1.msra.mxu0 0.0
  %2653 = vmatprep.subr.mxu0 0.0
  %2654 = vmatpush1.msra.mxu0 0.0
  %2655 = vmatprep.subr.mxu0 0.0
  %2656 = vmatpush1.msra.mxu0 0.0
  %2657 = vmatprep.subr.mxu0 0.0
  %2658 = vmatpush1.msra.mxu0 0.0
  %2659 = vmatprep.subr.mxu0 0.0
  %2660 = vmatpush1.msra.mxu0 0.0
  %2661 = vmatprep.subr.mxu0 0.0
  %2662 = vmatpush1.msra.mxu0 %v2271
  %2663 = vmatprep.subr.mxu0 0.0
  %2664 = vmatpush1.msra.mxu0 %v2270
  %2665 = vmatprep.subr.mxu0 0.0
  %2666 = vmatpush1.msra.mxu0 %v2269
  %2667 = vmatprep.subr.mxu0 0.0
  %2668 = vmatpush1.msra.mxu0 %v2268
  %2669 = vmatprep.subr.mxu0 0.0
  %2670 = vmatpush2.msra.mxu0 0.0
  %2671 = vmatprep.subr.mxu0 0.0
  %2672 = vmatpush2.msra.mxu0 0.0
  %2673 = vmatprep.subr.mxu0 0.0
  %2674 = vmatpush2.msra.mxu0 0.0
  %2675 = vmatprep.subr.mxu0 0.0
  %2676 = vmatpush2.msra.mxu0 0.0
  %2677 = vmatprep.subr.mxu0 0.0
  %2678 = vmatpush2.msra.mxu0 0.0
  %2679 = vmatprep.subr.mxu0 0.0
  %2680 = vmatpush2.msra.mxu0 0.0
  %2681 = vmatprep.subr.mxu0 0.0
  %2682 = vmatpush2.msra.mxu0 0.0
  %2683 = vmatprep.subr.mxu0 0.0
  %2684 = vmatpush2.msra.mxu0 0.0
  %2685 = vmatprep.subr.mxu0 0.0
  %2686 = vmatpush2.msra.mxu0 0.0
  %2687 = vmatprep.subr.mxu0 0.0
  %2688 = vmatpush2.msra.mxu0 0.0
  %2689 = vmatprep.subr.mxu0 0.0
  %2690 = vmatpush2.msra.mxu0 0.0
  %2691 = vmatprep.subr.mxu0 0.0
  %2692 = vmatpush2.msra.mxu0 0.0
  %2693 = vmatprep.subr.mxu0 0.0
  %2694 = vmatpush2.msra.mxu0 0.0
  %2695 = vmatprep.subr.mxu0 0.0
  %2696 = vmatpush2.msra.mxu0 0.0
  %2697 = vmatprep.subr.mxu0 0.0
  %2698 = vmatpush2.msra.mxu0 0.0
  %2699 = vmatprep.subr.mxu0 0.0
  %2700 = vmatpush2.msra.mxu0 0.0
  %2701 = vmatprep.mubr.f32.mxu0 0.0
  %2702 = vmatmul.mubr.f32.gmra.mxu0 %v2632
  %v2703 = vpop.f32.mrf.mxu0
  %v2704 = vadd.f32 %v2623, %v2703
  %v2705 = vpop.f32.mrf.mxu0
  %2706 = vmatprep.mubr.f32.mxu0 0.0
  %2707 = vmatmul.mubr.f32.gmra.mxu0 %v2635
  %v2708 = vpop.f32.mrf.mxu0
  %v2709 = vadd.f32 %v2628, %v2708
  %v2710 = vpop.f32.mrf.mxu0
  %2711 = vdwg.mxu0
  %v2713 = vlaneseq
  %v2714 = vshrl.u32 %v2713, 7
  %v2715 = vsub.s32 0, %v2714
  %v2716 = vrot.slane %v2273, %v2715
  %v2718 = vadd.f32 %v2704, %v2716
  %v2719 = vadd.f32 %v2709, %v2716
  %v2721 = vsel %vm921, %v2351, 0
  %v2724 = vsel %vm921, %v2356, 0
  %v2727 = vsel %vm928, %v2274, 0
  %2729 = vmatprep.subr.mxu0 0.0
  %2730 = vmatpush1.msra.mxu0 0.0
  %2731 = vmatprep.subr.mxu0 0.0
  %2732 = vmatpush1.msra.mxu0 0.0
  %2733 = vmatprep.subr.mxu0 0.0
  %2734 = vmatpush1.msra.mxu0 0.0
  %2735 = vmatprep.subr.mxu0 0.0
  %2736 = vmatpush1.msra.mxu0 0.0
  %2737 = vmatprep.subr.mxu0 0.0
  %2738 = vmatpush1.msra.mxu0 0.0
  %2739 = vmatprep.subr.mxu0 0.0
  %2740 = vmatpush1.msra.mxu0 0.0
  %2741 = vmatprep.subr.mxu0 0.0
  %2742 = vmatpush1.msra.mxu0 0.0
  %2743 = vmatprep.subr.mxu0 0.0
  %2744 = vmatpush1.msra.mxu0 0.0
  %2745 = vmatprep.subr.mxu0 0.0
  %2746 = vmatpush1.msra.mxu0 0.0
  %2747 = vmatprep.subr.mxu0 0.0
  %2748 = vmatpush1.msra.mxu0 0.0
  %2749 = vmatprep.subr.mxu0 0.0
  %2750 = vmatpush1.msra.mxu0 0.0
  %2751 = vmatprep.subr.mxu0 0.0
  %2752 = vmatpush1.msra.mxu0 0.0
  %2753 = vmatprep.subr.mxu0 0.0
  %2754 = vmatpush1.msra.mxu0 0.0
  %2755 = vmatprep.subr.mxu0 0.0
  %2756 = vmatpush1.msra.mxu0 0.0
  %2757 = vmatprep.subr.mxu0 0.0
  %2758 = vmatpush1.msra.mxu0 0.0
  %2759 = vmatprep.subr.mxu0 0.0
  %2760 = vmatpush1.msra.mxu0 %v2727
  %2761 = vmatprep.subr.mxu0 0.0
  %2762 = vmatpush2.msra.mxu0 0.0
  %2763 = vmatprep.subr.mxu0 0.0
  %2764 = vmatpush2.msra.mxu0 0.0
  %2765 = vmatprep.subr.mxu0 0.0
  %2766 = vmatpush2.msra.mxu0 0.0
  %2767 = vmatprep.subr.mxu0 0.0
  %2768 = vmatpush2.msra.mxu0 0.0
  %2769 = vmatprep.subr.mxu0 0.0
  %2770 = vmatpush2.msra.mxu0 0.0
  %2771 = vmatprep.subr.mxu0 0.0
  %2772 = vmatpush2.msra.mxu0 0.0
  %2773 = vmatprep.subr.mxu0 0.0
  %2774 = vmatpush2.msra.mxu0 0.0
  %2775 = vmatprep.subr.mxu0 0.0
  %2776 = vmatpush2.msra.mxu0 0.0
  %2777 = vmatprep.subr.mxu0 0.0
  %2778 = vmatpush2.msra.mxu0 0.0
  %2779 = vmatprep.subr.mxu0 0.0
  %2780 = vmatpush2.msra.mxu0 0.0
  %2781 = vmatprep.subr.mxu0 0.0
  %2782 = vmatpush2.msra.mxu0 0.0
  %2783 = vmatprep.subr.mxu0 0.0
  %2784 = vmatpush2.msra.mxu0 0.0
  %2785 = vmatprep.subr.mxu0 0.0
  %2786 = vmatpush2.msra.mxu0 0.0
  %2787 = vmatprep.subr.mxu0 0.0
  %2788 = vmatpush2.msra.mxu0 0.0
  %2789 = vmatprep.subr.mxu0 0.0
  %2790 = vmatpush2.msra.mxu0 0.0
  %2791 = vmatprep.subr.mxu0 0.0
  %2792 = vmatpush2.msra.mxu0 0.0
  %2793 = vmatprep.mubr.f32.mxu0 0.0
  %2794 = vmatmul.mubr.f32.gmra.mxu0 %v2721
  %v2795 = vpop.f32.mrf.mxu0
  %v2796 = vadd.f32 0.0, %v2795
  %v2797 = vpop.f32.mrf.mxu0
  %2798 = vmatprep.mubr.f32.mxu0 0.0
  %2799 = vmatmul.mubr.f32.gmra.mxu0 %v2724
  %v2800 = vpop.f32.mrf.mxu0
  %v2801 = vadd.f32 0.0, %v2800
  %v2802 = vpop.f32.mrf.mxu0
  %2803 = vdwg.mxu0
  %v2805 = vsel %vm921, %v2432, 0
  %v2808 = vsel %vm921, %v2437, 0
  %2810 = vmatprep.subr.mxu0 0.0
  %2811 = vmatpush1.msra.mxu0 0.0
  %2812 = vmatprep.subr.mxu0 0.0
  %2813 = vmatpush1.msra.mxu0 0.0
  %2814 = vmatprep.subr.mxu0 0.0
  %2815 = vmatpush1.msra.mxu0 0.0
  %2816 = vmatprep.subr.mxu0 0.0
  %2817 = vmatpush1.msra.mxu0 0.0
  %2818 = vmatprep.subr.mxu0 0.0
  %2819 = vmatpush1.msra.mxu0 0.0
  %2820 = vmatprep.subr.mxu0 0.0
  %2821 = vmatpush1.msra.mxu0 0.0
  %2822 = vmatprep.subr.mxu0 0.0
  %2823 = vmatpush1.msra.mxu0 0.0
  %2824 = vmatprep.subr.mxu0 0.0
  %2825 = vmatpush1.msra.mxu0 0.0
  %2826 = vmatprep.subr.mxu0 0.0
  %2827 = vmatpush1.msra.mxu0 0.0
  %2828 = vmatprep.subr.mxu0 0.0
  %2829 = vmatpush1.msra.mxu0 0.0
  %2830 = vmatprep.subr.mxu0 0.0
  %2831 = vmatpush1.msra.mxu0 0.0
  %2832 = vmatprep.subr.mxu0 0.0
  %2833 = vmatpush1.msra.mxu0 0.0
  %2834 = vmatprep.subr.mxu0 0.0
  %2835 = vmatpush1.msra.mxu0 0.0
  %2836 = vmatprep.subr.mxu0 0.0
  %2837 = vmatpush1.msra.mxu0 0.0
  %2838 = vmatprep.subr.mxu0 0.0
  %2839 = vmatpush1.msra.mxu0 0.0
  %2840 = vmatprep.subr.mxu0 0.0
  %2841 = vmatpush1.msra.mxu0 %v2727
  %2842 = vmatprep.subr.mxu0 0.0
  %2843 = vmatpush2.msra.mxu0 0.0
  %2844 = vmatprep.subr.mxu0 0.0
  %2845 = vmatpush2.msra.mxu0 0.0
  %2846 = vmatprep.subr.mxu0 0.0
  %2847 = vmatpush2.msra.mxu0 0.0
  %2848 = vmatprep.subr.mxu0 0.0
  %2849 = vmatpush2.msra.mxu0 0.0
  %2850 = vmatprep.subr.mxu0 0.0
  %2851 = vmatpush2.msra.mxu0 0.0
  %2852 = vmatprep.subr.mxu0 0.0
  %2853 = vmatpush2.msra.mxu0 0.0
  %2854 = vmatprep.subr.mxu0 0.0
  %2855 = vmatpush2.msra.mxu0 0.0
  %2856 = vmatprep.subr.mxu0 0.0
  %2857 = vmatpush2.msra.mxu0 0.0
  %2858 = vmatprep.subr.mxu0 0.0
  %2859 = vmatpush2.msra.mxu0 0.0
  %2860 = vmatprep.subr.mxu0 0.0
  %2861 = vmatpush2.msra.mxu0 0.0
  %2862 = vmatprep.subr.mxu0 0.0
  %2863 = vmatpush2.msra.mxu0 0.0
  %2864 = vmatprep.subr.mxu0 0.0
  %2865 = vmatpush2.msra.mxu0 0.0
  %2866 = vmatprep.subr.mxu0 0.0
  %2867 = vmatpush2.msra.mxu0 0.0
  %2868 = vmatprep.subr.mxu0 0.0
  %2869 = vmatpush2.msra.mxu0 0.0
  %2870 = vmatprep.subr.mxu0 0.0
  %2871 = vmatpush2.msra.mxu0 0.0
  %2872 = vmatprep.subr.mxu0 0.0
  %2873 = vmatpush2.msra.mxu0 0.0
  %2874 = vmatprep.mubr.f32.mxu0 0.0
  %2875 = vmatmul.mubr.f32.gmra.mxu0 %v2805
  %v2876 = vpop.f32.mrf.mxu0
  %v2877 = vadd.f32 0.0, %v2876
  %v2878 = vpop.f32.mrf.mxu0
  %2879 = vmatprep.mubr.f32.mxu0 0.0
  %2880 = vmatmul.mubr.f32.gmra.mxu0 %v2808
  %v2881 = vpop.f32.mrf.mxu0
  %v2882 = vadd.f32 0.0, %v2881
  %v2883 = vpop.f32.mrf.mxu0
  %2884 = vdwg.mxu0
  %v2886 = vsel %vm921, %v2513, 0
  %v2889 = vsel %vm921, %v2518, 0
  %2891 = vmatprep.subr.mxu0 0.0
  %2892 = vmatpush1.msra.mxu0 0.0
  %2893 = vmatprep.subr.mxu0 0.0
  %2894 = vmatpush1.msra.mxu0 0.0
  %2895 = vmatprep.subr.mxu0 0.0
  %2896 = vmatpush1.msra.mxu0 0.0
  %2897 = vmatprep.subr.mxu0 0.0
  %2898 = vmatpush1.msra.mxu0 0.0
  %2899 = vmatprep.subr.mxu0 0.0
  %2900 = vmatpush1.msra.mxu0 0.0
  %2901 = vmatprep.subr.mxu0 0.0
  %2902 = vmatpush1.msra.mxu0 0.0
  %2903 = vmatprep.subr.mxu0 0.0
  %2904 = vmatpush1.msra.mxu0 0.0
  %2905 = vmatprep.subr.mxu0 0.0
  %2906 = vmatpush1.msra.mxu0 0.0
  %2907 = vmatprep.subr.mxu0 0.0
  %2908 = vmatpush1.msra.mxu0 0.0
  %2909 = vmatprep.subr.mxu0 0.0
  %2910 = vmatpush1.msra.mxu0 0.0
  %2911 = vmatprep.subr.mxu0 0.0
  %2912 = vmatpush1.msra.mxu0 0.0
  %2913 = vmatprep.subr.mxu0 0.0
  %2914 = vmatpush1.msra.mxu0 0.0
  %2915 = vmatprep.subr.mxu0 0.0
  %2916 = vmatpush1.msra.mxu0 0.0
  %2917 = vmatprep.subr.mxu0 0.0
  %2918 = vmatpush1.msra.mxu0 0.0
  %2919 = vmatprep.subr.mxu0 0.0
  %2920 = vmatpush1.msra.mxu0 0.0
  %2921 = vmatprep.subr.mxu0 0.0
  %2922 = vmatpush1.msra.mxu0 %v2727
  %2923 = vmatprep.subr.mxu0 0.0
  %2924 = vmatpush2.msra.mxu0 0.0
  %2925 = vmatprep.subr.mxu0 0.0
  %2926 = vmatpush2.msra.mxu0 0.0
  %2927 = vmatprep.subr.mxu0 0.0
  %2928 = vmatpush2.msra.mxu0 0.0
  %2929 = vmatprep.subr.mxu0 0.0
  %2930 = vmatpush2.msra.mxu0 0.0
  %2931 = vmatprep.subr.mxu0 0.0
  %2932 = vmatpush2.msra.mxu0 0.0
  %2933 = vmatprep.subr.mxu0 0.0
  %2934 = vmatpush2.msra.mxu0 0.0
  %2935 = vmatprep.subr.mxu0 0.0
  %2936 = vmatpush2.msra.mxu0 0.0
  %2937 = vmatprep.subr.mxu0 0.0
  %2938 = vmatpush2.msra.mxu0 0.0
  %2939 = vmatprep.subr.mxu0 0.0
  %2940 = vmatpush2.msra.mxu0 0.0
  %2941 = vmatprep.subr.mxu0 0.0
  %2942 = vmatpush2.msra.mxu0 0.0
  %2943 = vmatprep.subr.mxu0 0.0
  %2944 = vmatpush2.msra.mxu0 0.0
  %2945 = vmatprep.subr.mxu0 0.0
  %2946 = vmatpush2.msra.mxu0 0.0
  %2947 = vmatprep.subr.mxu0 0.0
  %2948 = vmatpush2.msra.mxu0 0.0
  %2949 = vmatprep.subr.mxu0 0.0
  %2950 = vmatpush2.msra.mxu0 0.0
  %2951 = vmatprep.subr.mxu0 0.0
  %2952 = vmatpush2.msra.mxu0 0.0
  %2953 = vmatprep.subr.mxu0 0.0
  %2954 = vmatpush2.msra.mxu0 0.0
  %2955 = vmatprep.mubr.f32.mxu0 0.0
  %2956 = vmatmul.mubr.f32.gmra.mxu0 %v2886
  %v2957 = vpop.f32.mrf.mxu0
  %v2958 = vadd.f32 0.0, %v2957
  %v2959 = vpop.f32.mrf.mxu0
  %2960 = vmatprep.mubr.f32.mxu0 0.0
  %2961 = vmatmul.mubr.f32.gmra.mxu0 %v2889
  %v2962 = vpop.f32.mrf.mxu0
  %v2963 = vadd.f32 0.0, %v2962
  %v2964 = vpop.f32.mrf.mxu0
  %2965 = vdwg.mxu0
  %v2966 = vmul.f32 %v2796, %v2796
  %v2967 = vmul.f32 %v2801, %v2801
  %v2968 = vmul.f32 %v2877, %v2877
  %v2969 = vmul.f32 %v2882, %v2882
  %v2970 = vadd.f32 %v2966, %v2968
  %v2971 = vadd.f32 %v2967, %v2969
  %v2972 = vmul.f32 %v2958, %v2958
  %v2973 = vmul.f32 %v2963, %v2963
  %v2974 = vadd.f32 %v2970, %v2972
  %v2975 = vadd.f32 %v2971, %v2973
  %v2976 = vmax.f32 %v2974, 1e-08
  %v2977 = vmax.f32 %v2975, 1e-08
  %v2978 = vrsqrt.pop %v2976
  %v2979 = vmul.f32 %v2976, %v2978
  %vm2980 = vcmp.eq.f32.partialorder %v2976, inf
  %v2981 = vsel %vm2980, %v2976, %v2979
  %vm2982 = vcmp.eq.f32.partialorder %v2976, 0.0
  %v2983 = vand.u32 %v2976, 2147483648
  %v2984 = vsel %vm2982, %v2983, %v2981
  %v2985 = vrsqrt.pop %v2977
  %v2986 = vmul.f32 %v2977, %v2985
  %vm2987 = vcmp.eq.f32.partialorder %v2977, inf
  %v2988 = vsel %vm2987, %v2977, %v2986
  %vm2989 = vcmp.eq.f32.partialorder %v2977, 0.0
  %v2990 = vand.u32 %v2977, 2147483648
  %v2991 = vsel %vm2989, %v2990, %v2988
  %v2992 = vsub.f32 0.0, %v2984
  %v2993 = vsub.f32 0.0, %v2991
  %v2994 = vmul.f32 %v2992, 1.442695
  %v2995 = vpow.pop %v2994
  %v2996 = vmul.f32 %v2993, 1.442695
  %v2997 = vpow.pop %v2996
  %v2998 = vadd.f32 %v2995, 1.0
  %v2999 = vadd.f32 %v2997, 1.0
  %v3000 = vrcp.pop %v2998
  %v3001 = vmul.f32 1.0, %v3000
  %v3002 = vrcp.pop %v2999
  %v3003 = vmul.f32 1.0, %v3002
  %v3004 = vmul.f32 %v2796, %v3001
  %v3005 = vmul.f32 %v2801, %v3003
  %v3006 = vmul.f32 %v2877, %v3001
  %v3007 = vmul.f32 %v2882, %v3003
  %v3008 = vmul.f32 %v2958, %v3001
  %v3009 = vmul.f32 %v2963, %v3003
  %v3010 = vmax.f32 %v2718, 0.0
  %v3011 = vmax.f32 %v2719, 0.0
  %v3012 = vld [vmem:[%s43] sm:$0xf]
  %v3013 = vld [vmem:[%s45] sm:$0xff]
  %v3014 = vld [vmem:[%s45 + $0x8] sm:$0xff]
  %v3015 = vld [vmem:[%s45 + $0x10] sm:$0xff]
  %v3016 = vld [vmem:[%s45 + $0x18] sm:$0xff]
  %v3017 = vld [vmem:[%s47] sm:$0xf]
  %v3018 = vld [vmem:[%s49] sm:$0x1]
  %v3019 = vld [vmem:[%s51] sm:$0xf]
  %v3021 = vsel %vm921, %v3004, 0
  %v3024 = vsel %vm921, %v3005, 0
  %v3027 = vsel %vm928, %v3012, 0
  %3029 = vmatprep.subr.mxu0 0.0
  %3030 = vmatpush1.msra.mxu0 0.0
  %3031 = vmatprep.subr.mxu0 0.0
  %3032 = vmatpush1.msra.mxu0 0.0
  %3033 = vmatprep.subr.mxu0 0.0
  %3034 = vmatpush1.msra.mxu0 0.0
  %3035 = vmatprep.subr.mxu0 0.0
  %3036 = vmatpush1.msra.mxu0 0.0
  %3037 = vmatprep.subr.mxu0 0.0
  %3038 = vmatpush1.msra.mxu0 0.0
  %3039 = vmatprep.subr.mxu0 0.0
  %3040 = vmatpush1.msra.mxu0 0.0
  %3041 = vmatprep.subr.mxu0 0.0
  %3042 = vmatpush1.msra.mxu0 0.0
  %3043 = vmatprep.subr.mxu0 0.0
  %3044 = vmatpush1.msra.mxu0 0.0
  %3045 = vmatprep.subr.mxu0 0.0
  %3046 = vmatpush1.msra.mxu0 0.0
  %3047 = vmatprep.subr.mxu0 0.0
  %3048 = vmatpush1.msra.mxu0 0.0
  %3049 = vmatprep.subr.mxu0 0.0
  %3050 = vmatpush1.msra.mxu0 0.0
  %3051 = vmatprep.subr.mxu0 0.0
  %3052 = vmatpush1.msra.mxu0 0.0
  %3053 = vmatprep.subr.mxu0 0.0
  %3054 = vmatpush1.msra.mxu0 0.0
  %3055 = vmatprep.subr.mxu0 0.0
  %3056 = vmatpush1.msra.mxu0 0.0
  %3057 = vmatprep.subr.mxu0 0.0
  %3058 = vmatpush1.msra.mxu0 0.0
  %3059 = vmatprep.subr.mxu0 0.0
  %3060 = vmatpush1.msra.mxu0 %v3027
  %3061 = vmatprep.subr.mxu0 0.0
  %3062 = vmatpush2.msra.mxu0 0.0
  %3063 = vmatprep.subr.mxu0 0.0
  %3064 = vmatpush2.msra.mxu0 0.0
  %3065 = vmatprep.subr.mxu0 0.0
  %3066 = vmatpush2.msra.mxu0 0.0
  %3067 = vmatprep.subr.mxu0 0.0
  %3068 = vmatpush2.msra.mxu0 0.0
  %3069 = vmatprep.subr.mxu0 0.0
  %3070 = vmatpush2.msra.mxu0 0.0
  %3071 = vmatprep.subr.mxu0 0.0
  %3072 = vmatpush2.msra.mxu0 0.0
  %3073 = vmatprep.subr.mxu0 0.0
  %3074 = vmatpush2.msra.mxu0 0.0
  %3075 = vmatprep.subr.mxu0 0.0
  %3076 = vmatpush2.msra.mxu0 0.0
  %3077 = vmatprep.subr.mxu0 0.0
  %3078 = vmatpush2.msra.mxu0 0.0
  %3079 = vmatprep.subr.mxu0 0.0
  %3080 = vmatpush2.msra.mxu0 0.0
  %3081 = vmatprep.subr.mxu0 0.0
  %3082 = vmatpush2.msra.mxu0 0.0
  %3083 = vmatprep.subr.mxu0 0.0
  %3084 = vmatpush2.msra.mxu0 0.0
  %3085 = vmatprep.subr.mxu0 0.0
  %3086 = vmatpush2.msra.mxu0 0.0
  %3087 = vmatprep.subr.mxu0 0.0
  %3088 = vmatpush2.msra.mxu0 0.0
  %3089 = vmatprep.subr.mxu0 0.0
  %3090 = vmatpush2.msra.mxu0 0.0
  %3091 = vmatprep.subr.mxu0 0.0
  %3092 = vmatpush2.msra.mxu0 0.0
  %3093 = vmatprep.mubr.f32.mxu0 0.0
  %3094 = vmatmul.mubr.f32.gmra.mxu0 %v3021
  %v3095 = vpop.f32.mrf.mxu0
  %v3096 = vadd.f32 0.0, %v3095
  %v3097 = vpop.f32.mrf.mxu0
  %3098 = vmatprep.mubr.f32.mxu0 0.0
  %3099 = vmatmul.mubr.f32.gmra.mxu0 %v3024
  %v3100 = vpop.f32.mrf.mxu0
  %v3101 = vadd.f32 0.0, %v3100
  %v3102 = vpop.f32.mrf.mxu0
  %3103 = vdwg.mxu0
  %v3105 = vsel %vm921, %v3006, 0
  %v3108 = vsel %vm921, %v3007, 0
  %3110 = vmatprep.subr.mxu0 0.0
  %3111 = vmatpush1.msra.mxu0 0.0
  %3112 = vmatprep.subr.mxu0 0.0
  %3113 = vmatpush1.msra.mxu0 0.0
  %3114 = vmatprep.subr.mxu0 0.0
  %3115 = vmatpush1.msra.mxu0 0.0
  %3116 = vmatprep.subr.mxu0 0.0
  %3117 = vmatpush1.msra.mxu0 0.0
  %3118 = vmatprep.subr.mxu0 0.0
  %3119 = vmatpush1.msra.mxu0 0.0
  %3120 = vmatprep.subr.mxu0 0.0
  %3121 = vmatpush1.msra.mxu0 0.0
  %3122 = vmatprep.subr.mxu0 0.0
  %3123 = vmatpush1.msra.mxu0 0.0
  %3124 = vmatprep.subr.mxu0 0.0
  %3125 = vmatpush1.msra.mxu0 0.0
  %3126 = vmatprep.subr.mxu0 0.0
  %3127 = vmatpush1.msra.mxu0 0.0
  %3128 = vmatprep.subr.mxu0 0.0
  %3129 = vmatpush1.msra.mxu0 0.0
  %3130 = vmatprep.subr.mxu0 0.0
  %3131 = vmatpush1.msra.mxu0 0.0
  %3132 = vmatprep.subr.mxu0 0.0
  %3133 = vmatpush1.msra.mxu0 0.0
  %3134 = vmatprep.subr.mxu0 0.0
  %3135 = vmatpush1.msra.mxu0 0.0
  %3136 = vmatprep.subr.mxu0 0.0
  %3137 = vmatpush1.msra.mxu0 0.0
  %3138 = vmatprep.subr.mxu0 0.0
  %3139 = vmatpush1.msra.mxu0 0.0
  %3140 = vmatprep.subr.mxu0 0.0
  %3141 = vmatpush1.msra.mxu0 %v3027
  %3142 = vmatprep.subr.mxu0 0.0
  %3143 = vmatpush2.msra.mxu0 0.0
  %3144 = vmatprep.subr.mxu0 0.0
  %3145 = vmatpush2.msra.mxu0 0.0
  %3146 = vmatprep.subr.mxu0 0.0
  %3147 = vmatpush2.msra.mxu0 0.0
  %3148 = vmatprep.subr.mxu0 0.0
  %3149 = vmatpush2.msra.mxu0 0.0
  %3150 = vmatprep.subr.mxu0 0.0
  %3151 = vmatpush2.msra.mxu0 0.0
  %3152 = vmatprep.subr.mxu0 0.0
  %3153 = vmatpush2.msra.mxu0 0.0
  %3154 = vmatprep.subr.mxu0 0.0
  %3155 = vmatpush2.msra.mxu0 0.0
  %3156 = vmatprep.subr.mxu0 0.0
  %3157 = vmatpush2.msra.mxu0 0.0
  %3158 = vmatprep.subr.mxu0 0.0
  %3159 = vmatpush2.msra.mxu0 0.0
  %3160 = vmatprep.subr.mxu0 0.0
  %3161 = vmatpush2.msra.mxu0 0.0
  %3162 = vmatprep.subr.mxu0 0.0
  %3163 = vmatpush2.msra.mxu0 0.0
  %3164 = vmatprep.subr.mxu0 0.0
  %3165 = vmatpush2.msra.mxu0 0.0
  %3166 = vmatprep.subr.mxu0 0.0
  %3167 = vmatpush2.msra.mxu0 0.0
  %3168 = vmatprep.subr.mxu0 0.0
  %3169 = vmatpush2.msra.mxu0 0.0
  %3170 = vmatprep.subr.mxu0 0.0
  %3171 = vmatpush2.msra.mxu0 0.0
  %3172 = vmatprep.subr.mxu0 0.0
  %3173 = vmatpush2.msra.mxu0 0.0
  %3174 = vmatprep.mubr.f32.mxu0 0.0
  %3175 = vmatmul.mubr.f32.gmra.mxu0 %v3105
  %v3176 = vpop.f32.mrf.mxu0
  %v3177 = vadd.f32 0.0, %v3176
  %v3178 = vpop.f32.mrf.mxu0
  %3179 = vmatprep.mubr.f32.mxu0 0.0
  %3180 = vmatmul.mubr.f32.gmra.mxu0 %v3108
  %v3181 = vpop.f32.mrf.mxu0
  %v3182 = vadd.f32 0.0, %v3181
  %v3183 = vpop.f32.mrf.mxu0
  %3184 = vdwg.mxu0
  %v3186 = vsel %vm921, %v3008, 0
  %v3189 = vsel %vm921, %v3009, 0
  %3191 = vmatprep.subr.mxu0 0.0
  %3192 = vmatpush1.msra.mxu0 0.0
  %3193 = vmatprep.subr.mxu0 0.0
  %3194 = vmatpush1.msra.mxu0 0.0
  %3195 = vmatprep.subr.mxu0 0.0
  %3196 = vmatpush1.msra.mxu0 0.0
  %3197 = vmatprep.subr.mxu0 0.0
  %3198 = vmatpush1.msra.mxu0 0.0
  %3199 = vmatprep.subr.mxu0 0.0
  %3200 = vmatpush1.msra.mxu0 0.0
  %3201 = vmatprep.subr.mxu0 0.0
  %3202 = vmatpush1.msra.mxu0 0.0
  %3203 = vmatprep.subr.mxu0 0.0
  %3204 = vmatpush1.msra.mxu0 0.0
  %3205 = vmatprep.subr.mxu0 0.0
  %3206 = vmatpush1.msra.mxu0 0.0
  %3207 = vmatprep.subr.mxu0 0.0
  %3208 = vmatpush1.msra.mxu0 0.0
  %3209 = vmatprep.subr.mxu0 0.0
  %3210 = vmatpush1.msra.mxu0 0.0
  %3211 = vmatprep.subr.mxu0 0.0
  %3212 = vmatpush1.msra.mxu0 0.0
  %3213 = vmatprep.subr.mxu0 0.0
  %3214 = vmatpush1.msra.mxu0 0.0
  %3215 = vmatprep.subr.mxu0 0.0
  %3216 = vmatpush1.msra.mxu0 0.0
  %3217 = vmatprep.subr.mxu0 0.0
  %3218 = vmatpush1.msra.mxu0 0.0
  %3219 = vmatprep.subr.mxu0 0.0
  %3220 = vmatpush1.msra.mxu0 0.0
  %3221 = vmatprep.subr.mxu0 0.0
  %3222 = vmatpush1.msra.mxu0 %v3027
  %3223 = vmatprep.subr.mxu0 0.0
  %3224 = vmatpush2.msra.mxu0 0.0
  %3225 = vmatprep.subr.mxu0 0.0
  %3226 = vmatpush2.msra.mxu0 0.0
  %3227 = vmatprep.subr.mxu0 0.0
  %3228 = vmatpush2.msra.mxu0 0.0
  %3229 = vmatprep.subr.mxu0 0.0
  %3230 = vmatpush2.msra.mxu0 0.0
  %3231 = vmatprep.subr.mxu0 0.0
  %3232 = vmatpush2.msra.mxu0 0.0
  %3233 = vmatprep.subr.mxu0 0.0
  %3234 = vmatpush2.msra.mxu0 0.0
  %3235 = vmatprep.subr.mxu0 0.0
  %3236 = vmatpush2.msra.mxu0 0.0
  %3237 = vmatprep.subr.mxu0 0.0
  %3238 = vmatpush2.msra.mxu0 0.0
  %3239 = vmatprep.subr.mxu0 0.0
  %3240 = vmatpush2.msra.mxu0 0.0
  %3241 = vmatprep.subr.mxu0 0.0
  %3242 = vmatpush2.msra.mxu0 0.0
  %3243 = vmatprep.subr.mxu0 0.0
  %3244 = vmatpush2.msra.mxu0 0.0
  %3245 = vmatprep.subr.mxu0 0.0
  %3246 = vmatpush2.msra.mxu0 0.0
  %3247 = vmatprep.subr.mxu0 0.0
  %3248 = vmatpush2.msra.mxu0 0.0
  %3249 = vmatprep.subr.mxu0 0.0
  %3250 = vmatpush2.msra.mxu0 0.0
  %3251 = vmatprep.subr.mxu0 0.0
  %3252 = vmatpush2.msra.mxu0 0.0
  %3253 = vmatprep.subr.mxu0 0.0
  %3254 = vmatpush2.msra.mxu0 0.0
  %3255 = vmatprep.mubr.f32.mxu0 0.0
  %3256 = vmatmul.mubr.f32.gmra.mxu0 %v3186
  %v3257 = vpop.f32.mrf.mxu0
  %v3258 = vadd.f32 0.0, %v3257
  %v3259 = vpop.f32.mrf.mxu0
  %3260 = vmatprep.mubr.f32.mxu0 0.0
  %3261 = vmatmul.mubr.f32.gmra.mxu0 %v3189
  %v3262 = vpop.f32.mrf.mxu0
  %v3263 = vadd.f32 0.0, %v3262
  %v3264 = vpop.f32.mrf.mxu0
  %3265 = vdwg.mxu0
  %v3266 = vmul.f32 %v3096, %v3096
  %v3267 = vmul.f32 %v3101, %v3101
  %v3268 = vmul.f32 %v3177, %v3177
  %v3269 = vmul.f32 %v3182, %v3182
  %v3270 = vadd.f32 %v3266, %v3268
  %v3271 = vadd.f32 %v3267, %v3269
  %v3272 = vmul.f32 %v3258, %v3258
  %v3273 = vmul.f32 %v3263, %v3263
  %v3274 = vadd.f32 %v3270, %v3272
  %v3275 = vadd.f32 %v3271, %v3273
  %v3276 = vmax.f32 %v3274, 1e-08
  %v3277 = vmax.f32 %v3275, 1e-08
  %v3278 = vrsqrt.pop %v3276
  %v3279 = vmul.f32 %v3276, %v3278
  %vm3280 = vcmp.eq.f32.partialorder %v3276, inf
  %v3281 = vsel %vm3280, %v3276, %v3279
  %vm3282 = vcmp.eq.f32.partialorder %v3276, 0.0
  %v3283 = vand.u32 %v3276, 2147483648
  %v3284 = vsel %vm3282, %v3283, %v3281
  %v3285 = vrsqrt.pop %v3277
  %v3286 = vmul.f32 %v3277, %v3285
  %vm3287 = vcmp.eq.f32.partialorder %v3277, inf
  %v3288 = vsel %vm3287, %v3277, %v3286
  %vm3289 = vcmp.eq.f32.partialorder %v3277, 0.0
  %v3290 = vand.u32 %v3277, 2147483648
  %v3291 = vsel %vm3289, %v3290, %v3288
  %v3293 = vsel %vm921, %v3284, 0
  %v3296 = vsel %vm921, %v3291, 0
  %v3299 = vsel %vm928, %v3017, 0
  %3301 = vmatprep.subr.mxu0 0.0
  %3302 = vmatpush1.msra.mxu0 0.0
  %3303 = vmatprep.subr.mxu0 0.0
  %3304 = vmatpush1.msra.mxu0 0.0
  %3305 = vmatprep.subr.mxu0 0.0
  %3306 = vmatpush1.msra.mxu0 0.0
  %3307 = vmatprep.subr.mxu0 0.0
  %3308 = vmatpush1.msra.mxu0 0.0
  %3309 = vmatprep.subr.mxu0 0.0
  %3310 = vmatpush1.msra.mxu0 0.0
  %3311 = vmatprep.subr.mxu0 0.0
  %3312 = vmatpush1.msra.mxu0 0.0
  %3313 = vmatprep.subr.mxu0 0.0
  %3314 = vmatpush1.msra.mxu0 0.0
  %3315 = vmatprep.subr.mxu0 0.0
  %3316 = vmatpush1.msra.mxu0 0.0
  %3317 = vmatprep.subr.mxu0 0.0
  %3318 = vmatpush1.msra.mxu0 0.0
  %3319 = vmatprep.subr.mxu0 0.0
  %3320 = vmatpush1.msra.mxu0 0.0
  %3321 = vmatprep.subr.mxu0 0.0
  %3322 = vmatpush1.msra.mxu0 0.0
  %3323 = vmatprep.subr.mxu0 0.0
  %3324 = vmatpush1.msra.mxu0 0.0
  %3325 = vmatprep.subr.mxu0 0.0
  %3326 = vmatpush1.msra.mxu0 0.0
  %3327 = vmatprep.subr.mxu0 0.0
  %3328 = vmatpush1.msra.mxu0 0.0
  %3329 = vmatprep.subr.mxu0 0.0
  %3330 = vmatpush1.msra.mxu0 0.0
  %3331 = vmatprep.subr.mxu0 0.0
  %3332 = vmatpush1.msra.mxu0 %v3299
  %3333 = vmatprep.subr.mxu0 0.0
  %3334 = vmatpush2.msra.mxu0 0.0
  %3335 = vmatprep.subr.mxu0 0.0
  %3336 = vmatpush2.msra.mxu0 0.0
  %3337 = vmatprep.subr.mxu0 0.0
  %3338 = vmatpush2.msra.mxu0 0.0
  %3339 = vmatprep.subr.mxu0 0.0
  %3340 = vmatpush2.msra.mxu0 0.0
  %3341 = vmatprep.subr.mxu0 0.0
  %3342 = vmatpush2.msra.mxu0 0.0
  %3343 = vmatprep.subr.mxu0 0.0
  %3344 = vmatpush2.msra.mxu0 0.0
  %3345 = vmatprep.subr.mxu0 0.0
  %3346 = vmatpush2.msra.mxu0 0.0
  %3347 = vmatprep.subr.mxu0 0.0
  %3348 = vmatpush2.msra.mxu0 0.0
  %3349 = vmatprep.subr.mxu0 0.0
  %3350 = vmatpush2.msra.mxu0 0.0
  %3351 = vmatprep.subr.mxu0 0.0
  %3352 = vmatpush2.msra.mxu0 0.0
  %3353 = vmatprep.subr.mxu0 0.0
  %3354 = vmatpush2.msra.mxu0 0.0
  %3355 = vmatprep.subr.mxu0 0.0
  %3356 = vmatpush2.msra.mxu0 0.0
  %3357 = vmatprep.subr.mxu0 0.0
  %3358 = vmatpush2.msra.mxu0 0.0
  %3359 = vmatprep.subr.mxu0 0.0
  %3360 = vmatpush2.msra.mxu0 0.0
  %3361 = vmatprep.subr.mxu0 0.0
  %3362 = vmatpush2.msra.mxu0 0.0
  %3363 = vmatprep.subr.mxu0 0.0
  %3364 = vmatpush2.msra.mxu0 0.0
  %3365 = vmatprep.mubr.f32.mxu0 0.0
  %3366 = vmatmul.mubr.f32.gmra.mxu0 %v3293
  %v3367 = vpop.f32.mrf.mxu0
  %v3368 = vadd.f32 0.0, %v3367
  %v3369 = vpop.f32.mrf.mxu0
  %3370 = vmatprep.mubr.f32.mxu0 0.0
  %3371 = vmatmul.mubr.f32.gmra.mxu0 %v3296
  %v3372 = vpop.f32.mrf.mxu0
  %v3373 = vadd.f32 0.0, %v3372
  %v3374 = vpop.f32.mrf.mxu0
  %3375 = vdwg.mxu0
  %v3377 = vsel %vm1599, %v3010, 0
  %v3380 = vsel %vm1599, %v3011, 0
  %3382 = vmatprep.subr.mxu0 0.0
  %3383 = vmatpush1.msra.mxu0 0.0
  %3384 = vmatprep.subr.mxu0 0.0
  %3385 = vmatpush1.msra.mxu0 0.0
  %3386 = vmatprep.subr.mxu0 0.0
  %3387 = vmatpush1.msra.mxu0 0.0
  %3388 = vmatprep.subr.mxu0 0.0
  %3389 = vmatpush1.msra.mxu0 0.0
  %3390 = vmatprep.subr.mxu0 0.0
  %3391 = vmatpush1.msra.mxu0 0.0
  %3392 = vmatprep.subr.mxu0 0.0
  %3393 = vmatpush1.msra.mxu0 0.0
  %3394 = vmatprep.subr.mxu0 0.0
  %3395 = vmatpush1.msra.mxu0 0.0
  %3396 = vmatprep.subr.mxu0 0.0
  %3397 = vmatpush1.msra.mxu0 0.0
  %3398 = vmatprep.subr.mxu0 0.0
  %3399 = vmatpush1.msra.mxu0 0.0
  %3400 = vmatprep.subr.mxu0 0.0
  %3401 = vmatpush1.msra.mxu0 0.0
  %3402 = vmatprep.subr.mxu0 0.0
  %3403 = vmatpush1.msra.mxu0 0.0
  %3404 = vmatprep.subr.mxu0 0.0
  %3405 = vmatpush1.msra.mxu0 0.0
  %3406 = vmatprep.subr.mxu0 0.0
  %3407 = vmatpush1.msra.mxu0 %v3016
  %3408 = vmatprep.subr.mxu0 0.0
  %3409 = vmatpush1.msra.mxu0 %v3015
  %3410 = vmatprep.subr.mxu0 0.0
  %3411 = vmatpush1.msra.mxu0 %v3014
  %3412 = vmatprep.subr.mxu0 0.0
  %3413 = vmatpush1.msra.mxu0 %v3013
  %3414 = vmatprep.subr.mxu0 0.0
  %3415 = vmatpush2.msra.mxu0 0.0
  %3416 = vmatprep.subr.mxu0 0.0
  %3417 = vmatpush2.msra.mxu0 0.0
  %3418 = vmatprep.subr.mxu0 0.0
  %3419 = vmatpush2.msra.mxu0 0.0
  %3420 = vmatprep.subr.mxu0 0.0
  %3421 = vmatpush2.msra.mxu0 0.0
  %3422 = vmatprep.subr.mxu0 0.0
  %3423 = vmatpush2.msra.mxu0 0.0
  %3424 = vmatprep.subr.mxu0 0.0
  %3425 = vmatpush2.msra.mxu0 0.0
  %3426 = vmatprep.subr.mxu0 0.0
  %3427 = vmatpush2.msra.mxu0 0.0
  %3428 = vmatprep.subr.mxu0 0.0
  %3429 = vmatpush2.msra.mxu0 0.0
  %3430 = vmatprep.subr.mxu0 0.0
  %3431 = vmatpush2.msra.mxu0 0.0
  %3432 = vmatprep.subr.mxu0 0.0
  %3433 = vmatpush2.msra.mxu0 0.0
  %3434 = vmatprep.subr.mxu0 0.0
  %3435 = vmatpush2.msra.mxu0 0.0
  %3436 = vmatprep.subr.mxu0 0.0
  %3437 = vmatpush2.msra.mxu0 0.0
  %3438 = vmatprep.subr.mxu0 0.0
  %3439 = vmatpush2.msra.mxu0 0.0
  %3440 = vmatprep.subr.mxu0 0.0
  %3441 = vmatpush2.msra.mxu0 0.0
  %3442 = vmatprep.subr.mxu0 0.0
  %3443 = vmatpush2.msra.mxu0 0.0
  %3444 = vmatprep.subr.mxu0 0.0
  %3445 = vmatpush2.msra.mxu0 0.0
  %3446 = vmatprep.mubr.f32.mxu0 0.0
  %3447 = vmatmul.mubr.f32.gmra.mxu0 %v3377
  %v3448 = vpop.f32.mrf.mxu0
  %v3449 = vadd.f32 %v3368, %v3448
  %v3450 = vpop.f32.mrf.mxu0
  %3451 = vmatprep.mubr.f32.mxu0 0.0
  %3452 = vmatmul.mubr.f32.gmra.mxu0 %v3380
  %v3453 = vpop.f32.mrf.mxu0
  %v3454 = vadd.f32 %v3373, %v3453
  %v3455 = vpop.f32.mrf.mxu0
  %3456 = vdwg.mxu0
  %v3458 = vlaneseq
  %v3459 = vshrl.u32 %v3458, 7
  %v3460 = vsub.s32 0, %v3459
  %v3461 = vrot.slane %v3018, %v3460
  %v3463 = vadd.f32 %v3449, %v3461
  %v3464 = vadd.f32 %v3454, %v3461
  %v3466 = vsel %vm921, %v3096, 0
  %v3469 = vsel %vm921, %v3101, 0
  %v3472 = vsel %vm928, %v3019, 0
  %3474 = vmatprep.subr.mxu0 0.0
  %3475 = vmatpush1.msra.mxu0 0.0
  %3476 = vmatprep.subr.mxu0 0.0
  %3477 = vmatpush1.msra.mxu0 0.0
  %3478 = vmatprep.subr.mxu0 0.0
  %3479 = vmatpush1.msra.mxu0 0.0
  %3480 = vmatprep.subr.mxu0 0.0
  %3481 = vmatpush1.msra.mxu0 0.0
  %3482 = vmatprep.subr.mxu0 0.0
  %3483 = vmatpush1.msra.mxu0 0.0
  %3484 = vmatprep.subr.mxu0 0.0
  %3485 = vmatpush1.msra.mxu0 0.0
  %3486 = vmatprep.subr.mxu0 0.0
  %3487 = vmatpush1.msra.mxu0 0.0
  %3488 = vmatprep.subr.mxu0 0.0
  %3489 = vmatpush1.msra.mxu0 0.0
  %3490 = vmatprep.subr.mxu0 0.0
  %3491 = vmatpush1.msra.mxu0 0.0
  %3492 = vmatprep.subr.mxu0 0.0
  %3493 = vmatpush1.msra.mxu0 0.0
  %3494 = vmatprep.subr.mxu0 0.0
  %3495 = vmatpush1.msra.mxu0 0.0
  %3496 = vmatprep.subr.mxu0 0.0
  %3497 = vmatpush1.msra.mxu0 0.0
  %3498 = vmatprep.subr.mxu0 0.0
  %3499 = vmatpush1.msra.mxu0 0.0
  %3500 = vmatprep.subr.mxu0 0.0
  %3501 = vmatpush1.msra.mxu0 0.0
  %3502 = vmatprep.subr.mxu0 0.0
  %3503 = vmatpush1.msra.mxu0 0.0
  %3504 = vmatprep.subr.mxu0 0.0
  %3505 = vmatpush1.msra.mxu0 %v3472
  %3506 = vmatprep.subr.mxu0 0.0
  %3507 = vmatpush2.msra.mxu0 0.0
  %3508 = vmatprep.subr.mxu0 0.0
  %3509 = vmatpush2.msra.mxu0 0.0
  %3510 = vmatprep.subr.mxu0 0.0
  %3511 = vmatpush2.msra.mxu0 0.0
  %3512 = vmatprep.subr.mxu0 0.0
  %3513 = vmatpush2.msra.mxu0 0.0
  %3514 = vmatprep.subr.mxu0 0.0
  %3515 = vmatpush2.msra.mxu0 0.0
  %3516 = vmatprep.subr.mxu0 0.0
  %3517 = vmatpush2.msra.mxu0 0.0
  %3518 = vmatprep.subr.mxu0 0.0
  %3519 = vmatpush2.msra.mxu0 0.0
  %3520 = vmatprep.subr.mxu0 0.0
  %3521 = vmatpush2.msra.mxu0 0.0
  %3522 = vmatprep.subr.mxu0 0.0
  %3523 = vmatpush2.msra.mxu0 0.0
  %3524 = vmatprep.subr.mxu0 0.0
  %3525 = vmatpush2.msra.mxu0 0.0
  %3526 = vmatprep.subr.mxu0 0.0
  %3527 = vmatpush2.msra.mxu0 0.0
  %3528 = vmatprep.subr.mxu0 0.0
  %3529 = vmatpush2.msra.mxu0 0.0
  %3530 = vmatprep.subr.mxu0 0.0
  %3531 = vmatpush2.msra.mxu0 0.0
  %3532 = vmatprep.subr.mxu0 0.0
  %3533 = vmatpush2.msra.mxu0 0.0
  %3534 = vmatprep.subr.mxu0 0.0
  %3535 = vmatpush2.msra.mxu0 0.0
  %3536 = vmatprep.subr.mxu0 0.0
  %3537 = vmatpush2.msra.mxu0 0.0
  %3538 = vmatprep.mubr.f32.mxu0 0.0
  %3539 = vmatmul.mubr.f32.gmra.mxu0 %v3466
  %v3540 = vpop.f32.mrf.mxu0
  %v3541 = vadd.f32 0.0, %v3540
  %v3542 = vpop.f32.mrf.mxu0
  %3543 = vmatprep.mubr.f32.mxu0 0.0
  %3544 = vmatmul.mubr.f32.gmra.mxu0 %v3469
  %v3545 = vpop.f32.mrf.mxu0
  %v3546 = vadd.f32 0.0, %v3545
  %v3547 = vpop.f32.mrf.mxu0
  %3548 = vdwg.mxu0
  %v3550 = vsel %vm921, %v3177, 0
  %v3553 = vsel %vm921, %v3182, 0
  %3555 = vmatprep.subr.mxu0 0.0
  %3556 = vmatpush1.msra.mxu0 0.0
  %3557 = vmatprep.subr.mxu0 0.0
  %3558 = vmatpush1.msra.mxu0 0.0
  %3559 = vmatprep.subr.mxu0 0.0
  %3560 = vmatpush1.msra.mxu0 0.0
  %3561 = vmatprep.subr.mxu0 0.0
  %3562 = vmatpush1.msra.mxu0 0.0
  %3563 = vmatprep.subr.mxu0 0.0
  %3564 = vmatpush1.msra.mxu0 0.0
  %3565 = vmatprep.subr.mxu0 0.0
  %3566 = vmatpush1.msra.mxu0 0.0
  %3567 = vmatprep.subr.mxu0 0.0
  %3568 = vmatpush1.msra.mxu0 0.0
  %3569 = vmatprep.subr.mxu0 0.0
  %3570 = vmatpush1.msra.mxu0 0.0
  %3571 = vmatprep.subr.mxu0 0.0
  %3572 = vmatpush1.msra.mxu0 0.0
  %3573 = vmatprep.subr.mxu0 0.0
  %3574 = vmatpush1.msra.mxu0 0.0
  %3575 = vmatprep.subr.mxu0 0.0
  %3576 = vmatpush1.msra.mxu0 0.0
  %3577 = vmatprep.subr.mxu0 0.0
  %3578 = vmatpush1.msra.mxu0 0.0
  %3579 = vmatprep.subr.mxu0 0.0
  %3580 = vmatpush1.msra.mxu0 0.0
  %3581 = vmatprep.subr.mxu0 0.0
  %3582 = vmatpush1.msra.mxu0 0.0
  %3583 = vmatprep.subr.mxu0 0.0
  %3584 = vmatpush1.msra.mxu0 0.0
  %3585 = vmatprep.subr.mxu0 0.0
  %3586 = vmatpush1.msra.mxu0 %v3472
  %3587 = vmatprep.subr.mxu0 0.0
  %3588 = vmatpush2.msra.mxu0 0.0
  %3589 = vmatprep.subr.mxu0 0.0
  %3590 = vmatpush2.msra.mxu0 0.0
  %3591 = vmatprep.subr.mxu0 0.0
  %3592 = vmatpush2.msra.mxu0 0.0
  %3593 = vmatprep.subr.mxu0 0.0
  %3594 = vmatpush2.msra.mxu0 0.0
  %3595 = vmatprep.subr.mxu0 0.0
  %3596 = vmatpush2.msra.mxu0 0.0
  %3597 = vmatprep.subr.mxu0 0.0
  %3598 = vmatpush2.msra.mxu0 0.0
  %3599 = vmatprep.subr.mxu0 0.0
  %3600 = vmatpush2.msra.mxu0 0.0
  %3601 = vmatprep.subr.mxu0 0.0
  %3602 = vmatpush2.msra.mxu0 0.0
  %3603 = vmatprep.subr.mxu0 0.0
  %3604 = vmatpush2.msra.mxu0 0.0
  %3605 = vmatprep.subr.mxu0 0.0
  %3606 = vmatpush2.msra.mxu0 0.0
  %3607 = vmatprep.subr.mxu0 0.0
  %3608 = vmatpush2.msra.mxu0 0.0
  %3609 = vmatprep.subr.mxu0 0.0
  %3610 = vmatpush2.msra.mxu0 0.0
  %3611 = vmatprep.subr.mxu0 0.0
  %3612 = vmatpush2.msra.mxu0 0.0
  %3613 = vmatprep.subr.mxu0 0.0
  %3614 = vmatpush2.msra.mxu0 0.0
  %3615 = vmatprep.subr.mxu0 0.0
  %3616 = vmatpush2.msra.mxu0 0.0
  %3617 = vmatprep.subr.mxu0 0.0
  %3618 = vmatpush2.msra.mxu0 0.0
  %3619 = vmatprep.mubr.f32.mxu0 0.0
  %3620 = vmatmul.mubr.f32.gmra.mxu0 %v3550
  %v3621 = vpop.f32.mrf.mxu0
  %v3622 = vadd.f32 0.0, %v3621
  %v3623 = vpop.f32.mrf.mxu0
  %3624 = vmatprep.mubr.f32.mxu0 0.0
  %3625 = vmatmul.mubr.f32.gmra.mxu0 %v3553
  %v3626 = vpop.f32.mrf.mxu0
  %v3627 = vadd.f32 0.0, %v3626
  %v3628 = vpop.f32.mrf.mxu0
  %3629 = vdwg.mxu0
  %v3631 = vsel %vm921, %v3258, 0
  %v3634 = vsel %vm921, %v3263, 0
  %3636 = vmatprep.subr.mxu0 0.0
  %3637 = vmatpush1.msra.mxu0 0.0
  %3638 = vmatprep.subr.mxu0 0.0
  %3639 = vmatpush1.msra.mxu0 0.0
  %3640 = vmatprep.subr.mxu0 0.0
  %3641 = vmatpush1.msra.mxu0 0.0
  %3642 = vmatprep.subr.mxu0 0.0
  %3643 = vmatpush1.msra.mxu0 0.0
  %3644 = vmatprep.subr.mxu0 0.0
  %3645 = vmatpush1.msra.mxu0 0.0
  %3646 = vmatprep.subr.mxu0 0.0
  %3647 = vmatpush1.msra.mxu0 0.0
  %3648 = vmatprep.subr.mxu0 0.0
  %3649 = vmatpush1.msra.mxu0 0.0
  %3650 = vmatprep.subr.mxu0 0.0
  %3651 = vmatpush1.msra.mxu0 0.0
  %3652 = vmatprep.subr.mxu0 0.0
  %3653 = vmatpush1.msra.mxu0 0.0
  %3654 = vmatprep.subr.mxu0 0.0
  %3655 = vmatpush1.msra.mxu0 0.0
  %3656 = vmatprep.subr.mxu0 0.0
  %3657 = vmatpush1.msra.mxu0 0.0
  %3658 = vmatprep.subr.mxu0 0.0
  %3659 = vmatpush1.msra.mxu0 0.0
  %3660 = vmatprep.subr.mxu0 0.0
  %3661 = vmatpush1.msra.mxu0 0.0
  %3662 = vmatprep.subr.mxu0 0.0
  %3663 = vmatpush1.msra.mxu0 0.0
  %3664 = vmatprep.subr.mxu0 0.0
  %3665 = vmatpush1.msra.mxu0 0.0
  %3666 = vmatprep.subr.mxu0 0.0
  %3667 = vmatpush1.msra.mxu0 %v3472
  %3668 = vmatprep.subr.mxu0 0.0
  %3669 = vmatpush2.msra.mxu0 0.0
  %3670 = vmatprep.subr.mxu0 0.0
  %3671 = vmatpush2.msra.mxu0 0.0
  %3672 = vmatprep.subr.mxu0 0.0
  %3673 = vmatpush2.msra.mxu0 0.0
  %3674 = vmatprep.subr.mxu0 0.0
  %3675 = vmatpush2.msra.mxu0 0.0
  %3676 = vmatprep.subr.mxu0 0.0
  %3677 = vmatpush2.msra.mxu0 0.0
  %3678 = vmatprep.subr.mxu0 0.0
  %3679 = vmatpush2.msra.mxu0 0.0
  %3680 = vmatprep.subr.mxu0 0.0
  %3681 = vmatpush2.msra.mxu0 0.0
  %3682 = vmatprep.subr.mxu0 0.0
  %3683 = vmatpush2.msra.mxu0 0.0
  %3684 = vmatprep.subr.mxu0 0.0
  %3685 = vmatpush2.msra.mxu0 0.0
  %3686 = vmatprep.subr.mxu0 0.0
  %3687 = vmatpush2.msra.mxu0 0.0
  %3688 = vmatprep.subr.mxu0 0.0
  %3689 = vmatpush2.msra.mxu0 0.0
  %3690 = vmatprep.subr.mxu0 0.0
  %3691 = vmatpush2.msra.mxu0 0.0
  %3692 = vmatprep.subr.mxu0 0.0
  %3693 = vmatpush2.msra.mxu0 0.0
  %3694 = vmatprep.subr.mxu0 0.0
  %3695 = vmatpush2.msra.mxu0 0.0
  %3696 = vmatprep.subr.mxu0 0.0
  %3697 = vmatpush2.msra.mxu0 0.0
  %3698 = vmatprep.subr.mxu0 0.0
  %3699 = vmatpush2.msra.mxu0 0.0
  %3700 = vmatprep.mubr.f32.mxu0 0.0
  %3701 = vmatmul.mubr.f32.gmra.mxu0 %v3631
  %v3702 = vpop.f32.mrf.mxu0
  %v3703 = vadd.f32 0.0, %v3702
  %v3704 = vpop.f32.mrf.mxu0
  %3705 = vmatprep.mubr.f32.mxu0 0.0
  %3706 = vmatmul.mubr.f32.gmra.mxu0 %v3634
  %v3707 = vpop.f32.mrf.mxu0
  %v3708 = vadd.f32 0.0, %v3707
  %v3709 = vpop.f32.mrf.mxu0
  %3710 = vdwg.mxu0
  %v3711 = vlaneseq
  %v3712 = vshrl.u32 %v3711, 7
  %v3713 = vld [vmem:[%s9] sm:$0x1]
  %v3714 = vlaneseq
  %v3715 = vshrl.u32 %v3714, 7
  %v3716 = vsub.s32 0, %v3715
  %v3717 = vrot.slane %v3713, %v3716
  %vm3718 = vcmp.eq.s32.totalorder %v3712, %v3717
  %v3719 = vsel %vm3718, 1, 0
  %v3720 = vcvt.s32.f32 %v3719
  %v3721 = vld [vmem:[#allocation2] sm:$0xff]
  %vm3722 = vcmask 130048
  %v3724 = vsel %vm3722, %v3720, 0
  %3726 = vmatprep.subr.mxu0 0.0
  %3727 = vmatpush1.msra.mxu0 0.0
  %3728 = vmatprep.subr.mxu0 0.0
  %3729 = vmatpush1.msra.mxu0 0.0
  %3730 = vmatprep.subr.mxu0 0.0
  %3731 = vmatpush1.msra.mxu0 0.0
  %3732 = vmatprep.subr.mxu0 0.0
  %3733 = vmatpush1.msra.mxu0 0.0
  %3734 = vmatprep.subr.mxu0 0.0
  %3735 = vmatpush1.msra.mxu0 0.0
  %3736 = vmatprep.subr.mxu0 0.0
  %3737 = vmatpush1.msra.mxu0 0.0
  %3738 = vmatprep.subr.mxu0 0.0
  %3739 = vmatpush1.msra.mxu0 0.0
  %3740 = vmatprep.subr.mxu0 0.0
  %3741 = vmatpush1.msra.mxu0 0.0
  %3742 = vmatprep.subr.mxu0 0.0
  %3743 = vmatpush1.msra.mxu0 0.0
  %3744 = vmatprep.subr.mxu0 0.0
  %3745 = vmatpush1.msra.mxu0 0.0
  %3746 = vmatprep.subr.mxu0 0.0
  %3747 = vmatpush1.msra.mxu0 0.0
  %3748 = vmatprep.subr.mxu0 0.0
  %3749 = vmatpush1.msra.mxu0 0.0
  %3750 = vmatprep.subr.mxu0 0.0
  %3751 = vmatpush1.msra.mxu0 0.0
  %3752 = vmatprep.subr.mxu0 0.0
  %3753 = vmatpush1.msra.mxu0 0.0
  %3754 = vmatprep.subr.mxu0 0.0
  %3755 = vmatpush1.msra.mxu0 %v3464
  %3756 = vmatprep.subr.mxu0 0.0
  %3757 = vmatpush1.msra.mxu0 %v3463
  %3758 = vmatprep.subr.mxu0 0.0
  %3759 = vmatpush2.msra.mxu0 0.0
  %3760 = vmatprep.subr.mxu0 0.0
  %3761 = vmatpush2.msra.mxu0 0.0
  %3762 = vmatprep.subr.mxu0 0.0
  %3763 = vmatpush2.msra.mxu0 0.0
  %3764 = vmatprep.subr.mxu0 0.0
  %3765 = vmatpush2.msra.mxu0 0.0
  %3766 = vmatprep.subr.mxu0 0.0
  %3767 = vmatpush2.msra.mxu0 0.0
  %3768 = vmatprep.subr.mxu0 0.0
  %3769 = vmatpush2.msra.mxu0 0.0
  %3770 = vmatprep.subr.mxu0 0.0
  %3771 = vmatpush2.msra.mxu0 0.0
  %3772 = vmatprep.subr.mxu0 0.0
  %3773 = vmatpush2.msra.mxu0 0.0
  %3774 = vmatprep.subr.mxu0 0.0
  %3775 = vmatpush2.msra.mxu0 0.0
  %3776 = vmatprep.subr.mxu0 0.0
  %3777 = vmatpush2.msra.mxu0 0.0
  %3778 = vmatprep.subr.mxu0 0.0
  %3779 = vmatpush2.msra.mxu0 0.0
  %3780 = vmatprep.subr.mxu0 0.0
  %3781 = vmatpush2.msra.mxu0 0.0
  %3782 = vmatprep.subr.mxu0 0.0
  %3783 = vmatpush2.msra.mxu0 0.0
  %3784 = vmatprep.subr.mxu0 0.0
  %3785 = vmatpush2.msra.mxu0 0.0
  %3786 = vmatprep.subr.mxu0 0.0
  %3787 = vmatpush2.msra.mxu0 0.0
  %3788 = vmatprep.subr.mxu0 0.0
  %3789 = vmatpush2.msra.mxu0 0.0
  %3790 = vmatprep.mubr.f32.mxu0 0.0
  %3791 = vmatmul.mubr.f32.gmra.mxu0 %v3724
  %v3792 = vpop.f32.mrf.mxu0
  %v3793 = vadd.f32 0.0, %v3792
  %v3794 = vpop.f32.mrf.mxu0
  %3795 = vdwg.mxu0
  %v3796 = vadd.f32 %v3721, %v3793
  %3797 = vst.msk [vmem:[#allocation2] sm:$0xff] %vm1599, %v3796
  %v3798 = vld [vmem:[#allocation3] sm:$0xff]
  %3799 = vmatprep.subr.mxu0 0.0
  %3800 = vmatpush1.msra.mxu0 0.0
  %3801 = vmatprep.subr.mxu0 0.0
  %3802 = vmatpush1.msra.mxu0 0.0
  %3803 = vmatprep.subr.mxu0 0.0
  %3804 = vmatpush1.msra.mxu0 0.0
  %3805 = vmatprep.subr.mxu0 0.0
  %3806 = vmatpush1.msra.mxu0 0.0
  %3807 = vmatprep.subr.mxu0 0.0
  %3808 = vmatpush1.msra.mxu0 0.0
  %3809 = vmatprep.subr.mxu0 0.0
  %3810 = vmatpush1.msra.mxu0 0.0
  %3811 = vmatprep.subr.mxu0 0.0
  %3812 = vmatpush1.msra.mxu0 0.0
  %3813 = vmatprep.subr.mxu0 0.0
  %3814 = vmatpush1.msra.mxu0 0.0
  %3815 = vmatprep.subr.mxu0 0.0
  %3816 = vmatpush1.msra.mxu0 0.0
  %3817 = vmatprep.subr.mxu0 0.0
  %3818 = vmatpush1.msra.mxu0 0.0
  %3819 = vmatprep.subr.mxu0 0.0
  %3820 = vmatpush1.msra.mxu0 0.0
  %3821 = vmatprep.subr.mxu0 0.0
  %3822 = vmatpush1.msra.mxu0 0.0
  %3823 = vmatprep.subr.mxu0 0.0
  %3824 = vmatpush1.msra.mxu0 0.0
  %3825 = vmatprep.subr.mxu0 0.0
  %3826 = vmatpush1.msra.mxu0 0.0
  %3827 = vmatprep.subr.mxu0 0.0
  %3828 = vmatpush1.msra.mxu0 %v3546
  %3829 = vmatprep.subr.mxu0 0.0
  %3830 = vmatpush1.msra.mxu0 %v3541
  %3831 = vmatprep.subr.mxu0 0.0
  %3832 = vmatpush2.msra.mxu0 0.0
  %3833 = vmatprep.subr.mxu0 0.0
  %3834 = vmatpush2.msra.mxu0 0.0
  %3835 = vmatprep.subr.mxu0 0.0
  %3836 = vmatpush2.msra.mxu0 0.0
  %3837 = vmatprep.subr.mxu0 0.0
  %3838 = vmatpush2.msra.mxu0 0.0
  %3839 = vmatprep.subr.mxu0 0.0
  %3840 = vmatpush2.msra.mxu0 0.0
  %3841 = vmatprep.subr.mxu0 0.0
  %3842 = vmatpush2.msra.mxu0 0.0
  %3843 = vmatprep.subr.mxu0 0.0
  %3844 = vmatpush2.msra.mxu0 0.0
  %3845 = vmatprep.subr.mxu0 0.0
  %3846 = vmatpush2.msra.mxu0 0.0
  %3847 = vmatprep.subr.mxu0 0.0
  %3848 = vmatpush2.msra.mxu0 0.0
  %3849 = vmatprep.subr.mxu0 0.0
  %3850 = vmatpush2.msra.mxu0 0.0
  %3851 = vmatprep.subr.mxu0 0.0
  %3852 = vmatpush2.msra.mxu0 0.0
  %3853 = vmatprep.subr.mxu0 0.0
  %3854 = vmatpush2.msra.mxu0 0.0
  %3855 = vmatprep.subr.mxu0 0.0
  %3856 = vmatpush2.msra.mxu0 0.0
  %3857 = vmatprep.subr.mxu0 0.0
  %3858 = vmatpush2.msra.mxu0 0.0
  %3859 = vmatprep.subr.mxu0 0.0
  %3860 = vmatpush2.msra.mxu0 0.0
  %3861 = vmatprep.subr.mxu0 0.0
  %3862 = vmatpush2.msra.mxu0 0.0
  %3863 = vmatprep.mubr.f32.mxu0 0.0
  %3864 = vmatmul.mubr.f32.gmra.mxu0 %v3724
  %v3865 = vpop.f32.mrf.mxu0
  %v3866 = vadd.f32 0.0, %v3865
  %v3867 = vpop.f32.mrf.mxu0
  %3868 = vdwg.mxu0
  %v3869 = vadd.f32 %v3798, %v3866
  %3870 = vst.msk [vmem:[#allocation3] sm:$0xff] %vm921, %v3869
  %s3871 = scalar_lea.vmem [#allocation3], 8
  %v3872 = vld [vmem:[%s3871] sm:$0xff]
  %3873 = vmatprep.subr.mxu0 0.0
  %3874 = vmatpush1.msra.mxu0 0.0
  %3875 = vmatprep.subr.mxu0 0.0
  %3876 = vmatpush1.msra.mxu0 0.0
  %3877 = vmatprep.subr.mxu0 0.0
  %3878 = vmatpush1.msra.mxu0 0.0
  %3879 = vmatprep.subr.mxu0 0.0
  %3880 = vmatpush1.msra.mxu0 0.0
  %3881 = vmatprep.subr.mxu0 0.0
  %3882 = vmatpush1.msra.mxu0 0.0
  %3883 = vmatprep.subr.mxu0 0.0
  %3884 = vmatpush1.msra.mxu0 0.0
  %3885 = vmatprep.subr.mxu0 0.0
  %3886 = vmatpush1.msra.mxu0 0.0
  %3887 = vmatprep.subr.mxu0 0.0
  %3888 = vmatpush1.msra.mxu0 0.0
  %3889 = vmatprep.subr.mxu0 0.0
  %3890 = vmatpush1.msra.mxu0 0.0
  %3891 = vmatprep.subr.mxu0 0.0
  %3892 = vmatpush1.msra.mxu0 0.0
  %3893 = vmatprep.subr.mxu0 0.0
  %3894 = vmatpush1.msra.mxu0 0.0
  %3895 = vmatprep.subr.mxu0 0.0
  %3896 = vmatpush1.msra.mxu0 0.0
  %3897 = vmatprep.subr.mxu0 0.0
  %3898 = vmatpush1.msra.mxu0 0.0
  %3899 = vmatprep.subr.mxu0 0.0
  %3900 = vmatpush1.msra.mxu0 0.0
  %3901 = vmatprep.subr.mxu0 0.0
  %3902 = vmatpush1.msra.mxu0 %v3627
  %3903 = vmatprep.subr.mxu0 0.0
  %3904 = vmatpush1.msra.mxu0 %v3622
  %3905 = vmatprep.subr.mxu0 0.0
  %3906 = vmatpush2.msra.mxu0 0.0
  %3907 = vmatprep.subr.mxu0 0.0
  %3908 = vmatpush2.msra.mxu0 0.0
  %3909 = vmatprep.subr.mxu0 0.0
  %3910 = vmatpush2.msra.mxu0 0.0
  %3911 = vmatprep.subr.mxu0 0.0
  %3912 = vmatpush2.msra.mxu0 0.0
  %3913 = vmatprep.subr.mxu0 0.0
  %3914 = vmatpush2.msra.mxu0 0.0
  %3915 = vmatprep.subr.mxu0 0.0
  %3916 = vmatpush2.msra.mxu0 0.0
  %3917 = vmatprep.subr.mxu0 0.0
  %3918 = vmatpush2.msra.mxu0 0.0
  %3919 = vmatprep.subr.mxu0 0.0
  %3920 = vmatpush2.msra.mxu0 0.0
  %3921 = vmatprep.subr.mxu0 0.0
  %3922 = vmatpush2.msra.mxu0 0.0
  %3923 = vmatprep.subr.mxu0 0.0
  %3924 = vmatpush2.msra.mxu0 0.0
  %3925 = vmatprep.subr.mxu0 0.0
  %3926 = vmatpush2.msra.mxu0 0.0
  %3927 = vmatprep.subr.mxu0 0.0
  %3928 = vmatpush2.msra.mxu0 0.0
  %3929 = vmatprep.subr.mxu0 0.0
  %3930 = vmatpush2.msra.mxu0 0.0
  %3931 = vmatprep.subr.mxu0 0.0
  %3932 = vmatpush2.msra.mxu0 0.0
  %3933 = vmatprep.subr.mxu0 0.0
  %3934 = vmatpush2.msra.mxu0 0.0
  %3935 = vmatprep.subr.mxu0 0.0
  %3936 = vmatpush2.msra.mxu0 0.0
  %3937 = vmatprep.mubr.f32.mxu0 0.0
  %3938 = vmatmul.mubr.f32.gmra.mxu0 %v3724
  %v3939 = vpop.f32.mrf.mxu0
  %v3940 = vadd.f32 0.0, %v3939
  %v3941 = vpop.f32.mrf.mxu0
  %3942 = vdwg.mxu0
  %v3943 = vadd.f32 %v3872, %v3940
  %3944 = vst.msk [vmem:[%s3871] sm:$0xff] %vm921, %v3943
  %s3945 = scalar_lea.vmem [#allocation3], 16
  %v3946 = vld [vmem:[%s3945] sm:$0xff]
  %3947 = vmatprep.subr.mxu0 0.0
  %3948 = vmatpush1.msra.mxu0 0.0
  %3949 = vmatprep.subr.mxu0 0.0
  %3950 = vmatpush1.msra.mxu0 0.0
  %3951 = vmatprep.subr.mxu0 0.0
  %3952 = vmatpush1.msra.mxu0 0.0
  %3953 = vmatprep.subr.mxu0 0.0
  %3954 = vmatpush1.msra.mxu0 0.0
  %3955 = vmatprep.subr.mxu0 0.0
  %3956 = vmatpush1.msra.mxu0 0.0
  %3957 = vmatprep.subr.mxu0 0.0
  %3958 = vmatpush1.msra.mxu0 0.0
  %3959 = vmatprep.subr.mxu0 0.0
  %3960 = vmatpush1.msra.mxu0 0.0
  %3961 = vmatprep.subr.mxu0 0.0
  %3962 = vmatpush1.msra.mxu0 0.0
  %3963 = vmatprep.subr.mxu0 0.0
  %3964 = vmatpush1.msra.mxu0 0.0
  %3965 = vmatprep.subr.mxu0 0.0
  %3966 = vmatpush1.msra.mxu0 0.0
  %3967 = vmatprep.subr.mxu0 0.0
  %3968 = vmatpush1.msra.mxu0 0.0
  %3969 = vmatprep.subr.mxu0 0.0
  %3970 = vmatpush1.msra.mxu0 0.0
  %3971 = vmatprep.subr.mxu0 0.0
  %3972 = vmatpush1.msra.mxu0 0.0
  %3973 = vmatprep.subr.mxu0 0.0
  %3974 = vmatpush1.msra.mxu0 0.0
  %3975 = vmatprep.subr.mxu0 0.0
  %3976 = vmatpush1.msra.mxu0 %v3708
  %3977 = vmatprep.subr.mxu0 0.0
  %3978 = vmatpush1.msra.mxu0 %v3703
  %3979 = vmatprep.subr.mxu0 0.0
  %3980 = vmatpush2.msra.mxu0 0.0
  %3981 = vmatprep.subr.mxu0 0.0
  %3982 = vmatpush2.msra.mxu0 0.0
  %3983 = vmatprep.subr.mxu0 0.0
  %3984 = vmatpush2.msra.mxu0 0.0
  %3985 = vmatprep.subr.mxu0 0.0
  %3986 = vmatpush2.msra.mxu0 0.0
  %3987 = vmatprep.subr.mxu0 0.0
  %3988 = vmatpush2.msra.mxu0 0.0
  %3989 = vmatprep.subr.mxu0 0.0
  %3990 = vmatpush2.msra.mxu0 0.0
  %3991 = vmatprep.subr.mxu0 0.0
  %3992 = vmatpush2.msra.mxu0 0.0
  %3993 = vmatprep.subr.mxu0 0.0
  %3994 = vmatpush2.msra.mxu0 0.0
  %3995 = vmatprep.subr.mxu0 0.0
  %3996 = vmatpush2.msra.mxu0 0.0
  %3997 = vmatprep.subr.mxu0 0.0
  %3998 = vmatpush2.msra.mxu0 0.0
  %3999 = vmatprep.subr.mxu0 0.0
  %4000 = vmatpush2.msra.mxu0 0.0
  %4001 = vmatprep.subr.mxu0 0.0
  %4002 = vmatpush2.msra.mxu0 0.0
  %4003 = vmatprep.subr.mxu0 0.0
  %4004 = vmatpush2.msra.mxu0 0.0
  %4005 = vmatprep.subr.mxu0 0.0
  %4006 = vmatpush2.msra.mxu0 0.0
  %4007 = vmatprep.subr.mxu0 0.0
  %4008 = vmatpush2.msra.mxu0 0.0
  %4009 = vmatprep.subr.mxu0 0.0
  %4010 = vmatpush2.msra.mxu0 0.0
  %4011 = vmatprep.mubr.f32.mxu0 0.0
  %4012 = vmatmul.mubr.f32.gmra.mxu0 %v3724
  %v4013 = vpop.f32.mrf.mxu0
  %v4014 = vadd.f32 0.0, %v4013
  %v4015 = vpop.f32.mrf.mxu0
  %4016 = vdwg.mxu0
  %v4017 = vadd.f32 %v3946, %v4014
  %4018 = vst.msk [vmem:[%s3945] sm:$0xff] %vm921, %v4017
  %v4019 = vld [vmem:[#allocation4] sm:$0xff]
  %v4020 = vsel %vm3722, %v3720, 0.0
  %4021 = vadd.xlane.f32.xlu0 %v4020
  %v4022 = vpop.xlane.xlu0 %4021
  %v4023 = vadd.f32 %v4019, %v4022
  %4024 = vst.msk [vmem:[#allocation4] sm:$0xff] %vm835, %v4023
  // Predicated region
  $region166: #{gvp_embedding_forward.8} parent=0 // pred_check
    %p4025 = pneg %p169
  $region167: #{gvp_embedding_forward.8} parent=0 // pred_check_branch
    %4027 = sbr.rel (%p4025) target = $region169
  $region168: #{gvp_embedding_forward.8} parent=0 // pred_region
    %v4028 = vld [vmem:[#allocation4] sm:$0xff]
    %v4029 = vmax.f32 %v4028, 1.0
    %v4030 = vrcp.pop %v4029
    %v4031 = vmul.f32 1.0, %v4030
    %v4032 = vld [vmem:[#allocation2] sm:$0xff]
    %4034 = vset.pattern.permute.xlu0 0
    %4035 = vperm.xlu0 %4034, %v4031
    %v4036 = vpop.permute.xlu0 %4035
    %v4038 = vmul.f32 %v4032, %v4036
    %v4039 = vadd.f32 %v181, %v4038
    %v4040 = vld [vmem:[#allocation3] sm:$0xff]
    %v4041 = vmul.f32 %v4040, %v4036
    %v4042 = vadd.f32 %v182, %v4041
    %v4043 = vld [vmem:[%s3871] sm:$0xff]
    %v4044 = vmul.f32 %v4043, %v4036
    %v4045 = vadd.f32 %v184, %v4044
    %v4046 = vld [vmem:[%s3945] sm:$0xff]
    %v4047 = vmul.f32 %v4046, %v4036
    %v4048 = vadd.f32 %v186, %v4047
    %v4049 = vld [vmem:[%s53] sm:$0x1]
    %v4050 = vld [vmem:[%s55] sm:$0x1]
    %v4051 = vsel %vm1599, %v4039, 0.0
    %4052 = vadd.xlane.f32.xlu0 %v4051
    %v4053 = vpop.xlane.xlu0 %4052
    %v4054 = vrcp.pop 32.0
    %v4055 = vmul.f32 %v4053, %v4054
    %v4056 = vsub.f32 %v4039, %v4055
    %v4057 = vmul.f32 %v4056, %v4056
    %v4058 = vsel %vm1599, %v4057, 0.0
    %4059 = vadd.xlane.f32.xlu0 %v4058
    %v4060 = vpop.xlane.xlu0 %4059
    %v4061 = vmul.f32 %v4060, %v4054
    %v4062 = vadd.f32 %v4061, 1e-05
    %v4063 = vrsqrt.pop %v4062
    %v4064 = vmul.f32 %v4056, %v4063
    %v4066 = vlaneseq
    %v4067 = vshrl.u32 %v4066, 7
    %v4068 = vsub.s32 0, %v4067
    %v4069 = vrot.slane %v4049, %v4068
    %v4071 = vmul.f32 %v4064, %v4069
    %v4073 = vlaneseq
    %v4074 = vshrl.u32 %v4073, 7
    %v4075 = vsub.s32 0, %v4074
    %v4076 = vrot.slane %v4050, %v4075
    %v4078 = vadd.f32 %v4071, %v4076
    %v4079 = vmul.f32 %v4042, %v4042
    %v4080 = vmul.f32 %v4045, %v4045
    %v4081 = vadd.f32 %v4079, %v4080
    %v4082 = vmul.f32 %v4048, %v4048
    %v4083 = vadd.f32 %v4081, %v4082
    %v4084 = vmax.f32 %v4083, 1e-08
    %v4085 = vsel %vm921, %v4084, 0.0
    %4086 = vadd.xlane.f32.xlu0 %v4085
    %v4087 = vpop.xlane.xlu0 %4086
    %v4088 = vrcp.pop 4.0
    %v4089 = vmul.f32 %v4087, %v4088
    %v4090 = vrsqrt.pop %v4089
    %v4091 = vmul.f32 %v4042, %v4090
    %v4092 = vmul.f32 %v4045, %v4090
    %v4093 = vmul.f32 %v4048, %v4090
    %v4094 = vld [vmem:[%s57] sm:$0xf]
    %v4095 = vld [vmem:[%s59] sm:$0xff]
    %v4096 = vld [vmem:[%s59 + $0x8] sm:$0xff]
    %v4097 = vld [vmem:[%s59 + $0x10] sm:$0xff]
    %v4098 = vld [vmem:[%s59 + $0x18] sm:$0xff]
    %v4099 = vld [vmem:[%s61] sm:$0xff]
    %v4100 = vld [vmem:[%s63] sm:$0x1]
    %v4101 = vld [vmem:[%s65] sm:$0xff]
    %v4103 = vsel %vm921, %v4091, 0
    %v4106 = vsel %vm928, %v4094, 0
    %4108 = vmatprep.subr.mxu0 0.0
    %4109 = vmatpush1.msra.mxu0 0.0
    %4110 = vmatprep.subr.mxu0 0.0
    %4111 = vmatpush1.msra.mxu0 0.0
    %4112 = vmatprep.subr.mxu0 0.0
    %4113 = vmatpush1.msra.mxu0 0.0
    %4114 = vmatprep.subr.mxu0 0.0
    %4115 = vmatpush1.msra.mxu0 0.0
    %4116 = vmatprep.subr.mxu0 0.0
    %4117 = vmatpush1.msra.mxu0 0.0
    %4118 = vmatprep.subr.mxu0 0.0
    %4119 = vmatpush1.msra.mxu0 0.0
    %4120 = vmatprep.subr.mxu0 0.0
    %4121 = vmatpush1.msra.mxu0 0.0
    %4122 = vmatprep.subr.mxu0 0.0
    %4123 = vmatpush1.msra.mxu0 0.0
    %4124 = vmatprep.subr.mxu0 0.0
    %4125 = vmatpush1.msra.mxu0 0.0
    %4126 = vmatprep.subr.mxu0 0.0
    %4127 = vmatpush1.msra.mxu0 0.0
    %4128 = vmatprep.subr.mxu0 0.0
    %4129 = vmatpush1.msra.mxu0 0.0
    %4130 = vmatprep.subr.mxu0 0.0
    %4131 = vmatpush1.msra.mxu0 0.0
    %4132 = vmatprep.subr.mxu0 0.0
    %4133 = vmatpush1.msra.mxu0 0.0
    %4134 = vmatprep.subr.mxu0 0.0
    %4135 = vmatpush1.msra.mxu0 0.0
    %4136 = vmatprep.subr.mxu0 0.0
    %4137 = vmatpush1.msra.mxu0 0.0
    %4138 = vmatprep.subr.mxu0 0.0
    %4139 = vmatpush1.msra.mxu0 %v4106
    %4140 = vmatprep.subr.mxu0 0.0
    %4141 = vmatpush2.msra.mxu0 0.0
    %4142 = vmatprep.subr.mxu0 0.0
    %4143 = vmatpush2.msra.mxu0 0.0
    %4144 = vmatprep.subr.mxu0 0.0
    %4145 = vmatpush2.msra.mxu0 0.0
    %4146 = vmatprep.subr.mxu0 0.0
    %4147 = vmatpush2.msra.mxu0 0.0
    %4148 = vmatprep.subr.mxu0 0.0
    %4149 = vmatpush2.msra.mxu0 0.0
    %4150 = vmatprep.subr.mxu0 0.0
    %4151 = vmatpush2.msra.mxu0 0.0
    %4152 = vmatprep.subr.mxu0 0.0
    %4153 = vmatpush2.msra.mxu0 0.0
    %4154 = vmatprep.subr.mxu0 0.0
    %4155 = vmatpush2.msra.mxu0 0.0
    %4156 = vmatprep.subr.mxu0 0.0
    %4157 = vmatpush2.msra.mxu0 0.0
    %4158 = vmatprep.subr.mxu0 0.0
    %4159 = vmatpush2.msra.mxu0 0.0
    %4160 = vmatprep.subr.mxu0 0.0
    %4161 = vmatpush2.msra.mxu0 0.0
    %4162 = vmatprep.subr.mxu0 0.0
    %4163 = vmatpush2.msra.mxu0 0.0
    %4164 = vmatprep.subr.mxu0 0.0
    %4165 = vmatpush2.msra.mxu0 0.0
    %4166 = vmatprep.subr.mxu0 0.0
    %4167 = vmatpush2.msra.mxu0 0.0
    %4168 = vmatprep.subr.mxu0 0.0
    %4169 = vmatpush2.msra.mxu0 0.0
    %4170 = vmatprep.subr.mxu0 0.0
    %4171 = vmatpush2.msra.mxu0 0.0
    %4172 = vmatprep.mubr.f32.mxu0 0.0
    %4173 = vmatmul.mubr.f32.gmra.mxu0 %v4103
    %v4174 = vpop.f32.mrf.mxu0
    %v4175 = vadd.f32 0.0, %v4174
    %v4176 = vpop.f32.mrf.mxu0
    %4177 = vdwg.mxu0
    %v4179 = vsel %vm921, %v4092, 0
    %4181 = vmatprep.subr.mxu0 0.0
    %4182 = vmatpush1.msra.mxu0 0.0
    %4183 = vmatprep.subr.mxu0 0.0
    %4184 = vmatpush1.msra.mxu0 0.0
    %4185 = vmatprep.subr.mxu0 0.0
    %4186 = vmatpush1.msra.mxu0 0.0
    %4187 = vmatprep.subr.mxu0 0.0
    %4188 = vmatpush1.msra.mxu0 0.0
    %4189 = vmatprep.subr.mxu0 0.0
    %4190 = vmatpush1.msra.mxu0 0.0
    %4191 = vmatprep.subr.mxu0 0.0
    %4192 = vmatpush1.msra.mxu0 0.0
    %4193 = vmatprep.subr.mxu0 0.0
    %4194 = vmatpush1.msra.mxu0 0.0
    %4195 = vmatprep.subr.mxu0 0.0
    %4196 = vmatpush1.msra.mxu0 0.0
    %4197 = vmatprep.subr.mxu0 0.0
    %4198 = vmatpush1.msra.mxu0 0.0
    %4199 = vmatprep.subr.mxu0 0.0
    %4200 = vmatpush1.msra.mxu0 0.0
    %4201 = vmatprep.subr.mxu0 0.0
    %4202 = vmatpush1.msra.mxu0 0.0
    %4203 = vmatprep.subr.mxu0 0.0
    %4204 = vmatpush1.msra.mxu0 0.0
    %4205 = vmatprep.subr.mxu0 0.0
    %4206 = vmatpush1.msra.mxu0 0.0
    %4207 = vmatprep.subr.mxu0 0.0
    %4208 = vmatpush1.msra.mxu0 0.0
    %4209 = vmatprep.subr.mxu0 0.0
    %4210 = vmatpush1.msra.mxu0 0.0
    %4211 = vmatprep.subr.mxu0 0.0
    %4212 = vmatpush1.msra.mxu0 %v4106
    %4213 = vmatprep.subr.mxu0 0.0
    %4214 = vmatpush2.msra.mxu0 0.0
    %4215 = vmatprep.subr.mxu0 0.0
    %4216 = vmatpush2.msra.mxu0 0.0
    %4217 = vmatprep.subr.mxu0 0.0
    %4218 = vmatpush2.msra.mxu0 0.0
    %4219 = vmatprep.subr.mxu0 0.0
    %4220 = vmatpush2.msra.mxu0 0.0
    %4221 = vmatprep.subr.mxu0 0.0
    %4222 = vmatpush2.msra.mxu0 0.0
    %4223 = vmatprep.subr.mxu0 0.0
    %4224 = vmatpush2.msra.mxu0 0.0
    %4225 = vmatprep.subr.mxu0 0.0
    %4226 = vmatpush2.msra.mxu0 0.0
    %4227 = vmatprep.subr.mxu0 0.0
    %4228 = vmatpush2.msra.mxu0 0.0
    %4229 = vmatprep.subr.mxu0 0.0
    %4230 = vmatpush2.msra.mxu0 0.0
    %4231 = vmatprep.subr.mxu0 0.0
    %4232 = vmatpush2.msra.mxu0 0.0
    %4233 = vmatprep.subr.mxu0 0.0
    %4234 = vmatpush2.msra.mxu0 0.0
    %4235 = vmatprep.subr.mxu0 0.0
    %4236 = vmatpush2.msra.mxu0 0.0
    %4237 = vmatprep.subr.mxu0 0.0
    %4238 = vmatpush2.msra.mxu0 0.0
    %4239 = vmatprep.subr.mxu0 0.0
    %4240 = vmatpush2.msra.mxu0 0.0
    %4241 = vmatprep.subr.mxu0 0.0
    %4242 = vmatpush2.msra.mxu0 0.0
    %4243 = vmatprep.subr.mxu0 0.0
    %4244 = vmatpush2.msra.mxu0 0.0
    %4245 = vmatprep.mubr.f32.mxu0 0.0
    %4246 = vmatmul.mubr.f32.gmra.mxu0 %v4179
    %v4247 = vpop.f32.mrf.mxu0
    %v4248 = vadd.f32 0.0, %v4247
    %v4249 = vpop.f32.mrf.mxu0
    %4250 = vdwg.mxu0
    %v4252 = vsel %vm921, %v4093, 0
    %4254 = vmatprep.subr.mxu0 0.0
    %4255 = vmatpush1.msra.mxu0 0.0
    %4256 = vmatprep.subr.mxu0 0.0
    %4257 = vmatpush1.msra.mxu0 0.0
    %4258 = vmatprep.subr.mxu0 0.0
    %4259 = vmatpush1.msra.mxu0 0.0
    %4260 = vmatprep.subr.mxu0 0.0
    %4261 = vmatpush1.msra.mxu0 0.0
    %4262 = vmatprep.subr.mxu0 0.0
    %4263 = vmatpush1.msra.mxu0 0.0
    %4264 = vmatprep.subr.mxu0 0.0
    %4265 = vmatpush1.msra.mxu0 0.0
    %4266 = vmatprep.subr.mxu0 0.0
    %4267 = vmatpush1.msra.mxu0 0.0
    %4268 = vmatprep.subr.mxu0 0.0
    %4269 = vmatpush1.msra.mxu0 0.0
    %4270 = vmatprep.subr.mxu0 0.0
    %4271 = vmatpush1.msra.mxu0 0.0
    %4272 = vmatprep.subr.mxu0 0.0
    %4273 = vmatpush1.msra.mxu0 0.0
    %4274 = vmatprep.subr.mxu0 0.0
    %4275 = vmatpush1.msra.mxu0 0.0
    %4276 = vmatprep.subr.mxu0 0.0
    %4277 = vmatpush1.msra.mxu0 0.0
    %4278 = vmatprep.subr.mxu0 0.0
    %4279 = vmatpush1.msra.mxu0 0.0
    %4280 = vmatprep.subr.mxu0 0.0
    %4281 = vmatpush1.msra.mxu0 0.0
    %4282 = vmatprep.subr.mxu0 0.0
    %4283 = vmatpush1.msra.mxu0 0.0
    %4284 = vmatprep.subr.mxu0 0.0
    %4285 = vmatpush1.msra.mxu0 %v4106
    %4286 = vmatprep.subr.mxu0 0.0
    %4287 = vmatpush2.msra.mxu0 0.0
    %4288 = vmatprep.subr.mxu0 0.0
    %4289 = vmatpush2.msra.mxu0 0.0
    %4290 = vmatprep.subr.mxu0 0.0
    %4291 = vmatpush2.msra.mxu0 0.0
    %4292 = vmatprep.subr.mxu0 0.0
    %4293 = vmatpush2.msra.mxu0 0.0
    %4294 = vmatprep.subr.mxu0 0.0
    %4295 = vmatpush2.msra.mxu0 0.0
    %4296 = vmatprep.subr.mxu0 0.0
    %4297 = vmatpush2.msra.mxu0 0.0
    %4298 = vmatprep.subr.mxu0 0.0
    %4299 = vmatpush2.msra.mxu0 0.0
    %4300 = vmatprep.subr.mxu0 0.0
    %4301 = vmatpush2.msra.mxu0 0.0
    %4302 = vmatprep.subr.mxu0 0.0
    %4303 = vmatpush2.msra.mxu0 0.0
    %4304 = vmatprep.subr.mxu0 0.0
    %4305 = vmatpush2.msra.mxu0 0.0
    %4306 = vmatprep.subr.mxu0 0.0
    %4307 = vmatpush2.msra.mxu0 0.0
    %4308 = vmatprep.subr.mxu0 0.0
    %4309 = vmatpush2.msra.mxu0 0.0
    %4310 = vmatprep.subr.mxu0 0.0
    %4311 = vmatpush2.msra.mxu0 0.0
    %4312 = vmatprep.subr.mxu0 0.0
    %4313 = vmatpush2.msra.mxu0 0.0
    %4314 = vmatprep.subr.mxu0 0.0
    %4315 = vmatpush2.msra.mxu0 0.0
    %4316 = vmatprep.subr.mxu0 0.0
    %4317 = vmatpush2.msra.mxu0 0.0
    %4318 = vmatprep.mubr.f32.mxu0 0.0
    %4319 = vmatmul.mubr.f32.gmra.mxu0 %v4252
    %v4320 = vpop.f32.mrf.mxu0
    %v4321 = vadd.f32 0.0, %v4320
    %v4322 = vpop.f32.mrf.mxu0
    %4323 = vdwg.mxu0
    %v4324 = vmul.f32 %v4175, %v4175
    %v4325 = vmul.f32 %v4248, %v4248
    %v4326 = vadd.f32 %v4324, %v4325
    %v4327 = vmul.f32 %v4321, %v4321
    %v4328 = vadd.f32 %v4326, %v4327
    %v4329 = vmax.f32 %v4328, 1e-08
    %v4330 = vrsqrt.pop %v4329
    %v4331 = vmul.f32 %v4329, %v4330
    %vm4332 = vcmp.eq.f32.partialorder %v4329, inf
    %v4333 = vsel %vm4332, %v4329, %v4331
    %vm4334 = vcmp.eq.f32.partialorder %v4329, 0.0
    %v4335 = vand.u32 %v4329, 2147483648
    %v4336 = vsel %vm4334, %v4335, %v4333
    %v4338 = vsel %vm217, %v4336, 0
    %4340 = vmatprep.subr.mxu0 0.0
    %4341 = vmatpush1.msra.mxu0 0.0
    %4342 = vmatprep.subr.mxu0 0.0
    %4343 = vmatpush1.msra.mxu0 0.0
    %4344 = vmatprep.subr.mxu0 0.0
    %4345 = vmatpush1.msra.mxu0 0.0
    %4346 = vmatprep.subr.mxu0 0.0
    %4347 = vmatpush1.msra.mxu0 0.0
    %4348 = vmatprep.subr.mxu0 0.0
    %4349 = vmatpush1.msra.mxu0 0.0
    %4350 = vmatprep.subr.mxu0 0.0
    %4351 = vmatpush1.msra.mxu0 0.0
    %4352 = vmatprep.subr.mxu0 0.0
    %4353 = vmatpush1.msra.mxu0 0.0
    %4354 = vmatprep.subr.mxu0 0.0
    %4355 = vmatpush1.msra.mxu0 0.0
    %4356 = vmatprep.subr.mxu0 0.0
    %4357 = vmatpush1.msra.mxu0 0.0
    %4358 = vmatprep.subr.mxu0 0.0
    %4359 = vmatpush1.msra.mxu0 0.0
    %4360 = vmatprep.subr.mxu0 0.0
    %4361 = vmatpush1.msra.mxu0 0.0
    %4362 = vmatprep.subr.mxu0 0.0
    %4363 = vmatpush1.msra.mxu0 0.0
    %4364 = vmatprep.subr.mxu0 0.0
    %4365 = vmatpush1.msra.mxu0 0.0
    %4366 = vmatprep.subr.mxu0 0.0
    %4367 = vmatpush1.msra.mxu0 0.0
    %4368 = vmatprep.subr.mxu0 0.0
    %4369 = vmatpush1.msra.mxu0 0.0
    %4370 = vmatprep.subr.mxu0 0.0
    %4371 = vmatpush1.msra.mxu0 %v4099
    %4372 = vmatprep.subr.mxu0 0.0
    %4373 = vmatpush2.msra.mxu0 0.0
    %4374 = vmatprep.subr.mxu0 0.0
    %4375 = vmatpush2.msra.mxu0 0.0
    %4376 = vmatprep.subr.mxu0 0.0
    %4377 = vmatpush2.msra.mxu0 0.0
    %4378 = vmatprep.subr.mxu0 0.0
    %4379 = vmatpush2.msra.mxu0 0.0
    %4380 = vmatprep.subr.mxu0 0.0
    %4381 = vmatpush2.msra.mxu0 0.0
    %4382 = vmatprep.subr.mxu0 0.0
    %4383 = vmatpush2.msra.mxu0 0.0
    %4384 = vmatprep.subr.mxu0 0.0
    %4385 = vmatpush2.msra.mxu0 0.0
    %4386 = vmatprep.subr.mxu0 0.0
    %4387 = vmatpush2.msra.mxu0 0.0
    %4388 = vmatprep.subr.mxu0 0.0
    %4389 = vmatpush2.msra.mxu0 0.0
    %4390 = vmatprep.subr.mxu0 0.0
    %4391 = vmatpush2.msra.mxu0 0.0
    %4392 = vmatprep.subr.mxu0 0.0
    %4393 = vmatpush2.msra.mxu0 0.0
    %4394 = vmatprep.subr.mxu0 0.0
    %4395 = vmatpush2.msra.mxu0 0.0
    %4396 = vmatprep.subr.mxu0 0.0
    %4397 = vmatpush2.msra.mxu0 0.0
    %4398 = vmatprep.subr.mxu0 0.0
    %4399 = vmatpush2.msra.mxu0 0.0
    %4400 = vmatprep.subr.mxu0 0.0
    %4401 = vmatpush2.msra.mxu0 0.0
    %4402 = vmatprep.subr.mxu0 0.0
    %4403 = vmatpush2.msra.mxu0 0.0
    %4404 = vmatprep.mubr.f32.mxu0 0.0
    %4405 = vmatmul.mubr.f32.gmra.mxu0 %v4338
    %v4406 = vpop.f32.mrf.mxu0
    %v4407 = vadd.f32 0.0, %v4406
    %v4408 = vpop.f32.mrf.mxu0
    %4409 = vdwg.mxu0
    %v4411 = vsel %vm1599, %v4078, 0
    %4413 = vmatprep.subr.mxu0 0.0
    %4414 = vmatpush1.msra.mxu0 0.0
    %4415 = vmatprep.subr.mxu0 0.0
    %4416 = vmatpush1.msra.mxu0 0.0
    %4417 = vmatprep.subr.mxu0 0.0
    %4418 = vmatpush1.msra.mxu0 0.0
    %4419 = vmatprep.subr.mxu0 0.0
    %4420 = vmatpush1.msra.mxu0 0.0
    %4421 = vmatprep.subr.mxu0 0.0
    %4422 = vmatpush1.msra.mxu0 0.0
    %4423 = vmatprep.subr.mxu0 0.0
    %4424 = vmatpush1.msra.mxu0 0.0
    %4425 = vmatprep.subr.mxu0 0.0
    %4426 = vmatpush1.msra.mxu0 0.0
    %4427 = vmatprep.subr.mxu0 0.0
    %4428 = vmatpush1.msra.mxu0 0.0
    %4429 = vmatprep.subr.mxu0 0.0
    %4430 = vmatpush1.msra.mxu0 0.0
    %4431 = vmatprep.subr.mxu0 0.0
    %4432 = vmatpush1.msra.mxu0 0.0
    %4433 = vmatprep.subr.mxu0 0.0
    %4434 = vmatpush1.msra.mxu0 0.0
    %4435 = vmatprep.subr.mxu0 0.0
    %4436 = vmatpush1.msra.mxu0 0.0
    %4437 = vmatprep.subr.mxu0 0.0
    %4438 = vmatpush1.msra.mxu0 %v4098
    %4439 = vmatprep.subr.mxu0 0.0
    %4440 = vmatpush1.msra.mxu0 %v4097
    %4441 = vmatprep.subr.mxu0 0.0
    %4442 = vmatpush1.msra.mxu0 %v4096
    %4443 = vmatprep.subr.mxu0 0.0
    %4444 = vmatpush1.msra.mxu0 %v4095
    %4445 = vmatprep.subr.mxu0 0.0
    %4446 = vmatpush2.msra.mxu0 0.0
    %4447 = vmatprep.subr.mxu0 0.0
    %4448 = vmatpush2.msra.mxu0 0.0
    %4449 = vmatprep.subr.mxu0 0.0
    %4450 = vmatpush2.msra.mxu0 0.0
    %4451 = vmatprep.subr.mxu0 0.0
    %4452 = vmatpush2.msra.mxu0 0.0
    %4453 = vmatprep.subr.mxu0 0.0
    %4454 = vmatpush2.msra.mxu0 0.0
    %4455 = vmatprep.subr.mxu0 0.0
    %4456 = vmatpush2.msra.mxu0 0.0
    %4457 = vmatprep.subr.mxu0 0.0
    %4458 = vmatpush2.msra.mxu0 0.0
    %4459 = vmatprep.subr.mxu0 0.0
    %4460 = vmatpush2.msra.mxu0 0.0
    %4461 = vmatprep.subr.mxu0 0.0
    %4462 = vmatpush2.msra.mxu0 0.0
    %4463 = vmatprep.subr.mxu0 0.0
    %4464 = vmatpush2.msra.mxu0 0.0
    %4465 = vmatprep.subr.mxu0 0.0
    %4466 = vmatpush2.msra.mxu0 0.0
    %4467 = vmatprep.subr.mxu0 0.0
    %4468 = vmatpush2.msra.mxu0 0.0
    %4469 = vmatprep.subr.mxu0 0.0
    %4470 = vmatpush2.msra.mxu0 0.0
    %4471 = vmatprep.subr.mxu0 0.0
    %4472 = vmatpush2.msra.mxu0 0.0
    %4473 = vmatprep.subr.mxu0 0.0
    %4474 = vmatpush2.msra.mxu0 0.0
    %4475 = vmatprep.subr.mxu0 0.0
    %4476 = vmatpush2.msra.mxu0 0.0
    %4477 = vmatprep.mubr.f32.mxu0 0.0
    %4478 = vmatmul.mubr.f32.gmra.mxu0 %v4411
    %v4479 = vpop.f32.mrf.mxu0
    %v4480 = vadd.f32 %v4407, %v4479
    %v4481 = vpop.f32.mrf.mxu0
    %4482 = vdwg.mxu0
    %v4484 = vlaneseq
    %v4485 = vshrl.u32 %v4484, 7
    %v4486 = vsub.s32 0, %v4485
    %v4487 = vrot.slane %v4100, %v4486
    %v4489 = vadd.f32 %v4480, %v4487
    %v4491 = vsel %vm217, %v4175, 0
    %4493 = vmatprep.subr.mxu0 0.0
    %4494 = vmatpush1.msra.mxu0 0.0
    %4495 = vmatprep.subr.mxu0 0.0
    %4496 = vmatpush1.msra.mxu0 0.0
    %4497 = vmatprep.subr.mxu0 0.0
    %4498 = vmatpush1.msra.mxu0 0.0
    %4499 = vmatprep.subr.mxu0 0.0
    %4500 = vmatpush1.msra.mxu0 0.0
    %4501 = vmatprep.subr.mxu0 0.0
    %4502 = vmatpush1.msra.mxu0 0.0
    %4503 = vmatprep.subr.mxu0 0.0
    %4504 = vmatpush1.msra.mxu0 0.0
    %4505 = vmatprep.subr.mxu0 0.0
    %4506 = vmatpush1.msra.mxu0 0.0
    %4507 = vmatprep.subr.mxu0 0.0
    %4508 = vmatpush1.msra.mxu0 0.0
    %4509 = vmatprep.subr.mxu0 0.0
    %4510 = vmatpush1.msra.mxu0 0.0
    %4511 = vmatprep.subr.mxu0 0.0
    %4512 = vmatpush1.msra.mxu0 0.0
    %4513 = vmatprep.subr.mxu0 0.0
    %4514 = vmatpush1.msra.mxu0 0.0
    %4515 = vmatprep.subr.mxu0 0.0
    %4516 = vmatpush1.msra.mxu0 0.0
    %4517 = vmatprep.subr.mxu0 0.0
    %4518 = vmatpush1.msra.mxu0 0.0
    %4519 = vmatprep.subr.mxu0 0.0
    %4520 = vmatpush1.msra.mxu0 0.0
    %4521 = vmatprep.subr.mxu0 0.0
    %4522 = vmatpush1.msra.mxu0 0.0
    %4523 = vmatprep.subr.mxu0 0.0
    %4524 = vmatpush1.msra.mxu0 %v4101
    %4525 = vmatprep.subr.mxu0 0.0
    %4526 = vmatpush2.msra.mxu0 0.0
    %4527 = vmatprep.subr.mxu0 0.0
    %4528 = vmatpush2.msra.mxu0 0.0
    %4529 = vmatprep.subr.mxu0 0.0
    %4530 = vmatpush2.msra.mxu0 0.0
    %4531 = vmatprep.subr.mxu0 0.0
    %4532 = vmatpush2.msra.mxu0 0.0
    %4533 = vmatprep.subr.mxu0 0.0
    %4534 = vmatpush2.msra.mxu0 0.0
    %4535 = vmatprep.subr.mxu0 0.0
    %4536 = vmatpush2.msra.mxu0 0.0
    %4537 = vmatprep.subr.mxu0 0.0
    %4538 = vmatpush2.msra.mxu0 0.0
    %4539 = vmatprep.subr.mxu0 0.0
    %4540 = vmatpush2.msra.mxu0 0.0
    %4541 = vmatprep.subr.mxu0 0.0
    %4542 = vmatpush2.msra.mxu0 0.0
    %4543 = vmatprep.subr.mxu0 0.0
    %4544 = vmatpush2.msra.mxu0 0.0
    %4545 = vmatprep.subr.mxu0 0.0
    %4546 = vmatpush2.msra.mxu0 0.0
    %4547 = vmatprep.subr.mxu0 0.0
    %4548 = vmatpush2.msra.mxu0 0.0
    %4549 = vmatprep.subr.mxu0 0.0
    %4550 = vmatpush2.msra.mxu0 0.0
    %4551 = vmatprep.subr.mxu0 0.0
    %4552 = vmatpush2.msra.mxu0 0.0
    %4553 = vmatprep.subr.mxu0 0.0
    %4554 = vmatpush2.msra.mxu0 0.0
    %4555 = vmatprep.subr.mxu0 0.0
    %4556 = vmatpush2.msra.mxu0 0.0
    %4557 = vmatprep.mubr.f32.mxu0 0.0
    %4558 = vmatmul.mubr.f32.gmra.mxu0 %v4491
    %v4559 = vpop.f32.mrf.mxu0
    %v4560 = vadd.f32 0.0, %v4559
    %v4561 = vpop.f32.mrf.mxu0
    %4562 = vdwg.mxu0
    %v4564 = vsel %vm217, %v4248, 0
    %4566 = vmatprep.subr.mxu0 0.0
    %4567 = vmatpush1.msra.mxu0 0.0
    %4568 = vmatprep.subr.mxu0 0.0
    %4569 = vmatpush1.msra.mxu0 0.0
    %4570 = vmatprep.subr.mxu0 0.0
    %4571 = vmatpush1.msra.mxu0 0.0
    %4572 = vmatprep.subr.mxu0 0.0
    %4573 = vmatpush1.msra.mxu0 0.0
    %4574 = vmatprep.subr.mxu0 0.0
    %4575 = vmatpush1.msra.mxu0 0.0
    %4576 = vmatprep.subr.mxu0 0.0
    %4577 = vmatpush1.msra.mxu0 0.0
    %4578 = vmatprep.subr.mxu0 0.0
    %4579 = vmatpush1.msra.mxu0 0.0
    %4580 = vmatprep.subr.mxu0 0.0
    %4581 = vmatpush1.msra.mxu0 0.0
    %4582 = vmatprep.subr.mxu0 0.0
    %4583 = vmatpush1.msra.mxu0 0.0
    %4584 = vmatprep.subr.mxu0 0.0
    %4585 = vmatpush1.msra.mxu0 0.0
    %4586 = vmatprep.subr.mxu0 0.0
    %4587 = vmatpush1.msra.mxu0 0.0
    %4588 = vmatprep.subr.mxu0 0.0
    %4589 = vmatpush1.msra.mxu0 0.0
    %4590 = vmatprep.subr.mxu0 0.0
    %4591 = vmatpush1.msra.mxu0 0.0
    %4592 = vmatprep.subr.mxu0 0.0
    %4593 = vmatpush1.msra.mxu0 0.0
    %4594 = vmatprep.subr.mxu0 0.0
    %4595 = vmatpush1.msra.mxu0 0.0
    %4596 = vmatprep.subr.mxu0 0.0
    %4597 = vmatpush1.msra.mxu0 %v4101
    %4598 = vmatprep.subr.mxu0 0.0
    %4599 = vmatpush2.msra.mxu0 0.0
    %4600 = vmatprep.subr.mxu0 0.0
    %4601 = vmatpush2.msra.mxu0 0.0
    %4602 = vmatprep.subr.mxu0 0.0
    %4603 = vmatpush2.msra.mxu0 0.0
    %4604 = vmatprep.subr.mxu0 0.0
    %4605 = vmatpush2.msra.mxu0 0.0
    %4606 = vmatprep.subr.mxu0 0.0
    %4607 = vmatpush2.msra.mxu0 0.0
    %4608 = vmatprep.subr.mxu0 0.0
    %4609 = vmatpush2.msra.mxu0 0.0
    %4610 = vmatprep.subr.mxu0 0.0
    %4611 = vmatpush2.msra.mxu0 0.0
    %4612 = vmatprep.subr.mxu0 0.0
    %4613 = vmatpush2.msra.mxu0 0.0
    %4614 = vmatprep.subr.mxu0 0.0
    %4615 = vmatpush2.msra.mxu0 0.0
    %4616 = vmatprep.subr.mxu0 0.0
    %4617 = vmatpush2.msra.mxu0 0.0
    %4618 = vmatprep.subr.mxu0 0.0
    %4619 = vmatpush2.msra.mxu0 0.0
    %4620 = vmatprep.subr.mxu0 0.0
    %4621 = vmatpush2.msra.mxu0 0.0
    %4622 = vmatprep.subr.mxu0 0.0
    %4623 = vmatpush2.msra.mxu0 0.0
    %4624 = vmatprep.subr.mxu0 0.0
    %4625 = vmatpush2.msra.mxu0 0.0
    %4626 = vmatprep.subr.mxu0 0.0
    %4627 = vmatpush2.msra.mxu0 0.0
    %4628 = vmatprep.subr.mxu0 0.0
    %4629 = vmatpush2.msra.mxu0 0.0
    %4630 = vmatprep.mubr.f32.mxu0 0.0
    %4631 = vmatmul.mubr.f32.gmra.mxu0 %v4564
    %v4632 = vpop.f32.mrf.mxu0
    %v4633 = vadd.f32 0.0, %v4632
    %v4634 = vpop.f32.mrf.mxu0
    %4635 = vdwg.mxu0
    %v4637 = vsel %vm217, %v4321, 0
    %4639 = vmatprep.subr.mxu0 0.0
    %4640 = vmatpush1.msra.mxu0 0.0
    %4641 = vmatprep.subr.mxu0 0.0
    %4642 = vmatpush1.msra.mxu0 0.0
    %4643 = vmatprep.subr.mxu0 0.0
    %4644 = vmatpush1.msra.mxu0 0.0
    %4645 = vmatprep.subr.mxu0 0.0
    %4646 = vmatpush1.msra.mxu0 0.0
    %4647 = vmatprep.subr.mxu0 0.0
    %4648 = vmatpush1.msra.mxu0 0.0
    %4649 = vmatprep.subr.mxu0 0.0
    %4650 = vmatpush1.msra.mxu0 0.0
    %4651 = vmatprep.subr.mxu0 0.0
    %4652 = vmatpush1.msra.mxu0 0.0
    %4653 = vmatprep.subr.mxu0 0.0
    %4654 = vmatpush1.msra.mxu0 0.0
    %4655 = vmatprep.subr.mxu0 0.0
    %4656 = vmatpush1.msra.mxu0 0.0
    %4657 = vmatprep.subr.mxu0 0.0
    %4658 = vmatpush1.msra.mxu0 0.0
    %4659 = vmatprep.subr.mxu0 0.0
    %4660 = vmatpush1.msra.mxu0 0.0
    %4661 = vmatprep.subr.mxu0 0.0
    %4662 = vmatpush1.msra.mxu0 0.0
    %4663 = vmatprep.subr.mxu0 0.0
    %4664 = vmatpush1.msra.mxu0 0.0
    %4665 = vmatprep.subr.mxu0 0.0
    %4666 = vmatpush1.msra.mxu0 0.0
    %4667 = vmatprep.subr.mxu0 0.0
    %4668 = vmatpush1.msra.mxu0 0.0
    %4669 = vmatprep.subr.mxu0 0.0
    %4670 = vmatpush1.msra.mxu0 %v4101
    %4671 = vmatprep.subr.mxu0 0.0
    %4672 = vmatpush2.msra.mxu0 0.0
    %4673 = vmatprep.subr.mxu0 0.0
    %4674 = vmatpush2.msra.mxu0 0.0
    %4675 = vmatprep.subr.mxu0 0.0
    %4676 = vmatpush2.msra.mxu0 0.0
    %4677 = vmatprep.subr.mxu0 0.0
    %4678 = vmatpush2.msra.mxu0 0.0
    %4679 = vmatprep.subr.mxu0 0.0
    %4680 = vmatpush2.msra.mxu0 0.0
    %4681 = vmatprep.subr.mxu0 0.0
    %4682 = vmatpush2.msra.mxu0 0.0
    %4683 = vmatprep.subr.mxu0 0.0
    %4684 = vmatpush2.msra.mxu0 0.0
    %4685 = vmatprep.subr.mxu0 0.0
    %4686 = vmatpush2.msra.mxu0 0.0
    %4687 = vmatprep.subr.mxu0 0.0
    %4688 = vmatpush2.msra.mxu0 0.0
    %4689 = vmatprep.subr.mxu0 0.0
    %4690 = vmatpush2.msra.mxu0 0.0
    %4691 = vmatprep.subr.mxu0 0.0
    %4692 = vmatpush2.msra.mxu0 0.0
    %4693 = vmatprep.subr.mxu0 0.0
    %4694 = vmatpush2.msra.mxu0 0.0
    %4695 = vmatprep.subr.mxu0 0.0
    %4696 = vmatpush2.msra.mxu0 0.0
    %4697 = vmatprep.subr.mxu0 0.0
    %4698 = vmatpush2.msra.mxu0 0.0
    %4699 = vmatprep.subr.mxu0 0.0
    %4700 = vmatpush2.msra.mxu0 0.0
    %4701 = vmatprep.subr.mxu0 0.0
    %4702 = vmatpush2.msra.mxu0 0.0
    %4703 = vmatprep.mubr.f32.mxu0 0.0
    %4704 = vmatmul.mubr.f32.gmra.mxu0 %v4637
    %v4705 = vpop.f32.mrf.mxu0
    %v4706 = vadd.f32 0.0, %v4705
    %v4707 = vpop.f32.mrf.mxu0
    %4708 = vdwg.mxu0
    %v4709 = vmul.f32 %v4560, %v4560
    %v4710 = vmul.f32 %v4633, %v4633
    %v4711 = vadd.f32 %v4709, %v4710
    %v4712 = vmul.f32 %v4706, %v4706
    %v4713 = vadd.f32 %v4711, %v4712
    %v4714 = vmax.f32 %v4713, 1e-08
    %v4715 = vrsqrt.pop %v4714
    %v4716 = vmul.f32 %v4714, %v4715
    %vm4717 = vcmp.eq.f32.partialorder %v4714, inf
    %v4718 = vsel %vm4717, %v4714, %v4716
    %vm4719 = vcmp.eq.f32.partialorder %v4714, 0.0
    %v4720 = vand.u32 %v4714, 2147483648
    %v4721 = vsel %vm4719, %v4720, %v4718
    %v4722 = vsub.f32 0.0, %v4721
    %v4723 = vmul.f32 %v4722, 1.442695
    %v4724 = vpow.pop %v4723
    %v4725 = vadd.f32 %v4724, 1.0
    %v4726 = vrcp.pop %v4725
    %v4727 = vmul.f32 1.0, %v4726
    %v4728 = vmul.f32 %v4560, %v4727
    %v4729 = vmul.f32 %v4633, %v4727
    %v4730 = vmul.f32 %v4706, %v4727
    %v4731 = vmax.f32 %v4489, 0.0
    %v4732 = vld [vmem:[%s67] sm:$0xff]
    %v4733 = vld [vmem:[%s69] sm:$0xff]
    %v4734 = vld [vmem:[%s69 + $0x8] sm:$0xff]
    %v4735 = vld [vmem:[%s69 + $0x10] sm:$0xff]
    %v4736 = vld [vmem:[%s69 + $0x18] sm:$0xff]
    %v4737 = vld [vmem:[%s69 + $0x20] sm:$0xff]
    %v4738 = vld [vmem:[%s69 + $0x28] sm:$0xff]
    %v4739 = vld [vmem:[%s69 + $0x30] sm:$0xff]
    %v4740 = vld [vmem:[%s69 + $0x38] sm:$0xff]
    %v4741 = vld [vmem:[%s69 + $0x40] sm:$0xff]
    %v4742 = vld [vmem:[%s69 + $0x48] sm:$0xff]
    %v4743 = vld [vmem:[%s69 + $0x50] sm:$0xff]
    %v4744 = vld [vmem:[%s69 + $0x58] sm:$0xff]
    %v4745 = vld [vmem:[%s69 + $0x60] sm:$0xff]
    %v4746 = vld [vmem:[%s69 + $0x68] sm:$0xff]
    %v4747 = vld [vmem:[%s69 + $0x70] sm:$0xff]
    %v4748 = vld [vmem:[%s69 + $0x78] sm:$0xff]
    %v4749 = vld [vmem:[%s71] sm:$0xff]
    %v4750 = vld [vmem:[%s73] sm:$0x1]
    %v4751 = vld [vmem:[%s75] sm:$0xff]
    %v4753 = vsel %vm217, %v4728, 0
    %4755 = vmatprep.subr.mxu0 0.0
    %4756 = vmatpush1.msra.mxu0 0.0
    %4757 = vmatprep.subr.mxu0 0.0
    %4758 = vmatpush1.msra.mxu0 0.0
    %4759 = vmatprep.subr.mxu0 0.0
    %4760 = vmatpush1.msra.mxu0 0.0
    %4761 = vmatprep.subr.mxu0 0.0
    %4762 = vmatpush1.msra.mxu0 0.0
    %4763 = vmatprep.subr.mxu0 0.0
    %4764 = vmatpush1.msra.mxu0 0.0
    %4765 = vmatprep.subr.mxu0 0.0
    %4766 = vmatpush1.msra.mxu0 0.0
    %4767 = vmatprep.subr.mxu0 0.0
    %4768 = vmatpush1.msra.mxu0 0.0
    %4769 = vmatprep.subr.mxu0 0.0
    %4770 = vmatpush1.msra.mxu0 0.0
    %4771 = vmatprep.subr.mxu0 0.0
    %4772 = vmatpush1.msra.mxu0 0.0
    %4773 = vmatprep.subr.mxu0 0.0
    %4774 = vmatpush1.msra.mxu0 0.0
    %4775 = vmatprep.subr.mxu0 0.0
    %4776 = vmatpush1.msra.mxu0 0.0
    %4777 = vmatprep.subr.mxu0 0.0
    %4778 = vmatpush1.msra.mxu0 0.0
    %4779 = vmatprep.subr.mxu0 0.0
    %4780 = vmatpush1.msra.mxu0 0.0
    %4781 = vmatprep.subr.mxu0 0.0
    %4782 = vmatpush1.msra.mxu0 0.0
    %4783 = vmatprep.subr.mxu0 0.0
    %4784 = vmatpush1.msra.mxu0 0.0
    %4785 = vmatprep.subr.mxu0 0.0
    %4786 = vmatpush1.msra.mxu0 %v4732
    %4787 = vmatprep.subr.mxu0 0.0
    %4788 = vmatpush2.msra.mxu0 0.0
    %4789 = vmatprep.subr.mxu0 0.0
    %4790 = vmatpush2.msra.mxu0 0.0
    %4791 = vmatprep.subr.mxu0 0.0
    %4792 = vmatpush2.msra.mxu0 0.0
    %4793 = vmatprep.subr.mxu0 0.0
    %4794 = vmatpush2.msra.mxu0 0.0
    %4795 = vmatprep.subr.mxu0 0.0
    %4796 = vmatpush2.msra.mxu0 0.0
    %4797 = vmatprep.subr.mxu0 0.0
    %4798 = vmatpush2.msra.mxu0 0.0
    %4799 = vmatprep.subr.mxu0 0.0
    %4800 = vmatpush2.msra.mxu0 0.0
    %4801 = vmatprep.subr.mxu0 0.0
    %4802 = vmatpush2.msra.mxu0 0.0
    %4803 = vmatprep.subr.mxu0 0.0
    %4804 = vmatpush2.msra.mxu0 0.0
    %4805 = vmatprep.subr.mxu0 0.0
    %4806 = vmatpush2.msra.mxu0 0.0
    %4807 = vmatprep.subr.mxu0 0.0
    %4808 = vmatpush2.msra.mxu0 0.0
    %4809 = vmatprep.subr.mxu0 0.0
    %4810 = vmatpush2.msra.mxu0 0.0
    %4811 = vmatprep.subr.mxu0 0.0
    %4812 = vmatpush2.msra.mxu0 0.0
    %4813 = vmatprep.subr.mxu0 0.0
    %4814 = vmatpush2.msra.mxu0 0.0
    %4815 = vmatprep.subr.mxu0 0.0
    %4816 = vmatpush2.msra.mxu0 0.0
    %4817 = vmatprep.subr.mxu0 0.0
    %4818 = vmatpush2.msra.mxu0 0.0
    %4819 = vmatprep.mubr.f32.mxu0 0.0
    %4820 = vmatmul.mubr.f32.gmra.mxu0 %v4753
    %v4821 = vpop.f32.mrf.mxu0
    %v4822 = vadd.f32 0.0, %v4821
    %v4823 = vpop.f32.mrf.mxu0
    %4824 = vdwg.mxu0
    %v4826 = vsel %vm217, %v4729, 0
    %4828 = vmatprep.subr.mxu0 0.0
    %4829 = vmatpush1.msra.mxu0 0.0
    %4830 = vmatprep.subr.mxu0 0.0
    %4831 = vmatpush1.msra.mxu0 0.0
    %4832 = vmatprep.subr.mxu0 0.0
    %4833 = vmatpush1.msra.mxu0 0.0
    %4834 = vmatprep.subr.mxu0 0.0
    %4835 = vmatpush1.msra.mxu0 0.0
    %4836 = vmatprep.subr.mxu0 0.0
    %4837 = vmatpush1.msra.mxu0 0.0
    %4838 = vmatprep.subr.mxu0 0.0
    %4839 = vmatpush1.msra.mxu0 0.0
    %4840 = vmatprep.subr.mxu0 0.0
    %4841 = vmatpush1.msra.mxu0 0.0
    %4842 = vmatprep.subr.mxu0 0.0
    %4843 = vmatpush1.msra.mxu0 0.0
    %4844 = vmatprep.subr.mxu0 0.0
    %4845 = vmatpush1.msra.mxu0 0.0
    %4846 = vmatprep.subr.mxu0 0.0
    %4847 = vmatpush1.msra.mxu0 0.0
    %4848 = vmatprep.subr.mxu0 0.0
    %4849 = vmatpush1.msra.mxu0 0.0
    %4850 = vmatprep.subr.mxu0 0.0
    %4851 = vmatpush1.msra.mxu0 0.0
    %4852 = vmatprep.subr.mxu0 0.0
    %4853 = vmatpush1.msra.mxu0 0.0
    %4854 = vmatprep.subr.mxu0 0.0
    %4855 = vmatpush1.msra.mxu0 0.0
    %4856 = vmatprep.subr.mxu0 0.0
    %4857 = vmatpush1.msra.mxu0 0.0
    %4858 = vmatprep.subr.mxu0 0.0
    %4859 = vmatpush1.msra.mxu0 %v4732
    %4860 = vmatprep.subr.mxu0 0.0
    %4861 = vmatpush2.msra.mxu0 0.0
    %4862 = vmatprep.subr.mxu0 0.0
    %4863 = vmatpush2.msra.mxu0 0.0
    %4864 = vmatprep.subr.mxu0 0.0
    %4865 = vmatpush2.msra.mxu0 0.0
    %4866 = vmatprep.subr.mxu0 0.0
    %4867 = vmatpush2.msra.mxu0 0.0
    %4868 = vmatprep.subr.mxu0 0.0
    %4869 = vmatpush2.msra.mxu0 0.0
    %4870 = vmatprep.subr.mxu0 0.0
    %4871 = vmatpush2.msra.mxu0 0.0
    %4872 = vmatprep.subr.mxu0 0.0
    %4873 = vmatpush2.msra.mxu0 0.0
    %4874 = vmatprep.subr.mxu0 0.0
    %4875 = vmatpush2.msra.mxu0 0.0
    %4876 = vmatprep.subr.mxu0 0.0
    %4877 = vmatpush2.msra.mxu0 0.0
    %4878 = vmatprep.subr.mxu0 0.0
    %4879 = vmatpush2.msra.mxu0 0.0
    %4880 = vmatprep.subr.mxu0 0.0
    %4881 = vmatpush2.msra.mxu0 0.0
    %4882 = vmatprep.subr.mxu0 0.0
    %4883 = vmatpush2.msra.mxu0 0.0
    %4884 = vmatprep.subr.mxu0 0.0
    %4885 = vmatpush2.msra.mxu0 0.0
    %4886 = vmatprep.subr.mxu0 0.0
    %4887 = vmatpush2.msra.mxu0 0.0
    %4888 = vmatprep.subr.mxu0 0.0
    %4889 = vmatpush2.msra.mxu0 0.0
    %4890 = vmatprep.subr.mxu0 0.0
    %4891 = vmatpush2.msra.mxu0 0.0
    %4892 = vmatprep.mubr.f32.mxu0 0.0
    %4893 = vmatmul.mubr.f32.gmra.mxu0 %v4826
    %v4894 = vpop.f32.mrf.mxu0
    %v4895 = vadd.f32 0.0, %v4894
    %v4896 = vpop.f32.mrf.mxu0
    %4897 = vdwg.mxu0
    %v4899 = vsel %vm217, %v4730, 0
    %4901 = vmatprep.subr.mxu0 0.0
    %4902 = vmatpush1.msra.mxu0 0.0
    %4903 = vmatprep.subr.mxu0 0.0
    %4904 = vmatpush1.msra.mxu0 0.0
    %4905 = vmatprep.subr.mxu0 0.0
    %4906 = vmatpush1.msra.mxu0 0.0
    %4907 = vmatprep.subr.mxu0 0.0
    %4908 = vmatpush1.msra.mxu0 0.0
    %4909 = vmatprep.subr.mxu0 0.0
    %4910 = vmatpush1.msra.mxu0 0.0
    %4911 = vmatprep.subr.mxu0 0.0
    %4912 = vmatpush1.msra.mxu0 0.0
    %4913 = vmatprep.subr.mxu0 0.0
    %4914 = vmatpush1.msra.mxu0 0.0
    %4915 = vmatprep.subr.mxu0 0.0
    %4916 = vmatpush1.msra.mxu0 0.0
    %4917 = vmatprep.subr.mxu0 0.0
    %4918 = vmatpush1.msra.mxu0 0.0
    %4919 = vmatprep.subr.mxu0 0.0
    %4920 = vmatpush1.msra.mxu0 0.0
    %4921 = vmatprep.subr.mxu0 0.0
    %4922 = vmatpush1.msra.mxu0 0.0
    %4923 = vmatprep.subr.mxu0 0.0
    %4924 = vmatpush1.msra.mxu0 0.0
    %4925 = vmatprep.subr.mxu0 0.0
    %4926 = vmatpush1.msra.mxu0 0.0
    %4927 = vmatprep.subr.mxu0 0.0
    %4928 = vmatpush1.msra.mxu0 0.0
    %4929 = vmatprep.subr.mxu0 0.0
    %4930 = vmatpush1.msra.mxu0 0.0
    %4931 = vmatprep.subr.mxu0 0.0
    %4932 = vmatpush1.msra.mxu0 %v4732
    %4933 = vmatprep.subr.mxu0 0.0
    %4934 = vmatpush2.msra.mxu0 0.0
    %4935 = vmatprep.subr.mxu0 0.0
    %4936 = vmatpush2.msra.mxu0 0.0
    %4937 = vmatprep.subr.mxu0 0.0
    %4938 = vmatpush2.msra.mxu0 0.0
    %4939 = vmatprep.subr.mxu0 0.0
    %4940 = vmatpush2.msra.mxu0 0.0
    %4941 = vmatprep.subr.mxu0 0.0
    %4942 = vmatpush2.msra.mxu0 0.0
    %4943 = vmatprep.subr.mxu0 0.0
    %4944 = vmatpush2.msra.mxu0 0.0
    %4945 = vmatprep.subr.mxu0 0.0
    %4946 = vmatpush2.msra.mxu0 0.0
    %4947 = vmatprep.subr.mxu0 0.0
    %4948 = vmatpush2.msra.mxu0 0.0
    %4949 = vmatprep.subr.mxu0 0.0
    %4950 = vmatpush2.msra.mxu0 0.0
    %4951 = vmatprep.subr.mxu0 0.0
    %4952 = vmatpush2.msra.mxu0 0.0
    %4953 = vmatprep.subr.mxu0 0.0
    %4954 = vmatpush2.msra.mxu0 0.0
    %4955 = vmatprep.subr.mxu0 0.0
    %4956 = vmatpush2.msra.mxu0 0.0
    %4957 = vmatprep.subr.mxu0 0.0
    %4958 = vmatpush2.msra.mxu0 0.0
    %4959 = vmatprep.subr.mxu0 0.0
    %4960 = vmatpush2.msra.mxu0 0.0
    %4961 = vmatprep.subr.mxu0 0.0
    %4962 = vmatpush2.msra.mxu0 0.0
    %4963 = vmatprep.subr.mxu0 0.0
    %4964 = vmatpush2.msra.mxu0 0.0
    %4965 = vmatprep.mubr.f32.mxu0 0.0
    %4966 = vmatmul.mubr.f32.gmra.mxu0 %v4899
    %v4967 = vpop.f32.mrf.mxu0
    %v4968 = vadd.f32 0.0, %v4967
    %v4969 = vpop.f32.mrf.mxu0
    %4970 = vdwg.mxu0
    %v4971 = vmul.f32 %v4822, %v4822
    %v4972 = vmul.f32 %v4895, %v4895
    %v4973 = vadd.f32 %v4971, %v4972
    %v4974 = vmul.f32 %v4968, %v4968
    %v4975 = vadd.f32 %v4973, %v4974
    %v4976 = vmax.f32 %v4975, 1e-08
    %v4977 = vrsqrt.pop %v4976
    %v4978 = vmul.f32 %v4976, %v4977
    %vm4979 = vcmp.eq.f32.partialorder %v4976, inf
    %v4980 = vsel %vm4979, %v4976, %v4978
    %vm4981 = vcmp.eq.f32.partialorder %v4976, 0.0
    %v4982 = vand.u32 %v4976, 2147483648
    %v4983 = vsel %vm4981, %v4982, %v4980
    %v4985 = vsel %vm217, %v4983, 0
    %4987 = vmatprep.subr.mxu0 0.0
    %4988 = vmatpush1.msra.mxu0 0.0
    %4989 = vmatprep.subr.mxu0 0.0
    %4990 = vmatpush1.msra.mxu0 0.0
    %4991 = vmatprep.subr.mxu0 0.0
    %4992 = vmatpush1.msra.mxu0 0.0
    %4993 = vmatprep.subr.mxu0 0.0
    %4994 = vmatpush1.msra.mxu0 0.0
    %4995 = vmatprep.subr.mxu0 0.0
    %4996 = vmatpush1.msra.mxu0 0.0
    %4997 = vmatprep.subr.mxu0 0.0
    %4998 = vmatpush1.msra.mxu0 0.0
    %4999 = vmatprep.subr.mxu0 0.0
    %5000 = vmatpush1.msra.mxu0 0.0
    %5001 = vmatprep.subr.mxu0 0.0
    %5002 = vmatpush1.msra.mxu0 0.0
    %5003 = vmatprep.subr.mxu0 0.0
    %5004 = vmatpush1.msra.mxu0 0.0
    %5005 = vmatprep.subr.mxu0 0.0
    %5006 = vmatpush1.msra.mxu0 0.0
    %5007 = vmatprep.subr.mxu0 0.0
    %5008 = vmatpush1.msra.mxu0 0.0
    %5009 = vmatprep.subr.mxu0 0.0
    %5010 = vmatpush1.msra.mxu0 0.0
    %5011 = vmatprep.subr.mxu0 0.0
    %5012 = vmatpush1.msra.mxu0 0.0
    %5013 = vmatprep.subr.mxu0 0.0
    %5014 = vmatpush1.msra.mxu0 0.0
    %5015 = vmatprep.subr.mxu0 0.0
    %5016 = vmatpush1.msra.mxu0 0.0
    %5017 = vmatprep.subr.mxu0 0.0
    %5018 = vmatpush1.msra.mxu0 %v4749
    %5019 = vmatprep.subr.mxu0 0.0
    %5020 = vmatpush2.msra.mxu0 0.0
    %5021 = vmatprep.subr.mxu0 0.0
    %5022 = vmatpush2.msra.mxu0 0.0
    %5023 = vmatprep.subr.mxu0 0.0
    %5024 = vmatpush2.msra.mxu0 0.0
    %5025 = vmatprep.subr.mxu0 0.0
    %5026 = vmatpush2.msra.mxu0 0.0
    %5027 = vmatprep.subr.mxu0 0.0
    %5028 = vmatpush2.msra.mxu0 0.0
    %5029 = vmatprep.subr.mxu0 0.0
    %5030 = vmatpush2.msra.mxu0 0.0
    %5031 = vmatprep.subr.mxu0 0.0
    %5032 = vmatpush2.msra.mxu0 0.0
    %5033 = vmatprep.subr.mxu0 0.0
    %5034 = vmatpush2.msra.mxu0 0.0
    %5035 = vmatprep.subr.mxu0 0.0
    %5036 = vmatpush2.msra.mxu0 0.0
    %5037 = vmatprep.subr.mxu0 0.0
    %5038 = vmatpush2.msra.mxu0 0.0
    %5039 = vmatprep.subr.mxu0 0.0
    %5040 = vmatpush2.msra.mxu0 0.0
    %5041 = vmatprep.subr.mxu0 0.0
    %5042 = vmatpush2.msra.mxu0 0.0
    %5043 = vmatprep.subr.mxu0 0.0
    %5044 = vmatpush2.msra.mxu0 0.0
    %5045 = vmatprep.subr.mxu0 0.0
    %5046 = vmatpush2.msra.mxu0 0.0
    %5047 = vmatprep.subr.mxu0 0.0
    %5048 = vmatpush2.msra.mxu0 0.0
    %5049 = vmatprep.subr.mxu0 0.0
    %5050 = vmatpush2.msra.mxu0 0.0
    %5051 = vmatprep.mubr.f32.mxu0 0.0
    %5052 = vmatmul.mubr.f32.gmra.mxu0 %v4985
    %v5053 = vpop.f32.mrf.mxu0
    %v5054 = vadd.f32 0.0, %v5053
    %v5055 = vpop.f32.mrf.mxu0
    %5056 = vdwg.mxu0
    %5057 = vmatprep.subr.mxu0 0.0
    %5058 = vmatpush1.msra.mxu0 %v4748
    %5059 = vmatprep.subr.mxu0 0.0
    %5060 = vmatpush1.msra.mxu0 %v4747
    %5061 = vmatprep.subr.mxu0 0.0
    %5062 = vmatpush1.msra.mxu0 %v4746
    %5063 = vmatprep.subr.mxu0 0.0
    %5064 = vmatpush1.msra.mxu0 %v4745
    %5065 = vmatprep.subr.mxu0 0.0
    %5066 = vmatpush1.msra.mxu0 %v4744
    %5067 = vmatprep.subr.mxu0 0.0
    %5068 = vmatpush1.msra.mxu0 %v4743
    %5069 = vmatprep.subr.mxu0 0.0
    %5070 = vmatpush1.msra.mxu0 %v4742
    %5071 = vmatprep.subr.mxu0 0.0
    %5072 = vmatpush1.msra.mxu0 %v4741
    %5073 = vmatprep.subr.mxu0 0.0
    %5074 = vmatpush1.msra.mxu0 %v4740
    %5075 = vmatprep.subr.mxu0 0.0
    %5076 = vmatpush1.msra.mxu0 %v4739
    %5077 = vmatprep.subr.mxu0 0.0
    %5078 = vmatpush1.msra.mxu0 %v4738
    %5079 = vmatprep.subr.mxu0 0.0
    %5080 = vmatpush1.msra.mxu0 %v4737
    %5081 = vmatprep.subr.mxu0 0.0
    %5082 = vmatpush1.msra.mxu0 %v4736
    %5083 = vmatprep.subr.mxu0 0.0
    %5084 = vmatpush1.msra.mxu0 %v4735
    %5085 = vmatprep.subr.mxu0 0.0
    %5086 = vmatpush1.msra.mxu0 %v4734
    %5087 = vmatprep.subr.mxu0 0.0
    %5088 = vmatpush1.msra.mxu0 %v4733
    %5089 = vmatprep.subr.mxu0 0.0
    %5090 = vmatpush2.msra.mxu0 0.0
    %5091 = vmatprep.subr.mxu0 0.0
    %5092 = vmatpush2.msra.mxu0 0.0
    %5093 = vmatprep.subr.mxu0 0.0
    %5094 = vmatpush2.msra.mxu0 0.0
    %5095 = vmatprep.subr.mxu0 0.0
    %5096 = vmatpush2.msra.mxu0 0.0
    %5097 = vmatprep.subr.mxu0 0.0
    %5098 = vmatpush2.msra.mxu0 0.0
    %5099 = vmatprep.subr.mxu0 0.0
    %5100 = vmatpush2.msra.mxu0 0.0
    %5101 = vmatprep.subr.mxu0 0.0
    %5102 = vmatpush2.msra.mxu0 0.0
    %5103 = vmatprep.subr.mxu0 0.0
    %5104 = vmatpush2.msra.mxu0 0.0
    %5105 = vmatprep.subr.mxu0 0.0
    %5106 = vmatpush2.msra.mxu0 0.0
    %5107 = vmatprep.subr.mxu0 0.0
    %5108 = vmatpush2.msra.mxu0 0.0
    %5109 = vmatprep.subr.mxu0 0.0
    %5110 = vmatpush2.msra.mxu0 0.0
    %5111 = vmatprep.subr.mxu0 0.0
    %5112 = vmatpush2.msra.mxu0 0.0
    %5113 = vmatprep.subr.mxu0 0.0
    %5114 = vmatpush2.msra.mxu0 0.0
    %5115 = vmatprep.subr.mxu0 0.0
    %5116 = vmatpush2.msra.mxu0 0.0
    %5117 = vmatprep.subr.mxu0 0.0
    %5118 = vmatpush2.msra.mxu0 0.0
    %5119 = vmatprep.subr.mxu0 0.0
    %5120 = vmatpush2.msra.mxu0 0.0
    %5121 = vmatprep.mubr.f32.mxu0 0.0
    %5122 = vmatmul.mubr.f32.gmra.mxu0 %v4731
    %v5123 = vpop.f32.mrf.mxu0
    %v5124 = vadd.f32 %v5054, %v5123
    %v5125 = vpop.f32.mrf.mxu0
    %5126 = vdwg.mxu0
    %v5128 = vlaneseq
    %v5129 = vshrl.u32 %v5128, 7
    %v5130 = vsub.s32 0, %v5129
    %v5131 = vrot.slane %v4750, %v5130
    %v5133 = vadd.f32 %v5124, %v5131
    %v5135 = vsel %vm217, %v4822, 0
    %5137 = vmatprep.subr.mxu0 0.0
    %5138 = vmatpush1.msra.mxu0 0.0
    %5139 = vmatprep.subr.mxu0 0.0
    %5140 = vmatpush1.msra.mxu0 0.0
    %5141 = vmatprep.subr.mxu0 0.0
    %5142 = vmatpush1.msra.mxu0 0.0
    %5143 = vmatprep.subr.mxu0 0.0
    %5144 = vmatpush1.msra.mxu0 0.0
    %5145 = vmatprep.subr.mxu0 0.0
    %5146 = vmatpush1.msra.mxu0 0.0
    %5147 = vmatprep.subr.mxu0 0.0
    %5148 = vmatpush1.msra.mxu0 0.0
    %5149 = vmatprep.subr.mxu0 0.0
    %5150 = vmatpush1.msra.mxu0 0.0
    %5151 = vmatprep.subr.mxu0 0.0
    %5152 = vmatpush1.msra.mxu0 0.0
    %5153 = vmatprep.subr.mxu0 0.0
    %5154 = vmatpush1.msra.mxu0 0.0
    %5155 = vmatprep.subr.mxu0 0.0
    %5156 = vmatpush1.msra.mxu0 0.0
    %5157 = vmatprep.subr.mxu0 0.0
    %5158 = vmatpush1.msra.mxu0 0.0
    %5159 = vmatprep.subr.mxu0 0.0
    %5160 = vmatpush1.msra.mxu0 0.0
    %5161 = vmatprep.subr.mxu0 0.0
    %5162 = vmatpush1.msra.mxu0 0.0
    %5163 = vmatprep.subr.mxu0 0.0
    %5164 = vmatpush1.msra.mxu0 0.0
    %5165 = vmatprep.subr.mxu0 0.0
    %5166 = vmatpush1.msra.mxu0 0.0
    %5167 = vmatprep.subr.mxu0 0.0
    %5168 = vmatpush1.msra.mxu0 %v4751
    %5169 = vmatprep.subr.mxu0 0.0
    %5170 = vmatpush2.msra.mxu0 0.0
    %5171 = vmatprep.subr.mxu0 0.0
    %5172 = vmatpush2.msra.mxu0 0.0
    %5173 = vmatprep.subr.mxu0 0.0
    %5174 = vmatpush2.msra.mxu0 0.0
    %5175 = vmatprep.subr.mxu0 0.0
    %5176 = vmatpush2.msra.mxu0 0.0
    %5177 = vmatprep.subr.mxu0 0.0
    %5178 = vmatpush2.msra.mxu0 0.0
    %5179 = vmatprep.subr.mxu0 0.0
    %5180 = vmatpush2.msra.mxu0 0.0
    %5181 = vmatprep.subr.mxu0 0.0
    %5182 = vmatpush2.msra.mxu0 0.0
    %5183 = vmatprep.subr.mxu0 0.0
    %5184 = vmatpush2.msra.mxu0 0.0
    %5185 = vmatprep.subr.mxu0 0.0
    %5186 = vmatpush2.msra.mxu0 0.0
    %5187 = vmatprep.subr.mxu0 0.0
    %5188 = vmatpush2.msra.mxu0 0.0
    %5189 = vmatprep.subr.mxu0 0.0
    %5190 = vmatpush2.msra.mxu0 0.0
    %5191 = vmatprep.subr.mxu0 0.0
    %5192 = vmatpush2.msra.mxu0 0.0
    %5193 = vmatprep.subr.mxu0 0.0
    %5194 = vmatpush2.msra.mxu0 0.0
    %5195 = vmatprep.subr.mxu0 0.0
    %5196 = vmatpush2.msra.mxu0 0.0
    %5197 = vmatprep.subr.mxu0 0.0
    %5198 = vmatpush2.msra.mxu0 0.0
    %5199 = vmatprep.subr.mxu0 0.0
    %5200 = vmatpush2.msra.mxu0 0.0
    %5201 = vmatprep.mubr.f32.mxu0 0.0
    %5202 = vmatmul.mubr.f32.gmra.mxu0 %v5135
    %v5203 = vpop.f32.mrf.mxu0
    %v5204 = vadd.f32 0.0, %v5203
    %v5205 = vpop.f32.mrf.mxu0
    %5206 = vdwg.mxu0
    %v5208 = vsel %vm217, %v4895, 0
    %5210 = vmatprep.subr.mxu0 0.0
    %5211 = vmatpush1.msra.mxu0 0.0
    %5212 = vmatprep.subr.mxu0 0.0
    %5213 = vmatpush1.msra.mxu0 0.0
    %5214 = vmatprep.subr.mxu0 0.0
    %5215 = vmatpush1.msra.mxu0 0.0
    %5216 = vmatprep.subr.mxu0 0.0
    %5217 = vmatpush1.msra.mxu0 0.0
    %5218 = vmatprep.subr.mxu0 0.0
    %5219 = vmatpush1.msra.mxu0 0.0
    %5220 = vmatprep.subr.mxu0 0.0
    %5221 = vmatpush1.msra.mxu0 0.0
    %5222 = vmatprep.subr.mxu0 0.0
    %5223 = vmatpush1.msra.mxu0 0.0
    %5224 = vmatprep.subr.mxu0 0.0
    %5225 = vmatpush1.msra.mxu0 0.0
    %5226 = vmatprep.subr.mxu0 0.0
    %5227 = vmatpush1.msra.mxu0 0.0
    %5228 = vmatprep.subr.mxu0 0.0
    %5229 = vmatpush1.msra.mxu0 0.0
    %5230 = vmatprep.subr.mxu0 0.0
    %5231 = vmatpush1.msra.mxu0 0.0
    %5232 = vmatprep.subr.mxu0 0.0
    %5233 = vmatpush1.msra.mxu0 0.0
    %5234 = vmatprep.subr.mxu0 0.0
    %5235 = vmatpush1.msra.mxu0 0.0
    %5236 = vmatprep.subr.mxu0 0.0
    %5237 = vmatpush1.msra.mxu0 0.0
    %5238 = vmatprep.subr.mxu0 0.0
    %5239 = vmatpush1.msra.mxu0 0.0
    %5240 = vmatprep.subr.mxu0 0.0
    %5241 = vmatpush1.msra.mxu0 %v4751
    %5242 = vmatprep.subr.mxu0 0.0
    %5243 = vmatpush2.msra.mxu0 0.0
    %5244 = vmatprep.subr.mxu0 0.0
    %5245 = vmatpush2.msra.mxu0 0.0
    %5246 = vmatprep.subr.mxu0 0.0
    %5247 = vmatpush2.msra.mxu0 0.0
    %5248 = vmatprep.subr.mxu0 0.0
    %5249 = vmatpush2.msra.mxu0 0.0
    %5250 = vmatprep.subr.mxu0 0.0
    %5251 = vmatpush2.msra.mxu0 0.0
    %5252 = vmatprep.subr.mxu0 0.0
    %5253 = vmatpush2.msra.mxu0 0.0
    %5254 = vmatprep.subr.mxu0 0.0
    %5255 = vmatpush2.msra.mxu0 0.0
    %5256 = vmatprep.subr.mxu0 0.0
    %5257 = vmatpush2.msra.mxu0 0.0
    %5258 = vmatprep.subr.mxu0 0.0
    %5259 = vmatpush2.msra.mxu0 0.0
    %5260 = vmatprep.subr.mxu0 0.0
    %5261 = vmatpush2.msra.mxu0 0.0
    %5262 = vmatprep.subr.mxu0 0.0
    %5263 = vmatpush2.msra.mxu0 0.0
    %5264 = vmatprep.subr.mxu0 0.0
    %5265 = vmatpush2.msra.mxu0 0.0
    %5266 = vmatprep.subr.mxu0 0.0
    %5267 = vmatpush2.msra.mxu0 0.0
    %5268 = vmatprep.subr.mxu0 0.0
    %5269 = vmatpush2.msra.mxu0 0.0
    %5270 = vmatprep.subr.mxu0 0.0
    %5271 = vmatpush2.msra.mxu0 0.0
    %5272 = vmatprep.subr.mxu0 0.0
    %5273 = vmatpush2.msra.mxu0 0.0
    %5274 = vmatprep.mubr.f32.mxu0 0.0
    %5275 = vmatmul.mubr.f32.gmra.mxu0 %v5208
    %v5276 = vpop.f32.mrf.mxu0
    %v5277 = vadd.f32 0.0, %v5276
    %v5278 = vpop.f32.mrf.mxu0
    %5279 = vdwg.mxu0
    %v5281 = vsel %vm217, %v4968, 0
    %5283 = vmatprep.subr.mxu0 0.0
    %5284 = vmatpush1.msra.mxu0 0.0
    %5285 = vmatprep.subr.mxu0 0.0
    %5286 = vmatpush1.msra.mxu0 0.0
    %5287 = vmatprep.subr.mxu0 0.0
    %5288 = vmatpush1.msra.mxu0 0.0
    %5289 = vmatprep.subr.mxu0 0.0
    %5290 = vmatpush1.msra.mxu0 0.0
    %5291 = vmatprep.subr.mxu0 0.0
    %5292 = vmatpush1.msra.mxu0 0.0
    %5293 = vmatprep.subr.mxu0 0.0
    %5294 = vmatpush1.msra.mxu0 0.0
    %5295 = vmatprep.subr.mxu0 0.0
    %5296 = vmatpush1.msra.mxu0 0.0
    %5297 = vmatprep.subr.mxu0 0.0
    %5298 = vmatpush1.msra.mxu0 0.0
    %5299 = vmatprep.subr.mxu0 0.0
    %5300 = vmatpush1.msra.mxu0 0.0
    %5301 = vmatprep.subr.mxu0 0.0
    %5302 = vmatpush1.msra.mxu0 0.0
    %5303 = vmatprep.subr.mxu0 0.0
    %5304 = vmatpush1.msra.mxu0 0.0
    %5305 = vmatprep.subr.mxu0 0.0
    %5306 = vmatpush1.msra.mxu0 0.0
    %5307 = vmatprep.subr.mxu0 0.0
    %5308 = vmatpush1.msra.mxu0 0.0
    %5309 = vmatprep.subr.mxu0 0.0
    %5310 = vmatpush1.msra.mxu0 0.0
    %5311 = vmatprep.subr.mxu0 0.0
    %5312 = vmatpush1.msra.mxu0 0.0
    %5313 = vmatprep.subr.mxu0 0.0
    %5314 = vmatpush1.msra.mxu0 %v4751
    %5315 = vmatprep.subr.mxu0 0.0
    %5316 = vmatpush2.msra.mxu0 0.0
    %5317 = vmatprep.subr.mxu0 0.0
    %5318 = vmatpush2.msra.mxu0 0.0
    %5319 = vmatprep.subr.mxu0 0.0
    %5320 = vmatpush2.msra.mxu0 0.0
    %5321 = vmatprep.subr.mxu0 0.0
    %5322 = vmatpush2.msra.mxu0 0.0
    %5323 = vmatprep.subr.mxu0 0.0
    %5324 = vmatpush2.msra.mxu0 0.0
    %5325 = vmatprep.subr.mxu0 0.0
    %5326 = vmatpush2.msra.mxu0 0.0
    %5327 = vmatprep.subr.mxu0 0.0
    %5328 = vmatpush2.msra.mxu0 0.0
    %5329 = vmatprep.subr.mxu0 0.0
    %5330 = vmatpush2.msra.mxu0 0.0
    %5331 = vmatprep.subr.mxu0 0.0
    %5332 = vmatpush2.msra.mxu0 0.0
    %5333 = vmatprep.subr.mxu0 0.0
    %5334 = vmatpush2.msra.mxu0 0.0
    %5335 = vmatprep.subr.mxu0 0.0
    %5336 = vmatpush2.msra.mxu0 0.0
    %5337 = vmatprep.subr.mxu0 0.0
    %5338 = vmatpush2.msra.mxu0 0.0
    %5339 = vmatprep.subr.mxu0 0.0
    %5340 = vmatpush2.msra.mxu0 0.0
    %5341 = vmatprep.subr.mxu0 0.0
    %5342 = vmatpush2.msra.mxu0 0.0
    %5343 = vmatprep.subr.mxu0 0.0
    %5344 = vmatpush2.msra.mxu0 0.0
    %5345 = vmatprep.subr.mxu0 0.0
    %5346 = vmatpush2.msra.mxu0 0.0
    %5347 = vmatprep.mubr.f32.mxu0 0.0
    %5348 = vmatmul.mubr.f32.gmra.mxu0 %v5281
    %v5349 = vpop.f32.mrf.mxu0
    %v5350 = vadd.f32 0.0, %v5349
    %v5351 = vpop.f32.mrf.mxu0
    %5352 = vdwg.mxu0
    %v5353 = vadd.f32 %v4078, %v5133
    %v5354 = vld [vmem:[%s77] sm:$0x1]
    %v5355 = vld [vmem:[%s79] sm:$0x1]
    %v5356 = vsel %vm1599, %v5353, 0.0
    %5357 = vadd.xlane.f32.xlu0 %v5356
    %v5358 = vpop.xlane.xlu0 %5357
    %v5359 = vmul.f32 %v5358, %v4054
    %v5360 = vsub.f32 %v5353, %v5359
    %v5361 = vmul.f32 %v5360, %v5360
    %v5362 = vsel %vm1599, %v5361, 0.0
    %5363 = vadd.xlane.f32.xlu0 %v5362
    %v5364 = vpop.xlane.xlu0 %5363
    %v5365 = vmul.f32 %v5364, %v4054
    %v5366 = vadd.f32 %v5365, 1e-05
    %v5367 = vrsqrt.pop %v5366
    %v5368 = vmul.f32 %v5360, %v5367
    %v5370 = vlaneseq
    %v5371 = vshrl.u32 %v5370, 7
    %v5372 = vsub.s32 0, %v5371
    %v5373 = vrot.slane %v5354, %v5372
    %v5375 = vmul.f32 %v5368, %v5373
    %v5377 = vlaneseq
    %v5378 = vshrl.u32 %v5377, 7
    %v5379 = vsub.s32 0, %v5378
    %v5380 = vrot.slane %v5355, %v5379
    %v5382 = vadd.f32 %v5375, %v5380
    %v5383 = vadd.f32 %v4091, %v5204
    %v5384 = vadd.f32 %v4092, %v5277
    %v5385 = vadd.f32 %v4093, %v5350
    %v5386 = vmul.f32 %v5383, %v5383
    %v5387 = vmul.f32 %v5384, %v5384
    %v5388 = vadd.f32 %v5386, %v5387
    %v5389 = vmul.f32 %v5385, %v5385
    %v5390 = vadd.f32 %v5388, %v5389
    %v5391 = vmax.f32 %v5390, 1e-08
    %v5392 = vsel %vm921, %v5391, 0.0
    %5393 = vadd.xlane.f32.xlu0 %v5392
    %v5394 = vpop.xlane.xlu0 %5393
    %v5395 = vmul.f32 %v5394, %v4088
    %v5396 = vrsqrt.pop %v5395
    %v5397 = vmul.f32 %v5383, %v5396
    %v5398 = vmul.f32 %v5384, %v5396
    %v5399 = vmul.f32 %v5385, %v5396
    %5400 = vst.msk [vmem:[%s81] sm:$0xff] %vm1599, %v5382
    %5401 = vst.msk [vmem:[%s83] sm:$0xff] %vm921, %v5397
    %s5402 = scalar_lea.vmem %s83, 8
    %5403 = vst.msk [vmem:[%s5402] sm:$0xff] %vm921, %v5398
    %s5404 = scalar_lea.vmem %s83, 16
    %5405 = vst.msk [vmem:[%s5404] sm:$0xff] %vm921, %v5399
  $region169: #{gvp_embedding_forward.8} parent=0 // pred_fallthru
    _
  // Predicated region
  $region170: #{gvp_embedding_forward.8} parent=0 // pred_check
    _
  $region171: #{gvp_embedding_forward.8} parent=0 // pred_check_branch
    %5407 = sbr.rel (0) target = $region173
  $region172: #{gvp_embedding_forward.8} parent=0 // pred_region
    _
  $region173: #{gvp_embedding_forward.8} parent=0 // pred_fallthru
    _
  // Predicated region
  $region174: #{gvp_embedding_forward.8} parent=0 // pred_check
    _
  $region175: #{gvp_embedding_forward.8} parent=0 // pred_check_branch
    %5409 = sbr.rel (0) target = $region177
  $region176: #{gvp_embedding_forward.8} parent=0 // pred_region
    _
  $region177: #{gvp_embedding_forward.8} parent=0 // pred_fallthru
    _
  // Predicated region
  $region178: #{gvp_embedding_forward.8} parent=0 // pred_check
    _
  $region179: #{gvp_embedding_forward.8} parent=0 // pred_check_branch
    %5411 = sbr.rel (0) target = $region181
  $region180: #{gvp_embedding_forward.8} parent=0 // pred_region
    _
  $region181: #{gvp_embedding_forward.8} parent=0 // pred_fallthru
    _
  // Predicated region
  $region182: #{gvp_embedding_forward.8} parent=0 // pred_check
    _
  $region183: #{gvp_embedding_forward.8} parent=0 // pred_check_branch
    %5413 = sbr.rel (0) target = $region185
  $region184: #{gvp_embedding_forward.8} parent=0 // pred_region
    _
  $region185: #{gvp_embedding_forward.8} parent=0 // pred_fallthru
    _

</llo_original>
